<compile_context>
chip_gen: v5e
topology: v5e:2x2
jax: 0.10.0
libtpu: 0.0.40
codegen_flags: <defaults>
</compile_context>

<pallas_src>
import functools

import jax
import jax.numpy as jnp
from jax.experimental import pallas as pl
from jax.experimental.pallas import tpu as pltpu

LANE = 128      # channel padding multiple (vreg lane width)
LEFT = 8        # left spatial halo inside the VMEM scratch (sublane aligned)


def _round_up(x, m):
    return ((x + m - 1) // m) * m


_VMEM_LIMIT_CACHE = [None]


def _vmem_limit():
    if _VMEM_LIMIT_CACHE[0] is None:
        try:
            phys = pltpu.get_tpu_info().vmem_capacity_bytes
            _VMEM_LIMIT_CACHE[0] = int(min(phys * 3 // 4, 100 * 1024 * 1024))
        except Exception:
            _VMEM_LIMIT_CACHE[0] = 48 * 1024 * 1024   # safe on v5e/v6e/v7x
    return _VMEM_LIMIT_CACHE[0]


def _pick_tile(total, prefs):
    for p in prefs:
        if p <= total and total % p == 0:
            return p
    return total


# ----------------------------------------------------------------------------
# Pallas kernels
# ----------------------------------------------------------------------------
def _conv3x3_kernel(x_ref, w_ref, *rest, apply_bn_relu):
    """Fused [optional BN+ReLU of the input] + 3x3 conv (pad=1) + BN stats.

    x_ref:       (1, H, W, Cp)      bf16  resident sample (no spatial padding)
    w_ref:       (3, 3*Cp, Op)      bf16  packed weights: [dy, dx*Cp + c, o]
    scale/shift: (1, Cp)            f32   (only when apply_bn_relu)
    y_ref:       (1, tile_h, W, Op) bf16  conv output tile (pre-BN)
    sum_ref:     (1, 1, 1, Op)      f32   per-tile per-channel sum
    sq_ref:      (1, 1, 1, Op)      f32   per-tile per-channel sum of squares
    xpad_ref:    (H+2, Wp, Cp)      bf16  VMEM scratch: padded (+BN+ReLU) sample
    acc_ref:     (tile_h*W, Op)     f32   VMEM accumulator
    """
    if apply_bn_relu:
        scale_ref, shift_ref, y_ref, sum_ref, sq_ref, xpad_ref, acc_ref = rest
    else:
        y_ref, sum_ref, sq_ref, xpad_ref, acc_ref = rest
        scale_ref = shift_ref = None

    h = x_ref.shape[1]
    w_out = x_ref.shape[2]
    cp = x_ref.shape[3]
    tile_h = y_ref.shape[1]
    op = y_ref.shape[3]

    hi = pl.program_id(1)

    # Build the spatially padded (and, for layer 2, BN+ReLU-applied) sample
    # once per batch element; every H tile reuses it straight from VMEM.
    @pl.when(hi == 0)
    def _():
        xpad_ref[...] = jnp.zeros(xpad_ref.shape, xpad_ref.dtype)
        xin = x_ref[0]                                        # (H, W, Cp) bf16
        if apply_bn_relu:
            v = xin.astype(jnp.float32) * scale_ref[...] + shift_ref[...]
            xin = jnp.maximum(v, 0.0).astype(xpad_ref.dtype)
        # Interior at rows [1, H+1), columns [LEFT, LEFT+W): sublane-aligned.
        xpad_ref[pl.ds(1, h), pl.ds(LEFT, w_out), :] = xin

    h0 = pl.multiple_of(hi * tile_h, tile_h)

    # 3 MXU matmuls with K = 3*Cp: dx is folded into the contraction.
    for dy in range(3):
        xs = jnp.concatenate(
            [xpad_ref[pl.ds(h0 + dy, tile_h), pl.ds(LEFT - 1 + dx, w_out), :]
             for dx in range(3)],
            axis=-1)                                          # (tile_h, W, 3*Cp)
        xs = xs.reshape(tile_h * w_out, 3 * cp)
        part = jnp.dot(xs, w_ref[dy], preferred_element_type=jnp.float32)
        if dy == 0:
            acc_ref[...] = part
        else:
            acc_ref[...] += part

    acc = acc_ref[...]
    y_ref[0] = acc.reshape(tile_h, w_out, op).astype(y_ref.dtype)
    # BN statistics from the f32 accumulator (before the bf16 cast).
    sum_ref[0, 0] = jnp.sum(acc, axis=0, keepdims=True)
    sq_ref[0, 0] = jnp.sum(acc * acc, axis=0, keepdims=True)


def _bn_relu_kernel(y_ref, scale_ref, shift_ref, o_ref):
    # y_ref: (tile_m, Op) bf16; scale/shift: (1, Op) f32; o_ref: (tile_m, Op)
    y = y_ref[...].astype(jnp.float32) * scale_ref[...] + shift_ref[...]
    o_ref[...] = jnp.maximum(y, 0.0).astype(o_ref.dtype)


# ----------------------------------------------------------------------------
# Pallas wrappers
# ----------------------------------------------------------------------------
def conv3x3_bn_pallas(x_nhwc, w_packed, scale=None, shift=None):
    """x_nhwc: (N, H, W, Cp) bf16 (no spatial pad); w_packed: (3, 3*Cp, Op) bf16.
    If scale/shift (1, Cp) f32 are given, apply scale*x+shift then ReLU to the
    input inside the kernel (fused previous-layer BN+ReLU).
    Returns: y (N, H, W, Op) bf16, sums (N, n_h, 1, Op) f32, sqs (same)."""
    n, h, w_sp, cp = x_nhwc.shape
    op = w_packed.shape[-1]
    apply_bn_relu = scale is not None

    tile_h = _pick_tile(h, (32, 16, 8, 4, 2, 1))
    n_h = h // tile_h
    wp2 = LEFT + _round_up(w_sp + 1, 8)

    kernel = functools.partial(_conv3x3_kernel, apply_bn_relu=apply_bn_relu)

    in_specs = [
        pl.BlockSpec((1, h, w_sp, cp), lambda ni, hi: (ni, 0, 0, 0)),
        pl.BlockSpec((3, 3 * cp, op), lambda ni, hi: (0, 0, 0)),
    ]
    args = [x_nhwc, w_packed]
    if apply_bn_relu:
        in_specs += [pl.BlockSpec((1, cp), lambda ni, hi: (0, 0)),
                     pl.BlockSpec((1, cp), lambda ni, hi: (0, 0))]
        args += [scale, shift]

    return pl.pallas_call(
        kernel,
        out_shape=(
            jax.ShapeDtypeStruct((n, h, w_sp, op), jnp.bfloat16),
            jax.ShapeDtypeStruct((n, n_h, 1, op), jnp.float32),
            jax.ShapeDtypeStruct((n, n_h, 1, op), jnp.float32),
        ),
        grid=(n, n_h),
        in_specs=in_specs,
        out_specs=(
            pl.BlockSpec((1, tile_h, w_sp, op), lambda ni, hi: (ni, hi, 0, 0)),
            pl.BlockSpec((1, 1, 1, op), lambda ni, hi: (ni, hi, 0, 0)),
            pl.BlockSpec((1, 1, 1, op), lambda ni, hi: (ni, hi, 0, 0)),
        ),
        scratch_shapes=[
            pltpu.VMEM((h + 2, wp2, cp), jnp.bfloat16),
            pltpu.VMEM((tile_h * w_sp, op), jnp.float32),
        ],
        compiler_params=pltpu.CompilerParams(
            dimension_semantics=("parallel", "arbitrary"),
            vmem_limit_bytes=_vmem_limit()),
    )(*args)


def bn_relu_pallas(y2d, scale, shift, out_dtype):
    """y2d: (M, Op) bf16; scale/shift: (1, Op) f32 -> (M, Op) out_dtype."""
    m, op = y2d.shape
    tile_m = _pick_tile(m, (2048, 1024, 512, 256, 128, 64, 32, 16, 8, 4, 2, 1))
    return pl.pallas_call(
        _bn_relu_kernel,
        out_shape=jax.ShapeDtypeStruct((m, op), out_dtype),
        grid=(m // tile_m,),
        in_specs=[
            pl.BlockSpec((tile_m, op), lambda i: (i, 0)),
            pl.BlockSpec((1, op), lambda i: (0, 0)),
            pl.BlockSpec((1, op), lambda i: (0, 0)),
        ],
        out_specs=pl.BlockSpec((tile_m, op), lambda i: (i, 0)),
        compiler_params=pltpu.CompilerParams(
            dimension_semantics=("parallel",),
            vmem_limit_bytes=_vmem_limit()),
    )(y2d, scale, shift)


# ----------------------------------------------------------------------------
# Host-side glue: layout / padding / parameter packing / BN finalize
# ----------------------------------------------------------------------------
def _pad_vec(v, n):
    return jnp.zeros((n,), jnp.float32).at[: v.shape[0]].set(v.astype(jnp.float32))


def _prep_conv_weight(w, cin_pad, cout_pad):
    # torch (OC, IC, 3, 3) -> packed (3, 3*cin_pad, cout_pad) bf16 with
    # w_packed[dy, dx*cin_pad + c, o] = w[o, c, dy, dx]  (zero padded).
    oc, ic = w.shape[0], w.shape[1]
    wt = jnp.transpose(w, (2, 3, 1, 0))                       # (3, 3, IC, OC)
    wp = jnp.zeros((3, 3, cin_pad, cout_pad), jnp.float32)
    wp = wp.at[:, :, :ic, :oc].set(wt)
    return wp.reshape(3, 3 * cin_pad, cout_pad).astype(jnp.bfloat16)


def _to_nhwc_bf16(x_nchw, cpad):
    n, c, h, w = x_nchw.shape
    x = jnp.transpose(x_nchw, (0, 2, 3, 1))
    x = jnp.pad(x, ((0, 0), (0, 0), (0, 0), (0, cpad - c)))
    return x.astype(jnp.bfloat16)


def _bn_scale_shift(sums, sqs, gamma_p, beta_p, count):
    # Training-mode BatchNorm: biased batch variance, eps = 1e-5 (PyTorch).
    s = jnp.sum(sums, axis=(0, 1, 2))
    q = jnp.sum(sqs, axis=(0, 1, 2))
    mean = s / count
    var = jnp.maximum(q / count - mean * mean, 0.0)
    scale = gamma_p * jax.lax.rsqrt(var + 1e-5)
    shift = beta_p - mean * scale
    c = scale.shape[0]
    return scale.reshape(1, c), shift.reshape(1, c)


# ----------------------------------------------------------------------------
# Double_Convolution forward (Pallas path)
# ----------------------------------------------------------------------------
@jax.jit
def double_convolution_forward(x, params):
    n, ic, h, w = x.shape
    oc = params["w1"].shape[0]
    c1p = _round_up(ic, LANE)
    c2p = _round_up(oc, LANE)
    count = n * h * w

    # Conv biases are intentionally NOT used: training-mode BN subtracts the
    # batch mean right after the conv, so the bias cancels exactly.
    w1 = _prep_conv_weight(params["w1"], c1p, c2p)
    w2 = _prep_conv_weight(params["w2"], c2p, c2p)
    g1, be1 = _pad_vec(params["g1"], c2p), _pad_vec(params["beta1"], c2p)
    g2, be2 = _pad_vec(params["g2"], c2p), _pad_vec(params["beta2"], c2p)

    # Layout plumbing: NCHW -> NHWC, channel pad to lane width, bf16.
    xin = _to_nhwc_bf16(x, c1p)                               # (N, H, W, C1p)

    # --- conv1 (+ per-tile BN stats), finalize BN1 scale/shift in plain JAX ---
    y1, s1, q1 = conv3x3_bn_pallas(xin, w1)                   # y1 bf16 pre-BN
    sc1, sh1 = _bn_scale_shift(s1, q1, g1, be1, count)

    # --- conv2 with layer-1 BN+ReLU fused into the input load (no padded HBM
    #     intermediate, no separate bn_relu pass for layer 1) ---
    y2, s2, q2 = conv3x3_bn_pallas(y1, w2, sc1, sh1)
    sc2, sh2 = _bn_scale_shift(s2, q2, g2, be2, count)

    # --- final BN+ReLU apply, lane-dense elementwise kernel ---
    h2 = bn_relu_pallas(y2.reshape(count, c2p), sc2, sh2, jnp.float32)
    h2 = h2.reshape(n, h, w, c2p)

    # back to NCHW, drop channel padding
    return jnp.transpose(h2[..., :oc], (0, 3, 1, 2))


# ----------------------------------------------------------------------------
# Pure-JAX reference (f32, no Pallas) for correctness check
# ----------------------------------------------------------------------------
def _conv2d_ref(x, w, b):
    y = jax.lax.conv_general_dilated(x, w, (1, 1), ((1, 1), (1, 1)),
                                     dimension_numbers=("NCHW", "OIHW", "NCHW"))
    return y + b.reshape(1, -1, 1, 1)


def _bn_relu_ref(x, g, beta):
    mean = x.mean(axis=(0, 2, 3), keepdims=True)
    var = ((x - mean) ** 2).mean(axis=(0, 2, 3), keepdims=True)
    y = (x - mean) * jax.lax.rsqrt(var + 1e-5)
    y = y * g.reshape(1, -1, 1, 1) + beta.reshape(1, -1, 1, 1)
    return jnp.maximum(y, 0.0)


def double_convolution_ref(x, params):
    x = _bn_relu_ref(_conv2d_ref(x, params["w1"], params["b1"]),
                     params["g1"], params["beta1"])
    x = _bn_relu_ref(_conv2d_ref(x, params["w2"], params["b2"]),
                     params["g2"], params["beta2"])
    return x


# ----------------------------------------------------------------------------
# Main
# ----------------------------------------------------------------------------
if __name__ == "__main__":
    # Double_Convolution(ic=8, oc=4) on a (2, 8, 16, 16) input.
    N, IC, OC, H, W = 2, 8, 4, 16, 16

    key = jax.random.PRNGKey(0)
    ks = jax.random.split(key, 9)

    params = {
        # first 3x3: Conv2d(ic, oc, 3, 1, 1) + BatchNorm2d(oc)
        "w1": 0.1 * jax.random.normal(ks[0], (OC, IC, 3, 3), jnp.float32),
        "b1": 0.1 * jax.random.normal(ks[1], (OC,), jnp.float32),
        "g1": 1.0 + 0.1 * jax.random.normal(ks[2], (OC,), jnp.float32),
        "beta1": 0.1 * jax.random.normal(ks[3], (OC,), jnp.float32),
        # second 3x3: Conv2d(oc, oc, 3, 1, 1) + BatchNorm2d(oc)
        "w2": 0.1 * jax.random.normal(ks[4], (OC, OC, 3, 3), jnp.float32),
        "b2": 0.1 * jax.random.normal(ks[5], (OC,), jnp.float32),
        "g2": 1.0 + 0.1 * jax.random.normal(ks[6], (OC,), jnp.float32),
        "beta2": 0.1 * jax.random.normal(ks[7], (OC,), jnp.float32),
    }
    x = jax.random.normal(ks[8], (N, IC, H, W), jnp.float32)

    out = jax.block_until_ready(double_convolution_forward(x, params))
    ref = jax.block_until_ready(double_convolution_ref(x, params))

    assert out.shape == (N, OC, H, W), out.shape
    max_err = float(jnp.abs(out - ref).max())
    # bf16 activations/weights on the MXU vs an all-f32 reference.
    assert max_err < 1e-1, f"max_err={max_err}"

    print("KERNEL_OK")
</pallas_src>

<mosaic_0001>
module attributes {stable_mosaic.version = 11 : i64} {
  func.func @_conv3x3_kernel(%arg0: i32, %arg1: i32, %arg2: memref<1x16x16x128xbf16, #tpu.memory_space<vmem>>, %arg3: memref<3x384x128xbf16, #tpu.memory_space<vmem>>, %arg4: memref<1x128xf32, #tpu.memory_space<vmem>>, %arg5: memref<1x128xf32, #tpu.memory_space<vmem>>, %arg6: memref<1x16x16x128xbf16, #tpu.memory_space<vmem>>, %arg7: memref<1x1x1x128xf32, #tpu.memory_space<vmem>>, %arg8: memref<1x1x1x128xf32, #tpu.memory_space<vmem>>, %arg9: memref<18x32x128xbf16, #tpu.memory_space<vmem>>, %arg10: memref<256x128xf32, #tpu.memory_space<vmem>>) attributes {dimension_semantics = [#tpu.dimension_semantics<parallel>, #tpu.dimension_semantics<arbitrary>], iteration_bounds = array<i64: 2, 1>, scalar_prefetch = 0 : i64, scratch_operands = 2 : i64, tpu.core_type = #tpu.core_type<tc>, window_params = [{transform_indices = @transform_0, window_bounds = array<i64: 1, 16, 16, 128>}, {pipeline_mode = #tpu.pipeline_mode<synchronous>, transform_indices = @transform_1, window_bounds = array<i64: 3, 384, 128>}, {pipeline_mode = #tpu.pipeline_mode<synchronous>, transform_indices = @transform_2, window_bounds = array<i64: 1, 128>}, {pipeline_mode = #tpu.pipeline_mode<synchronous>, transform_indices = @transform_3, window_bounds = array<i64: 1, 128>}, {transform_indices = @transform_4, window_bounds = array<i64: 1, 16, 16, 128>}, {transform_indices = @transform_5, window_bounds = array<i64: 1, 1, 1, 128>}, {transform_indices = @transform_6, window_bounds = array<i64: 1, 1, 1, 128>}]} {
    %c0_i32 = arith.constant 0 : i32
    %0 = arith.cmpi eq, %arg1, %c0_i32 : i32
    %1 = arith.extui %0 : i1 to i32
    %c0_i32_0 = arith.constant 0 : i32
    %2 = arith.cmpi ne, %1, %c0_i32_0 : i32
    scf.if %2 {
      %cst_57 = arith.constant 0.000000e+00 : bf16
      %71 = vector.broadcast %cst_57 : bf16 to vector<18x32x128xbf16>
      %c0_58 = arith.constant 0 : index
      %c0_59 = arith.constant 0 : index
      %c0_60 = arith.constant 0 : index
      %72 = vector.load %arg9[%c0_58, %c0_59, %c0_60] : memref<18x32x128xbf16, #tpu.memory_space<vmem>>, vector<18x32x128xbf16>
      tpu.vector_store %arg9[%c0_58, %c0_59, %c0_60], %71 {strides = array<i32>} : memref<18x32x128xbf16, #tpu.memory_space<vmem>>, vector<18x32x128xbf16>,
      %c0_61 = arith.constant 0 : index
      %c0_62 = arith.constant 0 : index
      %c0_63 = arith.constant 0 : index
      %c0_64 = arith.constant 0 : index
      %73 = vector.load %arg2[%c0_61, %c0_62, %c0_63, %c0_64] : memref<1x16x16x128xbf16, #tpu.memory_space<vmem>>, vector<1x16x16x128xbf16>
      %74 = vector.shape_cast %73 : vector<1x16x16x128xbf16> to vector<16x16x128xbf16>
      %75 = arith.extf %74 : vector<16x16x128xbf16> to vector<16x16x128xf32>
      %c0_65 = arith.constant 0 : index
      %c0_66 = arith.constant 0 : index
      %76 = vector.load %arg4[%c0_65, %c0_66] : memref<1x128xf32, #tpu.memory_space<vmem>>, vector<1x128xf32>
      %77 = vector.shape_cast %76 : vector<1x128xf32> to vector<1x1x128xf32>
      %78 = vector.broadcast %77 : vector<1x1x128xf32> to vector<16x16x128xf32>
      %79 = arith.mulf %75, %78 : vector<16x16x128xf32>
      %c0_67 = arith.constant 0 : index
      %c0_68 = arith.constant 0 : index
      %80 = vector.load %arg5[%c0_67, %c0_68] : memref<1x128xf32, #tpu.memory_space<vmem>>, vector<1x128xf32>
      %81 = vector.shape_cast %80 : vector<1x128xf32> to vector<1x1x128xf32>
      %82 = vector.broadcast %81 : vector<1x1x128xf32> to vector<16x16x128xf32>
      %83 = arith.addf %79, %82 : vector<16x16x128xf32>
      %cst_69 = arith.constant 0.000000e+00 : f32
      %84 = vector.broadcast %cst_69 : f32 to vector<16x16x128xf32>
      %85 = arith.maximumf %83, %84 : vector<16x16x128xf32>
      %86 = arith.truncf %85 : vector<16x16x128xf32> to vector<16x16x128xbf16>
      %c1_70 = arith.constant 1 : index
      %c8_71 = arith.constant 8 : index
      %c0_72 = arith.constant 0 : index
      %87 = vector.load %arg9[%c1_70, %c8_71, %c0_72] : memref<18x32x128xbf16, #tpu.memory_space<vmem>>, vector<16x16x128xbf16>
      tpu.vector_store %arg9[%c1_70, %c8_71, %c0_72], %86 {strides = array<i32>} : memref<18x32x128xbf16, #tpu.memory_space<vmem>>, vector<16x16x128xbf16>,
    } else {
    }
    %c16_i32 = arith.constant 16 : i32
    %3 = arith.muli %arg1, %c16_i32 : i32
    %4 = tpu.assume_multiple %3, 16 : i32
    %c0_i32_1 = arith.constant 0 : i32
    %5 = arith.addi %4, %c0_i32_1 : i32
    %6 = arith.index_cast %5 : i32 to index
    %c7 = arith.constant 7 : index
    %c0 = arith.constant 0 : index
    %7 = vector.load %arg9[%6, %c7, %c0] : memref<18x32x128xbf16, #tpu.memory_space<vmem>>, vector<16x16x128xbf16>
    %c0_i32_2 = arith.constant 0 : i32
    %8 = arith.addi %4, %c0_i32_2 : i32
    %9 = arith.index_cast %8 : i32 to index
    %c8 = arith.constant 8 : index
    %c0_3 = arith.constant 0 : index
    %10 = vector.load %arg9[%9, %c8, %c0_3] : memref<18x32x128xbf16, #tpu.memory_space<vmem>>, vector<16x16x128xbf16>
    %c0_i32_4 = arith.constant 0 : i32
    %11 = arith.addi %4, %c0_i32_4 : i32
    %12 = arith.index_cast %11 : i32 to index
    %c9 = arith.constant 9 : index
    %c0_5 = arith.constant 0 : index
    %13 = vector.load %arg9[%12, %c9, %c0_5] : memref<18x32x128xbf16, #tpu.memory_space<vmem>>, vector<16x16x128xbf16>
    %14 = tpu.concatenate %7, %10, %13 in 2 : vector<16x16x128xbf16>, vector<16x16x128xbf16>, vector<16x16x128xbf16> -> vector<16x16x384xbf16>
    %15 = vector.shape_cast %14 : vector<16x16x384xbf16> to vector<256x384xbf16>
    %c0_6 = arith.constant 0 : index
    %c0_7 = arith.constant 0 : index
    %c0_8 = arith.constant 0 : index
    %16 = vector.load %arg3[%c0_6, %c0_7, %c0_8] : memref<3x384x128xbf16, #tpu.memory_space<vmem>>, vector<1x384x128xbf16>
    %17 = vector.shape_cast %16 : vector<1x384x128xbf16> to vector<384x128xbf16>
    %cst = arith.constant dense<0.000000e+00> : vector<256x128xf32>
    %18 = tpu.matmul %15, %17, %cst {dimension_numbers = #tpu.dot_dimension_numbers<[1], [0], [0], [1], [0, 0, 1, 1], [], []>} : vector<256x384xbf16>, vector<384x128xbf16>, vector<256x128xf32> -> vector<256x128xf32>
    %c0_9 = arith.constant 0 : index
    %c0_10 = arith.constant 0 : index
    %19 = vector.load %arg10[%c0_9, %c0_10] : memref<256x128xf32, #tpu.memory_space<vmem>>, vector<256x128xf32>
    tpu.vector_store %arg10[%c0_9, %c0_10], %18 {strides = array<i32>} : memref<256x128xf32, #tpu.memory_space<vmem>>, vector<256x128xf32>,
    %c1_i32 = arith.constant 1 : i32
    %20 = arith.addi %4, %c1_i32 : i32
    %21 = arith.index_cast %20 : i32 to index
    %c7_11 = arith.constant 7 : index
    %c0_12 = arith.constant 0 : index
    %22 = vector.load %arg9[%21, %c7_11, %c0_12] : memref<18x32x128xbf16, #tpu.memory_space<vmem>>, vector<16x16x128xbf16>
    %c1_i32_13 = arith.constant 1 : i32
    %23 = arith.addi %4, %c1_i32_13 : i32
    %24 = arith.index_cast %23 : i32 to index
    %c8_14 = arith.constant 8 : index
    %c0_15 = arith.constant 0 : index
    %25 = vector.load %arg9[%24, %c8_14, %c0_15] : memref<18x32x128xbf16, #tpu.memory_space<vmem>>, vector<16x16x128xbf16>
    %c1_i32_16 = arith.constant 1 : i32
    %26 = arith.addi %4, %c1_i32_16 : i32
    %27 = arith.index_cast %26 : i32 to index
    %c9_17 = arith.constant 9 : index
    %c0_18 = arith.constant 0 : index
    %28 = vector.load %arg9[%27, %c9_17, %c0_18] : memref<18x32x128xbf16, #tpu.memory_space<vmem>>, vector<16x16x128xbf16>
    %29 = tpu.concatenate %22, %25, %28 in 2 : vector<16x16x128xbf16>, vector<16x16x128xbf16>, vector<16x16x128xbf16> -> vector<16x16x384xbf16>
    %30 = vector.shape_cast %29 : vector<16x16x384xbf16> to vector<256x384xbf16>
    %c1 = arith.constant 1 : index
    %c0_19 = arith.constant 0 : index
    %c0_20 = arith.constant 0 : index
    %31 = vector.load %arg3[%c1, %c0_19, %c0_20] : memref<3x384x128xbf16, #tpu.memory_space<vmem>>, vector<1x384x128xbf16>
    %32 = vector.shape_cast %31 : vector<1x384x128xbf16> to vector<384x128xbf16>
    %cst_21 = arith.constant dense<0.000000e+00> : vector<256x128xf32>
    %33 = tpu.matmul %30, %32, %cst_21 {dimension_numbers = #tpu.dot_dimension_numbers<[1], [0], [0], [1], [0, 0, 1, 1], [], []>} : vector<256x384xbf16>, vector<384x128xbf16>, vector<256x128xf32> -> vector<256x128xf32>
    %c0_22 = arith.constant 0 : index
    %c0_23 = arith.constant 0 : index
    %34 = vector.load %arg10[%c0_22, %c0_23] : memref<256x128xf32, #tpu.memory_space<vmem>>, vector<256x128xf32>
    %35 = arith.addf %34, %33 : vector<256x128xf32>
    %c0_24 = arith.constant 0 : index
    %c0_25 = arith.constant 0 : index
    %36 = vector.load %arg10[%c0_24, %c0_25] : memref<256x128xf32, #tpu.memory_space<vmem>>, vector<256x128xf32>
    tpu.vector_store %arg10[%c0_24, %c0_25], %35 {strides = array<i32>} : memref<256x128xf32, #tpu.memory_space<vmem>>, vector<256x128xf32>,
    %c2_i32 = arith.constant 2 : i32
    %37 = arith.addi %4, %c2_i32 : i32
    %38 = arith.index_cast %37 : i32 to index
    %c7_26 = arith.constant 7 : index
    %c0_27 = arith.constant 0 : index
    %39 = vector.load %arg9[%38, %c7_26, %c0_27] : memref<18x32x128xbf16, #tpu.memory_space<vmem>>, vector<16x16x128xbf16>
    %c2_i32_28 = arith.constant 2 : i32
    %40 = arith.addi %4, %c2_i32_28 : i32
    %41 = arith.index_cast %40 : i32 to index
    %c8_29 = arith.constant 8 : index
    %c0_30 = arith.constant 0 : index
    %42 = vector.load %arg9[%41, %c8_29, %c0_30] : memref<18x32x128xbf16, #tpu.memory_space<vmem>>, vector<16x16x128xbf16>
    %c2_i32_31 = arith.constant 2 : i32
    %43 = arith.addi %4, %c2_i32_31 : i32
    %44 = arith.index_cast %43 : i32 to index
    %c9_32 = arith.constant 9 : index
    %c0_33 = arith.constant 0 : index
    %45 = vector.load %arg9[%44, %c9_32, %c0_33] : memref<18x32x128xbf16, #tpu.memory_space<vmem>>, vector<16x16x128xbf16>
    %46 = tpu.concatenate %39, %42, %45 in 2 : vector<16x16x128xbf16>, vector<16x16x128xbf16>, vector<16x16x128xbf16> -> vector<16x16x384xbf16>
    %47 = vector.shape_cast %46 : vector<16x16x384xbf16> to vector<256x384xbf16>
    %c2 = arith.constant 2 : index
    %c0_34 = arith.constant 0 : index
    %c0_35 = arith.constant 0 : index
    %48 = vector.load %arg3[%c2, %c0_34, %c0_35] : memref<3x384x128xbf16, #tpu.memory_space<vmem>>, vector<1x384x128xbf16>
    %49 = vector.shape_cast %48 : vector<1x384x128xbf16> to vector<384x128xbf16>
    %cst_36 = arith.constant dense<0.000000e+00> : vector<256x128xf32>
    %50 = tpu.matmul %47, %49, %cst_36 {dimension_numbers = #tpu.dot_dimension_numbers<[1], [0], [0], [1], [0, 0, 1, 1], [], []>} : vector<256x384xbf16>, vector<384x128xbf16>, vector<256x128xf32> -> vector<256x128xf32>
    %c0_37 = arith.constant 0 : index
    %c0_38 = arith.constant 0 : index
    %51 = vector.load %arg10[%c0_37, %c0_38] : memref<256x128xf32, #tpu.memory_space<vmem>>, vector<256x128xf32>
    %52 = arith.addf %51, %50 : vector<256x128xf32>
    %c0_39 = arith.constant 0 : index
    %c0_40 = arith.constant 0 : index
    %53 = vector.load %arg10[%c0_39, %c0_40] : memref<256x128xf32, #tpu.memory_space<vmem>>, vector<256x128xf32>
    tpu.vector_store %arg10[%c0_39, %c0_40], %52 {strides = array<i32>} : memref<256x128xf32, #tpu.memory_space<vmem>>, vector<256x128xf32>,
    %c0_41 = arith.constant 0 : index
    %c0_42 = arith.constant 0 : index
    %54 = vector.load %arg10[%c0_41, %c0_42] : memref<256x128xf32, #tpu.memory_space<vmem>>, vector<256x128xf32>
    %55 = vector.shape_cast %54 : vector<256x128xf32> to vector<16x16x128xf32>
    %56 = arith.truncf %55 : vector<16x16x128xf32> to vector<16x16x128xbf16>
    %c0_43 = arith.constant 0 : index
    %c0_44 = arith.constant 0 : index
    %c0_45 = arith.constant 0 : index
    %c0_46 = arith.constant 0 : index
    %57 = vector.load %arg6[%c0_43, %c0_44, %c0_45, %c0_46] : memref<1x16x16x128xbf16, #tpu.memory_space<vmem>>, vector<1x16x16x128xbf16>
    %58 = vector.shape_cast %57 : vector<1x16x16x128xbf16> to vector<16x16x128xbf16>
    %59 = vector.shape_cast %56 : vector<16x16x128xbf16> to vector<1x16x16x128xbf16>
    tpu.vector_store %arg6[%c0_43, %c0_44, %c0_45, %c0_46], %59 {strides = array<i32>} : memref<1x16x16x128xbf16, #tpu.memory_space<vmem>>, vector<1x16x16x128xbf16>,
    %cst_47 = arith.constant dense<0.000000e+00> : vector<128xf32>
    %60 = vector.multi_reduction <add>, %54, %cst_47 [0] : vector<256x128xf32> to vector<128xf32>
    %61 = vector.shape_cast %60 : vector<128xf32> to vector<1x128xf32>
    %c0_48 = arith.constant 0 : index
    %c0_49 = arith.constant 0 : index
    %c0_50 = arith.constant 0 : index
    %c0_51 = arith.constant 0 : index
    %62 = vector.load %arg7[%c0_48, %c0_49, %c0_50, %c0_51] : memref<1x1x1x128xf32, #tpu.memory_space<vmem>>, vector<1x1x1x128xf32>
    %63 = vector.shape_cast %62 : vector<1x1x1x128xf32> to vector<1x128xf32>
    %64 = vector.shape_cast %61 : vector<1x128xf32> to vector<1x1x1x128xf32>
    tpu.vector_store %arg7[%c0_48, %c0_49, %c0_50, %c0_51], %64 {strides = array<i32>} : memref<1x1x1x128xf32, #tpu.memory_space<vmem>>, vector<1x1x1x128xf32>,
    %65 = arith.mulf %54, %54 : vector<256x128xf32>
    %cst_52 = arith.constant dense<0.000000e+00> : vector<128xf32>
    %66 = vector.multi_reduction <add>, %65, %cst_52 [0] : vector<256x128xf32> to vector<128xf32>
    %67 = vector.shape_cast %66 : vector<128xf32> to vector<1x128xf32>
    %c0_53 = arith.constant 0 : index
    %c0_54 = arith.constant 0 : index
    %c0_55 = arith.constant 0 : index
    %c0_56 = arith.constant 0 : index
    %68 = vector.load %arg8[%c0_53, %c0_54, %c0_55, %c0_56] : memref<1x1x1x128xf32, #tpu.memory_space<vmem>>, vector<1x1x1x128xf32>
    %69 = vector.shape_cast %68 : vector<1x1x1x128xf32> to vector<1x128xf32>
    %70 = vector.shape_cast %67 : vector<1x128xf32> to vector<1x1x1x128xf32>
    tpu.vector_store %arg8[%c0_53, %c0_54, %c0_55, %c0_56], %70 {strides = array<i32>} : memref<1x1x1x128xf32, #tpu.memory_space<vmem>>, vector<1x1x1x128xf32>,
    return
  }
  func.func @transform_0(%arg0: i32, %arg1: i32) -> (i32, i32, i32, i32) {
    %c0_i32 = arith.constant 0 : i32
    %c0_i32_0 = arith.constant 0 : i32
    %c0_i32_1 = arith.constant 0 : i32
    %c0_i32_2 = arith.constant 0 : i32
    return %arg0, %c0_i32, %c0_i32_0, %c0_i32_1 : i32, i32, i32, i32
  }
  func.func @transform_1(%arg0: i32, %arg1: i32) -> (i32, i32, i32) {
    %c0_i32 = arith.constant 0 : i32
    %c0_i32_0 = arith.constant 0 : i32
    %c0_i32_1 = arith.constant 0 : i32
    %c0_i32_2 = arith.constant 0 : i32
    return %c0_i32, %c0_i32_0, %c0_i32_1 : i32, i32, i32
  }
  func.func @transform_2(%arg0: i32, %arg1: i32) -> (i32, i32) {
    %c0_i32 = arith.constant 0 : i32
    %c0_i32_0 = arith.constant 0 : i32
    %c0_i32_1 = arith.constant 0 : i32
    return %c0_i32, %c0_i32_0 : i32, i32
  }
  func.func @transform_3(%arg0: i32, %arg1: i32) -> (i32, i32) {
    %c0_i32 = arith.constant 0 : i32
    %c0_i32_0 = arith.constant 0 : i32
    %c0_i32_1 = arith.constant 0 : i32
    return %c0_i32, %c0_i32_0 : i32, i32
  }
  func.func @transform_4(%arg0: i32, %arg1: i32) -> (i32, i32, i32, i32) {
    %c0_i32 = arith.constant 0 : i32
    %c0_i32_0 = arith.constant 0 : i32
    %c0_i32_1 = arith.constant 0 : i32
    return %arg0, %arg1, %c0_i32, %c0_i32_0 : i32, i32, i32, i32
  }
  func.func @transform_5(%arg0: i32, %arg1: i32) -> (i32, i32, i32, i32) {
    %c0_i32 = arith.constant 0 : i32
    %c0_i32_0 = arith.constant 0 : i32
    %c0_i32_1 = arith.constant 0 : i32
    return %arg0, %arg1, %c0_i32, %c0_i32_0 : i32, i32, i32, i32
  }
  func.func @transform_6(%arg0: i32, %arg1: i32) -> (i32, i32, i32, i32) {
    %c0_i32 = arith.constant 0 : i32
    %c0_i32_0 = arith.constant 0 : i32
    %c0_i32_1 = arith.constant 0 : i32
    return %arg0, %arg1, %c0_i32, %c0_i32_0 : i32, i32, i32, i32
  }
}

module attributes {stable_mosaic.version = 11 : i64} {
  func.func @_conv3x3_kernel(%arg0: i32, %arg1: i32, %arg2: memref<1x16x16x128xbf16, #tpu.memory_space<vmem>>, %arg3: memref<3x384x128xbf16, #tpu.memory_space<vmem>>, %arg4: memref<1x16x16x128xbf16, #tpu.memory_space<vmem>>, %arg5: memref<1x1x1x128xf32, #tpu.memory_space<vmem>>, %arg6: memref<1x1x1x128xf32, #tpu.memory_space<vmem>>, %arg7: memref<18x32x128xbf16, #tpu.memory_space<vmem>>, %arg8: memref<256x128xf32, #tpu.memory_space<vmem>>) attributes {dimension_semantics = [#tpu.dimension_semantics<parallel>, #tpu.dimension_semantics<arbitrary>], iteration_bounds = array<i64: 2, 1>, scalar_prefetch = 0 : i64, scratch_operands = 2 : i64, tpu.core_type = #tpu.core_type<tc>, window_params = [{transform_indices = @transform_0, window_bounds = array<i64: 1, 16, 16, 128>}, {pipeline_mode = #tpu.pipeline_mode<synchronous>, transform_indices = @transform_1, window_bounds = array<i64: 3, 384, 128>}, {transform_indices = @transform_2, window_bounds = array<i64: 1, 16, 16, 128>}, {transform_indices = @transform_3, window_bounds = array<i64: 1, 1, 1, 128>}, {transform_indices = @transform_4, window_bounds = array<i64: 1, 1, 1, 128>}]} {
    %c0_i32 = arith.constant 0 : i32
    %0 = arith.cmpi eq, %arg1, %c0_i32 : i32
    %1 = arith.extui %0 : i1 to i32
    %c0_i32_0 = arith.constant 0 : i32
    %2 = arith.cmpi ne, %1, %c0_i32_0 : i32
    scf.if %2 {
      %cst_57 = arith.constant 0.000000e+00 : bf16
      %71 = vector.broadcast %cst_57 : bf16 to vector<18x32x128xbf16>
      %c0_58 = arith.constant 0 : index
      %c0_59 = arith.constant 0 : index
      %c0_60 = arith.constant 0 : index
      %72 = vector.load %arg7[%c0_58, %c0_59, %c0_60] : memref<18x32x128xbf16, #tpu.memory_space<vmem>>, vector<18x32x128xbf16>
      tpu.vector_store %arg7[%c0_58, %c0_59, %c0_60], %71 {strides = array<i32>} : memref<18x32x128xbf16, #tpu.memory_space<vmem>>, vector<18x32x128xbf16>,
      %c0_61 = arith.constant 0 : index
      %c0_62 = arith.constant 0 : index
      %c0_63 = arith.constant 0 : index
      %c0_64 = arith.constant 0 : index
      %73 = vector.load %arg2[%c0_61, %c0_62, %c0_63, %c0_64] : memref<1x16x16x128xbf16, #tpu.memory_space<vmem>>, vector<1x16x16x128xbf16>
      %74 = vector.shape_cast %73 : vector<1x16x16x128xbf16> to vector<16x16x128xbf16>
      %c1_65 = arith.constant 1 : index
      %c8_66 = arith.constant 8 : index
      %c0_67 = arith.constant 0 : index
      %75 = vector.load %arg7[%c1_65, %c8_66, %c0_67] : memref<18x32x128xbf16, #tpu.memory_space<vmem>>, vector<16x16x128xbf16>
      tpu.vector_store %arg7[%c1_65, %c8_66, %c0_67], %74 {strides = array<i32>} : memref<18x32x128xbf16, #tpu.memory_space<vmem>>, vector<16x16x128xbf16>,
    } else {
    }
    %c16_i32 = arith.constant 16 : i32
    %3 = arith.muli %arg1, %c16_i32 : i32
    %4 = tpu.assume_multiple %3, 16 : i32
    %c0_i32_1 = arith.constant 0 : i32
    %5 = arith.addi %4, %c0_i32_1 : i32
    %6 = arith.index_cast %5 : i32 to index
    %c7 = arith.constant 7 : index
    %c0 = arith.constant 0 : index
    %7 = vector.load %arg7[%6, %c7, %c0] : memref<18x32x128xbf16, #tpu.memory_space<vmem>>, vector<16x16x128xbf16>
    %c0_i32_2 = arith.constant 0 : i32
    %8 = arith.addi %4, %c0_i32_2 : i32
    %9 = arith.index_cast %8 : i32 to index
    %c8 = arith.constant 8 : index
    %c0_3 = arith.constant 0 : index
    %10 = vector.load %arg7[%9, %c8, %c0_3] : memref<18x32x128xbf16, #tpu.memory_space<vmem>>, vector<16x16x128xbf16>
    %c0_i32_4 = arith.constant 0 : i32
    %11 = arith.addi %4, %c0_i32_4 : i32
    %12 = arith.index_cast %11 : i32 to index
    %c9 = arith.constant 9 : index
    %c0_5 = arith.constant 0 : index
    %13 = vector.load %arg7[%12, %c9, %c0_5] : memref<18x32x128xbf16, #tpu.memory_space<vmem>>, vector<16x16x128xbf16>
    %14 = tpu.concatenate %7, %10, %13 in 2 : vector<16x16x128xbf16>, vector<16x16x128xbf16>, vector<16x16x128xbf16> -> vector<16x16x384xbf16>
    %15 = vector.shape_cast %14 : vector<16x16x384xbf16> to vector<256x384xbf16>
    %c0_6 = arith.constant 0 : index
    %c0_7 = arith.constant 0 : index
    %c0_8 = arith.constant 0 : index
    %16 = vector.load %arg3[%c0_6, %c0_7, %c0_8] : memref<3x384x128xbf16, #tpu.memory_space<vmem>>, vector<1x384x128xbf16>
    %17 = vector.shape_cast %16 : vector<1x384x128xbf16> to vector<384x128xbf16>
    %cst = arith.constant dense<0.000000e+00> : vector<256x128xf32>
    %18 = tpu.matmul %15, %17, %cst {dimension_numbers = #tpu.dot_dimension_numbers<[1], [0], [0], [1], [0, 0, 1, 1], [], []>} : vector<256x384xbf16>, vector<384x128xbf16>, vector<256x128xf32> -> vector<256x128xf32>
    %c0_9 = arith.constant 0 : index
    %c0_10 = arith.constant 0 : index
    %19 = vector.load %arg8[%c0_9, %c0_10] : memref<256x128xf32, #tpu.memory_space<vmem>>, vector<256x128xf32>
    tpu.vector_store %arg8[%c0_9, %c0_10], %18 {strides = array<i32>} : memref<256x128xf32, #tpu.memory_space<vmem>>, vector<256x128xf32>,
    %c1_i32 = arith.constant 1 : i32
    %20 = arith.addi %4, %c1_i32 : i32
    %21 = arith.index_cast %20 : i32 to index
    %c7_11 = arith.constant 7 : index
    %c0_12 = arith.constant 0 : index
    %22 = vector.load %arg7[%21, %c7_11, %c0_12] : memref<18x32x128xbf16, #tpu.memory_space<vmem>>, vector<16x16x128xbf16>
    %c1_i32_13 = arith.constant 1 : i32
    %23 = arith.addi %4, %c1_i32_13 : i32
    %24 = arith.index_cast %23 : i32 to index
    %c8_14 = arith.constant 8 : index
    %c0_15 = arith.constant 0 : index
    %25 = vector.load %arg7[%24, %c8_14, %c0_15] : memref<18x32x128xbf16, #tpu.memory_space<vmem>>, vector<16x16x128xbf16>
    %c1_i32_16 = arith.constant 1 : i32
    %26 = arith.addi %4, %c1_i32_16 : i32
    %27 = arith.index_cast %26 : i32 to index
    %c9_17 = arith.constant 9 : index
    %c0_18 = arith.constant 0 : index
    %28 = vector.load %arg7[%27, %c9_17, %c0_18] : memref<18x32x128xbf16, #tpu.memory_space<vmem>>, vector<16x16x128xbf16>
    %29 = tpu.concatenate %22, %25, %28 in 2 : vector<16x16x128xbf16>, vector<16x16x128xbf16>, vector<16x16x128xbf16> -> vector<16x16x384xbf16>
    %30 = vector.shape_cast %29 : vector<16x16x384xbf16> to vector<256x384xbf16>
    %c1 = arith.constant 1 : index
    %c0_19 = arith.constant 0 : index
    %c0_20 = arith.constant 0 : index
    %31 = vector.load %arg3[%c1, %c0_19, %c0_20] : memref<3x384x128xbf16, #tpu.memory_space<vmem>>, vector<1x384x128xbf16>
    %32 = vector.shape_cast %31 : vector<1x384x128xbf16> to vector<384x128xbf16>
    %cst_21 = arith.constant dense<0.000000e+00> : vector<256x128xf32>
    %33 = tpu.matmul %30, %32, %cst_21 {dimension_numbers = #tpu.dot_dimension_numbers<[1], [0], [0], [1], [0, 0, 1, 1], [], []>} : vector<256x384xbf16>, vector<384x128xbf16>, vector<256x128xf32> -> vector<256x128xf32>
    %c0_22 = arith.constant 0 : index
    %c0_23 = arith.constant 0 : index
    %34 = vector.load %arg8[%c0_22, %c0_23] : memref<256x128xf32, #tpu.memory_space<vmem>>, vector<256x128xf32>
    %35 = arith.addf %34, %33 : vector<256x128xf32>
    %c0_24 = arith.constant 0 : index
    %c0_25 = arith.constant 0 : index
    %36 = vector.load %arg8[%c0_24, %c0_25] : memref<256x128xf32, #tpu.memory_space<vmem>>, vector<256x128xf32>
    tpu.vector_store %arg8[%c0_24, %c0_25], %35 {strides = array<i32>} : memref<256x128xf32, #tpu.memory_space<vmem>>, vector<256x128xf32>,
    %c2_i32 = arith.constant 2 : i32
    %37 = arith.addi %4, %c2_i32 : i32
    %38 = arith.index_cast %37 : i32 to index
    %c7_26 = arith.constant 7 : index
    %c0_27 = arith.constant 0 : index
    %39 = vector.load %arg7[%38, %c7_26, %c0_27] : memref<18x32x128xbf16, #tpu.memory_space<vmem>>, vector<16x16x128xbf16>
    %c2_i32_28 = arith.constant 2 : i32
    %40 = arith.addi %4, %c2_i32_28 : i32
    %41 = arith.index_cast %40 : i32 to index
    %c8_29 = arith.constant 8 : index
    %c0_30 = arith.constant 0 : index
    %42 = vector.load %arg7[%41, %c8_29, %c0_30] : memref<18x32x128xbf16, #tpu.memory_space<vmem>>, vector<16x16x128xbf16>
    %c2_i32_31 = arith.constant 2 : i32
    %43 = arith.addi %4, %c2_i32_31 : i32
    %44 = arith.index_cast %43 : i32 to index
    %c9_32 = arith.constant 9 : index
    %c0_33 = arith.constant 0 : index
    %45 = vector.load %arg7[%44, %c9_32, %c0_33] : memref<18x32x128xbf16, #tpu.memory_space<vmem>>, vector<16x16x128xbf16>
    %46 = tpu.concatenate %39, %42, %45 in 2 : vector<16x16x128xbf16>, vector<16x16x128xbf16>, vector<16x16x128xbf16> -> vector<16x16x384xbf16>
    %47 = vector.shape_cast %46 : vector<16x16x384xbf16> to vector<256x384xbf16>
    %c2 = arith.constant 2 : index
    %c0_34 = arith.constant 0 : index
    %c0_35 = arith.constant 0 : index
    %48 = vector.load %arg3[%c2, %c0_34, %c0_35] : memref<3x384x128xbf16, #tpu.memory_space<vmem>>, vector<1x384x128xbf16>
    %49 = vector.shape_cast %48 : vector<1x384x128xbf16> to vector<384x128xbf16>
    %cst_36 = arith.constant dense<0.000000e+00> : vector<256x128xf32>
    %50 = tpu.matmul %47, %49, %cst_36 {dimension_numbers = #tpu.dot_dimension_numbers<[1], [0], [0], [1], [0, 0, 1, 1], [], []>} : vector<256x384xbf16>, vector<384x128xbf16>, vector<256x128xf32> -> vector<256x128xf32>
    %c0_37 = arith.constant 0 : index
    %c0_38 = arith.constant 0 : index
    %51 = vector.load %arg8[%c0_37, %c0_38] : memref<256x128xf32, #tpu.memory_space<vmem>>, vector<256x128xf32>
    %52 = arith.addf %51, %50 : vector<256x128xf32>
    %c0_39 = arith.constant 0 : index
    %c0_40 = arith.constant 0 : index
    %53 = vector.load %arg8[%c0_39, %c0_40] : memref<256x128xf32, #tpu.memory_space<vmem>>, vector<256x128xf32>
    tpu.vector_store %arg8[%c0_39, %c0_40], %52 {strides = array<i32>} : memref<256x128xf32, #tpu.memory_space<vmem>>, vector<256x128xf32>,
    %c0_41 = arith.constant 0 : index
    %c0_42 = arith.constant 0 : index
    %54 = vector.load %arg8[%c0_41, %c0_42] : memref<256x128xf32, #tpu.memory_space<vmem>>, vector<256x128xf32>
    %55 = vector.shape_cast %54 : vector<256x128xf32> to vector<16x16x128xf32>
    %56 = arith.truncf %55 : vector<16x16x128xf32> to vector<16x16x128xbf16>
    %c0_43 = arith.constant 0 : index
    %c0_44 = arith.constant 0 : index
    %c0_45 = arith.constant 0 : index
    %c0_46 = arith.constant 0 : index
    %57 = vector.load %arg4[%c0_43, %c0_44, %c0_45, %c0_46] : memref<1x16x16x128xbf16, #tpu.memory_space<vmem>>, vector<1x16x16x128xbf16>
    %58 = vector.shape_cast %57 : vector<1x16x16x128xbf16> to vector<16x16x128xbf16>
    %59 = vector.shape_cast %56 : vector<16x16x128xbf16> to vector<1x16x16x128xbf16>
    tpu.vector_store %arg4[%c0_43, %c0_44, %c0_45, %c0_46], %59 {strides = array<i32>} : memref<1x16x16x128xbf16, #tpu.memory_space<vmem>>, vector<1x16x16x128xbf16>,
    %cst_47 = arith.constant dense<0.000000e+00> : vector<128xf32>
    %60 = vector.multi_reduction <add>, %54, %cst_47 [0] : vector<256x128xf32> to vector<128xf32>
    %61 = vector.shape_cast %60 : vector<128xf32> to vector<1x128xf32>
    %c0_48 = arith.constant 0 : index
    %c0_49 = arith.constant 0 : index
    %c0_50 = arith.constant 0 : index
    %c0_51 = arith.constant 0 : index
    %62 = vector.load %arg5[%c0_48, %c0_49, %c0_50, %c0_51] : memref<1x1x1x128xf32, #tpu.memory_space<vmem>>, vector<1x1x1x128xf32>
    %63 = vector.shape_cast %62 : vector<1x1x1x128xf32> to vector<1x128xf32>
    %64 = vector.shape_cast %61 : vector<1x128xf32> to vector<1x1x1x128xf32>
    tpu.vector_store %arg5[%c0_48, %c0_49, %c0_50, %c0_51], %64 {strides = array<i32>} : memref<1x1x1x128xf32, #tpu.memory_space<vmem>>, vector<1x1x1x128xf32>,
    %65 = arith.mulf %54, %54 : vector<256x128xf32>
    %cst_52 = arith.constant dense<0.000000e+00> : vector<128xf32>
    %66 = vector.multi_reduction <add>, %65, %cst_52 [0] : vector<256x128xf32> to vector<128xf32>
    %67 = vector.shape_cast %66 : vector<128xf32> to vector<1x128xf32>
    %c0_53 = arith.constant 0 : index
    %c0_54 = arith.constant 0 : index
    %c0_55 = arith.constant 0 : index
    %c0_56 = arith.constant 0 : index
    %68 = vector.load %arg6[%c0_53, %c0_54, %c0_55, %c0_56] : memref<1x1x1x128xf32, #tpu.memory_space<vmem>>, vector<1x1x1x128xf32>
    %69 = vector.shape_cast %68 : vector<1x1x1x128xf32> to vector<1x128xf32>
    %70 = vector.shape_cast %67 : vector<1x128xf32> to vector<1x1x1x128xf32>
    tpu.vector_store %arg6[%c0_53, %c0_54, %c0_55, %c0_56], %70 {strides = array<i32>} : memref<1x1x1x128xf32, #tpu.memory_space<vmem>>, vector<1x1x1x128xf32>,
    return
  }
  func.func @transform_0(%arg0: i32, %arg1: i32) -> (i32, i32, i32, i32) {
    %c0_i32 = arith.constant 0 : i32
    %c0_i32_0 = arith.constant 0 : i32
    %c0_i32_1 = arith.constant 0 : i32
    %c0_i32_2 = arith.constant 0 : i32
    return %arg0, %c0_i32, %c0_i32_0, %c0_i32_1 : i32, i32, i32, i32
  }
  func.func @transform_1(%arg0: i32, %arg1: i32) -> (i32, i32, i32) {
    %c0_i32 = arith.constant 0 : i32
    %c0_i32_0 = arith.constant 0 : i32
    %c0_i32_1 = arith.constant 0 : i32
    %c0_i32_2 = arith.constant 0 : i32
    return %c0_i32, %c0_i32_0, %c0_i32_1 : i32, i32, i32
  }
  func.func @transform_2(%arg0: i32, %arg1: i32) -> (i32, i32, i32, i32) {
    %c0_i32 = arith.constant 0 : i32
    %c0_i32_0 = arith.constant 0 : i32
    %c0_i32_1 = arith.constant 0 : i32
    return %arg0, %arg1, %c0_i32, %c0_i32_0 : i32, i32, i32, i32
  }
  func.func @transform_3(%arg0: i32, %arg1: i32) -> (i32, i32, i32, i32) {
    %c0_i32 = arith.constant 0 : i32
    %c0_i32_0 = arith.constant 0 : i32
    %c0_i32_1 = arith.constant 0 : i32
    return %arg0, %arg1, %c0_i32, %c0_i32_0 : i32, i32, i32, i32
  }
  func.func @transform_4(%arg0: i32, %arg1: i32) -> (i32, i32, i32, i32) {
    %c0_i32 = arith.constant 0 : i32
    %c0_i32_0 = arith.constant 0 : i32
    %c0_i32_1 = arith.constant 0 : i32
    return %arg0, %arg1, %c0_i32, %c0_i32_0 : i32, i32, i32, i32
  }
}

module attributes {stable_mosaic.version = 11 : i64} {
  func.func @_bn_relu_kernel(%arg0: i32, %arg1: memref<512x128xbf16, #tpu.memory_space<vmem>>, %arg2: memref<1x128xf32, #tpu.memory_space<vmem>>, %arg3: memref<1x128xf32, #tpu.memory_space<vmem>>, %arg4: memref<512x128xf32, #tpu.memory_space<vmem>>) attributes {dimension_semantics = [#tpu.dimension_semantics<parallel>], iteration_bounds = array<i64: 1>, scalar_prefetch = 0 : i64, scratch_operands = 0 : i64, tpu.core_type = #tpu.core_type<tc>, window_params = [{transform_indices = @transform_0, window_bounds = array<i64: 512, 128>}, {pipeline_mode = #tpu.pipeline_mode<synchronous>, transform_indices = @transform_1, window_bounds = array<i64: 1, 128>}, {pipeline_mode = #tpu.pipeline_mode<synchronous>, transform_indices = @transform_2, window_bounds = array<i64: 1, 128>}, {transform_indices = @transform_3, window_bounds = array<i64: 512, 128>}]} {
    %c0 = arith.constant 0 : index
    %c0_0 = arith.constant 0 : index
    %0 = vector.load %arg1[%c0, %c0_0] : memref<512x128xbf16, #tpu.memory_space<vmem>>, vector<512x128xbf16>
    %1 = arith.extf %0 : vector<512x128xbf16> to vector<512x128xf32>
    %c0_1 = arith.constant 0 : index
    %c0_2 = arith.constant 0 : index
    %2 = vector.load %arg2[%c0_1, %c0_2] : memref<1x128xf32, #tpu.memory_space<vmem>>, vector<1x128xf32>
    %3 = vector.broadcast %2 : vector<1x128xf32> to vector<512x128xf32>
    %4 = arith.mulf %1, %3 : vector<512x128xf32>
    %c0_3 = arith.constant 0 : index
    %c0_4 = arith.constant 0 : index
    %5 = vector.load %arg3[%c0_3, %c0_4] : memref<1x128xf32, #tpu.memory_space<vmem>>, vector<1x128xf32>
    %6 = vector.broadcast %5 : vector<1x128xf32> to vector<512x128xf32>
    %7 = arith.addf %4, %6 : vector<512x128xf32>
    %cst = arith.constant 0.000000e+00 : f32
    %8 = vector.broadcast %cst : f32 to vector<512x128xf32>
    %9 = arith.maximumf %7, %8 : vector<512x128xf32>
    %c0_5 = arith.constant 0 : index
    %c0_6 = arith.constant 0 : index
    %10 = vector.load %arg4[%c0_5, %c0_6] : memref<512x128xf32, #tpu.memory_space<vmem>>, vector<512x128xf32>
    tpu.vector_store %arg4[%c0_5, %c0_6], %9 {strides = array<i32>} : memref<512x128xf32, #tpu.memory_space<vmem>>, vector<512x128xf32>,
    return
  }
  func.func @transform_0(%arg0: i32) -> (i32, i32) {
    %c0_i32 = arith.constant 0 : i32
    %c0_i32_0 = arith.constant 0 : i32
    return %arg0, %c0_i32 : i32, i32
  }
  func.func @transform_1(%arg0: i32) -> (i32, i32) {
    %c0_i32 = arith.constant 0 : i32
    %c0_i32_0 = arith.constant 0 : i32
    %c0_i32_1 = arith.constant 0 : i32
    return %c0_i32, %c0_i32_0 : i32, i32
  }
  func.func @transform_2(%arg0: i32) -> (i32, i32) {
    %c0_i32 = arith.constant 0 : i32
    %c0_i32_0 = arith.constant 0 : i32
    %c0_i32_1 = arith.constant 0 : i32
    return %c0_i32, %c0_i32_0 : i32, i32
  }
  func.func @transform_3(%arg0: i32) -> (i32, i32) {
    %c0_i32 = arith.constant 0 : i32
    %c0_i32_0 = arith.constant 0 : i32
    return %arg0, %c0_i32 : i32, i32
  }
}

</mosaic_0001>

<llo_original>
// kernel: double_convolution_forward.5
$region0: #{double_convolution_forward.5}
  #allocation0 [shape = 'u32[]', space=smem, size = 0x4, offset = 0x4, fixed_abs, tag = 'smem constant byte address 0x4 - core index']
  #allocation1 [shape = 'u32[72,128]{1,0:T(1,128)}', space=vmem, size = 0x9000, scoped, tag = 'internal scratch']
  %s0 = inlined_call_operand.vmem [shape: bf16[512,128], index: 0, kind: input, shape index: {}]
  %s1 = inlined_call_operand.vmem [shape: f32[1,128], index: 1, kind: input, shape index: {}]
  %s2 = inlined_call_operand.vmem [shape: f32[1,128], index: 2, kind: input, shape index: {}]
  %s3 = inlined_call_operand.vmem [shape: f32[512,128], index: 3, kind: output, shape index: {}]
  %s4 = sld [smem:[#allocation0]]
  $region22: #{double_convolution_forward.5} parent=0
    _
  %s6 = ssub.s32 1, %s4
  %s7 = scalar_select 0, %s6, %s4
  // Predicated region
  $region2: #{double_convolution_forward.5} parent=0 // pred_check
    _
  $region3: #{double_convolution_forward.5} parent=0 // pred_check_branch
    %9 = sbr.rel (0) target = $region5
  $region4: #{double_convolution_forward.5} parent=0 // pred_region
    _
  $region5: #{double_convolution_forward.5} parent=0 // pred_fallthru
    _
  // Predicated region
  $region6: #{double_convolution_forward.5} parent=0 // pred_check
    _
  $region7: #{double_convolution_forward.5} parent=0 // pred_check_branch
    %11 = sbr.rel (0) target = $region9
  $region8: #{double_convolution_forward.5} parent=0 // pred_region
    _
  $region9: #{double_convolution_forward.5} parent=0 // pred_fallthru
    _
  // Predicated region
  $region10: #{double_convolution_forward.5} parent=0 // pred_check
    _
  $region11: #{double_convolution_forward.5} parent=0 // pred_check_branch
    %13 = sbr.rel (0) target = $region13
  $region12: #{double_convolution_forward.5} parent=0 // pred_region
    _
  $region13: #{double_convolution_forward.5} parent=0 // pred_fallthru
    _
  %v14 = vld [vmem:[%s0] sm:$0xf]
  %v15 = vld [vmem:[%s0 + $0x4] sm:$0xf]
  %v16 = vld [vmem:[%s0 + $0x8] sm:$0xf]
  %v17 = vld [vmem:[%s0 + $0xc] sm:$0xf]
  %v18 = vld [vmem:[%s0 + $0x10] sm:$0xf]
  %v19 = vld [vmem:[%s0 + $0x14] sm:$0xf]
  %v20 = vld [vmem:[%s0 + $0x18] sm:$0xf]
  %v21 = vld [vmem:[%s0 + $0x1c] sm:$0xf]
  %v22 = vld [vmem:[%s0 + $0x20] sm:$0xf]
  %v23 = vld [vmem:[%s0 + $0x24] sm:$0xf]
  %v24 = vld [vmem:[%s0 + $0x28] sm:$0xf]
  %v25 = vld [vmem:[%s0 + $0x2c] sm:$0xf]
  %v26 = vld [vmem:[%s0 + $0x30] sm:$0xf]
  %v27 = vld [vmem:[%s0 + $0x34] sm:$0xf]
  %v28 = vld [vmem:[%s0 + $0x38] sm:$0xf]
  %v29 = vld [vmem:[%s0 + $0x3c] sm:$0xf]
  %v30 = vld [vmem:[%s0 + $0x40] sm:$0xf]
  %v31 = vld [vmem:[%s0 + $0x44] sm:$0xf]
  %v32 = vld [vmem:[%s0 + $0x48] sm:$0xf]
  %v33 = vld [vmem:[%s0 + $0x4c] sm:$0xf]
  %v34 = vld [vmem:[%s0 + $0x50] sm:$0xf]
  %v35 = vld [vmem:[%s0 + $0x54] sm:$0xf]
  %v36 = vld [vmem:[%s0 + $0x58] sm:$0xf]
  %v37 = vld [vmem:[%s0 + $0x5c] sm:$0xf]
  %v38 = vld [vmem:[%s0 + $0x60] sm:$0xf]
  %v39 = vld [vmem:[%s0 + $0x64] sm:$0xf]
  %v40 = vld [vmem:[%s0 + $0x68] sm:$0xf]
  %v41 = vld [vmem:[%s0 + $0x6c] sm:$0xf]
  %v42 = vld [vmem:[%s0 + $0x70] sm:$0xf]
  %v43 = vld [vmem:[%s0 + $0x74] sm:$0xf]
  %v44 = vld [vmem:[%s0 + $0x78] sm:$0xf]
  %v45 = vld [vmem:[%s0 + $0x7c] sm:$0xf]
  %v46 = vld [vmem:[%s0 + $0x80] sm:$0xf]
  %v47 = vld [vmem:[%s0 + $0x84] sm:$0xf]
  %v48 = vld [vmem:[%s0 + $0x88] sm:$0xf]
  %v49 = vld [vmem:[%s0 + $0x8c] sm:$0xf]
  %v50 = vld [vmem:[%s0 + $0x90] sm:$0xf]
  %v51 = vld [vmem:[%s0 + $0x94] sm:$0xf]
  %v52 = vld [vmem:[%s0 + $0x98] sm:$0xf]
  %v53 = vld [vmem:[%s0 + $0x9c] sm:$0xf]
  %v54 = vld [vmem:[%s0 + $0xa0] sm:$0xf]
  %v55 = vld [vmem:[%s0 + $0xa4] sm:$0xf]
  %v56 = vld [vmem:[%s0 + $0xa8] sm:$0xf]
  %v57 = vld [vmem:[%s0 + $0xac] sm:$0xf]
  %v58 = vld [vmem:[%s0 + $0xb0] sm:$0xf]
  %v59 = vld [vmem:[%s0 + $0xb4] sm:$0xf]
  %v60 = vld [vmem:[%s0 + $0xb8] sm:$0xf]
  %v61 = vld [vmem:[%s0 + $0xbc] sm:$0xf]
  %v62 = vld [vmem:[%s0 + $0xc0] sm:$0xf]
  %v63 = vld [vmem:[%s0 + $0xc4] sm:$0xf]
  %v64 = vld [vmem:[%s0 + $0xc8] sm:$0xf]
  %v65 = vld [vmem:[%s0 + $0xcc] sm:$0xf]
  %v66 = vld [vmem:[%s0 + $0xd0] sm:$0xf]
  %v67 = vld [vmem:[%s0 + $0xd4] sm:$0xf]
  %v68 = vld [vmem:[%s0 + $0xd8] sm:$0xf]
  %v69 = vld [vmem:[%s0 + $0xdc] sm:$0xf]
  %v70 = vld [vmem:[%s0 + $0xe0] sm:$0xf]
  %v71 = vld [vmem:[%s0 + $0xe4] sm:$0xf]
  %v72 = vld [vmem:[%s0 + $0xe8] sm:$0xf]
  %v73 = vld [vmem:[%s0 + $0xec] sm:$0xf]
  %v74 = vld [vmem:[%s0 + $0xf0] sm:$0xf]
  %v75 = vld [vmem:[%s0 + $0xf4] sm:$0xf]
  %v76 = vld [vmem:[%s0 + $0xf8] sm:$0xf]
  %v77 = vld [vmem:[%s0 + $0xfc] sm:$0xf]
  %v78 = vunpack.c.l.bf16 %v14
  %v79 = vunpack.c.l.bf16 %v15
  %v80 = vunpack.c.l.bf16 %v16
  %v81 = vunpack.c.l.bf16 %v17
  %v82 = vunpack.c.l.bf16 %v18
  %v83 = vunpack.c.l.bf16 %v19
  %v84 = vunpack.c.l.bf16 %v20
  %v85 = vunpack.c.l.bf16 %v21
  %v86 = vunpack.c.l.bf16 %v22
  %v87 = vunpack.c.l.bf16 %v23
  %v88 = vunpack.c.l.bf16 %v24
  %v89 = vunpack.c.l.bf16 %v25
  %v90 = vunpack.c.l.bf16 %v26
  %v91 = vunpack.c.l.bf16 %v27
  %v92 = vunpack.c.l.bf16 %v28
  %v93 = vunpack.c.l.bf16 %v29
  %v94 = vunpack.c.l.bf16 %v30
  %v95 = vunpack.c.l.bf16 %v31
  %v96 = vunpack.c.l.bf16 %v32
  %v97 = vunpack.c.l.bf16 %v33
  %v98 = vunpack.c.l.bf16 %v34
  %v99 = vunpack.c.l.bf16 %v35
  %v100 = vunpack.c.l.bf16 %v36
  %v101 = vunpack.c.l.bf16 %v37
  %v102 = vunpack.c.l.bf16 %v38
  %v103 = vunpack.c.l.bf16 %v39
  %v104 = vunpack.c.l.bf16 %v40
  %v105 = vunpack.c.l.bf16 %v41
  %v106 = vunpack.c.l.bf16 %v42
  %v107 = vunpack.c.l.bf16 %v43
  %v108 = vunpack.c.l.bf16 %v44
  %v109 = vunpack.c.l.bf16 %v45
  %v110 = vunpack.c.l.bf16 %v46
  %v111 = vunpack.c.l.bf16 %v47
  %v112 = vunpack.c.l.bf16 %v48
  %v113 = vunpack.c.l.bf16 %v49
  %v114 = vunpack.c.l.bf16 %v50
  %v115 = vunpack.c.l.bf16 %v51
  %v116 = vunpack.c.l.bf16 %v52
  %v117 = vunpack.c.l.bf16 %v53
  %v118 = vunpack.c.l.bf16 %v54
  %v119 = vunpack.c.l.bf16 %v55
  %v120 = vunpack.c.l.bf16 %v56
  %v121 = vunpack.c.l.bf16 %v57
  %v122 = vunpack.c.l.bf16 %v58
  %v123 = vunpack.c.l.bf16 %v59
  %v124 = vunpack.c.l.bf16 %v60
  %v125 = vunpack.c.l.bf16 %v61
  %v126 = vunpack.c.l.bf16 %v62
  %v127 = vunpack.c.l.bf16 %v63
  %v128 = vunpack.c.l.bf16 %v64
  %v129 = vunpack.c.l.bf16 %v65
  %v130 = vunpack.c.l.bf16 %v66
  %v131 = vunpack.c.l.bf16 %v67
  %v132 = vunpack.c.l.bf16 %v68
  %v133 = vunpack.c.l.bf16 %v69
  %v134 = vunpack.c.l.bf16 %v70
  %v135 = vunpack.c.l.bf16 %v71
  %v136 = vunpack.c.l.bf16 %v72
  %v137 = vunpack.c.l.bf16 %v73
  %v138 = vunpack.c.l.bf16 %v74
  %v139 = vunpack.c.l.bf16 %v75
  %v140 = vunpack.c.l.bf16 %v76
  %v141 = vunpack.c.l.bf16 %v77
  %v142 = vld [vmem:[%s1] sm:$0x1]
  %v144 = vperm.slane %v142, 0
  %v146 = vmul.f32 %v78, %v144
  %v147 = vmul.f32 %v79, %v144
  %v148 = vmul.f32 %v80, %v144
  %v149 = vmul.f32 %v81, %v144
  %v150 = vmul.f32 %v82, %v144
  %v151 = vmul.f32 %v83, %v144
  %v152 = vmul.f32 %v84, %v144
  %v153 = vmul.f32 %v85, %v144
  %v154 = vmul.f32 %v86, %v144
  %v155 = vmul.f32 %v87, %v144
  %v156 = vmul.f32 %v88, %v144
  %v157 = vmul.f32 %v89, %v144
  %v158 = vmul.f32 %v90, %v144
  %v159 = vmul.f32 %v91, %v144
  %v160 = vmul.f32 %v92, %v144
  %v161 = vmul.f32 %v93, %v144
  %v162 = vmul.f32 %v94, %v144
  %v163 = vmul.f32 %v95, %v144
  %v164 = vmul.f32 %v96, %v144
  %v165 = vmul.f32 %v97, %v144
  %v166 = vmul.f32 %v98, %v144
  %v167 = vmul.f32 %v99, %v144
  %v168 = vmul.f32 %v100, %v144
  %v169 = vmul.f32 %v101, %v144
  %v170 = vmul.f32 %v102, %v144
  %v171 = vmul.f32 %v103, %v144
  %v172 = vmul.f32 %v104, %v144
  %v173 = vmul.f32 %v105, %v144
  %v174 = vmul.f32 %v106, %v144
  %v175 = vmul.f32 %v107, %v144
  %v176 = vmul.f32 %v108, %v144
  %v177 = vmul.f32 %v109, %v144
  %v178 = vmul.f32 %v110, %v144
  %v179 = vmul.f32 %v111, %v144
  %v180 = vmul.f32 %v112, %v144
  %v181 = vmul.f32 %v113, %v144
  %v182 = vmul.f32 %v114, %v144
  %v183 = vmul.f32 %v115, %v144
  %v184 = vmul.f32 %v116, %v144
  %v185 = vmul.f32 %v117, %v144
  %v186 = vmul.f32 %v118, %v144
  %v187 = vmul.f32 %v119, %v144
  %v188 = vmul.f32 %v120, %v144
  %v189 = vmul.f32 %v121, %v144
  %v190 = vmul.f32 %v122, %v144
  %v191 = vmul.f32 %v123, %v144
  %v192 = vmul.f32 %v124, %v144
  %v193 = vmul.f32 %v125, %v144
  %v194 = vmul.f32 %v126, %v144
  %v195 = vmul.f32 %v127, %v144
  %v196 = vmul.f32 %v128, %v144
  %v197 = vmul.f32 %v129, %v144
  %v198 = vmul.f32 %v130, %v144
  %v199 = vmul.f32 %v131, %v144
  %v200 = vmul.f32 %v132, %v144
  %v201 = vmul.f32 %v133, %v144
  %v202 = vmul.f32 %v134, %v144
  %v203 = vmul.f32 %v135, %v144
  %v204 = vmul.f32 %v136, %v144
  %v205 = vmul.f32 %v137, %v144
  %v206 = vmul.f32 %v138, %v144
  %v207 = vmul.f32 %v139, %v144
  %v208 = vmul.f32 %v140, %v144
  %v209 = vmul.f32 %v141, %v144
  %v210 = vld [vmem:[%s2] sm:$0x1]
  %v212 = vperm.slane %v210, 0
  %v214 = vadd.f32 %v146, %v212
  %v215 = vadd.f32 %v147, %v212
  %v216 = vadd.f32 %v148, %v212
  %v217 = vadd.f32 %v149, %v212
  %v218 = vadd.f32 %v150, %v212
  %v219 = vadd.f32 %v151, %v212
  %v220 = vadd.f32 %v152, %v212
  %v221 = vadd.f32 %v153, %v212
  %v222 = vadd.f32 %v154, %v212
  %v223 = vadd.f32 %v155, %v212
  %v224 = vadd.f32 %v156, %v212
  %v225 = vadd.f32 %v157, %v212
  %v226 = vadd.f32 %v158, %v212
  %v227 = vadd.f32 %v159, %v212
  %v228 = vadd.f32 %v160, %v212
  %v229 = vadd.f32 %v161, %v212
  %v230 = vadd.f32 %v162, %v212
  %v231 = vadd.f32 %v163, %v212
  %v232 = vadd.f32 %v164, %v212
  %v233 = vadd.f32 %v165, %v212
  %v234 = vadd.f32 %v166, %v212
  %v235 = vadd.f32 %v167, %v212
  %v236 = vadd.f32 %v168, %v212
  %v237 = vadd.f32 %v169, %v212
  %v238 = vadd.f32 %v170, %v212
  %v239 = vadd.f32 %v171, %v212
  %v240 = vadd.f32 %v172, %v212
  %v241 = vadd.f32 %v173, %v212
  %v242 = vadd.f32 %v174, %v212
  %v243 = vadd.f32 %v175, %v212
  %v244 = vadd.f32 %v176, %v212
  %v245 = vadd.f32 %v177, %v212
  %v246 = vadd.f32 %v178, %v212
  %v247 = vadd.f32 %v179, %v212
  %v248 = vadd.f32 %v180, %v212
  %v249 = vadd.f32 %v181, %v212
  %v250 = vadd.f32 %v182, %v212
  %v251 = vadd.f32 %v183, %v212
  %v252 = vadd.f32 %v184, %v212
  %v253 = vadd.f32 %v185, %v212
  %v254 = vadd.f32 %v186, %v212
  %v255 = vadd.f32 %v187, %v212
  %v256 = vadd.f32 %v188, %v212
  %v257 = vadd.f32 %v189, %v212
  %v258 = vadd.f32 %v190, %v212
  %v259 = vadd.f32 %v191, %v212
  %v260 = vadd.f32 %v192, %v212
  %v261 = vadd.f32 %v193, %v212
  %v262 = vadd.f32 %v194, %v212
  %v263 = vadd.f32 %v195, %v212
  %v264 = vadd.f32 %v196, %v212
  %v265 = vadd.f32 %v197, %v212
  %v266 = vadd.f32 %v198, %v212
  %v267 = vadd.f32 %v199, %v212
  %v268 = vadd.f32 %v200, %v212
  %v269 = vadd.f32 %v201, %v212
  %v270 = vadd.f32 %v202, %v212
  %v271 = vadd.f32 %v203, %v212
  %v272 = vadd.f32 %v204, %v212
  %v273 = vadd.f32 %v205, %v212
  %v274 = vadd.f32 %v206, %v212
  %v275 = vadd.f32 %v207, %v212
  %v276 = vadd.f32 %v208, %v212
  %v277 = vadd.f32 %v209, %v212
  %v278 = vmax.f32 %v214, 0.0
  %v279 = vmax.f32 %v215, 0.0
  %v280 = vmax.f32 %v216, 0.0
  %v281 = vmax.f32 %v217, 0.0
  %v282 = vmax.f32 %v218, 0.0
  %v283 = vmax.f32 %v219, 0.0
  %v284 = vmax.f32 %v220, 0.0
  %v285 = vmax.f32 %v221, 0.0
  %v286 = vmax.f32 %v222, 0.0
  %v287 = vmax.f32 %v223, 0.0
  %v288 = vmax.f32 %v224, 0.0
  %v289 = vmax.f32 %v225, 0.0
  %v290 = vmax.f32 %v226, 0.0
  %v291 = vmax.f32 %v227, 0.0
  %v292 = vmax.f32 %v228, 0.0
  %v293 = vmax.f32 %v229, 0.0
  %v294 = vmax.f32 %v230, 0.0
  %v295 = vmax.f32 %v231, 0.0
  %v296 = vmax.f32 %v232, 0.0
  %v297 = vmax.f32 %v233, 0.0
  %v298 = vmax.f32 %v234, 0.0
  %v299 = vmax.f32 %v235, 0.0
  %v300 = vmax.f32 %v236, 0.0
  %v301 = vmax.f32 %v237, 0.0
  %v302 = vmax.f32 %v238, 0.0
  %v303 = vmax.f32 %v239, 0.0
  %v304 = vmax.f32 %v240, 0.0
  %v305 = vmax.f32 %v241, 0.0
  %v306 = vmax.f32 %v242, 0.0
  %v307 = vmax.f32 %v243, 0.0
  %v308 = vmax.f32 %v244, 0.0
  %v309 = vmax.f32 %v245, 0.0
  %v310 = vmax.f32 %v246, 0.0
  %v311 = vmax.f32 %v247, 0.0
  %v312 = vmax.f32 %v248, 0.0
  %v313 = vmax.f32 %v249, 0.0
  %v314 = vmax.f32 %v250, 0.0
  %v315 = vmax.f32 %v251, 0.0
  %v316 = vmax.f32 %v252, 0.0
  %v317 = vmax.f32 %v253, 0.0
  %v318 = vmax.f32 %v254, 0.0
  %v319 = vmax.f32 %v255, 0.0
  %v320 = vmax.f32 %v256, 0.0
  %v321 = vmax.f32 %v257, 0.0
  %v322 = vmax.f32 %v258, 0.0
  %v323 = vmax.f32 %v259, 0.0
  %v324 = vmax.f32 %v260, 0.0
  %v325 = vmax.f32 %v261, 0.0
  %v326 = vmax.f32 %v262, 0.0
  %v327 = vmax.f32 %v263, 0.0
  %v328 = vmax.f32 %v264, 0.0
  %v329 = vmax.f32 %v265, 0.0
  %v330 = vmax.f32 %v266, 0.0
  %v331 = vmax.f32 %v267, 0.0
  %v332 = vmax.f32 %v268, 0.0
  %v333 = vmax.f32 %v269, 0.0
  %v334 = vmax.f32 %v270, 0.0
  %v335 = vmax.f32 %v271, 0.0
  %v336 = vmax.f32 %v272, 0.0
  %v337 = vmax.f32 %v273, 0.0
  %v338 = vmax.f32 %v274, 0.0
  %v339 = vmax.f32 %v275, 0.0
  %v340 = vmax.f32 %v276, 0.0
  %v341 = vmax.f32 %v277, 0.0
  %342 = vst [vmem:[%s3] sm:$0xff] %v278
  %343 = vst [vmem:[%s3 + $0x8] sm:$0xff] %v279
  %344 = vst [vmem:[%s3 + $0x10] sm:$0xff] %v280
  %345 = vst [vmem:[%s3 + $0x18] sm:$0xff] %v281
  %346 = vst [vmem:[%s3 + $0x20] sm:$0xff] %v282
  %347 = vst [vmem:[%s3 + $0x28] sm:$0xff] %v283
  %348 = vst [vmem:[%s3 + $0x30] sm:$0xff] %v284
  %349 = vst [vmem:[%s3 + $0x38] sm:$0xff] %v285
  %350 = vst [vmem:[%s3 + $0x40] sm:$0xff] %v286
  %351 = vst [vmem:[%s3 + $0x48] sm:$0xff] %v287
  %352 = vst [vmem:[%s3 + $0x50] sm:$0xff] %v288
  %353 = vst [vmem:[%s3 + $0x58] sm:$0xff] %v289
  %354 = vst [vmem:[%s3 + $0x60] sm:$0xff] %v290
  %355 = vst [vmem:[%s3 + $0x68] sm:$0xff] %v291
  %356 = vst [vmem:[%s3 + $0x70] sm:$0xff] %v292
  %357 = vst [vmem:[%s3 + $0x78] sm:$0xff] %v293
  %358 = vst [vmem:[%s3 + $0x80] sm:$0xff] %v294
  %359 = vst [vmem:[%s3 + $0x88] sm:$0xff] %v295
  %360 = vst [vmem:[%s3 + $0x90] sm:$0xff] %v296
  %361 = vst [vmem:[%s3 + $0x98] sm:$0xff] %v297
  %362 = vst [vmem:[%s3 + $0xa0] sm:$0xff] %v298
  %363 = vst [vmem:[%s3 + $0xa8] sm:$0xff] %v299
  %364 = vst [vmem:[%s3 + $0xb0] sm:$0xff] %v300
  %365 = vst [vmem:[%s3 + $0xb8] sm:$0xff] %v301
  %366 = vst [vmem:[%s3 + $0xc0] sm:$0xff] %v302
  %367 = vst [vmem:[%s3 + $0xc8] sm:$0xff] %v303
  %368 = vst [vmem:[%s3 + $0xd0] sm:$0xff] %v304
  %369 = vst [vmem:[%s3 + $0xd8] sm:$0xff] %v305
  %370 = vst [vmem:[%s3 + $0xe0] sm:$0xff] %v306
  %371 = vst [vmem:[%s3 + $0xe8] sm:$0xff] %v307
  %372 = vst [vmem:[%s3 + $0xf0] sm:$0xff] %v308
  %373 = vst [vmem:[%s3 + $0xf8] sm:$0xff] %v309
  %374 = vst [vmem:[%s3 + $0x100] sm:$0xff] %v310
  %375 = vst [vmem:[%s3 + $0x108] sm:$0xff] %v311
  %376 = vst [vmem:[%s3 + $0x110] sm:$0xff] %v312
  %377 = vst [vmem:[%s3 + $0x118] sm:$0xff] %v313
  %378 = vst [vmem:[%s3 + $0x120] sm:$0xff] %v314
  %379 = vst [vmem:[%s3 + $0x128] sm:$0xff] %v315
  %380 = vst [vmem:[%s3 + $0x130] sm:$0xff] %v316
  %381 = vst [vmem:[%s3 + $0x138] sm:$0xff] %v317
  %382 = vst [vmem:[%s3 + $0x140] sm:$0xff] %v318
  %383 = vst [vmem:[%s3 + $0x148] sm:$0xff] %v319
  %384 = vst [vmem:[%s3 + $0x150] sm:$0xff] %v320
  %385 = vst [vmem:[%s3 + $0x158] sm:$0xff] %v321
  %386 = vst [vmem:[%s3 + $0x160] sm:$0xff] %v322
  %387 = vst [vmem:[%s3 + $0x168] sm:$0xff] %v323
  %388 = vst [vmem:[%s3 + $0x170] sm:$0xff] %v324
  %389 = vst [vmem:[%s3 + $0x178] sm:$0xff] %v325
  %390 = vst [vmem:[%s3 + $0x180] sm:$0xff] %v326
  %391 = vst [vmem:[%s3 + $0x188] sm:$0xff] %v327
  %392 = vst [vmem:[%s3 + $0x190] sm:$0xff] %v328
  %393 = vst [vmem:[%s3 + $0x198] sm:$0xff] %v329
  %394 = vst [vmem:[%s3 + $0x1a0] sm:$0xff] %v330
  %395 = vst [vmem:[%s3 + $0x1a8] sm:$0xff] %v331
  %396 = vst [vmem:[%s3 + $0x1b0] sm:$0xff] %v332
  %397 = vst [vmem:[%s3 + $0x1b8] sm:$0xff] %v333
  %398 = vst [vmem:[%s3 + $0x1c0] sm:$0xff] %v334
  %399 = vst [vmem:[%s3 + $0x1c8] sm:$0xff] %v335
  %400 = vst [vmem:[%s3 + $0x1d0] sm:$0xff] %v336
  %401 = vst [vmem:[%s3 + $0x1d8] sm:$0xff] %v337
  %402 = vst [vmem:[%s3 + $0x1e0] sm:$0xff] %v338
  %403 = vst [vmem:[%s3 + $0x1e8] sm:$0xff] %v339
  %404 = vst [vmem:[%s3 + $0x1f0] sm:$0xff] %v340
  %405 = vst [vmem:[%s3 + $0x1f8] sm:$0xff] %v341
  // Predicated region
  $region14: #{double_convolution_forward.5} parent=0 // pred_check
    _
  $region15: #{double_convolution_forward.5} parent=0 // pred_check_branch
    %407 = sbr.rel (0) target = $region17
  $region16: #{double_convolution_forward.5} parent=0 // pred_region
    _
  $region17: #{double_convolution_forward.5} parent=0 // pred_fallthru
    _
  // Predicated region
  $region18: #{double_convolution_forward.5} parent=0 // pred_check
    _
  $region19: #{double_convolution_forward.5} parent=0 // pred_check_branch
    %409 = sbr.rel (0) target = $region21
  $region20: #{double_convolution_forward.5} parent=0 // pred_region
    _
  $region21: #{double_convolution_forward.5} parent=0 // pred_fallthru
    _

// kernel: double_convolution_forward.4
$region0: #{double_convolution_forward.4}
  #allocation0 [shape = 'u32[]', space=smem, size = 0x4, offset = 0x4, fixed_abs, tag = 'smem constant byte address 0x4 - core index']
  #allocation1 [shape = 'u32[72,128]{1,0:T(1,128)}', space=vmem, size = 0x9000, scoped, tag = 'internal scratch']
  #allocation2 [shape = 'bf16[18,32,128]{2,1,0:T(8,128)(2,1)}', space=vmem, size = 0x24000, scoped, tag = 'scratch operand']
  #allocation3 [shape = 'f32[256,128]{1,0:T(8,128)}', space=vmem, size = 0x20000, scoped, tag = 'scratch operand']
  %s0 = inlined_call_operand.vmem [shape: bf16[2,16,16,128], index: 0, kind: input, shape index: {}]
  %s1 = inlined_call_operand.vmem [shape: bf16[3,384,128], index: 1, kind: input, shape index: {}]
  %s2 = inlined_call_operand.vmem [shape: f32[1,128], index: 2, kind: input, shape index: {}]
  %s3 = inlined_call_operand.vmem [shape: f32[1,128], index: 3, kind: input, shape index: {}]
  %s4 = inlined_call_operand.vmem [shape: bf16[2,16,16,128], index: 4, kind: output, shape index: {0}]
  %s5 = inlined_call_operand.vmem [shape: f32[2,1,1,128], index: 5, kind: output, shape index: {1}]
  %s6 = inlined_call_operand.vmem [shape: f32[2,1,1,128], index: 6, kind: output, shape index: {2}]
  %7 = xla_tuple %s4, %s5, %s6
  %s8 = sld [smem:[#allocation0]]
  $region69: #{double_convolution_forward.4} parent=0
    _
  %s10 = ssub.s32 1, %s8
  %s11 = scalar_select 0, %s10, %s8
  loop: start=0, step=1, limit=4
  $region2: #{double_convolution_forward.4} parent=0 // loop_pre_header
    _
  $region3: #{double_convolution_forward.4} parent=0 // loop_header
    %s13 = sphi 0, %s17
    %p14 = scmp.ge.s32.totalorder %s13, 4
    %s20 = sphi 0, %s32
    %s21 = sphi 0, %s28
    %s22 = sphi 0, %s20
    %s23 = sphi 0, %s21
    %s24 = sphi 0, %s22
    %s25 = sphi 0, %s23
    %s35 = sphi 0, %s37
    %s38 = sphi 0, %s35
    %s39 = sphi 0, %s38
    %s55 = sphi 0, %s39
    %s59 = sphi 0, %s59
    %s61 = sphi 0, %s59
    %s62 = sphi 0, %s61
    %s76 = sphi 0, %s62
    %s80 = sphi 0, %s80
    %s82 = sphi 0, %s80
    %s83 = sphi 0, %s82
    %s97 = sphi 0, %s83
    %s101 = sphi 0, %s101
    %s103 = sphi 0, %s101
    %s104 = sphi 0, %s103
    %s118 = sphi 0, %s104
    %s126 = sphi 0, %s128
    %s129 = sphi 0, %s126
    %s130 = sphi 0, %s129
    %s146 = sphi 0, %s130
    %s154 = sphi 0, %s156
    %s157 = sphi 0, %s154
    %s158 = sphi 0, %s157
    %s174 = sphi 0, %s158
    %s182 = sphi 0, %s184
    %s185 = sphi 0, %s182
    %s186 = sphi 0, %s185
    %s202 = sphi 0, %s186
  $region4: #{double_convolution_forward.4} parent=0 // loop_header_branch
    %16 = sbr.rel (%p14) target = $region8
  $region5: #{double_convolution_forward.4} parent=0 // loop_body
    %s18 = ssub.s32 %s13, 1
    %s19 = ssub.s32 %s13, 2
    %s26 = sadd.s32 1, %s21
    %p27 = scmp.ge.s32.totalorder %s26, 1
    %s28 = scalar_select %p27, 0, %s26
    %s29 = sadd.s32 1, %s20
    %s30 = scalar_select %p27, %s29, %s20
    %p31 = scmp.ge.s32.totalorder %s30, 2
    %s32 = scalar_select %p31, 0, %s30
    %s33 = ssub.s32 %s20, %s32
    %p34 = scmp.eq.s32.totalorder %s33, 0
    %s36 = sadd.s32 %s35, 1
    %s37 = scalar_select %p34, %s35, %s36
    %p40 = pneg %p34
    %p41 = scmp.eq.s32.totalorder %s13, 1
    %p42 = por %p40, %p41
    %p43 = scmp.ne.s32.totalorder %s35, %s38
    %p44 = scmp.eq.s32.totalorder %s13, 0
    %p45 = por %p43, %p44
    %p46 = scmp.ne.s32.totalorder %s35, %s38
    %p47 = scmp.eq.s32.totalorder %s18, 1
    %p48 = por %p46, %p47
    %p49 = scmp.ne.s32.totalorder %s38, %s39
    %p50 = scmp.eq.s32.totalorder %s18, 0
    %p51 = por %p49, %p50
    %p52 = scmp.ne.s32.totalorder %s38, %s39
    %p53 = scmp.eq.s32.totalorder %s19, 1
    %p54 = por %p52, %p53
    %p56 = scmp.ne.s32.totalorder %s39, %s55
    %p57 = scmp.eq.s32.totalorder %s19, 0
    %p58 = por %p56, %p57
    %s60 = sadd.s32 %s59, 1
    %p63 = scmp.eq.s32.totalorder %s13, 1
    %p64 = scmp.ne.s32.totalorder %s59, %s61
    %p65 = scmp.eq.s32.totalorder %s13, 0
    %p66 = por %p64, %p65
    %p67 = scmp.ne.s32.totalorder %s59, %s61
    %p68 = scmp.eq.s32.totalorder %s18, 1
    %p69 = por %p67, %p68
    %p70 = scmp.ne.s32.totalorder %s61, %s62
    %p71 = scmp.eq.s32.totalorder %s18, 0
    %p72 = por %p70, %p71
    %p73 = scmp.ne.s32.totalorder %s61, %s62
    %p74 = scmp.eq.s32.totalorder %s19, 1
    %p75 = por %p73, %p74
    %p77 = scmp.ne.s32.totalorder %s62, %s76
    %p78 = scmp.eq.s32.totalorder %s19, 0
    %p79 = por %p77, %p78
    %s81 = sadd.s32 %s80, 1
    %p84 = scmp.eq.s32.totalorder %s13, 1
    %p85 = scmp.ne.s32.totalorder %s80, %s82
    %p86 = scmp.eq.s32.totalorder %s13, 0
    %p87 = por %p85, %p86
    %p88 = scmp.ne.s32.totalorder %s80, %s82
    %p89 = scmp.eq.s32.totalorder %s18, 1
    %p90 = por %p88, %p89
    %p91 = scmp.ne.s32.totalorder %s82, %s83
    %p92 = scmp.eq.s32.totalorder %s18, 0
    %p93 = por %p91, %p92
    %p94 = scmp.ne.s32.totalorder %s82, %s83
    %p95 = scmp.eq.s32.totalorder %s19, 1
    %p96 = por %p94, %p95
    %p98 = scmp.ne.s32.totalorder %s83, %s97
    %p99 = scmp.eq.s32.totalorder %s19, 0
    %p100 = por %p98, %p99
    %s102 = sadd.s32 %s101, 1
    %p105 = scmp.eq.s32.totalorder %s13, 1
    %p106 = scmp.ne.s32.totalorder %s101, %s103
    %p107 = scmp.eq.s32.totalorder %s13, 0
    %p108 = por %p106, %p107
    %p109 = scmp.ne.s32.totalorder %s101, %s103
    %p110 = scmp.eq.s32.totalorder %s18, 1
    %p111 = por %p109, %p110
    %p112 = scmp.ne.s32.totalorder %s103, %s104
    %p113 = scmp.eq.s32.totalorder %s18, 0
    %p114 = por %p112, %p113
    %p115 = scmp.ne.s32.totalorder %s103, %s104
    %p116 = scmp.eq.s32.totalorder %s19, 1
    %p117 = por %p115, %p116
    %p119 = scmp.ne.s32.totalorder %s104, %s118
    %p120 = scmp.eq.s32.totalorder %s19, 0
    %p121 = por %p119, %p120
    %s122 = ssub.s32 %s20, %s32
    %s123 = ssub.s32 %s21, %s28
    %s124 = sor.u32 %s122, %s123
    %p125 = scmp.eq.s32.totalorder %s124, 0
    %s127 = sadd.s32 %s126, 1
    %s128 = scalar_select %p125, %s126, %s127
    %p131 = pneg %p125
    %p132 = scmp.eq.s32.totalorder %s13, 1
    %p133 = por %p131, %p132
    %p134 = scmp.ne.s32.totalorder %s126, %s129
    %p135 = scmp.eq.s32.totalorder %s13, 0
    %p136 = por %p134, %p135
    %p137 = scmp.ne.s32.totalorder %s126, %s129
    %p138 = scmp.eq.s32.totalorder %s18, 1
    %p139 = por %p137, %p138
    %p140 = scmp.ne.s32.totalorder %s129, %s130
    %p141 = scmp.eq.s32.totalorder %s18, 0
    %p142 = por %p140, %p141
    %p143 = scmp.ne.s32.totalorder %s129, %s130
    %p144 = scmp.eq.s32.totalorder %s19, 1
    %p145 = por %p143, %p144
    %p147 = scmp.ne.s32.totalorder %s130, %s146
    %p148 = scmp.eq.s32.totalorder %s19, 0
    %p149 = por %p147, %p148
    %s150 = ssub.s32 %s20, %s32
    %s151 = ssub.s32 %s21, %s28
    %s152 = sor.u32 %s150, %s151
    %p153 = scmp.eq.s32.totalorder %s152, 0
    %s155 = sadd.s32 %s154, 1
    %s156 = scalar_select %p153, %s154, %s155
    %p159 = pneg %p153
    %p160 = scmp.eq.s32.totalorder %s13, 1
    %p161 = por %p159, %p160
    %p162 = scmp.ne.s32.totalorder %s154, %s157
    %p163 = scmp.eq.s32.totalorder %s13, 0
    %p164 = por %p162, %p163
    %p165 = scmp.ne.s32.totalorder %s154, %s157
    %p166 = scmp.eq.s32.totalorder %s18, 1
    %p167 = por %p165, %p166
    %p168 = scmp.ne.s32.totalorder %s157, %s158
    %p169 = scmp.eq.s32.totalorder %s18, 0
    %p170 = por %p168, %p169
    %p171 = scmp.ne.s32.totalorder %s157, %s158
    %p172 = scmp.eq.s32.totalorder %s19, 1
    %p173 = por %p171, %p172
    %p175 = scmp.ne.s32.totalorder %s158, %s174
    %p176 = scmp.eq.s32.totalorder %s19, 0
    %p177 = por %p175, %p176
    %s178 = ssub.s32 %s20, %s32
    %s179 = ssub.s32 %s21, %s28
    %s180 = sor.u32 %s178, %s179
    %p181 = scmp.eq.s32.totalorder %s180, 0
    %s183 = sadd.s32 %s182, 1
    %s184 = scalar_select %p181, %s182, %s183
    %p187 = pneg %p181
    %p188 = scmp.eq.s32.totalorder %s13, 1
    %p189 = por %p187, %p188
    %p190 = scmp.ne.s32.totalorder %s182, %s185
    %p191 = scmp.eq.s32.totalorder %s13, 0
    %p192 = por %p190, %p191
    %p193 = scmp.ne.s32.totalorder %s182, %s185
    %p194 = scmp.eq.s32.totalorder %s18, 1
    %p195 = por %p193, %p194
    %p196 = scmp.ne.s32.totalorder %s185, %s186
    %p197 = scmp.eq.s32.totalorder %s18, 0
    %p198 = por %p196, %p197
    %p199 = scmp.ne.s32.totalorder %s185, %s186
    %p200 = scmp.eq.s32.totalorder %s19, 1
    %p201 = por %p199, %p200
    %p203 = scmp.ne.s32.totalorder %s186, %s202
    %p204 = scmp.eq.s32.totalorder %s19, 0
    %p205 = por %p203, %p204
    %p206 = scmp.le.s32.totalorder 1, %s13
    %p207 = scmp.lt.s32.totalorder %s13, 3
    %p208 = pnand %p206, %p207
    %p209 = pneg %p208
    // Predicated region
    $region9: #{double_convolution_forward.4} parent=5 // pred_check
      _
    $region10: #{double_convolution_forward.4} parent=5 // pred_check_branch
      %211 = sbr.rel (%p208) target = $region12
    $region11: #{double_convolution_forward.4} parent=5 // pred_region
      %s212 = ssub.s32 %s13, 1
      // Predicated region
      $region13: #{double_convolution_forward.4} parent=11 // pred_check
        %p213 = pneg %p72
      $region14: #{double_convolution_forward.4} parent=11 // pred_check_branch
        %215 = sbr.rel (%p213) target = $region16
      $region15: #{double_convolution_forward.4} parent=11 // pred_region
        _
      $region16: #{double_convolution_forward.4} parent=11 // pred_fallthru
        _
      // Predicated region
      $region17: #{double_convolution_forward.4} parent=11 // pred_check
        %p216 = pneg %p93
      $region18: #{double_convolution_forward.4} parent=11 // pred_check_branch
        %218 = sbr.rel (%p216) target = $region20
      $region19: #{double_convolution_forward.4} parent=11 // pred_region
        _
      $region20: #{double_convolution_forward.4} parent=11 // pred_fallthru
        _
      // Predicated region
      $region21: #{double_convolution_forward.4} parent=11 // pred_check
        %p219 = pneg %p114
      $region22: #{double_convolution_forward.4} parent=11 // pred_check_branch
        %221 = sbr.rel (%p219) target = $region24
      $region23: #{double_convolution_forward.4} parent=11 // pred_region
        _
      $region24: #{double_convolution_forward.4} parent=11 // pred_fallthru
        _
    $region12: #{double_convolution_forward.4} parent=5 // pred_fallthru
      _
    %p222 = scmp.lt.s32.totalorder %s13, 2
    // Predicated region
    $region25: #{double_convolution_forward.4} parent=5 // pred_check
      %p223 = pneg %p222
    $region26: #{double_convolution_forward.4} parent=5 // pred_check_branch
      %225 = sbr.rel (%p223) target = $region28
    $region27: #{double_convolution_forward.4} parent=5 // pred_region
      // Predicated region
      $region29: #{double_convolution_forward.4} parent=27 // pred_check
        %p226 = pneg %p45
      $region30: #{double_convolution_forward.4} parent=27 // pred_check_branch
        %228 = sbr.rel (%p226) target = $region32
      $region31: #{double_convolution_forward.4} parent=27 // pred_region
        %p229 = scmp.lt.s32.totalorder %s20, 1
        %s230 = scalar_select %p229, %s20, 1
        %s231 = smul.addr %s230, 32
        %s232 = smul.addr %s231, 4
        %s233 = scalar_lea.vmem %s0, %s232
      $region32: #{double_convolution_forward.4} parent=27 // pred_fallthru
        _
    $region28: #{double_convolution_forward.4} parent=5 // pred_fallthru
      _
    %p234 = scmp.le.s32.totalorder 1, %s13
    %p235 = scmp.lt.s32.totalorder %s13, 3
    %p236 = pnand %p234, %p235
    %p237 = pneg %p236
    // Predicated region
    $region33: #{double_convolution_forward.4} parent=5 // pred_check
      _
    $region34: #{double_convolution_forward.4} parent=5 // pred_check_branch
      %239 = sbr.rel (%p236) target = $region36
    $region35: #{double_convolution_forward.4} parent=5 // pred_region
      %s240 = ssub.s32 %s13, 1
      %p241 = scmp.lt.s32.totalorder %s22, 1
      %s242 = scalar_select %p241, %s22, 1
      %s243 = smul.addr %s242, 32
      %s244 = smul.addr %s243, 4
      %s245 = scalar_lea.vmem %s0, %s244
      %p246 = pneg %p51
      %p247 = pneg %p48
      %p248 = pneg %p72
      %p249 = pneg %p69
      %p250 = pneg %p93
      %p251 = pneg %p90
      %p252 = pneg %p114
      %p253 = pneg %p111
      %p254 = pneg %p142
      %p255 = pneg %p139
      %s256 = smul.u32 16, %s23
      %p257 = scmp.lt.s32.totalorder %s22, 1
      %s258 = scalar_select %p257, %s22, 1
      %p259 = scmp.lt.s32.totalorder %s256, 15
      %s260 = scalar_select %p259, %s256, 15
      %s261 = smul.addr %s260, 2
      %s262 = smul.addr %s258, 32
      %s263 = sadd.s32 %s261, %s262
      %s264 = smul.addr %s263, 4
      %s265 = scalar_lea.vmem %s4, %s264
      %p266 = pneg %p170
      %p267 = pneg %p167
      %p268 = scmp.lt.s32.totalorder %s22, 1
      %s269 = scalar_select %p268, %s22, 1
      %p270 = scmp.lt.s32.totalorder %s23, 0
      %s271 = scalar_select %p270, %s23, 0
      %s272 = sadd.s32 %s271, %s269
      %s273 = scalar_lea.vmem %s5, %s272
      %p274 = pneg %p198
      %p275 = pneg %p195
      %p276 = scmp.lt.s32.totalorder %s22, 1
      %s277 = scalar_select %p276, %s22, 1
      %p278 = scmp.lt.s32.totalorder %s23, 0
      %s279 = scalar_select %p278, %s23, 0
      %s280 = sadd.s32 %s279, %s277
      %s281 = scalar_lea.vmem %s6, %s280
      %p282 = scmp.lt.s32.totalorder %s22, 1
      %s283 = scalar_select %p282, %s22, 1
      %s284 = smul.addr %s283, 32
      %s285 = smul.addr %s284, 4
      %s286 = scalar_lea.vmem %s0, %s285
      %s287 = smul.u32 16, %s23
      %p288 = scmp.lt.s32.totalorder %s22, 1
      %s289 = scalar_select %p288, %s22, 1
      %p290 = scmp.lt.s32.totalorder %s287, 15
      %s291 = scalar_select %p290, %s287, 15
      %s292 = smul.addr %s291, 2
      %s293 = smul.addr %s289, 32
      %s294 = sadd.s32 %s292, %s293
      %s295 = smul.addr %s294, 4
      %s296 = scalar_lea.vmem %s4, %s295
      %s297 = smul.u32 16, %s23
      %p298 = scmp.lt.s32.totalorder %s22, 1
      %s299 = scalar_select %p298, %s22, 1
      %p300 = scmp.lt.s32.totalorder %s23, 0
      %s301 = scalar_select %p300, %s23, 0
      %s302 = sadd.s32 %s301, %s299
      %s303 = scalar_lea.vmem %s5, %s302
      %p304 = scmp.lt.s32.totalorder %s22, 1
      %s305 = scalar_select %p304, %s22, 1
      %p306 = scmp.lt.s32.totalorder %s23, 0
      %s307 = scalar_select %p306, %s23, 0
      %s308 = sadd.s32 %s307, %s305
      %s309 = scalar_lea.vmem %s6, %s308
      %p311 = scmp.eq.s32.totalorder %s23, 0
      // Predicated region
      $region37: #{double_convolution_forward.4} parent=35 // pred_check
        %p312 = pneg %p311
      $region38: #{double_convolution_forward.4} parent=35 // pred_check_branch
        %314 = sbr.rel (%p312) target = $region40
      $region39: #{double_convolution_forward.4} parent=35 // pred_region
        %315 = vst [vmem:[#allocation2] sm:$0xf] 0
        %316 = vst [vmem:[#allocation2 + $0x4] sm:$0xf] 0
        %317 = vst [vmem:[#allocation2 + $0x8] sm:$0xf] 0
        %318 = vst [vmem:[#allocation2 + $0xc] sm:$0xf] 0
        %319 = vst [vmem:[#allocation2 + $0x10] sm:$0xf] 0
        %320 = vst [vmem:[#allocation2 + $0x14] sm:$0xf] 0
        %321 = vst [vmem:[#allocation2 + $0x18] sm:$0xf] 0
        %322 = vst [vmem:[#allocation2 + $0x1c] sm:$0xf] 0
        %323 = vst [vmem:[#allocation2 + $0x20] sm:$0xf] 0
        %324 = vst [vmem:[#allocation2 + $0x24] sm:$0xf] 0
        %325 = vst [vmem:[#allocation2 + $0x28] sm:$0xf] 0
        %326 = vst [vmem:[#allocation2 + $0x2c] sm:$0xf] 0
        %327 = vst [vmem:[#allocation2 + $0x30] sm:$0xf] 0
        %328 = vst [vmem:[#allocation2 + $0x34] sm:$0xf] 0
        %329 = vst [vmem:[#allocation2 + $0x38] sm:$0xf] 0
        %330 = vst [vmem:[#allocation2 + $0x3c] sm:$0xf] 0
        %331 = vst [vmem:[#allocation2 + $0x40] sm:$0xf] 0
        %332 = vst [vmem:[#allocation2 + $0x44] sm:$0xf] 0
        %333 = vst [vmem:[#allocation2 + $0x48] sm:$0xf] 0
        %334 = vst [vmem:[#allocation2 + $0x4c] sm:$0xf] 0
        %335 = vst [vmem:[#allocation2 + $0x50] sm:$0xf] 0
        %336 = vst [vmem:[#allocation2 + $0x54] sm:$0xf] 0
        %337 = vst [vmem:[#allocation2 + $0x58] sm:$0xf] 0
        %338 = vst [vmem:[#allocation2 + $0x5c] sm:$0xf] 0
        %339 = vst [vmem:[#allocation2 + $0x60] sm:$0xf] 0
        %340 = vst [vmem:[#allocation2 + $0x64] sm:$0xf] 0
        %341 = vst [vmem:[#allocation2 + $0x68] sm:$0xf] 0
        %342 = vst [vmem:[#allocation2 + $0x6c] sm:$0xf] 0
        %343 = vst [vmem:[#allocation2 + $0x70] sm:$0xf] 0
        %344 = vst [vmem:[#allocation2 + $0x74] sm:$0xf] 0
        %345 = vst [vmem:[#allocation2 + $0x78] sm:$0xf] 0
        %346 = vst [vmem:[#allocation2 + $0x7c] sm:$0xf] 0
        %347 = vst [vmem:[#allocation2 + $0x80] sm:$0xf] 0
        %348 = vst [vmem:[#allocation2 + $0x84] sm:$0xf] 0
        %349 = vst [vmem:[#allocation2 + $0x88] sm:$0xf] 0
        %350 = vst [vmem:[#allocation2 + $0x8c] sm:$0xf] 0
        %351 = vst [vmem:[#allocation2 + $0x90] sm:$0xf] 0
        %352 = vst [vmem:[#allocation2 + $0x94] sm:$0xf] 0
        %353 = vst [vmem:[#allocation2 + $0x98] sm:$0xf] 0
        %354 = vst [vmem:[#allocation2 + $0x9c] sm:$0xf] 0
        %355 = vst [vmem:[#allocation2 + $0xa0] sm:$0xf] 0
        %356 = vst [vmem:[#allocation2 + $0xa4] sm:$0xf] 0
        %357 = vst [vmem:[#allocation2 + $0xa8] sm:$0xf] 0
        %358 = vst [vmem:[#allocation2 + $0xac] sm:$0xf] 0
        %359 = vst [vmem:[#allocation2 + $0xb0] sm:$0xf] 0
        %360 = vst [vmem:[#allocation2 + $0xb4] sm:$0xf] 0
        %361 = vst [vmem:[#allocation2 + $0xb8] sm:$0xf] 0
        %362 = vst [vmem:[#allocation2 + $0xbc] sm:$0xf] 0
        %363 = vst [vmem:[#allocation2 + $0xc0] sm:$0xf] 0
        %364 = vst [vmem:[#allocation2 + $0xc4] sm:$0xf] 0
        %365 = vst [vmem:[#allocation2 + $0xc8] sm:$0xf] 0
        %366 = vst [vmem:[#allocation2 + $0xcc] sm:$0xf] 0
        %367 = vst [vmem:[#allocation2 + $0xd0] sm:$0xf] 0
        %368 = vst [vmem:[#allocation2 + $0xd4] sm:$0xf] 0
        %369 = vst [vmem:[#allocation2 + $0xd8] sm:$0xf] 0
        %370 = vst [vmem:[#allocation2 + $0xdc] sm:$0xf] 0
        %371 = vst [vmem:[#allocation2 + $0xe0] sm:$0xf] 0
        %372 = vst [vmem:[#allocation2 + $0xe4] sm:$0xf] 0
        %373 = vst [vmem:[#allocation2 + $0xe8] sm:$0xf] 0
        %374 = vst [vmem:[#allocation2 + $0xec] sm:$0xf] 0
        %375 = vst [vmem:[#allocation2 + $0xf0] sm:$0xf] 0
        %376 = vst [vmem:[#allocation2 + $0xf4] sm:$0xf] 0
        %377 = vst [vmem:[#allocation2 + $0xf8] sm:$0xf] 0
        %378 = vst [vmem:[#allocation2 + $0xfc] sm:$0xf] 0
        %379 = vst [vmem:[#allocation2 + $0x100] sm:$0xf] 0
        %380 = vst [vmem:[#allocation2 + $0x104] sm:$0xf] 0
        %381 = vst [vmem:[#allocation2 + $0x108] sm:$0xf] 0
        %382 = vst [vmem:[#allocation2 + $0x10c] sm:$0xf] 0
        %383 = vst [vmem:[#allocation2 + $0x110] sm:$0xf] 0
        %384 = vst [vmem:[#allocation2 + $0x114] sm:$0xf] 0
        %385 = vst [vmem:[#allocation2 + $0x118] sm:$0xf] 0
        %386 = vst [vmem:[#allocation2 + $0x11c] sm:$0xf] 0
        %v387 = vld [vmem:[%s286] sm:$0xf]
        %v388 = vld [vmem:[%s286 + $0x4] sm:$0xf]
        %v389 = vld [vmem:[%s286 + $0x8] sm:$0xf]
        %v390 = vld [vmem:[%s286 + $0xc] sm:$0xf]
        %v391 = vld [vmem:[%s286 + $0x10] sm:$0xf]
        %v392 = vld [vmem:[%s286 + $0x14] sm:$0xf]
        %v393 = vld [vmem:[%s286 + $0x18] sm:$0xf]
        %v394 = vld [vmem:[%s286 + $0x1c] sm:$0xf]
        %v395 = vld [vmem:[%s286 + $0x20] sm:$0xf]
        %v396 = vld [vmem:[%s286 + $0x24] sm:$0xf]
        %v397 = vld [vmem:[%s286 + $0x28] sm:$0xf]
        %v398 = vld [vmem:[%s286 + $0x2c] sm:$0xf]
        %v399 = vld [vmem:[%s286 + $0x30] sm:$0xf]
        %v400 = vld [vmem:[%s286 + $0x34] sm:$0xf]
        %v401 = vld [vmem:[%s286 + $0x38] sm:$0xf]
        %v402 = vld [vmem:[%s286 + $0x3c] sm:$0xf]
        %v403 = vld [vmem:[%s286 + $0x40] sm:$0xf]
        %v404 = vld [vmem:[%s286 + $0x44] sm:$0xf]
        %v405 = vld [vmem:[%s286 + $0x48] sm:$0xf]
        %v406 = vld [vmem:[%s286 + $0x4c] sm:$0xf]
        %v407 = vld [vmem:[%s286 + $0x50] sm:$0xf]
        %v408 = vld [vmem:[%s286 + $0x54] sm:$0xf]
        %v409 = vld [vmem:[%s286 + $0x58] sm:$0xf]
        %v410 = vld [vmem:[%s286 + $0x5c] sm:$0xf]
        %v411 = vld [vmem:[%s286 + $0x60] sm:$0xf]
        %v412 = vld [vmem:[%s286 + $0x64] sm:$0xf]
        %v413 = vld [vmem:[%s286 + $0x68] sm:$0xf]
        %v414 = vld [vmem:[%s286 + $0x6c] sm:$0xf]
        %v415 = vld [vmem:[%s286 + $0x70] sm:$0xf]
        %v416 = vld [vmem:[%s286 + $0x74] sm:$0xf]
        %v417 = vld [vmem:[%s286 + $0x78] sm:$0xf]
        %v418 = vld [vmem:[%s286 + $0x7c] sm:$0xf]
        %v419 = vunpack.c.l.bf16 %v387
        %v420 = vunpack.c.l.bf16 %v388
        %v421 = vunpack.c.l.bf16 %v389
        %v422 = vunpack.c.l.bf16 %v390
        %v423 = vunpack.c.l.bf16 %v391
        %v424 = vunpack.c.l.bf16 %v392
        %v425 = vunpack.c.l.bf16 %v393
        %v426 = vunpack.c.l.bf16 %v394
        %v427 = vunpack.c.l.bf16 %v395
        %v428 = vunpack.c.l.bf16 %v396
        %v429 = vunpack.c.l.bf16 %v397
        %v430 = vunpack.c.l.bf16 %v398
        %v431 = vunpack.c.l.bf16 %v399
        %v432 = vunpack.c.l.bf16 %v400
        %v433 = vunpack.c.l.bf16 %v401
        %v434 = vunpack.c.l.bf16 %v402
        %v435 = vunpack.c.l.bf16 %v403
        %v436 = vunpack.c.l.bf16 %v404
        %v437 = vunpack.c.l.bf16 %v405
        %v438 = vunpack.c.l.bf16 %v406
        %v439 = vunpack.c.l.bf16 %v407
        %v440 = vunpack.c.l.bf16 %v408
        %v441 = vunpack.c.l.bf16 %v409
        %v442 = vunpack.c.l.bf16 %v410
        %v443 = vunpack.c.l.bf16 %v411
        %v444 = vunpack.c.l.bf16 %v412
        %v445 = vunpack.c.l.bf16 %v413
        %v446 = vunpack.c.l.bf16 %v414
        %v447 = vunpack.c.l.bf16 %v415
        %v448 = vunpack.c.l.bf16 %v416
        %v449 = vunpack.c.l.bf16 %v417
        %v450 = vunpack.c.l.bf16 %v418
        %v451 = vld [vmem:[%s2] sm:$0x1]
        %v453 = vperm.slane %v451, 0
        %v455 = vmul.f32 %v419, %v453
        %v456 = vmul.f32 %v420, %v453
        %v457 = vmul.f32 %v421, %v453
        %v458 = vmul.f32 %v422, %v453
        %v459 = vmul.f32 %v423, %v453
        %v460 = vmul.f32 %v424, %v453
        %v461 = vmul.f32 %v425, %v453
        %v462 = vmul.f32 %v426, %v453
        %v463 = vmul.f32 %v427, %v453
        %v464 = vmul.f32 %v428, %v453
        %v465 = vmul.f32 %v429, %v453
        %v466 = vmul.f32 %v430, %v453
        %v467 = vmul.f32 %v431, %v453
        %v468 = vmul.f32 %v432, %v453
        %v469 = vmul.f32 %v433, %v453
        %v470 = vmul.f32 %v434, %v453
        %v471 = vmul.f32 %v435, %v453
        %v472 = vmul.f32 %v436, %v453
        %v473 = vmul.f32 %v437, %v453
        %v474 = vmul.f32 %v438, %v453
        %v475 = vmul.f32 %v439, %v453
        %v476 = vmul.f32 %v440, %v453
        %v477 = vmul.f32 %v441, %v453
        %v478 = vmul.f32 %v442, %v453
        %v479 = vmul.f32 %v443, %v453
        %v480 = vmul.f32 %v444, %v453
        %v481 = vmul.f32 %v445, %v453
        %v482 = vmul.f32 %v446, %v453
        %v483 = vmul.f32 %v447, %v453
        %v484 = vmul.f32 %v448, %v453
        %v485 = vmul.f32 %v449, %v453
        %v486 = vmul.f32 %v450, %v453
        %v487 = vld [vmem:[%s3] sm:$0x1]
        %v489 = vperm.slane %v487, 0
        %v491 = vadd.f32 %v455, %v489
        %v492 = vadd.f32 %v456, %v489
        %v493 = vadd.f32 %v457, %v489
        %v494 = vadd.f32 %v458, %v489
        %v495 = vadd.f32 %v459, %v489
        %v496 = vadd.f32 %v460, %v489
        %v497 = vadd.f32 %v461, %v489
        %v498 = vadd.f32 %v462, %v489
        %v499 = vadd.f32 %v463, %v489
        %v500 = vadd.f32 %v464, %v489
        %v501 = vadd.f32 %v465, %v489
        %v502 = vadd.f32 %v466, %v489
        %v503 = vadd.f32 %v467, %v489
        %v504 = vadd.f32 %v468, %v489
        %v505 = vadd.f32 %v469, %v489
        %v506 = vadd.f32 %v470, %v489
        %v507 = vadd.f32 %v471, %v489
        %v508 = vadd.f32 %v472, %v489
        %v509 = vadd.f32 %v473, %v489
        %v510 = vadd.f32 %v474, %v489
        %v511 = vadd.f32 %v475, %v489
        %v512 = vadd.f32 %v476, %v489
        %v513 = vadd.f32 %v477, %v489
        %v514 = vadd.f32 %v478, %v489
        %v515 = vadd.f32 %v479, %v489
        %v516 = vadd.f32 %v480, %v489
        %v517 = vadd.f32 %v481, %v489
        %v518 = vadd.f32 %v482, %v489
        %v519 = vadd.f32 %v483, %v489
        %v520 = vadd.f32 %v484, %v489
        %v521 = vadd.f32 %v485, %v489
        %v522 = vadd.f32 %v486, %v489
        %v523 = vmax.f32 %v491, 0.0
        %v524 = vmax.f32 %v492, 0.0
        %v525 = vmax.f32 %v493, 0.0
        %v526 = vmax.f32 %v494, 0.0
        %v527 = vmax.f32 %v495, 0.0
        %v528 = vmax.f32 %v496, 0.0
        %v529 = vmax.f32 %v497, 0.0
        %v530 = vmax.f32 %v498, 0.0
        %v531 = vmax.f32 %v499, 0.0
        %v532 = vmax.f32 %v500, 0.0
        %v533 = vmax.f32 %v501, 0.0
        %v534 = vmax.f32 %v502, 0.0
        %v535 = vmax.f32 %v503, 0.0
        %v536 = vmax.f32 %v504, 0.0
        %v537 = vmax.f32 %v505, 0.0
        %v538 = vmax.f32 %v506, 0.0
        %v539 = vmax.f32 %v507, 0.0
        %v540 = vmax.f32 %v508, 0.0
        %v541 = vmax.f32 %v509, 0.0
        %v542 = vmax.f32 %v510, 0.0
        %v543 = vmax.f32 %v511, 0.0
        %v544 = vmax.f32 %v512, 0.0
        %v545 = vmax.f32 %v513, 0.0
        %v546 = vmax.f32 %v514, 0.0
        %v547 = vmax.f32 %v515, 0.0
        %v548 = vmax.f32 %v516, 0.0
        %v549 = vmax.f32 %v517, 0.0
        %v550 = vmax.f32 %v518, 0.0
        %v551 = vmax.f32 %v519, 0.0
        %v552 = vmax.f32 %v520, 0.0
        %v553 = vmax.f32 %v521, 0.0
        %v554 = vmax.f32 %v522, 0.0
        %v555 = vpack.c.bf16 %v523, %v523
        %v556 = vpack.c.bf16 %v524, %v524
        %v557 = vpack.c.bf16 %v525, %v525
        %v558 = vpack.c.bf16 %v526, %v526
        %v559 = vpack.c.bf16 %v527, %v527
        %v560 = vpack.c.bf16 %v528, %v528
        %v561 = vpack.c.bf16 %v529, %v529
        %v562 = vpack.c.bf16 %v530, %v530
        %v563 = vpack.c.bf16 %v531, %v531
        %v564 = vpack.c.bf16 %v532, %v532
        %v565 = vpack.c.bf16 %v533, %v533
        %v566 = vpack.c.bf16 %v534, %v534
        %v567 = vpack.c.bf16 %v535, %v535
        %v568 = vpack.c.bf16 %v536, %v536
        %v569 = vpack.c.bf16 %v537, %v537
        %v570 = vpack.c.bf16 %v538, %v538
        %v571 = vpack.c.bf16 %v539, %v539
        %v572 = vpack.c.bf16 %v540, %v540
        %v573 = vpack.c.bf16 %v541, %v541
        %v574 = vpack.c.bf16 %v542, %v542
        %v575 = vpack.c.bf16 %v543, %v543
        %v576 = vpack.c.bf16 %v544, %v544
        %v577 = vpack.c.bf16 %v545, %v545
        %v578 = vpack.c.bf16 %v546, %v546
        %v579 = vpack.c.bf16 %v547, %v547
        %v580 = vpack.c.bf16 %v548, %v548
        %v581 = vpack.c.bf16 %v549, %v549
        %v582 = vpack.c.bf16 %v550, %v550
        %v583 = vpack.c.bf16 %v551, %v551
        %v584 = vpack.c.bf16 %v552, %v552
        %v585 = vpack.c.bf16 %v553, %v553
        %v586 = vpack.c.bf16 %v554, %v554
        %s587 = scalar_lea.vmem [#allocation2], 16
        %588 = vst [vmem:[%s587 + $0x4] sm:$0xf] %v555
        %589 = vst [vmem:[%s587 + $0x8] sm:$0xf] %v556
        %590 = vst [vmem:[%s587 + $0x14] sm:$0xf] %v557
        %591 = vst [vmem:[%s587 + $0x18] sm:$0xf] %v558
        %592 = vst [vmem:[%s587 + $0x24] sm:$0xf] %v559
        %593 = vst [vmem:[%s587 + $0x28] sm:$0xf] %v560
        %594 = vst [vmem:[%s587 + $0x34] sm:$0xf] %v561
        %595 = vst [vmem:[%s587 + $0x38] sm:$0xf] %v562
        %596 = vst [vmem:[%s587 + $0x44] sm:$0xf] %v563
        %597 = vst [vmem:[%s587 + $0x48] sm:$0xf] %v564
        %598 = vst [vmem:[%s587 + $0x54] sm:$0xf] %v565
        %599 = vst [vmem:[%s587 + $0x58] sm:$0xf] %v566
        %600 = vst [vmem:[%s587 + $0x64] sm:$0xf] %v567
        %601 = vst [vmem:[%s587 + $0x68] sm:$0xf] %v568
        %602 = vst [vmem:[%s587 + $0x74] sm:$0xf] %v569
        %603 = vst [vmem:[%s587 + $0x78] sm:$0xf] %v570
        %604 = vst [vmem:[%s587 + $0x84] sm:$0xf] %v571
        %605 = vst [vmem:[%s587 + $0x88] sm:$0xf] %v572
        %606 = vst [vmem:[%s587 + $0x94] sm:$0xf] %v573
        %607 = vst [vmem:[%s587 + $0x98] sm:$0xf] %v574
        %608 = vst [vmem:[%s587 + $0xa4] sm:$0xf] %v575
        %609 = vst [vmem:[%s587 + $0xa8] sm:$0xf] %v576
        %610 = vst [vmem:[%s587 + $0xb4] sm:$0xf] %v577
        %611 = vst [vmem:[%s587 + $0xb8] sm:$0xf] %v578
        %612 = vst [vmem:[%s587 + $0xc4] sm:$0xf] %v579
        %613 = vst [vmem:[%s587 + $0xc8] sm:$0xf] %v580
        %614 = vst [vmem:[%s587 + $0xd4] sm:$0xf] %v581
        %615 = vst [vmem:[%s587 + $0xd8] sm:$0xf] %v582
        %616 = vst [vmem:[%s587 + $0xe4] sm:$0xf] %v583
        %617 = vst [vmem:[%s587 + $0xe8] sm:$0xf] %v584
        %618 = vst [vmem:[%s587 + $0xf4] sm:$0xf] %v585
        %619 = vst [vmem:[%s587 + $0xf8] sm:$0xf] %v586
      $region40: #{double_convolution_forward.4} parent=35 // pred_fallthru
        _
      %s620 = smul.u32 %s23, 16
      %s621 = smul.u32 %s620, 4
      %s622 = smul.addr %s621, 4
      %s623 = scalar_lea.vmem [#allocation2], %s622
      %v624 = vld [vmem:[%s623] sm:$0x8]
      %v625 = vld [vmem:[%s623 + $0x4] sm:$0xf]
      %v626 = vld [vmem:[%s623 + $0x8] sm:$0xf]
      %v627 = vld [vmem:[%s623 + $0x10] sm:$0x8]
      %v628 = vld [vmem:[%s623 + $0x14] sm:$0xf]
      %v629 = vld [vmem:[%s623 + $0x18] sm:$0xf]
      %v630 = vld [vmem:[%s623 + $0x20] sm:$0x8]
      %v631 = vld [vmem:[%s623 + $0x24] sm:$0xf]
      %v632 = vld [vmem:[%s623 + $0x28] sm:$0xf]
      %v633 = vld [vmem:[%s623 + $0x30] sm:$0x8]
      %v634 = vld [vmem:[%s623 + $0x34] sm:$0xf]
      %v635 = vld [vmem:[%s623 + $0x38] sm:$0xf]
      %v636 = vld [vmem:[%s623 + $0x40] sm:$0x8]
      %v637 = vld [vmem:[%s623 + $0x44] sm:$0xf]
      %v638 = vld [vmem:[%s623 + $0x48] sm:$0xf]
      %v639 = vld [vmem:[%s623 + $0x50] sm:$0x8]
      %v640 = vld [vmem:[%s623 + $0x54] sm:$0xf]
      %v641 = vld [vmem:[%s623 + $0x58] sm:$0xf]
      %v642 = vld [vmem:[%s623 + $0x60] sm:$0x8]
      %v643 = vld [vmem:[%s623 + $0x64] sm:$0xf]
      %v644 = vld [vmem:[%s623 + $0x68] sm:$0xf]
      %v645 = vld [vmem:[%s623 + $0x70] sm:$0x8]
      %v646 = vld [vmem:[%s623 + $0x74] sm:$0xf]
      %v647 = vld [vmem:[%s623 + $0x78] sm:$0xf]
      %v648 = vld [vmem:[%s623 + $0x80] sm:$0x8]
      %v649 = vld [vmem:[%s623 + $0x84] sm:$0xf]
      %v650 = vld [vmem:[%s623 + $0x88] sm:$0xf]
      %v651 = vld [vmem:[%s623 + $0x90] sm:$0x8]
      %v652 = vld [vmem:[%s623 + $0x94] sm:$0xf]
      %v653 = vld [vmem:[%s623 + $0x98] sm:$0xf]
      %v654 = vld [vmem:[%s623 + $0xa0] sm:$0x8]
      %v655 = vld [vmem:[%s623 + $0xa4] sm:$0xf]
      %v656 = vld [vmem:[%s623 + $0xa8] sm:$0xf]
      %v657 = vld [vmem:[%s623 + $0xb0] sm:$0x8]
      %v658 = vld [vmem:[%s623 + $0xb4] sm:$0xf]
      %v659 = vld [vmem:[%s623 + $0xb8] sm:$0xf]
      %v660 = vld [vmem:[%s623 + $0xc0] sm:$0x8]
      %v661 = vld [vmem:[%s623 + $0xc4] sm:$0xf]
      %v662 = vld [vmem:[%s623 + $0xc8] sm:$0xf]
      %v663 = vld [vmem:[%s623 + $0xd0] sm:$0x8]
      %v664 = vld [vmem:[%s623 + $0xd4] sm:$0xf]
      %v665 = vld [vmem:[%s623 + $0xd8] sm:$0xf]
      %v666 = vld [vmem:[%s623 + $0xe0] sm:$0x8]
      %v667 = vld [vmem:[%s623 + $0xe4] sm:$0xf]
      %v668 = vld [vmem:[%s623 + $0xe8] sm:$0xf]
      %v669 = vld [vmem:[%s623 + $0xf0] sm:$0x8]
      %v670 = vld [vmem:[%s623 + $0xf4] sm:$0xf]
      %v671 = vld [vmem:[%s623 + $0xf8] sm:$0xf]
      %v672 = vld [vmem:[%s623 + $0xc] sm:$0x1]
      %v673 = vld [vmem:[%s623 + $0x1c] sm:$0x1]
      %v674 = vld [vmem:[%s623 + $0x2c] sm:$0x1]
      %v675 = vld [vmem:[%s623 + $0x3c] sm:$0x1]
      %v676 = vld [vmem:[%s623 + $0x4c] sm:$0x1]
      %v677 = vld [vmem:[%s623 + $0x5c] sm:$0x1]
      %v678 = vld [vmem:[%s623 + $0x6c] sm:$0x1]
      %v679 = vld [vmem:[%s623 + $0x7c] sm:$0x1]
      %v680 = vld [vmem:[%s623 + $0x8c] sm:$0x1]
      %v681 = vld [vmem:[%s623 + $0x9c] sm:$0x1]
      %v682 = vld [vmem:[%s623 + $0xac] sm:$0x1]
      %v683 = vld [vmem:[%s623 + $0xbc] sm:$0x1]
      %v684 = vld [vmem:[%s623 + $0xcc] sm:$0x1]
      %v685 = vld [vmem:[%s623 + $0xdc] sm:$0x1]
      %v686 = vld [vmem:[%s623 + $0xec] sm:$0x1]
      %v687 = vld [vmem:[%s623 + $0xfc] sm:$0x1]
      %v736 = vunpack.c.l.b16 %v624
      %v737 = vunpack.c.l.b16 %v625
      %v738 = vunpack.c.l.b16 %v626
      %v739 = vunpack.c.l.b16 %v627
      %v740 = vunpack.c.l.b16 %v628
      %v741 = vunpack.c.l.b16 %v629
      %v742 = vunpack.c.l.b16 %v630
      %v743 = vunpack.c.l.b16 %v631
      %v744 = vunpack.c.l.b16 %v632
      %v745 = vunpack.c.l.b16 %v633
      %v746 = vunpack.c.l.b16 %v634
      %v747 = vunpack.c.l.b16 %v635
      %v748 = vunpack.c.l.b16 %v636
      %v749 = vunpack.c.l.b16 %v637
      %v750 = vunpack.c.l.b16 %v638
      %v751 = vunpack.c.l.b16 %v639
      %v752 = vunpack.c.l.b16 %v640
      %v753 = vunpack.c.l.b16 %v641
      %v754 = vunpack.c.l.b16 %v642
      %v755 = vunpack.c.l.b16 %v643
      %v756 = vunpack.c.l.b16 %v644
      %v757 = vunpack.c.l.b16 %v645
      %v758 = vunpack.c.l.b16 %v646
      %v759 = vunpack.c.l.b16 %v647
      %v760 = vunpack.c.l.b16 %v648
      %v761 = vunpack.c.l.b16 %v649
      %v762 = vunpack.c.l.b16 %v650
      %v763 = vunpack.c.l.b16 %v651
      %v764 = vunpack.c.l.b16 %v652
      %v765 = vunpack.c.l.b16 %v653
      %v766 = vunpack.c.l.b16 %v654
      %v767 = vunpack.c.l.b16 %v655
      %v768 = vunpack.c.l.b16 %v656
      %v769 = vunpack.c.l.b16 %v657
      %v770 = vunpack.c.l.b16 %v658
      %v771 = vunpack.c.l.b16 %v659
      %v772 = vunpack.c.l.b16 %v660
      %v773 = vunpack.c.l.b16 %v661
      %v774 = vunpack.c.l.b16 %v662
      %v775 = vunpack.c.l.b16 %v663
      %v776 = vunpack.c.l.b16 %v664
      %v777 = vunpack.c.l.b16 %v665
      %v778 = vunpack.c.l.b16 %v666
      %v779 = vunpack.c.l.b16 %v667
      %v780 = vunpack.c.l.b16 %v668
      %v781 = vunpack.c.l.b16 %v669
      %v782 = vunpack.c.l.b16 %v670
      %v783 = vunpack.c.l.b16 %v671
      %v784 = vpack.c.b16 %v737, %v736
      %v785 = vpack.c.b16 %v738, %v738
      %v786 = vpack.c.b16 %v740, %v739
      %v787 = vpack.c.b16 %v741, %v741
      %v788 = vpack.c.b16 %v743, %v742
      %v789 = vpack.c.b16 %v744, %v744
      %v790 = vpack.c.b16 %v746, %v745
      %v791 = vpack.c.b16 %v747, %v747
      %v792 = vpack.c.b16 %v749, %v748
      %v793 = vpack.c.b16 %v750, %v750
      %v794 = vpack.c.b16 %v752, %v751
      %v795 = vpack.c.b16 %v753, %v753
      %v796 = vpack.c.b16 %v755, %v754
      %v797 = vpack.c.b16 %v756, %v756
      %v798 = vpack.c.b16 %v758, %v757
      %v799 = vpack.c.b16 %v759, %v759
      %v800 = vpack.c.b16 %v761, %v760
      %v801 = vpack.c.b16 %v762, %v762
      %v802 = vpack.c.b16 %v764, %v763
      %v803 = vpack.c.b16 %v765, %v765
      %v804 = vpack.c.b16 %v767, %v766
      %v805 = vpack.c.b16 %v768, %v768
      %v806 = vpack.c.b16 %v770, %v769
      %v807 = vpack.c.b16 %v771, %v771
      %v808 = vpack.c.b16 %v773, %v772
      %v809 = vpack.c.b16 %v774, %v774
      %v810 = vpack.c.b16 %v776, %v775
      %v811 = vpack.c.b16 %v777, %v777
      %v812 = vpack.c.b16 %v779, %v778
      %v813 = vpack.c.b16 %v780, %v780
      %v814 = vpack.c.b16 %v782, %v781
      %v815 = vpack.c.b16 %v783, %v783
      %v816 = vpack.c.b16 %v738, %v737
      %v817 = vpack.c.b16 %v741, %v740
      %v818 = vpack.c.b16 %v744, %v743
      %v819 = vpack.c.b16 %v747, %v746
      %v820 = vpack.c.b16 %v750, %v749
      %v821 = vpack.c.b16 %v753, %v752
      %v822 = vpack.c.b16 %v756, %v755
      %v823 = vpack.c.b16 %v759, %v758
      %v824 = vpack.c.b16 %v762, %v761
      %v825 = vpack.c.b16 %v765, %v764
      %v826 = vpack.c.b16 %v768, %v767
      %v827 = vpack.c.b16 %v771, %v770
      %v828 = vpack.c.b16 %v774, %v773
      %v829 = vpack.c.b16 %v777, %v776
      %v830 = vpack.c.b16 %v780, %v779
      %v831 = vpack.c.b16 %v783, %v782
      %v833 = vshrl.u32 %v816, 16
      %v835 = vrot.slane %v833, 4
      %v836 = vshll.u32 %v816, 16
      %v838 = vrot.slane %v836, 5
      %v839 = vor.u32 %v835, %v838
      %v841 = vshrl.u32 %v817, 16
      %v843 = vrot.slane %v841, 4
      %v844 = vshll.u32 %v817, 16
      %v846 = vrot.slane %v844, 5
      %v847 = vor.u32 %v843, %v846
      %v849 = vshrl.u32 %v818, 16
      %v851 = vrot.slane %v849, 4
      %v852 = vshll.u32 %v818, 16
      %v854 = vrot.slane %v852, 5
      %v855 = vor.u32 %v851, %v854
      %v857 = vshrl.u32 %v819, 16
      %v859 = vrot.slane %v857, 4
      %v860 = vshll.u32 %v819, 16
      %v862 = vrot.slane %v860, 5
      %v863 = vor.u32 %v859, %v862
      %v865 = vshrl.u32 %v820, 16
      %v867 = vrot.slane %v865, 4
      %v868 = vshll.u32 %v820, 16
      %v870 = vrot.slane %v868, 5
      %v871 = vor.u32 %v867, %v870
      %v873 = vshrl.u32 %v821, 16
      %v875 = vrot.slane %v873, 4
      %v876 = vshll.u32 %v821, 16
      %v878 = vrot.slane %v876, 5
      %v879 = vor.u32 %v875, %v878
      %v881 = vshrl.u32 %v822, 16
      %v883 = vrot.slane %v881, 4
      %v884 = vshll.u32 %v822, 16
      %v886 = vrot.slane %v884, 5
      %v887 = vor.u32 %v883, %v886
      %v889 = vshrl.u32 %v823, 16
      %v891 = vrot.slane %v889, 4
      %v892 = vshll.u32 %v823, 16
      %v894 = vrot.slane %v892, 5
      %v895 = vor.u32 %v891, %v894
      %v897 = vshrl.u32 %v824, 16
      %v899 = vrot.slane %v897, 4
      %v900 = vshll.u32 %v824, 16
      %v902 = vrot.slane %v900, 5
      %v903 = vor.u32 %v899, %v902
      %v905 = vshrl.u32 %v825, 16
      %v907 = vrot.slane %v905, 4
      %v908 = vshll.u32 %v825, 16
      %v910 = vrot.slane %v908, 5
      %v911 = vor.u32 %v907, %v910
      %v913 = vshrl.u32 %v826, 16
      %v915 = vrot.slane %v913, 4
      %v916 = vshll.u32 %v826, 16
      %v918 = vrot.slane %v916, 5
      %v919 = vor.u32 %v915, %v918
      %v921 = vshrl.u32 %v827, 16
      %v923 = vrot.slane %v921, 4
      %v924 = vshll.u32 %v827, 16
      %v926 = vrot.slane %v924, 5
      %v927 = vor.u32 %v923, %v926
      %v929 = vshrl.u32 %v828, 16
      %v931 = vrot.slane %v929, 4
      %v932 = vshll.u32 %v828, 16
      %v934 = vrot.slane %v932, 5
      %v935 = vor.u32 %v931, %v934
      %v937 = vshrl.u32 %v829, 16
      %v939 = vrot.slane %v937, 4
      %v940 = vshll.u32 %v829, 16
      %v942 = vrot.slane %v940, 5
      %v943 = vor.u32 %v939, %v942
      %v945 = vshrl.u32 %v830, 16
      %v947 = vrot.slane %v945, 4
      %v948 = vshll.u32 %v830, 16
      %v950 = vrot.slane %v948, 5
      %v951 = vor.u32 %v947, %v950
      %v953 = vshrl.u32 %v831, 16
      %v955 = vrot.slane %v953, 4
      %v956 = vshll.u32 %v831, 16
      %v958 = vrot.slane %v956, 5
      %v959 = vor.u32 %v955, %v958
      %v976 = vunpack.c.l.b16 %v672
      %v977 = vunpack.c.l.b16 %v673
      %v978 = vunpack.c.l.b16 %v674
      %v979 = vunpack.c.l.b16 %v675
      %v980 = vunpack.c.l.b16 %v676
      %v981 = vunpack.c.l.b16 %v677
      %v982 = vunpack.c.l.b16 %v678
      %v983 = vunpack.c.l.b16 %v679
      %v984 = vunpack.c.l.b16 %v680
      %v985 = vunpack.c.l.b16 %v681
      %v986 = vunpack.c.l.b16 %v682
      %v987 = vunpack.c.l.b16 %v683
      %v988 = vunpack.c.l.b16 %v684
      %v989 = vunpack.c.l.b16 %v685
      %v990 = vunpack.c.l.b16 %v686
      %v991 = vunpack.c.l.b16 %v687
      %v992 = vpack.c.b16 %v976, %v976
      %v993 = vpack.c.b16 %v977, %v977
      %v994 = vpack.c.b16 %v978, %v978
      %v995 = vpack.c.b16 %v979, %v979
      %v996 = vpack.c.b16 %v980, %v980
      %v997 = vpack.c.b16 %v981, %v981
      %v998 = vpack.c.b16 %v982, %v982
      %v999 = vpack.c.b16 %v983, %v983
      %v1000 = vpack.c.b16 %v984, %v984
      %v1001 = vpack.c.b16 %v985, %v985
      %v1002 = vpack.c.b16 %v986, %v986
      %v1003 = vpack.c.b16 %v987, %v987
      %v1004 = vpack.c.b16 %v988, %v988
      %v1005 = vpack.c.b16 %v989, %v989
      %v1006 = vpack.c.b16 %v990, %v990
      %v1007 = vpack.c.b16 %v991, %v991
      %vm1008 = vcmask 1042432
      %v1009 = vrot.slane %v816, 5
      %v1010 = vrot.slane %v992, 5
      %v1011 = vsel %vm1008, %v1009, %v1010
      %v1012 = vrot.slane %v817, 5
      %v1013 = vrot.slane %v993, 5
      %v1014 = vsel %vm1008, %v1012, %v1013
      %v1015 = vrot.slane %v818, 5
      %v1016 = vrot.slane %v994, 5
      %v1017 = vsel %vm1008, %v1015, %v1016
      %v1018 = vrot.slane %v819, 5
      %v1019 = vrot.slane %v995, 5
      %v1020 = vsel %vm1008, %v1018, %v1019
      %v1021 = vrot.slane %v820, 5
      %v1022 = vrot.slane %v996, 5
      %v1023 = vsel %vm1008, %v1021, %v1022
      %v1024 = vrot.slane %v821, 5
      %v1025 = vrot.slane %v997, 5
      %v1026 = vsel %vm1008, %v1024, %v1025
      %v1027 = vrot.slane %v822, 5
      %v1028 = vrot.slane %v998, 5
      %v1029 = vsel %vm1008, %v1027, %v1028
      %v1030 = vrot.slane %v823, 5
      %v1031 = vrot.slane %v999, 5
      %v1032 = vsel %vm1008, %v1030, %v1031
      %v1033 = vrot.slane %v824, 5
      %v1034 = vrot.slane %v1000, 5
      %v1035 = vsel %vm1008, %v1033, %v1034
      %v1036 = vrot.slane %v825, 5
      %v1037 = vrot.slane %v1001, 5
      %v1038 = vsel %vm1008, %v1036, %v1037
      %v1039 = vrot.slane %v826, 5
      %v1040 = vrot.slane %v1002, 5
      %v1041 = vsel %vm1008, %v1039, %v1040
      %v1042 = vrot.slane %v827, 5
      %v1043 = vrot.slane %v1003, 5
      %v1044 = vsel %vm1008, %v1042, %v1043
      %v1045 = vrot.slane %v828, 5
      %v1046 = vrot.slane %v1004, 5
      %v1047 = vsel %vm1008, %v1045, %v1046
      %v1048 = vrot.slane %v829, 5
      %v1049 = vrot.slane %v1005, 5
      %v1050 = vsel %vm1008, %v1048, %v1049
      %v1051 = vrot.slane %v830, 5
      %v1052 = vrot.slane %v1006, 5
      %v1053 = vsel %vm1008, %v1051, %v1052
      %v1054 = vrot.slane %v831, 5
      %v1055 = vrot.slane %v1007, 5
      %v1056 = vsel %vm1008, %v1054, %v1055
      %vm1057 = vsmask.f32 4352
      %v1059 = vshrl.u32 %v784, 16
      %v1061 = vrot.slane %v1059, 3
      %v1062 = vshll.u32 %v784, 16
      %v1064 = vrot.slane %v1062, 4
      %v1065 = vor.u32 %v1061, %v1064
      %v1067 = vshrl.u32 %v785, 16
      %v1069 = vrot.slane %v1067, 3
      %v1070 = vshll.u32 %v785, 16
      %v1072 = vrot.slane %v1070, 4
      %v1073 = vor.u32 %v1069, %v1072
      %v1074 = vsel %vm1057, %v1065, %v1073
      %v1076 = vshrl.u32 %v839, 16
      %v1078 = vrot.slane %v1076, 3
      %v1079 = vshll.u32 %v839, 16
      %v1081 = vrot.slane %v1079, 4
      %v1082 = vor.u32 %v1078, %v1081
      %v1083 = vsel %vm1057, %v1082, %v1082
      %v1085 = vshrl.u32 %v1009, 16
      %v1087 = vrot.slane %v1085, 3
      %v1088 = vshll.u32 %v1009, 16
      %v1090 = vrot.slane %v1088, 4
      %v1091 = vor.u32 %v1087, %v1090
      %v1093 = vshrl.u32 %v1011, 16
      %v1095 = vrot.slane %v1093, 3
      %v1096 = vshll.u32 %v1011, 16
      %v1098 = vrot.slane %v1096, 4
      %v1099 = vor.u32 %v1095, %v1098
      %v1100 = vsel %vm1057, %v1091, %v1099
      %v1102 = vshrl.u32 %v786, 16
      %v1104 = vrot.slane %v1102, 3
      %v1105 = vshll.u32 %v786, 16
      %v1107 = vrot.slane %v1105, 4
      %v1108 = vor.u32 %v1104, %v1107
      %v1110 = vshrl.u32 %v787, 16
      %v1112 = vrot.slane %v1110, 3
      %v1113 = vshll.u32 %v787, 16
      %v1115 = vrot.slane %v1113, 4
      %v1116 = vor.u32 %v1112, %v1115
      %v1117 = vsel %vm1057, %v1108, %v1116
      %v1119 = vshrl.u32 %v847, 16
      %v1121 = vrot.slane %v1119, 3
      %v1122 = vshll.u32 %v847, 16
      %v1124 = vrot.slane %v1122, 4
      %v1125 = vor.u32 %v1121, %v1124
      %v1126 = vsel %vm1057, %v1125, %v1125
      %v1128 = vshrl.u32 %v1012, 16
      %v1130 = vrot.slane %v1128, 3
      %v1131 = vshll.u32 %v1012, 16
      %v1133 = vrot.slane %v1131, 4
      %v1134 = vor.u32 %v1130, %v1133
      %v1136 = vshrl.u32 %v1014, 16
      %v1138 = vrot.slane %v1136, 3
      %v1139 = vshll.u32 %v1014, 16
      %v1141 = vrot.slane %v1139, 4
      %v1142 = vor.u32 %v1138, %v1141
      %v1143 = vsel %vm1057, %v1134, %v1142
      %v1145 = vshrl.u32 %v788, 16
      %v1147 = vrot.slane %v1145, 3
      %v1148 = vshll.u32 %v788, 16
      %v1150 = vrot.slane %v1148, 4
      %v1151 = vor.u32 %v1147, %v1150
      %v1153 = vshrl.u32 %v789, 16
      %v1155 = vrot.slane %v1153, 3
      %v1156 = vshll.u32 %v789, 16
      %v1158 = vrot.slane %v1156, 4
      %v1159 = vor.u32 %v1155, %v1158
      %v1160 = vsel %vm1057, %v1151, %v1159
      %v1162 = vshrl.u32 %v855, 16
      %v1164 = vrot.slane %v1162, 3
      %v1165 = vshll.u32 %v855, 16
      %v1167 = vrot.slane %v1165, 4
      %v1168 = vor.u32 %v1164, %v1167
      %v1169 = vsel %vm1057, %v1168, %v1168
      %v1171 = vshrl.u32 %v1015, 16
      %v1173 = vrot.slane %v1171, 3
      %v1174 = vshll.u32 %v1015, 16
      %v1176 = vrot.slane %v1174, 4
      %v1177 = vor.u32 %v1173, %v1176
      %v1179 = vshrl.u32 %v1017, 16
      %v1181 = vrot.slane %v1179, 3
      %v1182 = vshll.u32 %v1017, 16
      %v1184 = vrot.slane %v1182, 4
      %v1185 = vor.u32 %v1181, %v1184
      %v1186 = vsel %vm1057, %v1177, %v1185
      %v1188 = vshrl.u32 %v790, 16
      %v1190 = vrot.slane %v1188, 3
      %v1191 = vshll.u32 %v790, 16
      %v1193 = vrot.slane %v1191, 4
      %v1194 = vor.u32 %v1190, %v1193
      %v1196 = vshrl.u32 %v791, 16
      %v1198 = vrot.slane %v1196, 3
      %v1199 = vshll.u32 %v791, 16
      %v1201 = vrot.slane %v1199, 4
      %v1202 = vor.u32 %v1198, %v1201
      %v1203 = vsel %vm1057, %v1194, %v1202
      %v1205 = vshrl.u32 %v863, 16
      %v1207 = vrot.slane %v1205, 3
      %v1208 = vshll.u32 %v863, 16
      %v1210 = vrot.slane %v1208, 4
      %v1211 = vor.u32 %v1207, %v1210
      %v1212 = vsel %vm1057, %v1211, %v1211
      %v1214 = vshrl.u32 %v1018, 16
      %v1216 = vrot.slane %v1214, 3
      %v1217 = vshll.u32 %v1018, 16
      %v1219 = vrot.slane %v1217, 4
      %v1220 = vor.u32 %v1216, %v1219
      %v1222 = vshrl.u32 %v1020, 16
      %v1224 = vrot.slane %v1222, 3
      %v1225 = vshll.u32 %v1020, 16
      %v1227 = vrot.slane %v1225, 4
      %v1228 = vor.u32 %v1224, %v1227
      %v1229 = vsel %vm1057, %v1220, %v1228
      %v1231 = vshrl.u32 %v792, 16
      %v1233 = vrot.slane %v1231, 3
      %v1234 = vshll.u32 %v792, 16
      %v1236 = vrot.slane %v1234, 4
      %v1237 = vor.u32 %v1233, %v1236
      %v1239 = vshrl.u32 %v793, 16
      %v1241 = vrot.slane %v1239, 3
      %v1242 = vshll.u32 %v793, 16
      %v1244 = vrot.slane %v1242, 4
      %v1245 = vor.u32 %v1241, %v1244
      %v1246 = vsel %vm1057, %v1237, %v1245
      %v1248 = vshrl.u32 %v871, 16
      %v1250 = vrot.slane %v1248, 3
      %v1251 = vshll.u32 %v871, 16
      %v1253 = vrot.slane %v1251, 4
      %v1254 = vor.u32 %v1250, %v1253
      %v1255 = vsel %vm1057, %v1254, %v1254
      %v1257 = vshrl.u32 %v1021, 16
      %v1259 = vrot.slane %v1257, 3
      %v1260 = vshll.u32 %v1021, 16
      %v1262 = vrot.slane %v1260, 4
      %v1263 = vor.u32 %v1259, %v1262
      %v1265 = vshrl.u32 %v1023, 16
      %v1267 = vrot.slane %v1265, 3
      %v1268 = vshll.u32 %v1023, 16
      %v1270 = vrot.slane %v1268, 4
      %v1271 = vor.u32 %v1267, %v1270
      %v1272 = vsel %vm1057, %v1263, %v1271
      %v1274 = vshrl.u32 %v794, 16
      %v1276 = vrot.slane %v1274, 3
      %v1277 = vshll.u32 %v794, 16
      %v1279 = vrot.slane %v1277, 4
      %v1280 = vor.u32 %v1276, %v1279
      %v1282 = vshrl.u32 %v795, 16
      %v1284 = vrot.slane %v1282, 3
      %v1285 = vshll.u32 %v795, 16
      %v1287 = vrot.slane %v1285, 4
      %v1288 = vor.u32 %v1284, %v1287
      %v1289 = vsel %vm1057, %v1280, %v1288
      %v1291 = vshrl.u32 %v879, 16
      %v1293 = vrot.slane %v1291, 3
      %v1294 = vshll.u32 %v879, 16
      %v1296 = vrot.slane %v1294, 4
      %v1297 = vor.u32 %v1293, %v1296
      %v1298 = vsel %vm1057, %v1297, %v1297
      %v1300 = vshrl.u32 %v1024, 16
      %v1302 = vrot.slane %v1300, 3
      %v1303 = vshll.u32 %v1024, 16
      %v1305 = vrot.slane %v1303, 4
      %v1306 = vor.u32 %v1302, %v1305
      %v1308 = vshrl.u32 %v1026, 16
      %v1310 = vrot.slane %v1308, 3
      %v1311 = vshll.u32 %v1026, 16
      %v1313 = vrot.slane %v1311, 4
      %v1314 = vor.u32 %v1310, %v1313
      %v1315 = vsel %vm1057, %v1306, %v1314
      %v1317 = vshrl.u32 %v796, 16
      %v1319 = vrot.slane %v1317, 3
      %v1320 = vshll.u32 %v796, 16
      %v1322 = vrot.slane %v1320, 4
      %v1323 = vor.u32 %v1319, %v1322
      %v1325 = vshrl.u32 %v797, 16
      %v1327 = vrot.slane %v1325, 3
      %v1328 = vshll.u32 %v797, 16
      %v1330 = vrot.slane %v1328, 4
      %v1331 = vor.u32 %v1327, %v1330
      %v1332 = vsel %vm1057, %v1323, %v1331
      %v1334 = vshrl.u32 %v887, 16
      %v1336 = vrot.slane %v1334, 3
      %v1337 = vshll.u32 %v887, 16
      %v1339 = vrot.slane %v1337, 4
      %v1340 = vor.u32 %v1336, %v1339
      %v1341 = vsel %vm1057, %v1340, %v1340
      %v1343 = vshrl.u32 %v1027, 16
      %v1345 = vrot.slane %v1343, 3
      %v1346 = vshll.u32 %v1027, 16
      %v1348 = vrot.slane %v1346, 4
      %v1349 = vor.u32 %v1345, %v1348
      %v1351 = vshrl.u32 %v1029, 16
      %v1353 = vrot.slane %v1351, 3
      %v1354 = vshll.u32 %v1029, 16
      %v1356 = vrot.slane %v1354, 4
      %v1357 = vor.u32 %v1353, %v1356
      %v1358 = vsel %vm1057, %v1349, %v1357
      %v1360 = vshrl.u32 %v798, 16
      %v1362 = vrot.slane %v1360, 3
      %v1363 = vshll.u32 %v798, 16
      %v1365 = vrot.slane %v1363, 4
      %v1366 = vor.u32 %v1362, %v1365
      %v1368 = vshrl.u32 %v799, 16
      %v1370 = vrot.slane %v1368, 3
      %v1371 = vshll.u32 %v799, 16
      %v1373 = vrot.slane %v1371, 4
      %v1374 = vor.u32 %v1370, %v1373
      %v1375 = vsel %vm1057, %v1366, %v1374
      %v1377 = vshrl.u32 %v895, 16
      %v1379 = vrot.slane %v1377, 3
      %v1380 = vshll.u32 %v895, 16
      %v1382 = vrot.slane %v1380, 4
      %v1383 = vor.u32 %v1379, %v1382
      %v1384 = vsel %vm1057, %v1383, %v1383
      %v1386 = vshrl.u32 %v1030, 16
      %v1388 = vrot.slane %v1386, 3
      %v1389 = vshll.u32 %v1030, 16
      %v1391 = vrot.slane %v1389, 4
      %v1392 = vor.u32 %v1388, %v1391
      %v1394 = vshrl.u32 %v1032, 16
      %v1396 = vrot.slane %v1394, 3
      %v1397 = vshll.u32 %v1032, 16
      %v1399 = vrot.slane %v1397, 4
      %v1400 = vor.u32 %v1396, %v1399
      %v1401 = vsel %vm1057, %v1392, %v1400
      %v1403 = vshrl.u32 %v800, 16
      %v1405 = vrot.slane %v1403, 3
      %v1406 = vshll.u32 %v800, 16
      %v1408 = vrot.slane %v1406, 4
      %v1409 = vor.u32 %v1405, %v1408
      %v1411 = vshrl.u32 %v801, 16
      %v1413 = vrot.slane %v1411, 3
      %v1414 = vshll.u32 %v801, 16
      %v1416 = vrot.slane %v1414, 4
      %v1417 = vor.u32 %v1413, %v1416
      %v1418 = vsel %vm1057, %v1409, %v1417
      %v1420 = vshrl.u32 %v903, 16
      %v1422 = vrot.slane %v1420, 3
      %v1423 = vshll.u32 %v903, 16
      %v1425 = vrot.slane %v1423, 4
      %v1426 = vor.u32 %v1422, %v1425
      %v1427 = vsel %vm1057, %v1426, %v1426
      %v1429 = vshrl.u32 %v1033, 16
      %v1431 = vrot.slane %v1429, 3
      %v1432 = vshll.u32 %v1033, 16
      %v1434 = vrot.slane %v1432, 4
      %v1435 = vor.u32 %v1431, %v1434
      %v1437 = vshrl.u32 %v1035, 16
      %v1439 = vrot.slane %v1437, 3
      %v1440 = vshll.u32 %v1035, 16
      %v1442 = vrot.slane %v1440, 4
      %v1443 = vor.u32 %v1439, %v1442
      %v1444 = vsel %vm1057, %v1435, %v1443
      %v1446 = vshrl.u32 %v802, 16
      %v1448 = vrot.slane %v1446, 3
      %v1449 = vshll.u32 %v802, 16
      %v1451 = vrot.slane %v1449, 4
      %v1452 = vor.u32 %v1448, %v1451
      %v1454 = vshrl.u32 %v803, 16
      %v1456 = vrot.slane %v1454, 3
      %v1457 = vshll.u32 %v803, 16
      %v1459 = vrot.slane %v1457, 4
      %v1460 = vor.u32 %v1456, %v1459
      %v1461 = vsel %vm1057, %v1452, %v1460
      %v1463 = vshrl.u32 %v911, 16
      %v1465 = vrot.slane %v1463, 3
      %v1466 = vshll.u32 %v911, 16
      %v1468 = vrot.slane %v1466, 4
      %v1469 = vor.u32 %v1465, %v1468
      %v1470 = vsel %vm1057, %v1469, %v1469
      %v1472 = vshrl.u32 %v1036, 16
      %v1474 = vrot.slane %v1472, 3
      %v1475 = vshll.u32 %v1036, 16
      %v1477 = vrot.slane %v1475, 4
      %v1478 = vor.u32 %v1474, %v1477
      %v1480 = vshrl.u32 %v1038, 16
      %v1482 = vrot.slane %v1480, 3
      %v1483 = vshll.u32 %v1038, 16
      %v1485 = vrot.slane %v1483, 4
      %v1486 = vor.u32 %v1482, %v1485
      %v1487 = vsel %vm1057, %v1478, %v1486
      %v1489 = vshrl.u32 %v804, 16
      %v1491 = vrot.slane %v1489, 3
      %v1492 = vshll.u32 %v804, 16
      %v1494 = vrot.slane %v1492, 4
      %v1495 = vor.u32 %v1491, %v1494
      %v1497 = vshrl.u32 %v805, 16
      %v1499 = vrot.slane %v1497, 3
      %v1500 = vshll.u32 %v805, 16
      %v1502 = vrot.slane %v1500, 4
      %v1503 = vor.u32 %v1499, %v1502
      %v1504 = vsel %vm1057, %v1495, %v1503
      %v1506 = vshrl.u32 %v919, 16
      %v1508 = vrot.slane %v1506, 3
      %v1509 = vshll.u32 %v919, 16
      %v1511 = vrot.slane %v1509, 4
      %v1512 = vor.u32 %v1508, %v1511
      %v1513 = vsel %vm1057, %v1512, %v1512
      %v1515 = vshrl.u32 %v1039, 16
      %v1517 = vrot.slane %v1515, 3
      %v1518 = vshll.u32 %v1039, 16
      %v1520 = vrot.slane %v1518, 4
      %v1521 = vor.u32 %v1517, %v1520
      %v1523 = vshrl.u32 %v1041, 16
      %v1525 = vrot.slane %v1523, 3
      %v1526 = vshll.u32 %v1041, 16
      %v1528 = vrot.slane %v1526, 4
      %v1529 = vor.u32 %v1525, %v1528
      %v1530 = vsel %vm1057, %v1521, %v1529
      %v1532 = vshrl.u32 %v806, 16
      %v1534 = vrot.slane %v1532, 3
      %v1535 = vshll.u32 %v806, 16
      %v1537 = vrot.slane %v1535, 4
      %v1538 = vor.u32 %v1534, %v1537
      %v1540 = vshrl.u32 %v807, 16
      %v1542 = vrot.slane %v1540, 3
      %v1543 = vshll.u32 %v807, 16
      %v1545 = vrot.slane %v1543, 4
      %v1546 = vor.u32 %v1542, %v1545
      %v1547 = vsel %vm1057, %v1538, %v1546
      %v1549 = vshrl.u32 %v927, 16
      %v1551 = vrot.slane %v1549, 3
      %v1552 = vshll.u32 %v927, 16
      %v1554 = vrot.slane %v1552, 4
      %v1555 = vor.u32 %v1551, %v1554
      %v1556 = vsel %vm1057, %v1555, %v1555
      %v1558 = vshrl.u32 %v1042, 16
      %v1560 = vrot.slane %v1558, 3
      %v1561 = vshll.u32 %v1042, 16
      %v1563 = vrot.slane %v1561, 4
      %v1564 = vor.u32 %v1560, %v1563
      %v1566 = vshrl.u32 %v1044, 16
      %v1568 = vrot.slane %v1566, 3
      %v1569 = vshll.u32 %v1044, 16
      %v1571 = vrot.slane %v1569, 4
      %v1572 = vor.u32 %v1568, %v1571
      %v1573 = vsel %vm1057, %v1564, %v1572
      %v1575 = vshrl.u32 %v808, 16
      %v1577 = vrot.slane %v1575, 3
      %v1578 = vshll.u32 %v808, 16
      %v1580 = vrot.slane %v1578, 4
      %v1581 = vor.u32 %v1577, %v1580
      %v1583 = vshrl.u32 %v809, 16
      %v1585 = vrot.slane %v1583, 3
      %v1586 = vshll.u32 %v809, 16
      %v1588 = vrot.slane %v1586, 4
      %v1589 = vor.u32 %v1585, %v1588
      %v1590 = vsel %vm1057, %v1581, %v1589
      %v1592 = vshrl.u32 %v935, 16
      %v1594 = vrot.slane %v1592, 3
      %v1595 = vshll.u32 %v935, 16
      %v1597 = vrot.slane %v1595, 4
      %v1598 = vor.u32 %v1594, %v1597
      %v1599 = vsel %vm1057, %v1598, %v1598
      %v1601 = vshrl.u32 %v1045, 16
      %v1603 = vrot.slane %v1601, 3
      %v1604 = vshll.u32 %v1045, 16
      %v1606 = vrot.slane %v1604, 4
      %v1607 = vor.u32 %v1603, %v1606
      %v1609 = vshrl.u32 %v1047, 16
      %v1611 = vrot.slane %v1609, 3
      %v1612 = vshll.u32 %v1047, 16
      %v1614 = vrot.slane %v1612, 4
      %v1615 = vor.u32 %v1611, %v1614
      %v1616 = vsel %vm1057, %v1607, %v1615
      %v1618 = vshrl.u32 %v810, 16
      %v1620 = vrot.slane %v1618, 3
      %v1621 = vshll.u32 %v810, 16
      %v1623 = vrot.slane %v1621, 4
      %v1624 = vor.u32 %v1620, %v1623
      %v1626 = vshrl.u32 %v811, 16
      %v1628 = vrot.slane %v1626, 3
      %v1629 = vshll.u32 %v811, 16
      %v1631 = vrot.slane %v1629, 4
      %v1632 = vor.u32 %v1628, %v1631
      %v1633 = vsel %vm1057, %v1624, %v1632
      %v1635 = vshrl.u32 %v943, 16
      %v1637 = vrot.slane %v1635, 3
      %v1638 = vshll.u32 %v943, 16
      %v1640 = vrot.slane %v1638, 4
      %v1641 = vor.u32 %v1637, %v1640
      %v1642 = vsel %vm1057, %v1641, %v1641
      %v1644 = vshrl.u32 %v1048, 16
      %v1646 = vrot.slane %v1644, 3
      %v1647 = vshll.u32 %v1048, 16
      %v1649 = vrot.slane %v1647, 4
      %v1650 = vor.u32 %v1646, %v1649
      %v1652 = vshrl.u32 %v1050, 16
      %v1654 = vrot.slane %v1652, 3
      %v1655 = vshll.u32 %v1050, 16
      %v1657 = vrot.slane %v1655, 4
      %v1658 = vor.u32 %v1654, %v1657
      %v1659 = vsel %vm1057, %v1650, %v1658
      %v1661 = vshrl.u32 %v812, 16
      %v1663 = vrot.slane %v1661, 3
      %v1664 = vshll.u32 %v812, 16
      %v1666 = vrot.slane %v1664, 4
      %v1667 = vor.u32 %v1663, %v1666
      %v1669 = vshrl.u32 %v813, 16
      %v1671 = vrot.slane %v1669, 3
      %v1672 = vshll.u32 %v813, 16
      %v1674 = vrot.slane %v1672, 4
      %v1675 = vor.u32 %v1671, %v1674
      %v1676 = vsel %vm1057, %v1667, %v1675
      %v1678 = vshrl.u32 %v951, 16
      %v1680 = vrot.slane %v1678, 3
      %v1681 = vshll.u32 %v951, 16
      %v1683 = vrot.slane %v1681, 4
      %v1684 = vor.u32 %v1680, %v1683
      %v1685 = vsel %vm1057, %v1684, %v1684
      %v1687 = vshrl.u32 %v1051, 16
      %v1689 = vrot.slane %v1687, 3
      %v1690 = vshll.u32 %v1051, 16
      %v1692 = vrot.slane %v1690, 4
      %v1693 = vor.u32 %v1689, %v1692
      %v1695 = vshrl.u32 %v1053, 16
      %v1697 = vrot.slane %v1695, 3
      %v1698 = vshll.u32 %v1053, 16
      %v1700 = vrot.slane %v1698, 4
      %v1701 = vor.u32 %v1697, %v1700
      %v1702 = vsel %vm1057, %v1693, %v1701
      %v1704 = vshrl.u32 %v814, 16
      %v1706 = vrot.slane %v1704, 3
      %v1707 = vshll.u32 %v814, 16
      %v1709 = vrot.slane %v1707, 4
      %v1710 = vor.u32 %v1706, %v1709
      %v1712 = vshrl.u32 %v815, 16
      %v1714 = vrot.slane %v1712, 3
      %v1715 = vshll.u32 %v815, 16
      %v1717 = vrot.slane %v1715, 4
      %v1718 = vor.u32 %v1714, %v1717
      %v1719 = vsel %vm1057, %v1710, %v1718
      %v1721 = vshrl.u32 %v959, 16
      %v1723 = vrot.slane %v1721, 3
      %v1724 = vshll.u32 %v959, 16
      %v1726 = vrot.slane %v1724, 4
      %v1727 = vor.u32 %v1723, %v1726
      %v1728 = vsel %vm1057, %v1727, %v1727
      %v1730 = vshrl.u32 %v1054, 16
      %v1732 = vrot.slane %v1730, 3
      %v1733 = vshll.u32 %v1054, 16
      %v1735 = vrot.slane %v1733, 4
      %v1736 = vor.u32 %v1732, %v1735
      %v1738 = vshrl.u32 %v1056, 16
      %v1740 = vrot.slane %v1738, 3
      %v1741 = vshll.u32 %v1056, 16
      %v1743 = vrot.slane %v1741, 4
      %v1744 = vor.u32 %v1740, %v1743
      %v1745 = vsel %vm1057, %v1736, %v1744
      %v1794 = vld [vmem:[%s1] sm:$0xf]
      %v1795 = vld [vmem:[%s1 + $0x4] sm:$0xf]
      %v1796 = vld [vmem:[%s1 + $0x8] sm:$0xf]
      %v1797 = vld [vmem:[%s1 + $0xc] sm:$0xf]
      %v1798 = vld [vmem:[%s1 + $0x10] sm:$0xf]
      %v1799 = vld [vmem:[%s1 + $0x14] sm:$0xf]
      %v1800 = vld [vmem:[%s1 + $0x18] sm:$0xf]
      %v1801 = vld [vmem:[%s1 + $0x1c] sm:$0xf]
      %v1802 = vld [vmem:[%s1 + $0x20] sm:$0xf]
      %v1803 = vld [vmem:[%s1 + $0x24] sm:$0xf]
      %v1804 = vld [vmem:[%s1 + $0x28] sm:$0xf]
      %v1805 = vld [vmem:[%s1 + $0x2c] sm:$0xf]
      %v1806 = vld [vmem:[%s1 + $0x30] sm:$0xf]
      %v1807 = vld [vmem:[%s1 + $0x34] sm:$0xf]
      %v1808 = vld [vmem:[%s1 + $0x38] sm:$0xf]
      %v1809 = vld [vmem:[%s1 + $0x3c] sm:$0xf]
      %v1810 = vld [vmem:[%s1 + $0x40] sm:$0xf]
      %v1811 = vld [vmem:[%s1 + $0x44] sm:$0xf]
      %v1812 = vld [vmem:[%s1 + $0x48] sm:$0xf]
      %v1813 = vld [vmem:[%s1 + $0x4c] sm:$0xf]
      %v1814 = vld [vmem:[%s1 + $0x50] sm:$0xf]
      %v1815 = vld [vmem:[%s1 + $0x54] sm:$0xf]
      %v1816 = vld [vmem:[%s1 + $0x58] sm:$0xf]
      %v1817 = vld [vmem:[%s1 + $0x5c] sm:$0xf]
      %v1818 = vld [vmem:[%s1 + $0x60] sm:$0xf]
      %v1819 = vld [vmem:[%s1 + $0x64] sm:$0xf]
      %v1820 = vld [vmem:[%s1 + $0x68] sm:$0xf]
      %v1821 = vld [vmem:[%s1 + $0x6c] sm:$0xf]
      %v1822 = vld [vmem:[%s1 + $0x70] sm:$0xf]
      %v1823 = vld [vmem:[%s1 + $0x74] sm:$0xf]
      %v1824 = vld [vmem:[%s1 + $0x78] sm:$0xf]
      %v1825 = vld [vmem:[%s1 + $0x7c] sm:$0xf]
      %v1826 = vld [vmem:[%s1 + $0x80] sm:$0xf]
      %v1827 = vld [vmem:[%s1 + $0x84] sm:$0xf]
      %v1828 = vld [vmem:[%s1 + $0x88] sm:$0xf]
      %v1829 = vld [vmem:[%s1 + $0x8c] sm:$0xf]
      %v1830 = vld [vmem:[%s1 + $0x90] sm:$0xf]
      %v1831 = vld [vmem:[%s1 + $0x94] sm:$0xf]
      %v1832 = vld [vmem:[%s1 + $0x98] sm:$0xf]
      %v1833 = vld [vmem:[%s1 + $0x9c] sm:$0xf]
      %v1834 = vld [vmem:[%s1 + $0xa0] sm:$0xf]
      %v1835 = vld [vmem:[%s1 + $0xa4] sm:$0xf]
      %v1836 = vld [vmem:[%s1 + $0xa8] sm:$0xf]
      %v1837 = vld [vmem:[%s1 + $0xac] sm:$0xf]
      %v1838 = vld [vmem:[%s1 + $0xb0] sm:$0xf]
      %v1839 = vld [vmem:[%s1 + $0xb4] sm:$0xf]
      %v1840 = vld [vmem:[%s1 + $0xb8] sm:$0xf]
      %v1841 = vld [vmem:[%s1 + $0xbc] sm:$0xf]
      %v1890 = vunpack.c.l.b16 %v1794
      %v1891 = vunpack.c.l.b16 %v1795
      %v1892 = vunpack.c.l.b16 %v1796
      %v1893 = vunpack.c.l.b16 %v1797
      %v1894 = vunpack.c.l.b16 %v1798
      %v1895 = vunpack.c.l.b16 %v1799
      %v1896 = vunpack.c.l.b16 %v1800
      %v1897 = vunpack.c.l.b16 %v1801
      %v1898 = vunpack.c.l.b16 %v1802
      %v1899 = vunpack.c.l.b16 %v1803
      %v1900 = vunpack.c.l.b16 %v1804
      %v1901 = vunpack.c.l.b16 %v1805
      %v1902 = vunpack.c.l.b16 %v1806
      %v1903 = vunpack.c.l.b16 %v1807
      %v1904 = vunpack.c.l.b16 %v1808
      %v1905 = vunpack.c.l.b16 %v1809
      %v1906 = vunpack.c.l.b16 %v1810
      %v1907 = vunpack.c.l.b16 %v1811
      %v1908 = vunpack.c.l.b16 %v1812
      %v1909 = vunpack.c.l.b16 %v1813
      %v1910 = vunpack.c.l.b16 %v1814
      %v1911 = vunpack.c.l.b16 %v1815
      %v1912 = vunpack.c.l.b16 %v1816
      %v1913 = vunpack.c.l.b16 %v1817
      %v1914 = vunpack.c.l.b16 %v1818
      %v1915 = vunpack.c.l.b16 %v1819
      %v1916 = vunpack.c.l.b16 %v1820
      %v1917 = vunpack.c.l.b16 %v1821
      %v1918 = vunpack.c.l.b16 %v1822
      %v1919 = vunpack.c.l.b16 %v1823
      %v1920 = vunpack.c.l.b16 %v1824
      %v1921 = vunpack.c.l.b16 %v1825
      %v1922 = vunpack.c.l.b16 %v1826
      %v1923 = vunpack.c.l.b16 %v1827
      %v1924 = vunpack.c.l.b16 %v1828
      %v1925 = vunpack.c.l.b16 %v1829
      %v1926 = vunpack.c.l.b16 %v1830
      %v1927 = vunpack.c.l.b16 %v1831
      %v1928 = vunpack.c.l.b16 %v1832
      %v1929 = vunpack.c.l.b16 %v1833
      %v1930 = vunpack.c.l.b16 %v1834
      %v1931 = vunpack.c.l.b16 %v1835
      %v1932 = vunpack.c.l.b16 %v1836
      %v1933 = vunpack.c.l.b16 %v1837
      %v1934 = vunpack.c.l.b16 %v1838
      %v1935 = vunpack.c.l.b16 %v1839
      %v1936 = vunpack.c.l.b16 %v1840
      %v1937 = vunpack.c.l.b16 %v1841
      %v1938 = vpack.c.b16 %v1891, %v1890
      %v1939 = vpack.c.b16 %v1893, %v1892
      %v1940 = vpack.c.b16 %v1895, %v1894
      %v1941 = vpack.c.b16 %v1897, %v1896
      %v1942 = vpack.c.b16 %v1899, %v1898
      %v1943 = vpack.c.b16 %v1901, %v1900
      %v1944 = vpack.c.b16 %v1903, %v1902
      %v1945 = vpack.c.b16 %v1905, %v1904
      %v1946 = vpack.c.b16 %v1907, %v1906
      %v1947 = vpack.c.b16 %v1909, %v1908
      %v1948 = vpack.c.b16 %v1911, %v1910
      %v1949 = vpack.c.b16 %v1913, %v1912
      %v1950 = vpack.c.b16 %v1915, %v1914
      %v1951 = vpack.c.b16 %v1917, %v1916
      %v1952 = vpack.c.b16 %v1919, %v1918
      %v1953 = vpack.c.b16 %v1921, %v1920
      %v1954 = vpack.c.b16 %v1923, %v1922
      %v1955 = vpack.c.b16 %v1925, %v1924
      %v1956 = vpack.c.b16 %v1927, %v1926
      %v1957 = vpack.c.b16 %v1929, %v1928
      %v1958 = vpack.c.b16 %v1931, %v1930
      %v1959 = vpack.c.b16 %v1933, %v1932
      %v1960 = vpack.c.b16 %v1935, %v1934
      %v1961 = vpack.c.b16 %v1937, %v1936
      %1986 = vmatpush.bf16.msra.mxu0 %v1945
      %1987 = vmatpush.bf16.msra.mxu0 %v1944
      %1988 = vmatpush.bf16.msra.mxu0 %v1943
      %1989 = vmatpush.bf16.msra.mxu0 %v1942
      %1990 = vmatpush.bf16.msra.mxu0 %v1941
      %1991 = vmatpush.bf16.msra.mxu0 %v1940
      %1992 = vmatpush.bf16.msra.mxu0 %v1939
      %1993 = vmatpush.bf16.msra.mxu0 %v1938
      %1994 = vmatmul.bf16.gmra.mxu0 %v1074
      %v1995 = vpop.f32.mrf.mxu0
      %v1996 = vadd.f32 0.0, %v1995
      %v1997 = vpop.f32.mrf.mxu0
      %v1998 = vadd.f32 0.0, %v1997
      %1999 = vmatmul.bf16.gmra.mxu0 %v1117
      %v2000 = vpop.f32.mrf.mxu0
      %v2001 = vadd.f32 0.0, %v2000
      %v2002 = vpop.f32.mrf.mxu0
      %v2003 = vadd.f32 0.0, %v2002
      %2004 = vmatmul.bf16.gmra.mxu0 %v1160
      %v2005 = vpop.f32.mrf.mxu0
      %v2006 = vadd.f32 0.0, %v2005
      %v2007 = vpop.f32.mrf.mxu0
      %v2008 = vadd.f32 0.0, %v2007
      %2009 = vmatmul.bf16.gmra.mxu0 %v1203
      %v2010 = vpop.f32.mrf.mxu0
      %v2011 = vadd.f32 0.0, %v2010
      %v2012 = vpop.f32.mrf.mxu0
      %v2013 = vadd.f32 0.0, %v2012
      %2014 = vmatmul.bf16.gmra.mxu0 %v1246
      %v2015 = vpop.f32.mrf.mxu0
      %v2016 = vadd.f32 0.0, %v2015
      %v2017 = vpop.f32.mrf.mxu0
      %v2018 = vadd.f32 0.0, %v2017
      %2019 = vmatmul.bf16.gmra.mxu0 %v1289
      %v2020 = vpop.f32.mrf.mxu0
      %v2021 = vadd.f32 0.0, %v2020
      %v2022 = vpop.f32.mrf.mxu0
      %v2023 = vadd.f32 0.0, %v2022
      %2024 = vmatmul.bf16.gmra.mxu0 %v1332
      %v2025 = vpop.f32.mrf.mxu0
      %v2026 = vadd.f32 0.0, %v2025
      %v2027 = vpop.f32.mrf.mxu0
      %v2028 = vadd.f32 0.0, %v2027
      %2029 = vmatmul.bf16.gmra.mxu0 %v1375
      %v2030 = vpop.f32.mrf.mxu0
      %v2031 = vadd.f32 0.0, %v2030
      %v2032 = vpop.f32.mrf.mxu0
      %v2033 = vadd.f32 0.0, %v2032
      %2034 = vmatmul.bf16.gmra.mxu0 %v1418
      %v2035 = vpop.f32.mrf.mxu0
      %v2036 = vadd.f32 0.0, %v2035
      %v2037 = vpop.f32.mrf.mxu0
      %v2038 = vadd.f32 0.0, %v2037
      %2039 = vmatmul.bf16.gmra.mxu0 %v1461
      %v2040 = vpop.f32.mrf.mxu0
      %v2041 = vadd.f32 0.0, %v2040
      %v2042 = vpop.f32.mrf.mxu0
      %v2043 = vadd.f32 0.0, %v2042
      %2044 = vmatmul.bf16.gmra.mxu0 %v1504
      %v2045 = vpop.f32.mrf.mxu0
      %v2046 = vadd.f32 0.0, %v2045
      %v2047 = vpop.f32.mrf.mxu0
      %v2048 = vadd.f32 0.0, %v2047
      %2049 = vmatmul.bf16.gmra.mxu0 %v1547
      %v2050 = vpop.f32.mrf.mxu0
      %v2051 = vadd.f32 0.0, %v2050
      %v2052 = vpop.f32.mrf.mxu0
      %v2053 = vadd.f32 0.0, %v2052
      %2054 = vmatmul.bf16.gmra.mxu0 %v1590
      %v2055 = vpop.f32.mrf.mxu0
      %v2056 = vadd.f32 0.0, %v2055
      %v2057 = vpop.f32.mrf.mxu0
      %v2058 = vadd.f32 0.0, %v2057
      %2059 = vmatmul.bf16.gmra.mxu0 %v1633
      %v2060 = vpop.f32.mrf.mxu0
      %v2061 = vadd.f32 0.0, %v2060
      %v2062 = vpop.f32.mrf.mxu0
      %v2063 = vadd.f32 0.0, %v2062
      %2064 = vmatmul.bf16.gmra.mxu0 %v1676
      %v2065 = vpop.f32.mrf.mxu0
      %v2066 = vadd.f32 0.0, %v2065
      %v2067 = vpop.f32.mrf.mxu0
      %v2068 = vadd.f32 0.0, %v2067
      %2069 = vmatmul.bf16.gmra.mxu0 %v1719
      %v2070 = vpop.f32.mrf.mxu0
      %v2071 = vadd.f32 0.0, %v2070
      %v2072 = vpop.f32.mrf.mxu0
      %v2073 = vadd.f32 0.0, %v2072
      %2074 = vdwg.mxu0
      %2075 = vmatpush.bf16.msra.mxu0 %v1953
      %2076 = vmatpush.bf16.msra.mxu0 %v1952
      %2077 = vmatpush.bf16.msra.mxu0 %v1951
      %2078 = vmatpush.bf16.msra.mxu0 %v1950
      %2079 = vmatpush.bf16.msra.mxu0 %v1949
      %2080 = vmatpush.bf16.msra.mxu0 %v1948
      %2081 = vmatpush.bf16.msra.mxu0 %v1947
      %2082 = vmatpush.bf16.msra.mxu0 %v1946
      %2083 = vmatmul.bf16.gmra.mxu0 %v1083
      %v2084 = vpop.f32.mrf.mxu0
      %v2085 = vadd.f32 %v1996, %v2084
      %v2086 = vpop.f32.mrf.mxu0
      %v2087 = vadd.f32 %v1998, %v2086
      %2088 = vmatmul.bf16.gmra.mxu0 %v1126
      %v2089 = vpop.f32.mrf.mxu0
      %v2090 = vadd.f32 %v2001, %v2089
      %v2091 = vpop.f32.mrf.mxu0
      %v2092 = vadd.f32 %v2003, %v2091
      %2093 = vmatmul.bf16.gmra.mxu0 %v1169
      %v2094 = vpop.f32.mrf.mxu0
      %v2095 = vadd.f32 %v2006, %v2094
      %v2096 = vpop.f32.mrf.mxu0
      %v2097 = vadd.f32 %v2008, %v2096
      %2098 = vmatmul.bf16.gmra.mxu0 %v1212
      %v2099 = vpop.f32.mrf.mxu0
      %v2100 = vadd.f32 %v2011, %v2099
      %v2101 = vpop.f32.mrf.mxu0
      %v2102 = vadd.f32 %v2013, %v2101
      %2103 = vmatmul.bf16.gmra.mxu0 %v1255
      %v2104 = vpop.f32.mrf.mxu0
      %v2105 = vadd.f32 %v2016, %v2104
      %v2106 = vpop.f32.mrf.mxu0
      %v2107 = vadd.f32 %v2018, %v2106
      %2108 = vmatmul.bf16.gmra.mxu0 %v1298
      %v2109 = vpop.f32.mrf.mxu0
      %v2110 = vadd.f32 %v2021, %v2109
      %v2111 = vpop.f32.mrf.mxu0
      %v2112 = vadd.f32 %v2023, %v2111
      %2113 = vmatmul.bf16.gmra.mxu0 %v1341
      %v2114 = vpop.f32.mrf.mxu0
      %v2115 = vadd.f32 %v2026, %v2114
      %v2116 = vpop.f32.mrf.mxu0
      %v2117 = vadd.f32 %v2028, %v2116
      %2118 = vmatmul.bf16.gmra.mxu0 %v1384
      %v2119 = vpop.f32.mrf.mxu0
      %v2120 = vadd.f32 %v2031, %v2119
      %v2121 = vpop.f32.mrf.mxu0
      %v2122 = vadd.f32 %v2033, %v2121
      %2123 = vmatmul.bf16.gmra.mxu0 %v1427
      %v2124 = vpop.f32.mrf.mxu0
      %v2125 = vadd.f32 %v2036, %v2124
      %v2126 = vpop.f32.mrf.mxu0
      %v2127 = vadd.f32 %v2038, %v2126
      %2128 = vmatmul.bf16.gmra.mxu0 %v1470
      %v2129 = vpop.f32.mrf.mxu0
      %v2130 = vadd.f32 %v2041, %v2129
      %v2131 = vpop.f32.mrf.mxu0
      %v2132 = vadd.f32 %v2043, %v2131
      %2133 = vmatmul.bf16.gmra.mxu0 %v1513
      %v2134 = vpop.f32.mrf.mxu0
      %v2135 = vadd.f32 %v2046, %v2134
      %v2136 = vpop.f32.mrf.mxu0
      %v2137 = vadd.f32 %v2048, %v2136
      %2138 = vmatmul.bf16.gmra.mxu0 %v1556
      %v2139 = vpop.f32.mrf.mxu0
      %v2140 = vadd.f32 %v2051, %v2139
      %v2141 = vpop.f32.mrf.mxu0
      %v2142 = vadd.f32 %v2053, %v2141
      %2143 = vmatmul.bf16.gmra.mxu0 %v1599
      %v2144 = vpop.f32.mrf.mxu0
      %v2145 = vadd.f32 %v2056, %v2144
      %v2146 = vpop.f32.mrf.mxu0
      %v2147 = vadd.f32 %v2058, %v2146
      %2148 = vmatmul.bf16.gmra.mxu0 %v1642
      %v2149 = vpop.f32.mrf.mxu0
      %v2150 = vadd.f32 %v2061, %v2149
      %v2151 = vpop.f32.mrf.mxu0
      %v2152 = vadd.f32 %v2063, %v2151
      %2153 = vmatmul.bf16.gmra.mxu0 %v1685
      %v2154 = vpop.f32.mrf.mxu0
      %v2155 = vadd.f32 %v2066, %v2154
      %v2156 = vpop.f32.mrf.mxu0
      %v2157 = vadd.f32 %v2068, %v2156
      %2158 = vmatmul.bf16.gmra.mxu0 %v1728
      %v2159 = vpop.f32.mrf.mxu0
      %v2160 = vadd.f32 %v2071, %v2159
      %v2161 = vpop.f32.mrf.mxu0
      %v2162 = vadd.f32 %v2073, %v2161
      %2163 = vdwg.mxu0
      %2164 = vmatpush.bf16.msra.mxu0 %v1961
      %2165 = vmatpush.bf16.msra.mxu0 %v1960
      %2166 = vmatpush.bf16.msra.mxu0 %v1959
      %2167 = vmatpush.bf16.msra.mxu0 %v1958
      %2168 = vmatpush.bf16.msra.mxu0 %v1957
      %2169 = vmatpush.bf16.msra.mxu0 %v1956
      %2170 = vmatpush.bf16.msra.mxu0 %v1955
      %2171 = vmatpush.bf16.msra.mxu0 %v1954
      %2172 = vmatmul.bf16.gmra.mxu0 %v1100
      %v2173 = vpop.f32.mrf.mxu0
      %v2174 = vadd.f32 %v2085, %v2173
      %v2175 = vpop.f32.mrf.mxu0
      %v2176 = vadd.f32 %v2087, %v2175
      %2177 = vmatmul.bf16.gmra.mxu0 %v1143
      %v2178 = vpop.f32.mrf.mxu0
      %v2179 = vadd.f32 %v2090, %v2178
      %v2180 = vpop.f32.mrf.mxu0
      %v2181 = vadd.f32 %v2092, %v2180
      %2182 = vmatmul.bf16.gmra.mxu0 %v1186
      %v2183 = vpop.f32.mrf.mxu0
      %v2184 = vadd.f32 %v2095, %v2183
      %v2185 = vpop.f32.mrf.mxu0
      %v2186 = vadd.f32 %v2097, %v2185
      %2187 = vmatmul.bf16.gmra.mxu0 %v1229
      %v2188 = vpop.f32.mrf.mxu0
      %v2189 = vadd.f32 %v2100, %v2188
      %v2190 = vpop.f32.mrf.mxu0
      %v2191 = vadd.f32 %v2102, %v2190
      %2192 = vmatmul.bf16.gmra.mxu0 %v1272
      %v2193 = vpop.f32.mrf.mxu0
      %v2194 = vadd.f32 %v2105, %v2193
      %v2195 = vpop.f32.mrf.mxu0
      %v2196 = vadd.f32 %v2107, %v2195
      %2197 = vmatmul.bf16.gmra.mxu0 %v1315
      %v2198 = vpop.f32.mrf.mxu0
      %v2199 = vadd.f32 %v2110, %v2198
      %v2200 = vpop.f32.mrf.mxu0
      %v2201 = vadd.f32 %v2112, %v2200
      %2202 = vmatmul.bf16.gmra.mxu0 %v1358
      %v2203 = vpop.f32.mrf.mxu0
      %v2204 = vadd.f32 %v2115, %v2203
      %v2205 = vpop.f32.mrf.mxu0
      %v2206 = vadd.f32 %v2117, %v2205
      %2207 = vmatmul.bf16.gmra.mxu0 %v1401
      %v2208 = vpop.f32.mrf.mxu0
      %v2209 = vadd.f32 %v2120, %v2208
      %v2210 = vpop.f32.mrf.mxu0
      %v2211 = vadd.f32 %v2122, %v2210
      %2212 = vmatmul.bf16.gmra.mxu0 %v1444
      %v2213 = vpop.f32.mrf.mxu0
      %v2214 = vadd.f32 %v2125, %v2213
      %v2215 = vpop.f32.mrf.mxu0
      %v2216 = vadd.f32 %v2127, %v2215
      %2217 = vmatmul.bf16.gmra.mxu0 %v1487
      %v2218 = vpop.f32.mrf.mxu0
      %v2219 = vadd.f32 %v2130, %v2218
      %v2220 = vpop.f32.mrf.mxu0
      %v2221 = vadd.f32 %v2132, %v2220
      %2222 = vmatmul.bf16.gmra.mxu0 %v1530
      %v2223 = vpop.f32.mrf.mxu0
      %v2224 = vadd.f32 %v2135, %v2223
      %v2225 = vpop.f32.mrf.mxu0
      %v2226 = vadd.f32 %v2137, %v2225
      %2227 = vmatmul.bf16.gmra.mxu0 %v1573
      %v2228 = vpop.f32.mrf.mxu0
      %v2229 = vadd.f32 %v2140, %v2228
      %v2230 = vpop.f32.mrf.mxu0
      %v2231 = vadd.f32 %v2142, %v2230
      %2232 = vmatmul.bf16.gmra.mxu0 %v1616
      %v2233 = vpop.f32.mrf.mxu0
      %v2234 = vadd.f32 %v2145, %v2233
      %v2235 = vpop.f32.mrf.mxu0
      %v2236 = vadd.f32 %v2147, %v2235
      %2237 = vmatmul.bf16.gmra.mxu0 %v1659
      %v2238 = vpop.f32.mrf.mxu0
      %v2239 = vadd.f32 %v2150, %v2238
      %v2240 = vpop.f32.mrf.mxu0
      %v2241 = vadd.f32 %v2152, %v2240
      %2242 = vmatmul.bf16.gmra.mxu0 %v1702
      %v2243 = vpop.f32.mrf.mxu0
      %v2244 = vadd.f32 %v2155, %v2243
      %v2245 = vpop.f32.mrf.mxu0
      %v2246 = vadd.f32 %v2157, %v2245
      %2247 = vmatmul.bf16.gmra.mxu0 %v1745
      %v2248 = vpop.f32.mrf.mxu0
      %v2249 = vadd.f32 %v2160, %v2248
      %v2250 = vpop.f32.mrf.mxu0
      %v2251 = vadd.f32 %v2162, %v2250
      %2252 = vdwg.mxu0
      %2253 = vst [vmem:[#allocation3] sm:$0xff] %v2174
      %2254 = vst [vmem:[#allocation3 + $0x8] sm:$0xff] %v2176
      %2255 = vst [vmem:[#allocation3 + $0x10] sm:$0xff] %v2179
      %2256 = vst [vmem:[#allocation3 + $0x18] sm:$0xff] %v2181
      %2257 = vst [vmem:[#allocation3 + $0x20] sm:$0xff] %v2184
      %2258 = vst [vmem:[#allocation3 + $0x28] sm:$0xff] %v2186
      %2259 = vst [vmem:[#allocation3 + $0x30] sm:$0xff] %v2189
      %2260 = vst [vmem:[#allocation3 + $0x38] sm:$0xff] %v2191
      %2261 = vst [vmem:[#allocation3 + $0x40] sm:$0xff] %v2194
      %2262 = vst [vmem:[#allocation3 + $0x48] sm:$0xff] %v2196
      %2263 = vst [vmem:[#allocation3 + $0x50] sm:$0xff] %v2199
      %2264 = vst [vmem:[#allocation3 + $0x58] sm:$0xff] %v2201
      %2265 = vst [vmem:[#allocation3 + $0x60] sm:$0xff] %v2204
      %2266 = vst [vmem:[#allocation3 + $0x68] sm:$0xff] %v2206
      %2267 = vst [vmem:[#allocation3 + $0x70] sm:$0xff] %v2209
      %2268 = vst [vmem:[#allocation3 + $0x78] sm:$0xff] %v2211
      %2269 = vst [vmem:[#allocation3 + $0x80] sm:$0xff] %v2214
      %2270 = vst [vmem:[#allocation3 + $0x88] sm:$0xff] %v2216
      %2271 = vst [vmem:[#allocation3 + $0x90] sm:$0xff] %v2219
      %2272 = vst [vmem:[#allocation3 + $0x98] sm:$0xff] %v2221
      %2273 = vst [vmem:[#allocation3 + $0xa0] sm:$0xff] %v2224
      %2274 = vst [vmem:[#allocation3 + $0xa8] sm:$0xff] %v2226
      %2275 = vst [vmem:[#allocation3 + $0xb0] sm:$0xff] %v2229
      %2276 = vst [vmem:[#allocation3 + $0xb8] sm:$0xff] %v2231
      %2277 = vst [vmem:[#allocation3 + $0xc0] sm:$0xff] %v2234
      %2278 = vst [vmem:[#allocation3 + $0xc8] sm:$0xff] %v2236
      %2279 = vst [vmem:[#allocation3 + $0xd0] sm:$0xff] %v2239
      %2280 = vst [vmem:[#allocation3 + $0xd8] sm:$0xff] %v2241
      %2281 = vst [vmem:[#allocation3 + $0xe0] sm:$0xff] %v2244
      %2282 = vst [vmem:[#allocation3 + $0xe8] sm:$0xff] %v2246
      %2283 = vst [vmem:[#allocation3 + $0xf0] sm:$0xff] %v2249
      %2284 = vst [vmem:[#allocation3 + $0xf8] sm:$0xff] %v2251
      %s2285 = sadd.s32 %s620, 1
      %s2286 = smul.u32 %s2285, 4
      %s2287 = smul.addr %s2286, 4
      %s2288 = scalar_lea.vmem [#allocation2], %s2287
      %v2289 = vld [vmem:[%s2288] sm:$0x8]
      %v2290 = vld [vmem:[%s2288 + $0x4] sm:$0xf]
      %v2291 = vld [vmem:[%s2288 + $0x8] sm:$0xf]
      %v2292 = vld [vmem:[%s2288 + $0x10] sm:$0x8]
      %v2293 = vld [vmem:[%s2288 + $0x14] sm:$0xf]
      %v2294 = vld [vmem:[%s2288 + $0x18] sm:$0xf]
      %v2295 = vld [vmem:[%s2288 + $0x20] sm:$0x8]
      %v2296 = vld [vmem:[%s2288 + $0x24] sm:$0xf]
      %v2297 = vld [vmem:[%s2288 + $0x28] sm:$0xf]
      %v2298 = vld [vmem:[%s2288 + $0x30] sm:$0x8]
      %v2299 = vld [vmem:[%s2288 + $0x34] sm:$0xf]
      %v2300 = vld [vmem:[%s2288 + $0x38] sm:$0xf]
      %v2301 = vld [vmem:[%s2288 + $0x40] sm:$0x8]
      %v2302 = vld [vmem:[%s2288 + $0x44] sm:$0xf]
      %v2303 = vld [vmem:[%s2288 + $0x48] sm:$0xf]
      %v2304 = vld [vmem:[%s2288 + $0x50] sm:$0x8]
      %v2305 = vld [vmem:[%s2288 + $0x54] sm:$0xf]
      %v2306 = vld [vmem:[%s2288 + $0x58] sm:$0xf]
      %v2307 = vld [vmem:[%s2288 + $0x60] sm:$0x8]
      %v2308 = vld [vmem:[%s2288 + $0x64] sm:$0xf]
      %v2309 = vld [vmem:[%s2288 + $0x68] sm:$0xf]
      %v2310 = vld [vmem:[%s2288 + $0x70] sm:$0x8]
      %v2311 = vld [vmem:[%s2288 + $0x74] sm:$0xf]
      %v2312 = vld [vmem:[%s2288 + $0x78] sm:$0xf]
      %v2313 = vld [vmem:[%s2288 + $0x80] sm:$0x8]
      %v2314 = vld [vmem:[%s2288 + $0x84] sm:$0xf]
      %v2315 = vld [vmem:[%s2288 + $0x88] sm:$0xf]
      %v2316 = vld [vmem:[%s2288 + $0x90] sm:$0x8]
      %v2317 = vld [vmem:[%s2288 + $0x94] sm:$0xf]
      %v2318 = vld [vmem:[%s2288 + $0x98] sm:$0xf]
      %v2319 = vld [vmem:[%s2288 + $0xa0] sm:$0x8]
      %v2320 = vld [vmem:[%s2288 + $0xa4] sm:$0xf]
      %v2321 = vld [vmem:[%s2288 + $0xa8] sm:$0xf]
      %v2322 = vld [vmem:[%s2288 + $0xb0] sm:$0x8]
      %v2323 = vld [vmem:[%s2288 + $0xb4] sm:$0xf]
      %v2324 = vld [vmem:[%s2288 + $0xb8] sm:$0xf]
      %v2325 = vld [vmem:[%s2288 + $0xc0] sm:$0x8]
      %v2326 = vld [vmem:[%s2288 + $0xc4] sm:$0xf]
      %v2327 = vld [vmem:[%s2288 + $0xc8] sm:$0xf]
      %v2328 = vld [vmem:[%s2288 + $0xd0] sm:$0x8]
      %v2329 = vld [vmem:[%s2288 + $0xd4] sm:$0xf]
      %v2330 = vld [vmem:[%s2288 + $0xd8] sm:$0xf]
      %v2331 = vld [vmem:[%s2288 + $0xe0] sm:$0x8]
      %v2332 = vld [vmem:[%s2288 + $0xe4] sm:$0xf]
      %v2333 = vld [vmem:[%s2288 + $0xe8] sm:$0xf]
      %v2334 = vld [vmem:[%s2288 + $0xf0] sm:$0x8]
      %v2335 = vld [vmem:[%s2288 + $0xf4] sm:$0xf]
      %v2336 = vld [vmem:[%s2288 + $0xf8] sm:$0xf]
      %v2337 = vld [vmem:[%s2288 + $0xc] sm:$0x1]
      %v2338 = vld [vmem:[%s2288 + $0x1c] sm:$0x1]
      %v2339 = vld [vmem:[%s2288 + $0x2c] sm:$0x1]
      %v2340 = vld [vmem:[%s2288 + $0x3c] sm:$0x1]
      %v2341 = vld [vmem:[%s2288 + $0x4c] sm:$0x1]
      %v2342 = vld [vmem:[%s2288 + $0x5c] sm:$0x1]
      %v2343 = vld [vmem:[%s2288 + $0x6c] sm:$0x1]
      %v2344 = vld [vmem:[%s2288 + $0x7c] sm:$0x1]
      %v2345 = vld [vmem:[%s2288 + $0x8c] sm:$0x1]
      %v2346 = vld [vmem:[%s2288 + $0x9c] sm:$0x1]
      %v2347 = vld [vmem:[%s2288 + $0xac] sm:$0x1]
      %v2348 = vld [vmem:[%s2288 + $0xbc] sm:$0x1]
      %v2349 = vld [vmem:[%s2288 + $0xcc] sm:$0x1]
      %v2350 = vld [vmem:[%s2288 + $0xdc] sm:$0x1]
      %v2351 = vld [vmem:[%s2288 + $0xec] sm:$0x1]
      %v2352 = vld [vmem:[%s2288 + $0xfc] sm:$0x1]
      %v2401 = vunpack.c.l.b16 %v2289
      %v2402 = vunpack.c.l.b16 %v2290
      %v2403 = vunpack.c.l.b16 %v2291
      %v2404 = vunpack.c.l.b16 %v2292
      %v2405 = vunpack.c.l.b16 %v2293
      %v2406 = vunpack.c.l.b16 %v2294
      %v2407 = vunpack.c.l.b16 %v2295
      %v2408 = vunpack.c.l.b16 %v2296
      %v2409 = vunpack.c.l.b16 %v2297
      %v2410 = vunpack.c.l.b16 %v2298
      %v2411 = vunpack.c.l.b16 %v2299
      %v2412 = vunpack.c.l.b16 %v2300
      %v2413 = vunpack.c.l.b16 %v2301
      %v2414 = vunpack.c.l.b16 %v2302
      %v2415 = vunpack.c.l.b16 %v2303
      %v2416 = vunpack.c.l.b16 %v2304
      %v2417 = vunpack.c.l.b16 %v2305
      %v2418 = vunpack.c.l.b16 %v2306
      %v2419 = vunpack.c.l.b16 %v2307
      %v2420 = vunpack.c.l.b16 %v2308
      %v2421 = vunpack.c.l.b16 %v2309
      %v2422 = vunpack.c.l.b16 %v2310
      %v2423 = vunpack.c.l.b16 %v2311
      %v2424 = vunpack.c.l.b16 %v2312
      %v2425 = vunpack.c.l.b16 %v2313
      %v2426 = vunpack.c.l.b16 %v2314
      %v2427 = vunpack.c.l.b16 %v2315
      %v2428 = vunpack.c.l.b16 %v2316
      %v2429 = vunpack.c.l.b16 %v2317
      %v2430 = vunpack.c.l.b16 %v2318
      %v2431 = vunpack.c.l.b16 %v2319
      %v2432 = vunpack.c.l.b16 %v2320
      %v2433 = vunpack.c.l.b16 %v2321
      %v2434 = vunpack.c.l.b16 %v2322
      %v2435 = vunpack.c.l.b16 %v2323
      %v2436 = vunpack.c.l.b16 %v2324
      %v2437 = vunpack.c.l.b16 %v2325
      %v2438 = vunpack.c.l.b16 %v2326
      %v2439 = vunpack.c.l.b16 %v2327
      %v2440 = vunpack.c.l.b16 %v2328
      %v2441 = vunpack.c.l.b16 %v2329
      %v2442 = vunpack.c.l.b16 %v2330
      %v2443 = vunpack.c.l.b16 %v2331
      %v2444 = vunpack.c.l.b16 %v2332
      %v2445 = vunpack.c.l.b16 %v2333
      %v2446 = vunpack.c.l.b16 %v2334
      %v2447 = vunpack.c.l.b16 %v2335
      %v2448 = vunpack.c.l.b16 %v2336
      %v2449 = vpack.c.b16 %v2402, %v2401
      %v2450 = vpack.c.b16 %v2403, %v2403
      %v2451 = vpack.c.b16 %v2405, %v2404
      %v2452 = vpack.c.b16 %v2406, %v2406
      %v2453 = vpack.c.b16 %v2408, %v2407
      %v2454 = vpack.c.b16 %v2409, %v2409
      %v2455 = vpack.c.b16 %v2411, %v2410
      %v2456 = vpack.c.b16 %v2412, %v2412
      %v2457 = vpack.c.b16 %v2414, %v2413
      %v2458 = vpack.c.b16 %v2415, %v2415
      %v2459 = vpack.c.b16 %v2417, %v2416
      %v2460 = vpack.c.b16 %v2418, %v2418
      %v2461 = vpack.c.b16 %v2420, %v2419
      %v2462 = vpack.c.b16 %v2421, %v2421
      %v2463 = vpack.c.b16 %v2423, %v2422
      %v2464 = vpack.c.b16 %v2424, %v2424
      %v2465 = vpack.c.b16 %v2426, %v2425
      %v2466 = vpack.c.b16 %v2427, %v2427
      %v2467 = vpack.c.b16 %v2429, %v2428
      %v2468 = vpack.c.b16 %v2430, %v2430
      %v2469 = vpack.c.b16 %v2432, %v2431
      %v2470 = vpack.c.b16 %v2433, %v2433
      %v2471 = vpack.c.b16 %v2435, %v2434
      %v2472 = vpack.c.b16 %v2436, %v2436
      %v2473 = vpack.c.b16 %v2438, %v2437
      %v2474 = vpack.c.b16 %v2439, %v2439
      %v2475 = vpack.c.b16 %v2441, %v2440
      %v2476 = vpack.c.b16 %v2442, %v2442
      %v2477 = vpack.c.b16 %v2444, %v2443
      %v2478 = vpack.c.b16 %v2445, %v2445
      %v2479 = vpack.c.b16 %v2447, %v2446
      %v2480 = vpack.c.b16 %v2448, %v2448
      %v2481 = vpack.c.b16 %v2403, %v2402
      %v2482 = vpack.c.b16 %v2406, %v2405
      %v2483 = vpack.c.b16 %v2409, %v2408
      %v2484 = vpack.c.b16 %v2412, %v2411
      %v2485 = vpack.c.b16 %v2415, %v2414
      %v2486 = vpack.c.b16 %v2418, %v2417
      %v2487 = vpack.c.b16 %v2421, %v2420
      %v2488 = vpack.c.b16 %v2424, %v2423
      %v2489 = vpack.c.b16 %v2427, %v2426
      %v2490 = vpack.c.b16 %v2430, %v2429
      %v2491 = vpack.c.b16 %v2433, %v2432
      %v2492 = vpack.c.b16 %v2436, %v2435
      %v2493 = vpack.c.b16 %v2439, %v2438
      %v2494 = vpack.c.b16 %v2442, %v2441
      %v2495 = vpack.c.b16 %v2445, %v2444
      %v2496 = vpack.c.b16 %v2448, %v2447
      %v2498 = vshrl.u32 %v2481, 16
      %v2500 = vrot.slane %v2498, 4
      %v2501 = vshll.u32 %v2481, 16
      %v2503 = vrot.slane %v2501, 5
      %v2504 = vor.u32 %v2500, %v2503
      %v2506 = vshrl.u32 %v2482, 16
      %v2508 = vrot.slane %v2506, 4
      %v2509 = vshll.u32 %v2482, 16
      %v2511 = vrot.slane %v2509, 5
      %v2512 = vor.u32 %v2508, %v2511
      %v2514 = vshrl.u32 %v2483, 16
      %v2516 = vrot.slane %v2514, 4
      %v2517 = vshll.u32 %v2483, 16
      %v2519 = vrot.slane %v2517, 5
      %v2520 = vor.u32 %v2516, %v2519
      %v2522 = vshrl.u32 %v2484, 16
      %v2524 = vrot.slane %v2522, 4
      %v2525 = vshll.u32 %v2484, 16
      %v2527 = vrot.slane %v2525, 5
      %v2528 = vor.u32 %v2524, %v2527
      %v2530 = vshrl.u32 %v2485, 16
      %v2532 = vrot.slane %v2530, 4
      %v2533 = vshll.u32 %v2485, 16
      %v2535 = vrot.slane %v2533, 5
      %v2536 = vor.u32 %v2532, %v2535
      %v2538 = vshrl.u32 %v2486, 16
      %v2540 = vrot.slane %v2538, 4
      %v2541 = vshll.u32 %v2486, 16
      %v2543 = vrot.slane %v2541, 5
      %v2544 = vor.u32 %v2540, %v2543
      %v2546 = vshrl.u32 %v2487, 16
      %v2548 = vrot.slane %v2546, 4
      %v2549 = vshll.u32 %v2487, 16
      %v2551 = vrot.slane %v2549, 5
      %v2552 = vor.u32 %v2548, %v2551
      %v2554 = vshrl.u32 %v2488, 16
      %v2556 = vrot.slane %v2554, 4
      %v2557 = vshll.u32 %v2488, 16
      %v2559 = vrot.slane %v2557, 5
      %v2560 = vor.u32 %v2556, %v2559
      %v2562 = vshrl.u32 %v2489, 16
      %v2564 = vrot.slane %v2562, 4
      %v2565 = vshll.u32 %v2489, 16
      %v2567 = vrot.slane %v2565, 5
      %v2568 = vor.u32 %v2564, %v2567
      %v2570 = vshrl.u32 %v2490, 16
      %v2572 = vrot.slane %v2570, 4
      %v2573 = vshll.u32 %v2490, 16
      %v2575 = vrot.slane %v2573, 5
      %v2576 = vor.u32 %v2572, %v2575
      %v2578 = vshrl.u32 %v2491, 16
      %v2580 = vrot.slane %v2578, 4
      %v2581 = vshll.u32 %v2491, 16
      %v2583 = vrot.slane %v2581, 5
      %v2584 = vor.u32 %v2580, %v2583
      %v2586 = vshrl.u32 %v2492, 16
      %v2588 = vrot.slane %v2586, 4
      %v2589 = vshll.u32 %v2492, 16
      %v2591 = vrot.slane %v2589, 5
      %v2592 = vor.u32 %v2588, %v2591
      %v2594 = vshrl.u32 %v2493, 16
      %v2596 = vrot.slane %v2594, 4
      %v2597 = vshll.u32 %v2493, 16
      %v2599 = vrot.slane %v2597, 5
      %v2600 = vor.u32 %v2596, %v2599
      %v2602 = vshrl.u32 %v2494, 16
      %v2604 = vrot.slane %v2602, 4
      %v2605 = vshll.u32 %v2494, 16
      %v2607 = vrot.slane %v2605, 5
      %v2608 = vor.u32 %v2604, %v2607
      %v2610 = vshrl.u32 %v2495, 16
      %v2612 = vrot.slane %v2610, 4
      %v2613 = vshll.u32 %v2495, 16
      %v2615 = vrot.slane %v2613, 5
      %v2616 = vor.u32 %v2612, %v2615
      %v2618 = vshrl.u32 %v2496, 16
      %v2620 = vrot.slane %v2618, 4
      %v2621 = vshll.u32 %v2496, 16
      %v2623 = vrot.slane %v2621, 5
      %v2624 = vor.u32 %v2620, %v2623
      %v2641 = vunpack.c.l.b16 %v2337
      %v2642 = vunpack.c.l.b16 %v2338
      %v2643 = vunpack.c.l.b16 %v2339
      %v2644 = vunpack.c.l.b16 %v2340
      %v2645 = vunpack.c.l.b16 %v2341
      %v2646 = vunpack.c.l.b16 %v2342
      %v2647 = vunpack.c.l.b16 %v2343
      %v2648 = vunpack.c.l.b16 %v2344
      %v2649 = vunpack.c.l.b16 %v2345
      %v2650 = vunpack.c.l.b16 %v2346
      %v2651 = vunpack.c.l.b16 %v2347
      %v2652 = vunpack.c.l.b16 %v2348
      %v2653 = vunpack.c.l.b16 %v2349
      %v2654 = vunpack.c.l.b16 %v2350
      %v2655 = vunpack.c.l.b16 %v2351
      %v2656 = vunpack.c.l.b16 %v2352
      %v2657 = vpack.c.b16 %v2641, %v2641
      %v2658 = vpack.c.b16 %v2642, %v2642
      %v2659 = vpack.c.b16 %v2643, %v2643
      %v2660 = vpack.c.b16 %v2644, %v2644
      %v2661 = vpack.c.b16 %v2645, %v2645
      %v2662 = vpack.c.b16 %v2646, %v2646
      %v2663 = vpack.c.b16 %v2647, %v2647
      %v2664 = vpack.c.b16 %v2648, %v2648
      %v2665 = vpack.c.b16 %v2649, %v2649
      %v2666 = vpack.c.b16 %v2650, %v2650
      %v2667 = vpack.c.b16 %v2651, %v2651
      %v2668 = vpack.c.b16 %v2652, %v2652
      %v2669 = vpack.c.b16 %v2653, %v2653
      %v2670 = vpack.c.b16 %v2654, %v2654
      %v2671 = vpack.c.b16 %v2655, %v2655
      %v2672 = vpack.c.b16 %v2656, %v2656
      %v2673 = vrot.slane %v2481, 5
      %v2674 = vrot.slane %v2657, 5
      %v2675 = vsel %vm1008, %v2673, %v2674
      %v2676 = vrot.slane %v2482, 5
      %v2677 = vrot.slane %v2658, 5
      %v2678 = vsel %vm1008, %v2676, %v2677
      %v2679 = vrot.slane %v2483, 5
      %v2680 = vrot.slane %v2659, 5
      %v2681 = vsel %vm1008, %v2679, %v2680
      %v2682 = vrot.slane %v2484, 5
      %v2683 = vrot.slane %v2660, 5
      %v2684 = vsel %vm1008, %v2682, %v2683
      %v2685 = vrot.slane %v2485, 5
      %v2686 = vrot.slane %v2661, 5
      %v2687 = vsel %vm1008, %v2685, %v2686
      %v2688 = vrot.slane %v2486, 5
      %v2689 = vrot.slane %v2662, 5
      %v2690 = vsel %vm1008, %v2688, %v2689
      %v2691 = vrot.slane %v2487, 5
      %v2692 = vrot.slane %v2663, 5
      %v2693 = vsel %vm1008, %v2691, %v2692
      %v2694 = vrot.slane %v2488, 5
      %v2695 = vrot.slane %v2664, 5
      %v2696 = vsel %vm1008, %v2694, %v2695
      %v2697 = vrot.slane %v2489, 5
      %v2698 = vrot.slane %v2665, 5
      %v2699 = vsel %vm1008, %v2697, %v2698
      %v2700 = vrot.slane %v2490, 5
      %v2701 = vrot.slane %v2666, 5
      %v2702 = vsel %vm1008, %v2700, %v2701
      %v2703 = vrot.slane %v2491, 5
      %v2704 = vrot.slane %v2667, 5
      %v2705 = vsel %vm1008, %v2703, %v2704
      %v2706 = vrot.slane %v2492, 5
      %v2707 = vrot.slane %v2668, 5
      %v2708 = vsel %vm1008, %v2706, %v2707
      %v2709 = vrot.slane %v2493, 5
      %v2710 = vrot.slane %v2669, 5
      %v2711 = vsel %vm1008, %v2709, %v2710
      %v2712 = vrot.slane %v2494, 5
      %v2713 = vrot.slane %v2670, 5
      %v2714 = vsel %vm1008, %v2712, %v2713
      %v2715 = vrot.slane %v2495, 5
      %v2716 = vrot.slane %v2671, 5
      %v2717 = vsel %vm1008, %v2715, %v2716
      %v2718 = vrot.slane %v2496, 5
      %v2719 = vrot.slane %v2672, 5
      %v2720 = vsel %vm1008, %v2718, %v2719
      %v2722 = vshrl.u32 %v2449, 16
      %v2724 = vrot.slane %v2722, 3
      %v2725 = vshll.u32 %v2449, 16
      %v2727 = vrot.slane %v2725, 4
      %v2728 = vor.u32 %v2724, %v2727
      %v2730 = vshrl.u32 %v2450, 16
      %v2732 = vrot.slane %v2730, 3
      %v2733 = vshll.u32 %v2450, 16
      %v2735 = vrot.slane %v2733, 4
      %v2736 = vor.u32 %v2732, %v2735
      %v2737 = vsel %vm1057, %v2728, %v2736
      %v2739 = vshrl.u32 %v2504, 16
      %v2741 = vrot.slane %v2739, 3
      %v2742 = vshll.u32 %v2504, 16
      %v2744 = vrot.slane %v2742, 4
      %v2745 = vor.u32 %v2741, %v2744
      %v2746 = vsel %vm1057, %v2745, %v2745
      %v2748 = vshrl.u32 %v2673, 16
      %v2750 = vrot.slane %v2748, 3
      %v2751 = vshll.u32 %v2673, 16
      %v2753 = vrot.slane %v2751, 4
      %v2754 = vor.u32 %v2750, %v2753
      %v2756 = vshrl.u32 %v2675, 16
      %v2758 = vrot.slane %v2756, 3
      %v2759 = vshll.u32 %v2675, 16
      %v2761 = vrot.slane %v2759, 4
      %v2762 = vor.u32 %v2758, %v2761
      %v2763 = vsel %vm1057, %v2754, %v2762
      %v2765 = vshrl.u32 %v2451, 16
      %v2767 = vrot.slane %v2765, 3
      %v2768 = vshll.u32 %v2451, 16
      %v2770 = vrot.slane %v2768, 4
      %v2771 = vor.u32 %v2767, %v2770
      %v2773 = vshrl.u32 %v2452, 16
      %v2775 = vrot.slane %v2773, 3
      %v2776 = vshll.u32 %v2452, 16
      %v2778 = vrot.slane %v2776, 4
      %v2779 = vor.u32 %v2775, %v2778
      %v2780 = vsel %vm1057, %v2771, %v2779
      %v2782 = vshrl.u32 %v2512, 16
      %v2784 = vrot.slane %v2782, 3
      %v2785 = vshll.u32 %v2512, 16
      %v2787 = vrot.slane %v2785, 4
      %v2788 = vor.u32 %v2784, %v2787
      %v2789 = vsel %vm1057, %v2788, %v2788
      %v2791 = vshrl.u32 %v2676, 16
      %v2793 = vrot.slane %v2791, 3
      %v2794 = vshll.u32 %v2676, 16
      %v2796 = vrot.slane %v2794, 4
      %v2797 = vor.u32 %v2793, %v2796
      %v2799 = vshrl.u32 %v2678, 16
      %v2801 = vrot.slane %v2799, 3
      %v2802 = vshll.u32 %v2678, 16
      %v2804 = vrot.slane %v2802, 4
      %v2805 = vor.u32 %v2801, %v2804
      %v2806 = vsel %vm1057, %v2797, %v2805
      %v2808 = vshrl.u32 %v2453, 16
      %v2810 = vrot.slane %v2808, 3
      %v2811 = vshll.u32 %v2453, 16
      %v2813 = vrot.slane %v2811, 4
      %v2814 = vor.u32 %v2810, %v2813
      %v2816 = vshrl.u32 %v2454, 16
      %v2818 = vrot.slane %v2816, 3
      %v2819 = vshll.u32 %v2454, 16
      %v2821 = vrot.slane %v2819, 4
      %v2822 = vor.u32 %v2818, %v2821
      %v2823 = vsel %vm1057, %v2814, %v2822
      %v2825 = vshrl.u32 %v2520, 16
      %v2827 = vrot.slane %v2825, 3
      %v2828 = vshll.u32 %v2520, 16
      %v2830 = vrot.slane %v2828, 4
      %v2831 = vor.u32 %v2827, %v2830
      %v2832 = vsel %vm1057, %v2831, %v2831
      %v2834 = vshrl.u32 %v2679, 16
      %v2836 = vrot.slane %v2834, 3
      %v2837 = vshll.u32 %v2679, 16
      %v2839 = vrot.slane %v2837, 4
      %v2840 = vor.u32 %v2836, %v2839
      %v2842 = vshrl.u32 %v2681, 16
      %v2844 = vrot.slane %v2842, 3
      %v2845 = vshll.u32 %v2681, 16
      %v2847 = vrot.slane %v2845, 4
      %v2848 = vor.u32 %v2844, %v2847
      %v2849 = vsel %vm1057, %v2840, %v2848
      %v2851 = vshrl.u32 %v2455, 16
      %v2853 = vrot.slane %v2851, 3
      %v2854 = vshll.u32 %v2455, 16
      %v2856 = vrot.slane %v2854, 4
      %v2857 = vor.u32 %v2853, %v2856
      %v2859 = vshrl.u32 %v2456, 16
      %v2861 = vrot.slane %v2859, 3
      %v2862 = vshll.u32 %v2456, 16
      %v2864 = vrot.slane %v2862, 4
      %v2865 = vor.u32 %v2861, %v2864
      %v2866 = vsel %vm1057, %v2857, %v2865
      %v2868 = vshrl.u32 %v2528, 16
      %v2870 = vrot.slane %v2868, 3
      %v2871 = vshll.u32 %v2528, 16
      %v2873 = vrot.slane %v2871, 4
      %v2874 = vor.u32 %v2870, %v2873
      %v2875 = vsel %vm1057, %v2874, %v2874
      %v2877 = vshrl.u32 %v2682, 16
      %v2879 = vrot.slane %v2877, 3
      %v2880 = vshll.u32 %v2682, 16
      %v2882 = vrot.slane %v2880, 4
      %v2883 = vor.u32 %v2879, %v2882
      %v2885 = vshrl.u32 %v2684, 16
      %v2887 = vrot.slane %v2885, 3
      %v2888 = vshll.u32 %v2684, 16
      %v2890 = vrot.slane %v2888, 4
      %v2891 = vor.u32 %v2887, %v2890
      %v2892 = vsel %vm1057, %v2883, %v2891
      %v2894 = vshrl.u32 %v2457, 16
      %v2896 = vrot.slane %v2894, 3
      %v2897 = vshll.u32 %v2457, 16
      %v2899 = vrot.slane %v2897, 4
      %v2900 = vor.u32 %v2896, %v2899
      %v2902 = vshrl.u32 %v2458, 16
      %v2904 = vrot.slane %v2902, 3
      %v2905 = vshll.u32 %v2458, 16
      %v2907 = vrot.slane %v2905, 4
      %v2908 = vor.u32 %v2904, %v2907
      %v2909 = vsel %vm1057, %v2900, %v2908
      %v2911 = vshrl.u32 %v2536, 16
      %v2913 = vrot.slane %v2911, 3
      %v2914 = vshll.u32 %v2536, 16
      %v2916 = vrot.slane %v2914, 4
      %v2917 = vor.u32 %v2913, %v2916
      %v2918 = vsel %vm1057, %v2917, %v2917
      %v2920 = vshrl.u32 %v2685, 16
      %v2922 = vrot.slane %v2920, 3
      %v2923 = vshll.u32 %v2685, 16
      %v2925 = vrot.slane %v2923, 4
      %v2926 = vor.u32 %v2922, %v2925
      %v2928 = vshrl.u32 %v2687, 16
      %v2930 = vrot.slane %v2928, 3
      %v2931 = vshll.u32 %v2687, 16
      %v2933 = vrot.slane %v2931, 4
      %v2934 = vor.u32 %v2930, %v2933
      %v2935 = vsel %vm1057, %v2926, %v2934
      %v2937 = vshrl.u32 %v2459, 16
      %v2939 = vrot.slane %v2937, 3
      %v2940 = vshll.u32 %v2459, 16
      %v2942 = vrot.slane %v2940, 4
      %v2943 = vor.u32 %v2939, %v2942
      %v2945 = vshrl.u32 %v2460, 16
      %v2947 = vrot.slane %v2945, 3
      %v2948 = vshll.u32 %v2460, 16
      %v2950 = vrot.slane %v2948, 4
      %v2951 = vor.u32 %v2947, %v2950
      %v2952 = vsel %vm1057, %v2943, %v2951
      %v2954 = vshrl.u32 %v2544, 16
      %v2956 = vrot.slane %v2954, 3
      %v2957 = vshll.u32 %v2544, 16
      %v2959 = vrot.slane %v2957, 4
      %v2960 = vor.u32 %v2956, %v2959
      %v2961 = vsel %vm1057, %v2960, %v2960
      %v2963 = vshrl.u32 %v2688, 16
      %v2965 = vrot.slane %v2963, 3
      %v2966 = vshll.u32 %v2688, 16
      %v2968 = vrot.slane %v2966, 4
      %v2969 = vor.u32 %v2965, %v2968
      %v2971 = vshrl.u32 %v2690, 16
      %v2973 = vrot.slane %v2971, 3
      %v2974 = vshll.u32 %v2690, 16
      %v2976 = vrot.slane %v2974, 4
      %v2977 = vor.u32 %v2973, %v2976
      %v2978 = vsel %vm1057, %v2969, %v2977
      %v2980 = vshrl.u32 %v2461, 16
      %v2982 = vrot.slane %v2980, 3
      %v2983 = vshll.u32 %v2461, 16
      %v2985 = vrot.slane %v2983, 4
      %v2986 = vor.u32 %v2982, %v2985
      %v2988 = vshrl.u32 %v2462, 16
      %v2990 = vrot.slane %v2988, 3
      %v2991 = vshll.u32 %v2462, 16
      %v2993 = vrot.slane %v2991, 4
      %v2994 = vor.u32 %v2990, %v2993
      %v2995 = vsel %vm1057, %v2986, %v2994
      %v2997 = vshrl.u32 %v2552, 16
      %v2999 = vrot.slane %v2997, 3
      %v3000 = vshll.u32 %v2552, 16
      %v3002 = vrot.slane %v3000, 4
      %v3003 = vor.u32 %v2999, %v3002
      %v3004 = vsel %vm1057, %v3003, %v3003
      %v3006 = vshrl.u32 %v2691, 16
      %v3008 = vrot.slane %v3006, 3
      %v3009 = vshll.u32 %v2691, 16
      %v3011 = vrot.slane %v3009, 4
      %v3012 = vor.u32 %v3008, %v3011
      %v3014 = vshrl.u32 %v2693, 16
      %v3016 = vrot.slane %v3014, 3
      %v3017 = vshll.u32 %v2693, 16
      %v3019 = vrot.slane %v3017, 4
      %v3020 = vor.u32 %v3016, %v3019
      %v3021 = vsel %vm1057, %v3012, %v3020
      %v3023 = vshrl.u32 %v2463, 16
      %v3025 = vrot.slane %v3023, 3
      %v3026 = vshll.u32 %v2463, 16
      %v3028 = vrot.slane %v3026, 4
      %v3029 = vor.u32 %v3025, %v3028
      %v3031 = vshrl.u32 %v2464, 16
      %v3033 = vrot.slane %v3031, 3
      %v3034 = vshll.u32 %v2464, 16
      %v3036 = vrot.slane %v3034, 4
      %v3037 = vor.u32 %v3033, %v3036
      %v3038 = vsel %vm1057, %v3029, %v3037
      %v3040 = vshrl.u32 %v2560, 16
      %v3042 = vrot.slane %v3040, 3
      %v3043 = vshll.u32 %v2560, 16
      %v3045 = vrot.slane %v3043, 4
      %v3046 = vor.u32 %v3042, %v3045
      %v3047 = vsel %vm1057, %v3046, %v3046
      %v3049 = vshrl.u32 %v2694, 16
      %v3051 = vrot.slane %v3049, 3
      %v3052 = vshll.u32 %v2694, 16
      %v3054 = vrot.slane %v3052, 4
      %v3055 = vor.u32 %v3051, %v3054
      %v3057 = vshrl.u32 %v2696, 16
      %v3059 = vrot.slane %v3057, 3
      %v3060 = vshll.u32 %v2696, 16
      %v3062 = vrot.slane %v3060, 4
      %v3063 = vor.u32 %v3059, %v3062
      %v3064 = vsel %vm1057, %v3055, %v3063
      %v3066 = vshrl.u32 %v2465, 16
      %v3068 = vrot.slane %v3066, 3
      %v3069 = vshll.u32 %v2465, 16
      %v3071 = vrot.slane %v3069, 4
      %v3072 = vor.u32 %v3068, %v3071
      %v3074 = vshrl.u32 %v2466, 16
      %v3076 = vrot.slane %v3074, 3
      %v3077 = vshll.u32 %v2466, 16
      %v3079 = vrot.slane %v3077, 4
      %v3080 = vor.u32 %v3076, %v3079
      %v3081 = vsel %vm1057, %v3072, %v3080
      %v3083 = vshrl.u32 %v2568, 16
      %v3085 = vrot.slane %v3083, 3
      %v3086 = vshll.u32 %v2568, 16
      %v3088 = vrot.slane %v3086, 4
      %v3089 = vor.u32 %v3085, %v3088
      %v3090 = vsel %vm1057, %v3089, %v3089
      %v3092 = vshrl.u32 %v2697, 16
      %v3094 = vrot.slane %v3092, 3
      %v3095 = vshll.u32 %v2697, 16
      %v3097 = vrot.slane %v3095, 4
      %v3098 = vor.u32 %v3094, %v3097
      %v3100 = vshrl.u32 %v2699, 16
      %v3102 = vrot.slane %v3100, 3
      %v3103 = vshll.u32 %v2699, 16
      %v3105 = vrot.slane %v3103, 4
      %v3106 = vor.u32 %v3102, %v3105
      %v3107 = vsel %vm1057, %v3098, %v3106
      %v3109 = vshrl.u32 %v2467, 16
      %v3111 = vrot.slane %v3109, 3
      %v3112 = vshll.u32 %v2467, 16
      %v3114 = vrot.slane %v3112, 4
      %v3115 = vor.u32 %v3111, %v3114
      %v3117 = vshrl.u32 %v2468, 16
      %v3119 = vrot.slane %v3117, 3
      %v3120 = vshll.u32 %v2468, 16
      %v3122 = vrot.slane %v3120, 4
      %v3123 = vor.u32 %v3119, %v3122
      %v3124 = vsel %vm1057, %v3115, %v3123
      %v3126 = vshrl.u32 %v2576, 16
      %v3128 = vrot.slane %v3126, 3
      %v3129 = vshll.u32 %v2576, 16
      %v3131 = vrot.slane %v3129, 4
      %v3132 = vor.u32 %v3128, %v3131
      %v3133 = vsel %vm1057, %v3132, %v3132
      %v3135 = vshrl.u32 %v2700, 16
      %v3137 = vrot.slane %v3135, 3
      %v3138 = vshll.u32 %v2700, 16
      %v3140 = vrot.slane %v3138, 4
      %v3141 = vor.u32 %v3137, %v3140
      %v3143 = vshrl.u32 %v2702, 16
      %v3145 = vrot.slane %v3143, 3
      %v3146 = vshll.u32 %v2702, 16
      %v3148 = vrot.slane %v3146, 4
      %v3149 = vor.u32 %v3145, %v3148
      %v3150 = vsel %vm1057, %v3141, %v3149
      %v3152 = vshrl.u32 %v2469, 16
      %v3154 = vrot.slane %v3152, 3
      %v3155 = vshll.u32 %v2469, 16
      %v3157 = vrot.slane %v3155, 4
      %v3158 = vor.u32 %v3154, %v3157
      %v3160 = vshrl.u32 %v2470, 16
      %v3162 = vrot.slane %v3160, 3
      %v3163 = vshll.u32 %v2470, 16
      %v3165 = vrot.slane %v3163, 4
      %v3166 = vor.u32 %v3162, %v3165
      %v3167 = vsel %vm1057, %v3158, %v3166
      %v3169 = vshrl.u32 %v2584, 16
      %v3171 = vrot.slane %v3169, 3
      %v3172 = vshll.u32 %v2584, 16
      %v3174 = vrot.slane %v3172, 4
      %v3175 = vor.u32 %v3171, %v3174
      %v3176 = vsel %vm1057, %v3175, %v3175
      %v3178 = vshrl.u32 %v2703, 16
      %v3180 = vrot.slane %v3178, 3
      %v3181 = vshll.u32 %v2703, 16
      %v3183 = vrot.slane %v3181, 4
      %v3184 = vor.u32 %v3180, %v3183
      %v3186 = vshrl.u32 %v2705, 16
      %v3188 = vrot.slane %v3186, 3
      %v3189 = vshll.u32 %v2705, 16
      %v3191 = vrot.slane %v3189, 4
      %v3192 = vor.u32 %v3188, %v3191
      %v3193 = vsel %vm1057, %v3184, %v3192
      %v3195 = vshrl.u32 %v2471, 16
      %v3197 = vrot.slane %v3195, 3
      %v3198 = vshll.u32 %v2471, 16
      %v3200 = vrot.slane %v3198, 4
      %v3201 = vor.u32 %v3197, %v3200
      %v3203 = vshrl.u32 %v2472, 16
      %v3205 = vrot.slane %v3203, 3
      %v3206 = vshll.u32 %v2472, 16
      %v3208 = vrot.slane %v3206, 4
      %v3209 = vor.u32 %v3205, %v3208
      %v3210 = vsel %vm1057, %v3201, %v3209
      %v3212 = vshrl.u32 %v2592, 16
      %v3214 = vrot.slane %v3212, 3
      %v3215 = vshll.u32 %v2592, 16
      %v3217 = vrot.slane %v3215, 4
      %v3218 = vor.u32 %v3214, %v3217
      %v3219 = vsel %vm1057, %v3218, %v3218
      %v3221 = vshrl.u32 %v2706, 16
      %v3223 = vrot.slane %v3221, 3
      %v3224 = vshll.u32 %v2706, 16
      %v3226 = vrot.slane %v3224, 4
      %v3227 = vor.u32 %v3223, %v3226
      %v3229 = vshrl.u32 %v2708, 16
      %v3231 = vrot.slane %v3229, 3
      %v3232 = vshll.u32 %v2708, 16
      %v3234 = vrot.slane %v3232, 4
      %v3235 = vor.u32 %v3231, %v3234
      %v3236 = vsel %vm1057, %v3227, %v3235
      %v3238 = vshrl.u32 %v2473, 16
      %v3240 = vrot.slane %v3238, 3
      %v3241 = vshll.u32 %v2473, 16
      %v3243 = vrot.slane %v3241, 4
      %v3244 = vor.u32 %v3240, %v3243
      %v3246 = vshrl.u32 %v2474, 16
      %v3248 = vrot.slane %v3246, 3
      %v3249 = vshll.u32 %v2474, 16
      %v3251 = vrot.slane %v3249, 4
      %v3252 = vor.u32 %v3248, %v3251
      %v3253 = vsel %vm1057, %v3244, %v3252
      %v3255 = vshrl.u32 %v2600, 16
      %v3257 = vrot.slane %v3255, 3
      %v3258 = vshll.u32 %v2600, 16
      %v3260 = vrot.slane %v3258, 4
      %v3261 = vor.u32 %v3257, %v3260
      %v3262 = vsel %vm1057, %v3261, %v3261
      %v3264 = vshrl.u32 %v2709, 16
      %v3266 = vrot.slane %v3264, 3
      %v3267 = vshll.u32 %v2709, 16
      %v3269 = vrot.slane %v3267, 4
      %v3270 = vor.u32 %v3266, %v3269
      %v3272 = vshrl.u32 %v2711, 16
      %v3274 = vrot.slane %v3272, 3
      %v3275 = vshll.u32 %v2711, 16
      %v3277 = vrot.slane %v3275, 4
      %v3278 = vor.u32 %v3274, %v3277
      %v3279 = vsel %vm1057, %v3270, %v3278
      %v3281 = vshrl.u32 %v2475, 16
      %v3283 = vrot.slane %v3281, 3
      %v3284 = vshll.u32 %v2475, 16
      %v3286 = vrot.slane %v3284, 4
      %v3287 = vor.u32 %v3283, %v3286
      %v3289 = vshrl.u32 %v2476, 16
      %v3291 = vrot.slane %v3289, 3
      %v3292 = vshll.u32 %v2476, 16
      %v3294 = vrot.slane %v3292, 4
      %v3295 = vor.u32 %v3291, %v3294
      %v3296 = vsel %vm1057, %v3287, %v3295
      %v3298 = vshrl.u32 %v2608, 16
      %v3300 = vrot.slane %v3298, 3
      %v3301 = vshll.u32 %v2608, 16
      %v3303 = vrot.slane %v3301, 4
      %v3304 = vor.u32 %v3300, %v3303
      %v3305 = vsel %vm1057, %v3304, %v3304
      %v3307 = vshrl.u32 %v2712, 16
      %v3309 = vrot.slane %v3307, 3
      %v3310 = vshll.u32 %v2712, 16
      %v3312 = vrot.slane %v3310, 4
      %v3313 = vor.u32 %v3309, %v3312
      %v3315 = vshrl.u32 %v2714, 16
      %v3317 = vrot.slane %v3315, 3
      %v3318 = vshll.u32 %v2714, 16
      %v3320 = vrot.slane %v3318, 4
      %v3321 = vor.u32 %v3317, %v3320
      %v3322 = vsel %vm1057, %v3313, %v3321
      %v3324 = vshrl.u32 %v2477, 16
      %v3326 = vrot.slane %v3324, 3
      %v3327 = vshll.u32 %v2477, 16
      %v3329 = vrot.slane %v3327, 4
      %v3330 = vor.u32 %v3326, %v3329
      %v3332 = vshrl.u32 %v2478, 16
      %v3334 = vrot.slane %v3332, 3
      %v3335 = vshll.u32 %v2478, 16
      %v3337 = vrot.slane %v3335, 4
      %v3338 = vor.u32 %v3334, %v3337
      %v3339 = vsel %vm1057, %v3330, %v3338
      %v3341 = vshrl.u32 %v2616, 16
      %v3343 = vrot.slane %v3341, 3
      %v3344 = vshll.u32 %v2616, 16
      %v3346 = vrot.slane %v3344, 4
      %v3347 = vor.u32 %v3343, %v3346
      %v3348 = vsel %vm1057, %v3347, %v3347
      %v3350 = vshrl.u32 %v2715, 16
      %v3352 = vrot.slane %v3350, 3
      %v3353 = vshll.u32 %v2715, 16
      %v3355 = vrot.slane %v3353, 4
      %v3356 = vor.u32 %v3352, %v3355
      %v3358 = vshrl.u32 %v2717, 16
      %v3360 = vrot.slane %v3358, 3
      %v3361 = vshll.u32 %v2717, 16
      %v3363 = vrot.slane %v3361, 4
      %v3364 = vor.u32 %v3360, %v3363
      %v3365 = vsel %vm1057, %v3356, %v3364
      %v3367 = vshrl.u32 %v2479, 16
      %v3369 = vrot.slane %v3367, 3
      %v3370 = vshll.u32 %v2479, 16
      %v3372 = vrot.slane %v3370, 4
      %v3373 = vor.u32 %v3369, %v3372
      %v3375 = vshrl.u32 %v2480, 16
      %v3377 = vrot.slane %v3375, 3
      %v3378 = vshll.u32 %v2480, 16
      %v3380 = vrot.slane %v3378, 4
      %v3381 = vor.u32 %v3377, %v3380
      %v3382 = vsel %vm1057, %v3373, %v3381
      %v3384 = vshrl.u32 %v2624, 16
      %v3386 = vrot.slane %v3384, 3
      %v3387 = vshll.u32 %v2624, 16
      %v3389 = vrot.slane %v3387, 4
      %v3390 = vor.u32 %v3386, %v3389
      %v3391 = vsel %vm1057, %v3390, %v3390
      %v3393 = vshrl.u32 %v2718, 16
      %v3395 = vrot.slane %v3393, 3
      %v3396 = vshll.u32 %v2718, 16
      %v3398 = vrot.slane %v3396, 4
      %v3399 = vor.u32 %v3395, %v3398
      %v3401 = vshrl.u32 %v2720, 16
      %v3403 = vrot.slane %v3401, 3
      %v3404 = vshll.u32 %v2720, 16
      %v3406 = vrot.slane %v3404, 4
      %v3407 = vor.u32 %v3403, %v3406
      %v3408 = vsel %vm1057, %v3399, %v3407
      %s3457 = scalar_lea.vmem %s1, 192
      %v3458 = vld [vmem:[%s3457] sm:$0xf]
      %v3459 = vld [vmem:[%s3457 + $0x4] sm:$0xf]
      %v3460 = vld [vmem:[%s3457 + $0x8] sm:$0xf]
      %v3461 = vld [vmem:[%s3457 + $0xc] sm:$0xf]
      %v3462 = vld [vmem:[%s3457 + $0x10] sm:$0xf]
      %v3463 = vld [vmem:[%s3457 + $0x14] sm:$0xf]
      %v3464 = vld [vmem:[%s3457 + $0x18] sm:$0xf]
      %v3465 = vld [vmem:[%s3457 + $0x1c] sm:$0xf]
      %v3466 = vld [vmem:[%s3457 + $0x20] sm:$0xf]
      %v3467 = vld [vmem:[%s3457 + $0x24] sm:$0xf]
      %v3468 = vld [vmem:[%s3457 + $0x28] sm:$0xf]
      %v3469 = vld [vmem:[%s3457 + $0x2c] sm:$0xf]
      %v3470 = vld [vmem:[%s3457 + $0x30] sm:$0xf]
      %v3471 = vld [vmem:[%s3457 + $0x34] sm:$0xf]
      %v3472 = vld [vmem:[%s3457 + $0x38] sm:$0xf]
      %v3473 = vld [vmem:[%s3457 + $0x3c] sm:$0xf]
      %v3474 = vld [vmem:[%s3457 + $0x40] sm:$0xf]
      %v3475 = vld [vmem:[%s3457 + $0x44] sm:$0xf]
      %v3476 = vld [vmem:[%s3457 + $0x48] sm:$0xf]
      %v3477 = vld [vmem:[%s3457 + $0x4c] sm:$0xf]
      %v3478 = vld [vmem:[%s3457 + $0x50] sm:$0xf]
      %v3479 = vld [vmem:[%s3457 + $0x54] sm:$0xf]
      %v3480 = vld [vmem:[%s3457 + $0x58] sm:$0xf]
      %v3481 = vld [vmem:[%s3457 + $0x5c] sm:$0xf]
      %v3482 = vld [vmem:[%s3457 + $0x60] sm:$0xf]
      %v3483 = vld [vmem:[%s3457 + $0x64] sm:$0xf]
      %v3484 = vld [vmem:[%s3457 + $0x68] sm:$0xf]
      %v3485 = vld [vmem:[%s3457 + $0x6c] sm:$0xf]
      %v3486 = vld [vmem:[%s3457 + $0x70] sm:$0xf]
      %v3487 = vld [vmem:[%s3457 + $0x74] sm:$0xf]
      %v3488 = vld [vmem:[%s3457 + $0x78] sm:$0xf]
      %v3489 = vld [vmem:[%s3457 + $0x7c] sm:$0xf]
      %v3490 = vld [vmem:[%s3457 + $0x80] sm:$0xf]
      %v3491 = vld [vmem:[%s3457 + $0x84] sm:$0xf]
      %v3492 = vld [vmem:[%s3457 + $0x88] sm:$0xf]
      %v3493 = vld [vmem:[%s3457 + $0x8c] sm:$0xf]
      %v3494 = vld [vmem:[%s3457 + $0x90] sm:$0xf]
      %v3495 = vld [vmem:[%s3457 + $0x94] sm:$0xf]
      %v3496 = vld [vmem:[%s3457 + $0x98] sm:$0xf]
      %v3497 = vld [vmem:[%s3457 + $0x9c] sm:$0xf]
      %v3498 = vld [vmem:[%s3457 + $0xa0] sm:$0xf]
      %v3499 = vld [vmem:[%s3457 + $0xa4] sm:$0xf]
      %v3500 = vld [vmem:[%s3457 + $0xa8] sm:$0xf]
      %v3501 = vld [vmem:[%s3457 + $0xac] sm:$0xf]
      %v3502 = vld [vmem:[%s3457 + $0xb0] sm:$0xf]
      %v3503 = vld [vmem:[%s3457 + $0xb4] sm:$0xf]
      %v3504 = vld [vmem:[%s3457 + $0xb8] sm:$0xf]
      %v3505 = vld [vmem:[%s3457 + $0xbc] sm:$0xf]
      %v3554 = vunpack.c.l.b16 %v3458
      %v3555 = vunpack.c.l.b16 %v3459
      %v3556 = vunpack.c.l.b16 %v3460
      %v3557 = vunpack.c.l.b16 %v3461
      %v3558 = vunpack.c.l.b16 %v3462
      %v3559 = vunpack.c.l.b16 %v3463
      %v3560 = vunpack.c.l.b16 %v3464
      %v3561 = vunpack.c.l.b16 %v3465
      %v3562 = vunpack.c.l.b16 %v3466
      %v3563 = vunpack.c.l.b16 %v3467
      %v3564 = vunpack.c.l.b16 %v3468
      %v3565 = vunpack.c.l.b16 %v3469
      %v3566 = vunpack.c.l.b16 %v3470
      %v3567 = vunpack.c.l.b16 %v3471
      %v3568 = vunpack.c.l.b16 %v3472
      %v3569 = vunpack.c.l.b16 %v3473
      %v3570 = vunpack.c.l.b16 %v3474
      %v3571 = vunpack.c.l.b16 %v3475
      %v3572 = vunpack.c.l.b16 %v3476
      %v3573 = vunpack.c.l.b16 %v3477
      %v3574 = vunpack.c.l.b16 %v3478
      %v3575 = vunpack.c.l.b16 %v3479
      %v3576 = vunpack.c.l.b16 %v3480
      %v3577 = vunpack.c.l.b16 %v3481
      %v3578 = vunpack.c.l.b16 %v3482
      %v3579 = vunpack.c.l.b16 %v3483
      %v3580 = vunpack.c.l.b16 %v3484
      %v3581 = vunpack.c.l.b16 %v3485
      %v3582 = vunpack.c.l.b16 %v3486
      %v3583 = vunpack.c.l.b16 %v3487
      %v3584 = vunpack.c.l.b16 %v3488
      %v3585 = vunpack.c.l.b16 %v3489
      %v3586 = vunpack.c.l.b16 %v3490
      %v3587 = vunpack.c.l.b16 %v3491
      %v3588 = vunpack.c.l.b16 %v3492
      %v3589 = vunpack.c.l.b16 %v3493
      %v3590 = vunpack.c.l.b16 %v3494
      %v3591 = vunpack.c.l.b16 %v3495
      %v3592 = vunpack.c.l.b16 %v3496
      %v3593 = vunpack.c.l.b16 %v3497
      %v3594 = vunpack.c.l.b16 %v3498
      %v3595 = vunpack.c.l.b16 %v3499
      %v3596 = vunpack.c.l.b16 %v3500
      %v3597 = vunpack.c.l.b16 %v3501
      %v3598 = vunpack.c.l.b16 %v3502
      %v3599 = vunpack.c.l.b16 %v3503
      %v3600 = vunpack.c.l.b16 %v3504
      %v3601 = vunpack.c.l.b16 %v3505
      %v3602 = vpack.c.b16 %v3555, %v3554
      %v3603 = vpack.c.b16 %v3557, %v3556
      %v3604 = vpack.c.b16 %v3559, %v3558
      %v3605 = vpack.c.b16 %v3561, %v3560
      %v3606 = vpack.c.b16 %v3563, %v3562
      %v3607 = vpack.c.b16 %v3565, %v3564
      %v3608 = vpack.c.b16 %v3567, %v3566
      %v3609 = vpack.c.b16 %v3569, %v3568
      %v3610 = vpack.c.b16 %v3571, %v3570
      %v3611 = vpack.c.b16 %v3573, %v3572
      %v3612 = vpack.c.b16 %v3575, %v3574
      %v3613 = vpack.c.b16 %v3577, %v3576
      %v3614 = vpack.c.b16 %v3579, %v3578
      %v3615 = vpack.c.b16 %v3581, %v3580
      %v3616 = vpack.c.b16 %v3583, %v3582
      %v3617 = vpack.c.b16 %v3585, %v3584
      %v3618 = vpack.c.b16 %v3587, %v3586
      %v3619 = vpack.c.b16 %v3589, %v3588
      %v3620 = vpack.c.b16 %v3591, %v3590
      %v3621 = vpack.c.b16 %v3593, %v3592
      %v3622 = vpack.c.b16 %v3595, %v3594
      %v3623 = vpack.c.b16 %v3597, %v3596
      %v3624 = vpack.c.b16 %v3599, %v3598
      %v3625 = vpack.c.b16 %v3601, %v3600
      %3650 = vmatpush.bf16.msra.mxu0 %v3609
      %3651 = vmatpush.bf16.msra.mxu0 %v3608
      %3652 = vmatpush.bf16.msra.mxu0 %v3607
      %3653 = vmatpush.bf16.msra.mxu0 %v3606
      %3654 = vmatpush.bf16.msra.mxu0 %v3605
      %3655 = vmatpush.bf16.msra.mxu0 %v3604
      %3656 = vmatpush.bf16.msra.mxu0 %v3603
      %3657 = vmatpush.bf16.msra.mxu0 %v3602
      %3658 = vmatmul.bf16.gmra.mxu0 %v2737
      %v3659 = vpop.f32.mrf.mxu0
      %v3660 = vadd.f32 0.0, %v3659
      %v3661 = vpop.f32.mrf.mxu0
      %v3662 = vadd.f32 0.0, %v3661
      %3663 = vmatmul.bf16.gmra.mxu0 %v2780
      %v3664 = vpop.f32.mrf.mxu0
      %v3665 = vadd.f32 0.0, %v3664
      %v3666 = vpop.f32.mrf.mxu0
      %v3667 = vadd.f32 0.0, %v3666
      %3668 = vmatmul.bf16.gmra.mxu0 %v2823
      %v3669 = vpop.f32.mrf.mxu0
      %v3670 = vadd.f32 0.0, %v3669
      %v3671 = vpop.f32.mrf.mxu0
      %v3672 = vadd.f32 0.0, %v3671
      %3673 = vmatmul.bf16.gmra.mxu0 %v2866
      %v3674 = vpop.f32.mrf.mxu0
      %v3675 = vadd.f32 0.0, %v3674
      %v3676 = vpop.f32.mrf.mxu0
      %v3677 = vadd.f32 0.0, %v3676
      %3678 = vmatmul.bf16.gmra.mxu0 %v2909
      %v3679 = vpop.f32.mrf.mxu0
      %v3680 = vadd.f32 0.0, %v3679
      %v3681 = vpop.f32.mrf.mxu0
      %v3682 = vadd.f32 0.0, %v3681
      %3683 = vmatmul.bf16.gmra.mxu0 %v2952
      %v3684 = vpop.f32.mrf.mxu0
      %v3685 = vadd.f32 0.0, %v3684
      %v3686 = vpop.f32.mrf.mxu0
      %v3687 = vadd.f32 0.0, %v3686
      %3688 = vmatmul.bf16.gmra.mxu0 %v2995
      %v3689 = vpop.f32.mrf.mxu0
      %v3690 = vadd.f32 0.0, %v3689
      %v3691 = vpop.f32.mrf.mxu0
      %v3692 = vadd.f32 0.0, %v3691
      %3693 = vmatmul.bf16.gmra.mxu0 %v3038
      %v3694 = vpop.f32.mrf.mxu0
      %v3695 = vadd.f32 0.0, %v3694
      %v3696 = vpop.f32.mrf.mxu0
      %v3697 = vadd.f32 0.0, %v3696
      %3698 = vmatmul.bf16.gmra.mxu0 %v3081
      %v3699 = vpop.f32.mrf.mxu0
      %v3700 = vadd.f32 0.0, %v3699
      %v3701 = vpop.f32.mrf.mxu0
      %v3702 = vadd.f32 0.0, %v3701
      %3703 = vmatmul.bf16.gmra.mxu0 %v3124
      %v3704 = vpop.f32.mrf.mxu0
      %v3705 = vadd.f32 0.0, %v3704
      %v3706 = vpop.f32.mrf.mxu0
      %v3707 = vadd.f32 0.0, %v3706
      %3708 = vmatmul.bf16.gmra.mxu0 %v3167
      %v3709 = vpop.f32.mrf.mxu0
      %v3710 = vadd.f32 0.0, %v3709
      %v3711 = vpop.f32.mrf.mxu0
      %v3712 = vadd.f32 0.0, %v3711
      %3713 = vmatmul.bf16.gmra.mxu0 %v3210
      %v3714 = vpop.f32.mrf.mxu0
      %v3715 = vadd.f32 0.0, %v3714
      %v3716 = vpop.f32.mrf.mxu0
      %v3717 = vadd.f32 0.0, %v3716
      %3718 = vmatmul.bf16.gmra.mxu0 %v3253
      %v3719 = vpop.f32.mrf.mxu0
      %v3720 = vadd.f32 0.0, %v3719
      %v3721 = vpop.f32.mrf.mxu0
      %v3722 = vadd.f32 0.0, %v3721
      %3723 = vmatmul.bf16.gmra.mxu0 %v3296
      %v3724 = vpop.f32.mrf.mxu0
      %v3725 = vadd.f32 0.0, %v3724
      %v3726 = vpop.f32.mrf.mxu0
      %v3727 = vadd.f32 0.0, %v3726
      %3728 = vmatmul.bf16.gmra.mxu0 %v3339
      %v3729 = vpop.f32.mrf.mxu0
      %v3730 = vadd.f32 0.0, %v3729
      %v3731 = vpop.f32.mrf.mxu0
      %v3732 = vadd.f32 0.0, %v3731
      %3733 = vmatmul.bf16.gmra.mxu0 %v3382
      %v3734 = vpop.f32.mrf.mxu0
      %v3735 = vadd.f32 0.0, %v3734
      %v3736 = vpop.f32.mrf.mxu0
      %v3737 = vadd.f32 0.0, %v3736
      %3738 = vdwg.mxu0
      %3739 = vmatpush.bf16.msra.mxu0 %v3617
      %3740 = vmatpush.bf16.msra.mxu0 %v3616
      %3741 = vmatpush.bf16.msra.mxu0 %v3615
      %3742 = vmatpush.bf16.msra.mxu0 %v3614
      %3743 = vmatpush.bf16.msra.mxu0 %v3613
      %3744 = vmatpush.bf16.msra.mxu0 %v3612
      %3745 = vmatpush.bf16.msra.mxu0 %v3611
      %3746 = vmatpush.bf16.msra.mxu0 %v3610
      %3747 = vmatmul.bf16.gmra.mxu0 %v2746
      %v3748 = vpop.f32.mrf.mxu0
      %v3749 = vadd.f32 %v3660, %v3748
      %v3750 = vpop.f32.mrf.mxu0
      %v3751 = vadd.f32 %v3662, %v3750
      %3752 = vmatmul.bf16.gmra.mxu0 %v2789
      %v3753 = vpop.f32.mrf.mxu0
      %v3754 = vadd.f32 %v3665, %v3753
      %v3755 = vpop.f32.mrf.mxu0
      %v3756 = vadd.f32 %v3667, %v3755
      %3757 = vmatmul.bf16.gmra.mxu0 %v2832
      %v3758 = vpop.f32.mrf.mxu0
      %v3759 = vadd.f32 %v3670, %v3758
      %v3760 = vpop.f32.mrf.mxu0
      %v3761 = vadd.f32 %v3672, %v3760
      %3762 = vmatmul.bf16.gmra.mxu0 %v2875
      %v3763 = vpop.f32.mrf.mxu0
      %v3764 = vadd.f32 %v3675, %v3763
      %v3765 = vpop.f32.mrf.mxu0
      %v3766 = vadd.f32 %v3677, %v3765
      %3767 = vmatmul.bf16.gmra.mxu0 %v2918
      %v3768 = vpop.f32.mrf.mxu0
      %v3769 = vadd.f32 %v3680, %v3768
      %v3770 = vpop.f32.mrf.mxu0
      %v3771 = vadd.f32 %v3682, %v3770
      %3772 = vmatmul.bf16.gmra.mxu0 %v2961
      %v3773 = vpop.f32.mrf.mxu0
      %v3774 = vadd.f32 %v3685, %v3773
      %v3775 = vpop.f32.mrf.mxu0
      %v3776 = vadd.f32 %v3687, %v3775
      %3777 = vmatmul.bf16.gmra.mxu0 %v3004
      %v3778 = vpop.f32.mrf.mxu0
      %v3779 = vadd.f32 %v3690, %v3778
      %v3780 = vpop.f32.mrf.mxu0
      %v3781 = vadd.f32 %v3692, %v3780
      %3782 = vmatmul.bf16.gmra.mxu0 %v3047
      %v3783 = vpop.f32.mrf.mxu0
      %v3784 = vadd.f32 %v3695, %v3783
      %v3785 = vpop.f32.mrf.mxu0
      %v3786 = vadd.f32 %v3697, %v3785
      %3787 = vmatmul.bf16.gmra.mxu0 %v3090
      %v3788 = vpop.f32.mrf.mxu0
      %v3789 = vadd.f32 %v3700, %v3788
      %v3790 = vpop.f32.mrf.mxu0
      %v3791 = vadd.f32 %v3702, %v3790
      %3792 = vmatmul.bf16.gmra.mxu0 %v3133
      %v3793 = vpop.f32.mrf.mxu0
      %v3794 = vadd.f32 %v3705, %v3793
      %v3795 = vpop.f32.mrf.mxu0
      %v3796 = vadd.f32 %v3707, %v3795
      %3797 = vmatmul.bf16.gmra.mxu0 %v3176
      %v3798 = vpop.f32.mrf.mxu0
      %v3799 = vadd.f32 %v3710, %v3798
      %v3800 = vpop.f32.mrf.mxu0
      %v3801 = vadd.f32 %v3712, %v3800
      %3802 = vmatmul.bf16.gmra.mxu0 %v3219
      %v3803 = vpop.f32.mrf.mxu0
      %v3804 = vadd.f32 %v3715, %v3803
      %v3805 = vpop.f32.mrf.mxu0
      %v3806 = vadd.f32 %v3717, %v3805
      %3807 = vmatmul.bf16.gmra.mxu0 %v3262
      %v3808 = vpop.f32.mrf.mxu0
      %v3809 = vadd.f32 %v3720, %v3808
      %v3810 = vpop.f32.mrf.mxu0
      %v3811 = vadd.f32 %v3722, %v3810
      %3812 = vmatmul.bf16.gmra.mxu0 %v3305
      %v3813 = vpop.f32.mrf.mxu0
      %v3814 = vadd.f32 %v3725, %v3813
      %v3815 = vpop.f32.mrf.mxu0
      %v3816 = vadd.f32 %v3727, %v3815
      %3817 = vmatmul.bf16.gmra.mxu0 %v3348
      %v3818 = vpop.f32.mrf.mxu0
      %v3819 = vadd.f32 %v3730, %v3818
      %v3820 = vpop.f32.mrf.mxu0
      %v3821 = vadd.f32 %v3732, %v3820
      %3822 = vmatmul.bf16.gmra.mxu0 %v3391
      %v3823 = vpop.f32.mrf.mxu0
      %v3824 = vadd.f32 %v3735, %v3823
      %v3825 = vpop.f32.mrf.mxu0
      %v3826 = vadd.f32 %v3737, %v3825
      %3827 = vdwg.mxu0
      %3828 = vmatpush.bf16.msra.mxu0 %v3625
      %3829 = vmatpush.bf16.msra.mxu0 %v3624
      %3830 = vmatpush.bf16.msra.mxu0 %v3623
      %3831 = vmatpush.bf16.msra.mxu0 %v3622
      %3832 = vmatpush.bf16.msra.mxu0 %v3621
      %3833 = vmatpush.bf16.msra.mxu0 %v3620
      %3834 = vmatpush.bf16.msra.mxu0 %v3619
      %3835 = vmatpush.bf16.msra.mxu0 %v3618
      %3836 = vmatmul.bf16.gmra.mxu0 %v2763
      %v3837 = vpop.f32.mrf.mxu0
      %v3838 = vadd.f32 %v3749, %v3837
      %v3839 = vpop.f32.mrf.mxu0
      %v3840 = vadd.f32 %v3751, %v3839
      %3841 = vmatmul.bf16.gmra.mxu0 %v2806
      %v3842 = vpop.f32.mrf.mxu0
      %v3843 = vadd.f32 %v3754, %v3842
      %v3844 = vpop.f32.mrf.mxu0
      %v3845 = vadd.f32 %v3756, %v3844
      %3846 = vmatmul.bf16.gmra.mxu0 %v2849
      %v3847 = vpop.f32.mrf.mxu0
      %v3848 = vadd.f32 %v3759, %v3847
      %v3849 = vpop.f32.mrf.mxu0
      %v3850 = vadd.f32 %v3761, %v3849
      %3851 = vmatmul.bf16.gmra.mxu0 %v2892
      %v3852 = vpop.f32.mrf.mxu0
      %v3853 = vadd.f32 %v3764, %v3852
      %v3854 = vpop.f32.mrf.mxu0
      %v3855 = vadd.f32 %v3766, %v3854
      %3856 = vmatmul.bf16.gmra.mxu0 %v2935
      %v3857 = vpop.f32.mrf.mxu0
      %v3858 = vadd.f32 %v3769, %v3857
      %v3859 = vpop.f32.mrf.mxu0
      %v3860 = vadd.f32 %v3771, %v3859
      %3861 = vmatmul.bf16.gmra.mxu0 %v2978
      %v3862 = vpop.f32.mrf.mxu0
      %v3863 = vadd.f32 %v3774, %v3862
      %v3864 = vpop.f32.mrf.mxu0
      %v3865 = vadd.f32 %v3776, %v3864
      %3866 = vmatmul.bf16.gmra.mxu0 %v3021
      %v3867 = vpop.f32.mrf.mxu0
      %v3868 = vadd.f32 %v3779, %v3867
      %v3869 = vpop.f32.mrf.mxu0
      %v3870 = vadd.f32 %v3781, %v3869
      %3871 = vmatmul.bf16.gmra.mxu0 %v3064
      %v3872 = vpop.f32.mrf.mxu0
      %v3873 = vadd.f32 %v3784, %v3872
      %v3874 = vpop.f32.mrf.mxu0
      %v3875 = vadd.f32 %v3786, %v3874
      %3876 = vmatmul.bf16.gmra.mxu0 %v3107
      %v3877 = vpop.f32.mrf.mxu0
      %v3878 = vadd.f32 %v3789, %v3877
      %v3879 = vpop.f32.mrf.mxu0
      %v3880 = vadd.f32 %v3791, %v3879
      %3881 = vmatmul.bf16.gmra.mxu0 %v3150
      %v3882 = vpop.f32.mrf.mxu0
      %v3883 = vadd.f32 %v3794, %v3882
      %v3884 = vpop.f32.mrf.mxu0
      %v3885 = vadd.f32 %v3796, %v3884
      %3886 = vmatmul.bf16.gmra.mxu0 %v3193
      %v3887 = vpop.f32.mrf.mxu0
      %v3888 = vadd.f32 %v3799, %v3887
      %v3889 = vpop.f32.mrf.mxu0
      %v3890 = vadd.f32 %v3801, %v3889
      %3891 = vmatmul.bf16.gmra.mxu0 %v3236
      %v3892 = vpop.f32.mrf.mxu0
      %v3893 = vadd.f32 %v3804, %v3892
      %v3894 = vpop.f32.mrf.mxu0
      %v3895 = vadd.f32 %v3806, %v3894
      %3896 = vmatmul.bf16.gmra.mxu0 %v3279
      %v3897 = vpop.f32.mrf.mxu0
      %v3898 = vadd.f32 %v3809, %v3897
      %v3899 = vpop.f32.mrf.mxu0
      %v3900 = vadd.f32 %v3811, %v3899
      %3901 = vmatmul.bf16.gmra.mxu0 %v3322
      %v3902 = vpop.f32.mrf.mxu0
      %v3903 = vadd.f32 %v3814, %v3902
      %v3904 = vpop.f32.mrf.mxu0
      %v3905 = vadd.f32 %v3816, %v3904
      %3906 = vmatmul.bf16.gmra.mxu0 %v3365
      %v3907 = vpop.f32.mrf.mxu0
      %v3908 = vadd.f32 %v3819, %v3907
      %v3909 = vpop.f32.mrf.mxu0
      %v3910 = vadd.f32 %v3821, %v3909
      %3911 = vmatmul.bf16.gmra.mxu0 %v3408
      %v3912 = vpop.f32.mrf.mxu0
      %v3913 = vadd.f32 %v3824, %v3912
      %v3914 = vpop.f32.mrf.mxu0
      %v3915 = vadd.f32 %v3826, %v3914
      %3916 = vdwg.mxu0
      %v3917 = vld [vmem:[#allocation3] sm:$0xff]
      %v3918 = vld [vmem:[#allocation3 + $0x8] sm:$0xff]
      %v3919 = vld [vmem:[#allocation3 + $0x10] sm:$0xff]
      %v3920 = vld [vmem:[#allocation3 + $0x18] sm:$0xff]
      %v3921 = vld [vmem:[#allocation3 + $0x20] sm:$0xff]
      %v3922 = vld [vmem:[#allocation3 + $0x28] sm:$0xff]
      %v3923 = vld [vmem:[#allocation3 + $0x30] sm:$0xff]
      %v3924 = vld [vmem:[#allocation3 + $0x38] sm:$0xff]
      %v3925 = vld [vmem:[#allocation3 + $0x40] sm:$0xff]
      %v3926 = vld [vmem:[#allocation3 + $0x48] sm:$0xff]
      %v3927 = vld [vmem:[#allocation3 + $0x50] sm:$0xff]
      %v3928 = vld [vmem:[#allocation3 + $0x58] sm:$0xff]
      %v3929 = vld [vmem:[#allocation3 + $0x60] sm:$0xff]
      %v3930 = vld [vmem:[#allocation3 + $0x68] sm:$0xff]
      %v3931 = vld [vmem:[#allocation3 + $0x70] sm:$0xff]
      %v3932 = vld [vmem:[#allocation3 + $0x78] sm:$0xff]
      %v3933 = vld [vmem:[#allocation3 + $0x80] sm:$0xff]
      %v3934 = vld [vmem:[#allocation3 + $0x88] sm:$0xff]
      %v3935 = vld [vmem:[#allocation3 + $0x90] sm:$0xff]
      %v3936 = vld [vmem:[#allocation3 + $0x98] sm:$0xff]
      %v3937 = vld [vmem:[#allocation3 + $0xa0] sm:$0xff]
      %v3938 = vld [vmem:[#allocation3 + $0xa8] sm:$0xff]
      %v3939 = vld [vmem:[#allocation3 + $0xb0] sm:$0xff]
      %v3940 = vld [vmem:[#allocation3 + $0xb8] sm:$0xff]
      %v3941 = vld [vmem:[#allocation3 + $0xc0] sm:$0xff]
      %v3942 = vld [vmem:[#allocation3 + $0xc8] sm:$0xff]
      %v3943 = vld [vmem:[#allocation3 + $0xd0] sm:$0xff]
      %v3944 = vld [vmem:[#allocation3 + $0xd8] sm:$0xff]
      %v3945 = vld [vmem:[#allocation3 + $0xe0] sm:$0xff]
      %v3946 = vld [vmem:[#allocation3 + $0xe8] sm:$0xff]
      %v3947 = vld [vmem:[#allocation3 + $0xf0] sm:$0xff]
      %v3948 = vld [vmem:[#allocation3 + $0xf8] sm:$0xff]
      %v3949 = vadd.f32 %v3917, %v3838
      %v3950 = vadd.f32 %v3918, %v3840
      %v3951 = vadd.f32 %v3919, %v3843
      %v3952 = vadd.f32 %v3920, %v3845
      %v3953 = vadd.f32 %v3921, %v3848
      %v3954 = vadd.f32 %v3922, %v3850
      %v3955 = vadd.f32 %v3923, %v3853
      %v3956 = vadd.f32 %v3924, %v3855
      %v3957 = vadd.f32 %v3925, %v3858
      %v3958 = vadd.f32 %v3926, %v3860
      %v3959 = vadd.f32 %v3927, %v3863
      %v3960 = vadd.f32 %v3928, %v3865
      %v3961 = vadd.f32 %v3929, %v3868
      %v3962 = vadd.f32 %v3930, %v3870
      %v3963 = vadd.f32 %v3931, %v3873
      %v3964 = vadd.f32 %v3932, %v3875
      %v3965 = vadd.f32 %v3933, %v3878
      %v3966 = vadd.f32 %v3934, %v3880
      %v3967 = vadd.f32 %v3935, %v3883
      %v3968 = vadd.f32 %v3936, %v3885
      %v3969 = vadd.f32 %v3937, %v3888
      %v3970 = vadd.f32 %v3938, %v3890
      %v3971 = vadd.f32 %v3939, %v3893
      %v3972 = vadd.f32 %v3940, %v3895
      %v3973 = vadd.f32 %v3941, %v3898
      %v3974 = vadd.f32 %v3942, %v3900
      %v3975 = vadd.f32 %v3943, %v3903
      %v3976 = vadd.f32 %v3944, %v3905
      %v3977 = vadd.f32 %v3945, %v3908
      %v3978 = vadd.f32 %v3946, %v3910
      %v3979 = vadd.f32 %v3947, %v3913
      %v3980 = vadd.f32 %v3948, %v3915
      %3981 = vst [vmem:[#allocation3] sm:$0xff] %v3949
      %3982 = vst [vmem:[#allocation3 + $0x8] sm:$0xff] %v3950
      %3983 = vst [vmem:[#allocation3 + $0x10] sm:$0xff] %v3951
      %3984 = vst [vmem:[#allocation3 + $0x18] sm:$0xff] %v3952
      %3985 = vst [vmem:[#allocation3 + $0x20] sm:$0xff] %v3953
      %3986 = vst [vmem:[#allocation3 + $0x28] sm:$0xff] %v3954
      %3987 = vst [vmem:[#allocation3 + $0x30] sm:$0xff] %v3955
      %3988 = vst [vmem:[#allocation3 + $0x38] sm:$0xff] %v3956
      %3989 = vst [vmem:[#allocation3 + $0x40] sm:$0xff] %v3957
      %3990 = vst [vmem:[#allocation3 + $0x48] sm:$0xff] %v3958
      %3991 = vst [vmem:[#allocation3 + $0x50] sm:$0xff] %v3959
      %3992 = vst [vmem:[#allocation3 + $0x58] sm:$0xff] %v3960
      %3993 = vst [vmem:[#allocation3 + $0x60] sm:$0xff] %v3961
      %3994 = vst [vmem:[#allocation3 + $0x68] sm:$0xff] %v3962
      %3995 = vst [vmem:[#allocation3 + $0x70] sm:$0xff] %v3963
      %3996 = vst [vmem:[#allocation3 + $0x78] sm:$0xff] %v3964
      %3997 = vst [vmem:[#allocation3 + $0x80] sm:$0xff] %v3965
      %3998 = vst [vmem:[#allocation3 + $0x88] sm:$0xff] %v3966
      %3999 = vst [vmem:[#allocation3 + $0x90] sm:$0xff] %v3967
      %4000 = vst [vmem:[#allocation3 + $0x98] sm:$0xff] %v3968
      %4001 = vst [vmem:[#allocation3 + $0xa0] sm:$0xff] %v3969
      %4002 = vst [vmem:[#allocation3 + $0xa8] sm:$0xff] %v3970
      %4003 = vst [vmem:[#allocation3 + $0xb0] sm:$0xff] %v3971
      %4004 = vst [vmem:[#allocation3 + $0xb8] sm:$0xff] %v3972
      %4005 = vst [vmem:[#allocation3 + $0xc0] sm:$0xff] %v3973
      %4006 = vst [vmem:[#allocation3 + $0xc8] sm:$0xff] %v3974
      %4007 = vst [vmem:[#allocation3 + $0xd0] sm:$0xff] %v3975
      %4008 = vst [vmem:[#allocation3 + $0xd8] sm:$0xff] %v3976
      %4009 = vst [vmem:[#allocation3 + $0xe0] sm:$0xff] %v3977
      %4010 = vst [vmem:[#allocation3 + $0xe8] sm:$0xff] %v3978
      %4011 = vst [vmem:[#allocation3 + $0xf0] sm:$0xff] %v3979
      %4012 = vst [vmem:[#allocation3 + $0xf8] sm:$0xff] %v3980
      %s4013 = sadd.s32 %s620, 2
      %s4014 = smul.u32 %s4013, 4
      %s4015 = smul.addr %s4014, 4
      %s4016 = scalar_lea.vmem [#allocation2], %s4015
      %v4017 = vld [vmem:[%s4016] sm:$0x8]
      %v4018 = vld [vmem:[%s4016 + $0x4] sm:$0xf]
      %v4019 = vld [vmem:[%s4016 + $0x8] sm:$0xf]
      %v4020 = vld [vmem:[%s4016 + $0x10] sm:$0x8]
      %v4021 = vld [vmem:[%s4016 + $0x14] sm:$0xf]
      %v4022 = vld [vmem:[%s4016 + $0x18] sm:$0xf]
      %v4023 = vld [vmem:[%s4016 + $0x20] sm:$0x8]
      %v4024 = vld [vmem:[%s4016 + $0x24] sm:$0xf]
      %v4025 = vld [vmem:[%s4016 + $0x28] sm:$0xf]
      %v4026 = vld [vmem:[%s4016 + $0x30] sm:$0x8]
      %v4027 = vld [vmem:[%s4016 + $0x34] sm:$0xf]
      %v4028 = vld [vmem:[%s4016 + $0x38] sm:$0xf]
      %v4029 = vld [vmem:[%s4016 + $0x40] sm:$0x8]
      %v4030 = vld [vmem:[%s4016 + $0x44] sm:$0xf]
      %v4031 = vld [vmem:[%s4016 + $0x48] sm:$0xf]
      %v4032 = vld [vmem:[%s4016 + $0x50] sm:$0x8]
      %v4033 = vld [vmem:[%s4016 + $0x54] sm:$0xf]
      %v4034 = vld [vmem:[%s4016 + $0x58] sm:$0xf]
      %v4035 = vld [vmem:[%s4016 + $0x60] sm:$0x8]
      %v4036 = vld [vmem:[%s4016 + $0x64] sm:$0xf]
      %v4037 = vld [vmem:[%s4016 + $0x68] sm:$0xf]
      %v4038 = vld [vmem:[%s4016 + $0x70] sm:$0x8]
      %v4039 = vld [vmem:[%s4016 + $0x74] sm:$0xf]
      %v4040 = vld [vmem:[%s4016 + $0x78] sm:$0xf]
      %v4041 = vld [vmem:[%s4016 + $0x80] sm:$0x8]
      %v4042 = vld [vmem:[%s4016 + $0x84] sm:$0xf]
      %v4043 = vld [vmem:[%s4016 + $0x88] sm:$0xf]
      %v4044 = vld [vmem:[%s4016 + $0x90] sm:$0x8]
      %v4045 = vld [vmem:[%s4016 + $0x94] sm:$0xf]
      %v4046 = vld [vmem:[%s4016 + $0x98] sm:$0xf]
      %v4047 = vld [vmem:[%s4016 + $0xa0] sm:$0x8]
      %v4048 = vld [vmem:[%s4016 + $0xa4] sm:$0xf]
      %v4049 = vld [vmem:[%s4016 + $0xa8] sm:$0xf]
      %v4050 = vld [vmem:[%s4016 + $0xb0] sm:$0x8]
      %v4051 = vld [vmem:[%s4016 + $0xb4] sm:$0xf]
      %v4052 = vld [vmem:[%s4016 + $0xb8] sm:$0xf]
      %v4053 = vld [vmem:[%s4016 + $0xc0] sm:$0x8]
      %v4054 = vld [vmem:[%s4016 + $0xc4] sm:$0xf]
      %v4055 = vld [vmem:[%s4016 + $0xc8] sm:$0xf]
      %v4056 = vld [vmem:[%s4016 + $0xd0] sm:$0x8]
      %v4057 = vld [vmem:[%s4016 + $0xd4] sm:$0xf]
      %v4058 = vld [vmem:[%s4016 + $0xd8] sm:$0xf]
      %v4059 = vld [vmem:[%s4016 + $0xe0] sm:$0x8]
      %v4060 = vld [vmem:[%s4016 + $0xe4] sm:$0xf]
      %v4061 = vld [vmem:[%s4016 + $0xe8] sm:$0xf]
      %v4062 = vld [vmem:[%s4016 + $0xf0] sm:$0x8]
      %v4063 = vld [vmem:[%s4016 + $0xf4] sm:$0xf]
      %v4064 = vld [vmem:[%s4016 + $0xf8] sm:$0xf]
      %v4065 = vld [vmem:[%s4016 + $0xc] sm:$0x1]
      %v4066 = vld [vmem:[%s4016 + $0x1c] sm:$0x1]
      %v4067 = vld [vmem:[%s4016 + $0x2c] sm:$0x1]
      %v4068 = vld [vmem:[%s4016 + $0x3c] sm:$0x1]
      %v4069 = vld [vmem:[%s4016 + $0x4c] sm:$0x1]
      %v4070 = vld [vmem:[%s4016 + $0x5c] sm:$0x1]
      %v4071 = vld [vmem:[%s4016 + $0x6c] sm:$0x1]
      %v4072 = vld [vmem:[%s4016 + $0x7c] sm:$0x1]
      %v4073 = vld [vmem:[%s4016 + $0x8c] sm:$0x1]
      %v4074 = vld [vmem:[%s4016 + $0x9c] sm:$0x1]
      %v4075 = vld [vmem:[%s4016 + $0xac] sm:$0x1]
      %v4076 = vld [vmem:[%s4016 + $0xbc] sm:$0x1]
      %v4077 = vld [vmem:[%s4016 + $0xcc] sm:$0x1]
      %v4078 = vld [vmem:[%s4016 + $0xdc] sm:$0x1]
      %v4079 = vld [vmem:[%s4016 + $0xec] sm:$0x1]
      %v4080 = vld [vmem:[%s4016 + $0xfc] sm:$0x1]
      %v4129 = vunpack.c.l.b16 %v4017
      %v4130 = vunpack.c.l.b16 %v4018
      %v4131 = vunpack.c.l.b16 %v4019
      %v4132 = vunpack.c.l.b16 %v4020
      %v4133 = vunpack.c.l.b16 %v4021
      %v4134 = vunpack.c.l.b16 %v4022
      %v4135 = vunpack.c.l.b16 %v4023
      %v4136 = vunpack.c.l.b16 %v4024
      %v4137 = vunpack.c.l.b16 %v4025
      %v4138 = vunpack.c.l.b16 %v4026
      %v4139 = vunpack.c.l.b16 %v4027
      %v4140 = vunpack.c.l.b16 %v4028
      %v4141 = vunpack.c.l.b16 %v4029
      %v4142 = vunpack.c.l.b16 %v4030
      %v4143 = vunpack.c.l.b16 %v4031
      %v4144 = vunpack.c.l.b16 %v4032
      %v4145 = vunpack.c.l.b16 %v4033
      %v4146 = vunpack.c.l.b16 %v4034
      %v4147 = vunpack.c.l.b16 %v4035
      %v4148 = vunpack.c.l.b16 %v4036
      %v4149 = vunpack.c.l.b16 %v4037
      %v4150 = vunpack.c.l.b16 %v4038
      %v4151 = vunpack.c.l.b16 %v4039
      %v4152 = vunpack.c.l.b16 %v4040
      %v4153 = vunpack.c.l.b16 %v4041
      %v4154 = vunpack.c.l.b16 %v4042
      %v4155 = vunpack.c.l.b16 %v4043
      %v4156 = vunpack.c.l.b16 %v4044
      %v4157 = vunpack.c.l.b16 %v4045
      %v4158 = vunpack.c.l.b16 %v4046
      %v4159 = vunpack.c.l.b16 %v4047
      %v4160 = vunpack.c.l.b16 %v4048
      %v4161 = vunpack.c.l.b16 %v4049
      %v4162 = vunpack.c.l.b16 %v4050
      %v4163 = vunpack.c.l.b16 %v4051
      %v4164 = vunpack.c.l.b16 %v4052
      %v4165 = vunpack.c.l.b16 %v4053
      %v4166 = vunpack.c.l.b16 %v4054
      %v4167 = vunpack.c.l.b16 %v4055
      %v4168 = vunpack.c.l.b16 %v4056
      %v4169 = vunpack.c.l.b16 %v4057
      %v4170 = vunpack.c.l.b16 %v4058
      %v4171 = vunpack.c.l.b16 %v4059
      %v4172 = vunpack.c.l.b16 %v4060
      %v4173 = vunpack.c.l.b16 %v4061
      %v4174 = vunpack.c.l.b16 %v4062
      %v4175 = vunpack.c.l.b16 %v4063
      %v4176 = vunpack.c.l.b16 %v4064
      %v4177 = vpack.c.b16 %v4130, %v4129
      %v4178 = vpack.c.b16 %v4131, %v4131
      %v4179 = vpack.c.b16 %v4133, %v4132
      %v4180 = vpack.c.b16 %v4134, %v4134
      %v4181 = vpack.c.b16 %v4136, %v4135
      %v4182 = vpack.c.b16 %v4137, %v4137
      %v4183 = vpack.c.b16 %v4139, %v4138
      %v4184 = vpack.c.b16 %v4140, %v4140
      %v4185 = vpack.c.b16 %v4142, %v4141
      %v4186 = vpack.c.b16 %v4143, %v4143
      %v4187 = vpack.c.b16 %v4145, %v4144
      %v4188 = vpack.c.b16 %v4146, %v4146
      %v4189 = vpack.c.b16 %v4148, %v4147
      %v4190 = vpack.c.b16 %v4149, %v4149
      %v4191 = vpack.c.b16 %v4151, %v4150
      %v4192 = vpack.c.b16 %v4152, %v4152
      %v4193 = vpack.c.b16 %v4154, %v4153
      %v4194 = vpack.c.b16 %v4155, %v4155
      %v4195 = vpack.c.b16 %v4157, %v4156
      %v4196 = vpack.c.b16 %v4158, %v4158
      %v4197 = vpack.c.b16 %v4160, %v4159
      %v4198 = vpack.c.b16 %v4161, %v4161
      %v4199 = vpack.c.b16 %v4163, %v4162
      %v4200 = vpack.c.b16 %v4164, %v4164
      %v4201 = vpack.c.b16 %v4166, %v4165
      %v4202 = vpack.c.b16 %v4167, %v4167
      %v4203 = vpack.c.b16 %v4169, %v4168
      %v4204 = vpack.c.b16 %v4170, %v4170
      %v4205 = vpack.c.b16 %v4172, %v4171
      %v4206 = vpack.c.b16 %v4173, %v4173
      %v4207 = vpack.c.b16 %v4175, %v4174
      %v4208 = vpack.c.b16 %v4176, %v4176
      %v4209 = vpack.c.b16 %v4131, %v4130
      %v4210 = vpack.c.b16 %v4134, %v4133
      %v4211 = vpack.c.b16 %v4137, %v4136
      %v4212 = vpack.c.b16 %v4140, %v4139
      %v4213 = vpack.c.b16 %v4143, %v4142
      %v4214 = vpack.c.b16 %v4146, %v4145
      %v4215 = vpack.c.b16 %v4149, %v4148
      %v4216 = vpack.c.b16 %v4152, %v4151
      %v4217 = vpack.c.b16 %v4155, %v4154
      %v4218 = vpack.c.b16 %v4158, %v4157
      %v4219 = vpack.c.b16 %v4161, %v4160
      %v4220 = vpack.c.b16 %v4164, %v4163
      %v4221 = vpack.c.b16 %v4167, %v4166
      %v4222 = vpack.c.b16 %v4170, %v4169
      %v4223 = vpack.c.b16 %v4173, %v4172
      %v4224 = vpack.c.b16 %v4176, %v4175
      %v4226 = vshrl.u32 %v4209, 16
      %v4228 = vrot.slane %v4226, 4
      %v4229 = vshll.u32 %v4209, 16
      %v4231 = vrot.slane %v4229, 5
      %v4232 = vor.u32 %v4228, %v4231
      %v4234 = vshrl.u32 %v4210, 16
      %v4236 = vrot.slane %v4234, 4
      %v4237 = vshll.u32 %v4210, 16
      %v4239 = vrot.slane %v4237, 5
      %v4240 = vor.u32 %v4236, %v4239
      %v4242 = vshrl.u32 %v4211, 16
      %v4244 = vrot.slane %v4242, 4
      %v4245 = vshll.u32 %v4211, 16
      %v4247 = vrot.slane %v4245, 5
      %v4248 = vor.u32 %v4244, %v4247
      %v4250 = vshrl.u32 %v4212, 16
      %v4252 = vrot.slane %v4250, 4
      %v4253 = vshll.u32 %v4212, 16
      %v4255 = vrot.slane %v4253, 5
      %v4256 = vor.u32 %v4252, %v4255
      %v4258 = vshrl.u32 %v4213, 16
      %v4260 = vrot.slane %v4258, 4
      %v4261 = vshll.u32 %v4213, 16
      %v4263 = vrot.slane %v4261, 5
      %v4264 = vor.u32 %v4260, %v4263
      %v4266 = vshrl.u32 %v4214, 16
      %v4268 = vrot.slane %v4266, 4
      %v4269 = vshll.u32 %v4214, 16
      %v4271 = vrot.slane %v4269, 5
      %v4272 = vor.u32 %v4268, %v4271
      %v4274 = vshrl.u32 %v4215, 16
      %v4276 = vrot.slane %v4274, 4
      %v4277 = vshll.u32 %v4215, 16
      %v4279 = vrot.slane %v4277, 5
      %v4280 = vor.u32 %v4276, %v4279
      %v4282 = vshrl.u32 %v4216, 16
      %v4284 = vrot.slane %v4282, 4
      %v4285 = vshll.u32 %v4216, 16
      %v4287 = vrot.slane %v4285, 5
      %v4288 = vor.u32 %v4284, %v4287
      %v4290 = vshrl.u32 %v4217, 16
      %v4292 = vrot.slane %v4290, 4
      %v4293 = vshll.u32 %v4217, 16
      %v4295 = vrot.slane %v4293, 5
      %v4296 = vor.u32 %v4292, %v4295
      %v4298 = vshrl.u32 %v4218, 16
      %v4300 = vrot.slane %v4298, 4
      %v4301 = vshll.u32 %v4218, 16
      %v4303 = vrot.slane %v4301, 5
      %v4304 = vor.u32 %v4300, %v4303
      %v4306 = vshrl.u32 %v4219, 16
      %v4308 = vrot.slane %v4306, 4
      %v4309 = vshll.u32 %v4219, 16
      %v4311 = vrot.slane %v4309, 5
      %v4312 = vor.u32 %v4308, %v4311
      %v4314 = vshrl.u32 %v4220, 16
      %v4316 = vrot.slane %v4314, 4
      %v4317 = vshll.u32 %v4220, 16
      %v4319 = vrot.slane %v4317, 5
      %v4320 = vor.u32 %v4316, %v4319
      %v4322 = vshrl.u32 %v4221, 16
      %v4324 = vrot.slane %v4322, 4
      %v4325 = vshll.u32 %v4221, 16
      %v4327 = vrot.slane %v4325, 5
      %v4328 = vor.u32 %v4324, %v4327
      %v4330 = vshrl.u32 %v4222, 16
      %v4332 = vrot.slane %v4330, 4
      %v4333 = vshll.u32 %v4222, 16
      %v4335 = vrot.slane %v4333, 5
      %v4336 = vor.u32 %v4332, %v4335
      %v4338 = vshrl.u32 %v4223, 16
      %v4340 = vrot.slane %v4338, 4
      %v4341 = vshll.u32 %v4223, 16
      %v4343 = vrot.slane %v4341, 5
      %v4344 = vor.u32 %v4340, %v4343
      %v4346 = vshrl.u32 %v4224, 16
      %v4348 = vrot.slane %v4346, 4
      %v4349 = vshll.u32 %v4224, 16
      %v4351 = vrot.slane %v4349, 5
      %v4352 = vor.u32 %v4348, %v4351
      %v4369 = vunpack.c.l.b16 %v4065
      %v4370 = vunpack.c.l.b16 %v4066
      %v4371 = vunpack.c.l.b16 %v4067
      %v4372 = vunpack.c.l.b16 %v4068
      %v4373 = vunpack.c.l.b16 %v4069
      %v4374 = vunpack.c.l.b16 %v4070
      %v4375 = vunpack.c.l.b16 %v4071
      %v4376 = vunpack.c.l.b16 %v4072
      %v4377 = vunpack.c.l.b16 %v4073
      %v4378 = vunpack.c.l.b16 %v4074
      %v4379 = vunpack.c.l.b16 %v4075
      %v4380 = vunpack.c.l.b16 %v4076
      %v4381 = vunpack.c.l.b16 %v4077
      %v4382 = vunpack.c.l.b16 %v4078
      %v4383 = vunpack.c.l.b16 %v4079
      %v4384 = vunpack.c.l.b16 %v4080
      %v4385 = vpack.c.b16 %v4369, %v4369
      %v4386 = vpack.c.b16 %v4370, %v4370
      %v4387 = vpack.c.b16 %v4371, %v4371
      %v4388 = vpack.c.b16 %v4372, %v4372
      %v4389 = vpack.c.b16 %v4373, %v4373
      %v4390 = vpack.c.b16 %v4374, %v4374
      %v4391 = vpack.c.b16 %v4375, %v4375
      %v4392 = vpack.c.b16 %v4376, %v4376
      %v4393 = vpack.c.b16 %v4377, %v4377
      %v4394 = vpack.c.b16 %v4378, %v4378
      %v4395 = vpack.c.b16 %v4379, %v4379
      %v4396 = vpack.c.b16 %v4380, %v4380
      %v4397 = vpack.c.b16 %v4381, %v4381
      %v4398 = vpack.c.b16 %v4382, %v4382
      %v4399 = vpack.c.b16 %v4383, %v4383
      %v4400 = vpack.c.b16 %v4384, %v4384
      %v4401 = vrot.slane %v4209, 5
      %v4402 = vrot.slane %v4385, 5
      %v4403 = vsel %vm1008, %v4401, %v4402
      %v4404 = vrot.slane %v4210, 5
      %v4405 = vrot.slane %v4386, 5
      %v4406 = vsel %vm1008, %v4404, %v4405
      %v4407 = vrot.slane %v4211, 5
      %v4408 = vrot.slane %v4387, 5
      %v4409 = vsel %vm1008, %v4407, %v4408
      %v4410 = vrot.slane %v4212, 5
      %v4411 = vrot.slane %v4388, 5
      %v4412 = vsel %vm1008, %v4410, %v4411
      %v4413 = vrot.slane %v4213, 5
      %v4414 = vrot.slane %v4389, 5
      %v4415 = vsel %vm1008, %v4413, %v4414
      %v4416 = vrot.slane %v4214, 5
      %v4417 = vrot.slane %v4390, 5
      %v4418 = vsel %vm1008, %v4416, %v4417
      %v4419 = vrot.slane %v4215, 5
      %v4420 = vrot.slane %v4391, 5
      %v4421 = vsel %vm1008, %v4419, %v4420
      %v4422 = vrot.slane %v4216, 5
      %v4423 = vrot.slane %v4392, 5
      %v4424 = vsel %vm1008, %v4422, %v4423
      %v4425 = vrot.slane %v4217, 5
      %v4426 = vrot.slane %v4393, 5
      %v4427 = vsel %vm1008, %v4425, %v4426
      %v4428 = vrot.slane %v4218, 5
      %v4429 = vrot.slane %v4394, 5
      %v4430 = vsel %vm1008, %v4428, %v4429
      %v4431 = vrot.slane %v4219, 5
      %v4432 = vrot.slane %v4395, 5
      %v4433 = vsel %vm1008, %v4431, %v4432
      %v4434 = vrot.slane %v4220, 5
      %v4435 = vrot.slane %v4396, 5
      %v4436 = vsel %vm1008, %v4434, %v4435
      %v4437 = vrot.slane %v4221, 5
      %v4438 = vrot.slane %v4397, 5
      %v4439 = vsel %vm1008, %v4437, %v4438
      %v4440 = vrot.slane %v4222, 5
      %v4441 = vrot.slane %v4398, 5
      %v4442 = vsel %vm1008, %v4440, %v4441
      %v4443 = vrot.slane %v4223, 5
      %v4444 = vrot.slane %v4399, 5
      %v4445 = vsel %vm1008, %v4443, %v4444
      %v4446 = vrot.slane %v4224, 5
      %v4447 = vrot.slane %v4400, 5
      %v4448 = vsel %vm1008, %v4446, %v4447
      %v4450 = vshrl.u32 %v4177, 16
      %v4452 = vrot.slane %v4450, 3
      %v4453 = vshll.u32 %v4177, 16
      %v4455 = vrot.slane %v4453, 4
      %v4456 = vor.u32 %v4452, %v4455
      %v4458 = vshrl.u32 %v4178, 16
      %v4460 = vrot.slane %v4458, 3
      %v4461 = vshll.u32 %v4178, 16
      %v4463 = vrot.slane %v4461, 4
      %v4464 = vor.u32 %v4460, %v4463
      %v4465 = vsel %vm1057, %v4456, %v4464
      %v4467 = vshrl.u32 %v4232, 16
      %v4469 = vrot.slane %v4467, 3
      %v4470 = vshll.u32 %v4232, 16
      %v4472 = vrot.slane %v4470, 4
      %v4473 = vor.u32 %v4469, %v4472
      %v4474 = vsel %vm1057, %v4473, %v4473
      %v4476 = vshrl.u32 %v4401, 16
      %v4478 = vrot.slane %v4476, 3
      %v4479 = vshll.u32 %v4401, 16
      %v4481 = vrot.slane %v4479, 4
      %v4482 = vor.u32 %v4478, %v4481
      %v4484 = vshrl.u32 %v4403, 16
      %v4486 = vrot.slane %v4484, 3
      %v4487 = vshll.u32 %v4403, 16
      %v4489 = vrot.slane %v4487, 4
      %v4490 = vor.u32 %v4486, %v4489
      %v4491 = vsel %vm1057, %v4482, %v4490
      %v4493 = vshrl.u32 %v4179, 16
      %v4495 = vrot.slane %v4493, 3
      %v4496 = vshll.u32 %v4179, 16
      %v4498 = vrot.slane %v4496, 4
      %v4499 = vor.u32 %v4495, %v4498
      %v4501 = vshrl.u32 %v4180, 16
      %v4503 = vrot.slane %v4501, 3
      %v4504 = vshll.u32 %v4180, 16
      %v4506 = vrot.slane %v4504, 4
      %v4507 = vor.u32 %v4503, %v4506
      %v4508 = vsel %vm1057, %v4499, %v4507
      %v4510 = vshrl.u32 %v4240, 16
      %v4512 = vrot.slane %v4510, 3
      %v4513 = vshll.u32 %v4240, 16
      %v4515 = vrot.slane %v4513, 4
      %v4516 = vor.u32 %v4512, %v4515
      %v4517 = vsel %vm1057, %v4516, %v4516
      %v4519 = vshrl.u32 %v4404, 16
      %v4521 = vrot.slane %v4519, 3
      %v4522 = vshll.u32 %v4404, 16
      %v4524 = vrot.slane %v4522, 4
      %v4525 = vor.u32 %v4521, %v4524
      %v4527 = vshrl.u32 %v4406, 16
      %v4529 = vrot.slane %v4527, 3
      %v4530 = vshll.u32 %v4406, 16
      %v4532 = vrot.slane %v4530, 4
      %v4533 = vor.u32 %v4529, %v4532
      %v4534 = vsel %vm1057, %v4525, %v4533
      %v4536 = vshrl.u32 %v4181, 16
      %v4538 = vrot.slane %v4536, 3
      %v4539 = vshll.u32 %v4181, 16
      %v4541 = vrot.slane %v4539, 4
      %v4542 = vor.u32 %v4538, %v4541
      %v4544 = vshrl.u32 %v4182, 16
      %v4546 = vrot.slane %v4544, 3
      %v4547 = vshll.u32 %v4182, 16
      %v4549 = vrot.slane %v4547, 4
      %v4550 = vor.u32 %v4546, %v4549
      %v4551 = vsel %vm1057, %v4542, %v4550
      %v4553 = vshrl.u32 %v4248, 16
      %v4555 = vrot.slane %v4553, 3
      %v4556 = vshll.u32 %v4248, 16
      %v4558 = vrot.slane %v4556, 4
      %v4559 = vor.u32 %v4555, %v4558
      %v4560 = vsel %vm1057, %v4559, %v4559
      %v4562 = vshrl.u32 %v4407, 16
      %v4564 = vrot.slane %v4562, 3
      %v4565 = vshll.u32 %v4407, 16
      %v4567 = vrot.slane %v4565, 4
      %v4568 = vor.u32 %v4564, %v4567
      %v4570 = vshrl.u32 %v4409, 16
      %v4572 = vrot.slane %v4570, 3
      %v4573 = vshll.u32 %v4409, 16
      %v4575 = vrot.slane %v4573, 4
      %v4576 = vor.u32 %v4572, %v4575
      %v4577 = vsel %vm1057, %v4568, %v4576
      %v4579 = vshrl.u32 %v4183, 16
      %v4581 = vrot.slane %v4579, 3
      %v4582 = vshll.u32 %v4183, 16
      %v4584 = vrot.slane %v4582, 4
      %v4585 = vor.u32 %v4581, %v4584
      %v4587 = vshrl.u32 %v4184, 16
      %v4589 = vrot.slane %v4587, 3
      %v4590 = vshll.u32 %v4184, 16
      %v4592 = vrot.slane %v4590, 4
      %v4593 = vor.u32 %v4589, %v4592
      %v4594 = vsel %vm1057, %v4585, %v4593
      %v4596 = vshrl.u32 %v4256, 16
      %v4598 = vrot.slane %v4596, 3
      %v4599 = vshll.u32 %v4256, 16
      %v4601 = vrot.slane %v4599, 4
      %v4602 = vor.u32 %v4598, %v4601
      %v4603 = vsel %vm1057, %v4602, %v4602
      %v4605 = vshrl.u32 %v4410, 16
      %v4607 = vrot.slane %v4605, 3
      %v4608 = vshll.u32 %v4410, 16
      %v4610 = vrot.slane %v4608, 4
      %v4611 = vor.u32 %v4607, %v4610
      %v4613 = vshrl.u32 %v4412, 16
      %v4615 = vrot.slane %v4613, 3
      %v4616 = vshll.u32 %v4412, 16
      %v4618 = vrot.slane %v4616, 4
      %v4619 = vor.u32 %v4615, %v4618
      %v4620 = vsel %vm1057, %v4611, %v4619
      %v4622 = vshrl.u32 %v4185, 16
      %v4624 = vrot.slane %v4622, 3
      %v4625 = vshll.u32 %v4185, 16
      %v4627 = vrot.slane %v4625, 4
      %v4628 = vor.u32 %v4624, %v4627
      %v4630 = vshrl.u32 %v4186, 16
      %v4632 = vrot.slane %v4630, 3
      %v4633 = vshll.u32 %v4186, 16
      %v4635 = vrot.slane %v4633, 4
      %v4636 = vor.u32 %v4632, %v4635
      %v4637 = vsel %vm1057, %v4628, %v4636
      %v4639 = vshrl.u32 %v4264, 16
      %v4641 = vrot.slane %v4639, 3
      %v4642 = vshll.u32 %v4264, 16
      %v4644 = vrot.slane %v4642, 4
      %v4645 = vor.u32 %v4641, %v4644
      %v4646 = vsel %vm1057, %v4645, %v4645
      %v4648 = vshrl.u32 %v4413, 16
      %v4650 = vrot.slane %v4648, 3
      %v4651 = vshll.u32 %v4413, 16
      %v4653 = vrot.slane %v4651, 4
      %v4654 = vor.u32 %v4650, %v4653
      %v4656 = vshrl.u32 %v4415, 16
      %v4658 = vrot.slane %v4656, 3
      %v4659 = vshll.u32 %v4415, 16
      %v4661 = vrot.slane %v4659, 4
      %v4662 = vor.u32 %v4658, %v4661
      %v4663 = vsel %vm1057, %v4654, %v4662
      %v4665 = vshrl.u32 %v4187, 16
      %v4667 = vrot.slane %v4665, 3
      %v4668 = vshll.u32 %v4187, 16
      %v4670 = vrot.slane %v4668, 4
      %v4671 = vor.u32 %v4667, %v4670
      %v4673 = vshrl.u32 %v4188, 16
      %v4675 = vrot.slane %v4673, 3
      %v4676 = vshll.u32 %v4188, 16
      %v4678 = vrot.slane %v4676, 4
      %v4679 = vor.u32 %v4675, %v4678
      %v4680 = vsel %vm1057, %v4671, %v4679
      %v4682 = vshrl.u32 %v4272, 16
      %v4684 = vrot.slane %v4682, 3
      %v4685 = vshll.u32 %v4272, 16
      %v4687 = vrot.slane %v4685, 4
      %v4688 = vor.u32 %v4684, %v4687
      %v4689 = vsel %vm1057, %v4688, %v4688
      %v4691 = vshrl.u32 %v4416, 16
      %v4693 = vrot.slane %v4691, 3
      %v4694 = vshll.u32 %v4416, 16
      %v4696 = vrot.slane %v4694, 4
      %v4697 = vor.u32 %v4693, %v4696
      %v4699 = vshrl.u32 %v4418, 16
      %v4701 = vrot.slane %v4699, 3
      %v4702 = vshll.u32 %v4418, 16
      %v4704 = vrot.slane %v4702, 4
      %v4705 = vor.u32 %v4701, %v4704
      %v4706 = vsel %vm1057, %v4697, %v4705
      %v4708 = vshrl.u32 %v4189, 16
      %v4710 = vrot.slane %v4708, 3
      %v4711 = vshll.u32 %v4189, 16
      %v4713 = vrot.slane %v4711, 4
      %v4714 = vor.u32 %v4710, %v4713
      %v4716 = vshrl.u32 %v4190, 16
      %v4718 = vrot.slane %v4716, 3
      %v4719 = vshll.u32 %v4190, 16
      %v4721 = vrot.slane %v4719, 4
      %v4722 = vor.u32 %v4718, %v4721
      %v4723 = vsel %vm1057, %v4714, %v4722
      %v4725 = vshrl.u32 %v4280, 16
      %v4727 = vrot.slane %v4725, 3
      %v4728 = vshll.u32 %v4280, 16
      %v4730 = vrot.slane %v4728, 4
      %v4731 = vor.u32 %v4727, %v4730
      %v4732 = vsel %vm1057, %v4731, %v4731
      %v4734 = vshrl.u32 %v4419, 16
      %v4736 = vrot.slane %v4734, 3
      %v4737 = vshll.u32 %v4419, 16
      %v4739 = vrot.slane %v4737, 4
      %v4740 = vor.u32 %v4736, %v4739
      %v4742 = vshrl.u32 %v4421, 16
      %v4744 = vrot.slane %v4742, 3
      %v4745 = vshll.u32 %v4421, 16
      %v4747 = vrot.slane %v4745, 4
      %v4748 = vor.u32 %v4744, %v4747
      %v4749 = vsel %vm1057, %v4740, %v4748
      %v4751 = vshrl.u32 %v4191, 16
      %v4753 = vrot.slane %v4751, 3
      %v4754 = vshll.u32 %v4191, 16
      %v4756 = vrot.slane %v4754, 4
      %v4757 = vor.u32 %v4753, %v4756
      %v4759 = vshrl.u32 %v4192, 16
      %v4761 = vrot.slane %v4759, 3
      %v4762 = vshll.u32 %v4192, 16
      %v4764 = vrot.slane %v4762, 4
      %v4765 = vor.u32 %v4761, %v4764
      %v4766 = vsel %vm1057, %v4757, %v4765
      %v4768 = vshrl.u32 %v4288, 16
      %v4770 = vrot.slane %v4768, 3
      %v4771 = vshll.u32 %v4288, 16
      %v4773 = vrot.slane %v4771, 4
      %v4774 = vor.u32 %v4770, %v4773
      %v4775 = vsel %vm1057, %v4774, %v4774
      %v4777 = vshrl.u32 %v4422, 16
      %v4779 = vrot.slane %v4777, 3
      %v4780 = vshll.u32 %v4422, 16
      %v4782 = vrot.slane %v4780, 4
      %v4783 = vor.u32 %v4779, %v4782
      %v4785 = vshrl.u32 %v4424, 16
      %v4787 = vrot.slane %v4785, 3
      %v4788 = vshll.u32 %v4424, 16
      %v4790 = vrot.slane %v4788, 4
      %v4791 = vor.u32 %v4787, %v4790
      %v4792 = vsel %vm1057, %v4783, %v4791
      %v4794 = vshrl.u32 %v4193, 16
      %v4796 = vrot.slane %v4794, 3
      %v4797 = vshll.u32 %v4193, 16
      %v4799 = vrot.slane %v4797, 4
      %v4800 = vor.u32 %v4796, %v4799
      %v4802 = vshrl.u32 %v4194, 16
      %v4804 = vrot.slane %v4802, 3
      %v4805 = vshll.u32 %v4194, 16
      %v4807 = vrot.slane %v4805, 4
      %v4808 = vor.u32 %v4804, %v4807
      %v4809 = vsel %vm1057, %v4800, %v4808
      %v4811 = vshrl.u32 %v4296, 16
      %v4813 = vrot.slane %v4811, 3
      %v4814 = vshll.u32 %v4296, 16
      %v4816 = vrot.slane %v4814, 4
      %v4817 = vor.u32 %v4813, %v4816
      %v4818 = vsel %vm1057, %v4817, %v4817
      %v4820 = vshrl.u32 %v4425, 16
      %v4822 = vrot.slane %v4820, 3
      %v4823 = vshll.u32 %v4425, 16
      %v4825 = vrot.slane %v4823, 4
      %v4826 = vor.u32 %v4822, %v4825
      %v4828 = vshrl.u32 %v4427, 16
      %v4830 = vrot.slane %v4828, 3
      %v4831 = vshll.u32 %v4427, 16
      %v4833 = vrot.slane %v4831, 4
      %v4834 = vor.u32 %v4830, %v4833
      %v4835 = vsel %vm1057, %v4826, %v4834
      %v4837 = vshrl.u32 %v4195, 16
      %v4839 = vrot.slane %v4837, 3
      %v4840 = vshll.u32 %v4195, 16
      %v4842 = vrot.slane %v4840, 4
      %v4843 = vor.u32 %v4839, %v4842
      %v4845 = vshrl.u32 %v4196, 16
      %v4847 = vrot.slane %v4845, 3
      %v4848 = vshll.u32 %v4196, 16
      %v4850 = vrot.slane %v4848, 4
      %v4851 = vor.u32 %v4847, %v4850
      %v4852 = vsel %vm1057, %v4843, %v4851
      %v4854 = vshrl.u32 %v4304, 16
      %v4856 = vrot.slane %v4854, 3
      %v4857 = vshll.u32 %v4304, 16
      %v4859 = vrot.slane %v4857, 4
      %v4860 = vor.u32 %v4856, %v4859
      %v4861 = vsel %vm1057, %v4860, %v4860
      %v4863 = vshrl.u32 %v4428, 16
      %v4865 = vrot.slane %v4863, 3
      %v4866 = vshll.u32 %v4428, 16
      %v4868 = vrot.slane %v4866, 4
      %v4869 = vor.u32 %v4865, %v4868
      %v4871 = vshrl.u32 %v4430, 16
      %v4873 = vrot.slane %v4871, 3
      %v4874 = vshll.u32 %v4430, 16
      %v4876 = vrot.slane %v4874, 4
      %v4877 = vor.u32 %v4873, %v4876
      %v4878 = vsel %vm1057, %v4869, %v4877
      %v4880 = vshrl.u32 %v4197, 16
      %v4882 = vrot.slane %v4880, 3
      %v4883 = vshll.u32 %v4197, 16
      %v4885 = vrot.slane %v4883, 4
      %v4886 = vor.u32 %v4882, %v4885
      %v4888 = vshrl.u32 %v4198, 16
      %v4890 = vrot.slane %v4888, 3
      %v4891 = vshll.u32 %v4198, 16
      %v4893 = vrot.slane %v4891, 4
      %v4894 = vor.u32 %v4890, %v4893
      %v4895 = vsel %vm1057, %v4886, %v4894
      %v4897 = vshrl.u32 %v4312, 16
      %v4899 = vrot.slane %v4897, 3
      %v4900 = vshll.u32 %v4312, 16
      %v4902 = vrot.slane %v4900, 4
      %v4903 = vor.u32 %v4899, %v4902
      %v4904 = vsel %vm1057, %v4903, %v4903
      %v4906 = vshrl.u32 %v4431, 16
      %v4908 = vrot.slane %v4906, 3
      %v4909 = vshll.u32 %v4431, 16
      %v4911 = vrot.slane %v4909, 4
      %v4912 = vor.u32 %v4908, %v4911
      %v4914 = vshrl.u32 %v4433, 16
      %v4916 = vrot.slane %v4914, 3
      %v4917 = vshll.u32 %v4433, 16
      %v4919 = vrot.slane %v4917, 4
      %v4920 = vor.u32 %v4916, %v4919
      %v4921 = vsel %vm1057, %v4912, %v4920
      %v4923 = vshrl.u32 %v4199, 16
      %v4925 = vrot.slane %v4923, 3
      %v4926 = vshll.u32 %v4199, 16
      %v4928 = vrot.slane %v4926, 4
      %v4929 = vor.u32 %v4925, %v4928
      %v4931 = vshrl.u32 %v4200, 16
      %v4933 = vrot.slane %v4931, 3
      %v4934 = vshll.u32 %v4200, 16
      %v4936 = vrot.slane %v4934, 4
      %v4937 = vor.u32 %v4933, %v4936
      %v4938 = vsel %vm1057, %v4929, %v4937
      %v4940 = vshrl.u32 %v4320, 16
      %v4942 = vrot.slane %v4940, 3
      %v4943 = vshll.u32 %v4320, 16
      %v4945 = vrot.slane %v4943, 4
      %v4946 = vor.u32 %v4942, %v4945
      %v4947 = vsel %vm1057, %v4946, %v4946
      %v4949 = vshrl.u32 %v4434, 16
      %v4951 = vrot.slane %v4949, 3
      %v4952 = vshll.u32 %v4434, 16
      %v4954 = vrot.slane %v4952, 4
      %v4955 = vor.u32 %v4951, %v4954
      %v4957 = vshrl.u32 %v4436, 16
      %v4959 = vrot.slane %v4957, 3
      %v4960 = vshll.u32 %v4436, 16
      %v4962 = vrot.slane %v4960, 4
      %v4963 = vor.u32 %v4959, %v4962
      %v4964 = vsel %vm1057, %v4955, %v4963
      %v4966 = vshrl.u32 %v4201, 16
      %v4968 = vrot.slane %v4966, 3
      %v4969 = vshll.u32 %v4201, 16
      %v4971 = vrot.slane %v4969, 4
      %v4972 = vor.u32 %v4968, %v4971
      %v4974 = vshrl.u32 %v4202, 16
      %v4976 = vrot.slane %v4974, 3
      %v4977 = vshll.u32 %v4202, 16
      %v4979 = vrot.slane %v4977, 4
      %v4980 = vor.u32 %v4976, %v4979
      %v4981 = vsel %vm1057, %v4972, %v4980
      %v4983 = vshrl.u32 %v4328, 16
      %v4985 = vrot.slane %v4983, 3
      %v4986 = vshll.u32 %v4328, 16
      %v4988 = vrot.slane %v4986, 4
      %v4989 = vor.u32 %v4985, %v4988
      %v4990 = vsel %vm1057, %v4989, %v4989
      %v4992 = vshrl.u32 %v4437, 16
      %v4994 = vrot.slane %v4992, 3
      %v4995 = vshll.u32 %v4437, 16
      %v4997 = vrot.slane %v4995, 4
      %v4998 = vor.u32 %v4994, %v4997
      %v5000 = vshrl.u32 %v4439, 16
      %v5002 = vrot.slane %v5000, 3
      %v5003 = vshll.u32 %v4439, 16
      %v5005 = vrot.slane %v5003, 4
      %v5006 = vor.u32 %v5002, %v5005
      %v5007 = vsel %vm1057, %v4998, %v5006
      %v5009 = vshrl.u32 %v4203, 16
      %v5011 = vrot.slane %v5009, 3
      %v5012 = vshll.u32 %v4203, 16
      %v5014 = vrot.slane %v5012, 4
      %v5015 = vor.u32 %v5011, %v5014
      %v5017 = vshrl.u32 %v4204, 16
      %v5019 = vrot.slane %v5017, 3
      %v5020 = vshll.u32 %v4204, 16
      %v5022 = vrot.slane %v5020, 4
      %v5023 = vor.u32 %v5019, %v5022
      %v5024 = vsel %vm1057, %v5015, %v5023
      %v5026 = vshrl.u32 %v4336, 16
      %v5028 = vrot.slane %v5026, 3
      %v5029 = vshll.u32 %v4336, 16
      %v5031 = vrot.slane %v5029, 4
      %v5032 = vor.u32 %v5028, %v5031
      %v5033 = vsel %vm1057, %v5032, %v5032
      %v5035 = vshrl.u32 %v4440, 16
      %v5037 = vrot.slane %v5035, 3
      %v5038 = vshll.u32 %v4440, 16
      %v5040 = vrot.slane %v5038, 4
      %v5041 = vor.u32 %v5037, %v5040
      %v5043 = vshrl.u32 %v4442, 16
      %v5045 = vrot.slane %v5043, 3
      %v5046 = vshll.u32 %v4442, 16
      %v5048 = vrot.slane %v5046, 4
      %v5049 = vor.u32 %v5045, %v5048
      %v5050 = vsel %vm1057, %v5041, %v5049
      %v5052 = vshrl.u32 %v4205, 16
      %v5054 = vrot.slane %v5052, 3
      %v5055 = vshll.u32 %v4205, 16
      %v5057 = vrot.slane %v5055, 4
      %v5058 = vor.u32 %v5054, %v5057
      %v5060 = vshrl.u32 %v4206, 16
      %v5062 = vrot.slane %v5060, 3
      %v5063 = vshll.u32 %v4206, 16
      %v5065 = vrot.slane %v5063, 4
      %v5066 = vor.u32 %v5062, %v5065
      %v5067 = vsel %vm1057, %v5058, %v5066
      %v5069 = vshrl.u32 %v4344, 16
      %v5071 = vrot.slane %v5069, 3
      %v5072 = vshll.u32 %v4344, 16
      %v5074 = vrot.slane %v5072, 4
      %v5075 = vor.u32 %v5071, %v5074
      %v5076 = vsel %vm1057, %v5075, %v5075
      %v5078 = vshrl.u32 %v4443, 16
      %v5080 = vrot.slane %v5078, 3
      %v5081 = vshll.u32 %v4443, 16
      %v5083 = vrot.slane %v5081, 4
      %v5084 = vor.u32 %v5080, %v5083
      %v5086 = vshrl.u32 %v4445, 16
      %v5088 = vrot.slane %v5086, 3
      %v5089 = vshll.u32 %v4445, 16
      %v5091 = vrot.slane %v5089, 4
      %v5092 = vor.u32 %v5088, %v5091
      %v5093 = vsel %vm1057, %v5084, %v5092
      %v5095 = vshrl.u32 %v4207, 16
      %v5097 = vrot.slane %v5095, 3
      %v5098 = vshll.u32 %v4207, 16
      %v5100 = vrot.slane %v5098, 4
      %v5101 = vor.u32 %v5097, %v5100
      %v5103 = vshrl.u32 %v4208, 16
      %v5105 = vrot.slane %v5103, 3
      %v5106 = vshll.u32 %v4208, 16
      %v5108 = vrot.slane %v5106, 4
      %v5109 = vor.u32 %v5105, %v5108
      %v5110 = vsel %vm1057, %v5101, %v5109
      %v5112 = vshrl.u32 %v4352, 16
      %v5114 = vrot.slane %v5112, 3
      %v5115 = vshll.u32 %v4352, 16
      %v5117 = vrot.slane %v5115, 4
      %v5118 = vor.u32 %v5114, %v5117
      %v5119 = vsel %vm1057, %v5118, %v5118
      %v5121 = vshrl.u32 %v4446, 16
      %v5123 = vrot.slane %v5121, 3
      %v5124 = vshll.u32 %v4446, 16
      %v5126 = vrot.slane %v5124, 4
      %v5127 = vor.u32 %v5123, %v5126
      %v5129 = vshrl.u32 %v4448, 16
      %v5131 = vrot.slane %v5129, 3
      %v5132 = vshll.u32 %v4448, 16
      %v5134 = vrot.slane %v5132, 4
      %v5135 = vor.u32 %v5131, %v5134
      %v5136 = vsel %vm1057, %v5127, %v5135
      %s5185 = scalar_lea.vmem %s1, 384
      %v5186 = vld [vmem:[%s5185] sm:$0xf]
      %v5187 = vld [vmem:[%s5185 + $0x4] sm:$0xf]
      %v5188 = vld [vmem:[%s5185 + $0x8] sm:$0xf]
      %v5189 = vld [vmem:[%s5185 + $0xc] sm:$0xf]
      %v5190 = vld [vmem:[%s5185 + $0x10] sm:$0xf]
      %v5191 = vld [vmem:[%s5185 + $0x14] sm:$0xf]
      %v5192 = vld [vmem:[%s5185 + $0x18] sm:$0xf]
      %v5193 = vld [vmem:[%s5185 + $0x1c] sm:$0xf]
      %v5194 = vld [vmem:[%s5185 + $0x20] sm:$0xf]
      %v5195 = vld [vmem:[%s5185 + $0x24] sm:$0xf]
      %v5196 = vld [vmem:[%s5185 + $0x28] sm:$0xf]
      %v5197 = vld [vmem:[%s5185 + $0x2c] sm:$0xf]
      %v5198 = vld [vmem:[%s5185 + $0x30] sm:$0xf]
      %v5199 = vld [vmem:[%s5185 + $0x34] sm:$0xf]
      %v5200 = vld [vmem:[%s5185 + $0x38] sm:$0xf]
      %v5201 = vld [vmem:[%s5185 + $0x3c] sm:$0xf]
      %v5202 = vld [vmem:[%s5185 + $0x40] sm:$0xf]
      %v5203 = vld [vmem:[%s5185 + $0x44] sm:$0xf]
      %v5204 = vld [vmem:[%s5185 + $0x48] sm:$0xf]
      %v5205 = vld [vmem:[%s5185 + $0x4c] sm:$0xf]
      %v5206 = vld [vmem:[%s5185 + $0x50] sm:$0xf]
      %v5207 = vld [vmem:[%s5185 + $0x54] sm:$0xf]
      %v5208 = vld [vmem:[%s5185 + $0x58] sm:$0xf]
      %v5209 = vld [vmem:[%s5185 + $0x5c] sm:$0xf]
      %v5210 = vld [vmem:[%s5185 + $0x60] sm:$0xf]
      %v5211 = vld [vmem:[%s5185 + $0x64] sm:$0xf]
      %v5212 = vld [vmem:[%s5185 + $0x68] sm:$0xf]
      %v5213 = vld [vmem:[%s5185 + $0x6c] sm:$0xf]
      %v5214 = vld [vmem:[%s5185 + $0x70] sm:$0xf]
      %v5215 = vld [vmem:[%s5185 + $0x74] sm:$0xf]
      %v5216 = vld [vmem:[%s5185 + $0x78] sm:$0xf]
      %v5217 = vld [vmem:[%s5185 + $0x7c] sm:$0xf]
      %v5218 = vld [vmem:[%s5185 + $0x80] sm:$0xf]
      %v5219 = vld [vmem:[%s5185 + $0x84] sm:$0xf]
      %v5220 = vld [vmem:[%s5185 + $0x88] sm:$0xf]
      %v5221 = vld [vmem:[%s5185 + $0x8c] sm:$0xf]
      %v5222 = vld [vmem:[%s5185 + $0x90] sm:$0xf]
      %v5223 = vld [vmem:[%s5185 + $0x94] sm:$0xf]
      %v5224 = vld [vmem:[%s5185 + $0x98] sm:$0xf]
      %v5225 = vld [vmem:[%s5185 + $0x9c] sm:$0xf]
      %v5226 = vld [vmem:[%s5185 + $0xa0] sm:$0xf]
      %v5227 = vld [vmem:[%s5185 + $0xa4] sm:$0xf]
      %v5228 = vld [vmem:[%s5185 + $0xa8] sm:$0xf]
      %v5229 = vld [vmem:[%s5185 + $0xac] sm:$0xf]
      %v5230 = vld [vmem:[%s5185 + $0xb0] sm:$0xf]
      %v5231 = vld [vmem:[%s5185 + $0xb4] sm:$0xf]
      %v5232 = vld [vmem:[%s5185 + $0xb8] sm:$0xf]
      %v5233 = vld [vmem:[%s5185 + $0xbc] sm:$0xf]
      %v5282 = vunpack.c.l.b16 %v5186
      %v5283 = vunpack.c.l.b16 %v5187
      %v5284 = vunpack.c.l.b16 %v5188
      %v5285 = vunpack.c.l.b16 %v5189
      %v5286 = vunpack.c.l.b16 %v5190
      %v5287 = vunpack.c.l.b16 %v5191
      %v5288 = vunpack.c.l.b16 %v5192
      %v5289 = vunpack.c.l.b16 %v5193
      %v5290 = vunpack.c.l.b16 %v5194
      %v5291 = vunpack.c.l.b16 %v5195
      %v5292 = vunpack.c.l.b16 %v5196
      %v5293 = vunpack.c.l.b16 %v5197
      %v5294 = vunpack.c.l.b16 %v5198
      %v5295 = vunpack.c.l.b16 %v5199
      %v5296 = vunpack.c.l.b16 %v5200
      %v5297 = vunpack.c.l.b16 %v5201
      %v5298 = vunpack.c.l.b16 %v5202
      %v5299 = vunpack.c.l.b16 %v5203
      %v5300 = vunpack.c.l.b16 %v5204
      %v5301 = vunpack.c.l.b16 %v5205
      %v5302 = vunpack.c.l.b16 %v5206
      %v5303 = vunpack.c.l.b16 %v5207
      %v5304 = vunpack.c.l.b16 %v5208
      %v5305 = vunpack.c.l.b16 %v5209
      %v5306 = vunpack.c.l.b16 %v5210
      %v5307 = vunpack.c.l.b16 %v5211
      %v5308 = vunpack.c.l.b16 %v5212
      %v5309 = vunpack.c.l.b16 %v5213
      %v5310 = vunpack.c.l.b16 %v5214
      %v5311 = vunpack.c.l.b16 %v5215
      %v5312 = vunpack.c.l.b16 %v5216
      %v5313 = vunpack.c.l.b16 %v5217
      %v5314 = vunpack.c.l.b16 %v5218
      %v5315 = vunpack.c.l.b16 %v5219
      %v5316 = vunpack.c.l.b16 %v5220
      %v5317 = vunpack.c.l.b16 %v5221
      %v5318 = vunpack.c.l.b16 %v5222
      %v5319 = vunpack.c.l.b16 %v5223
      %v5320 = vunpack.c.l.b16 %v5224
      %v5321 = vunpack.c.l.b16 %v5225
      %v5322 = vunpack.c.l.b16 %v5226
      %v5323 = vunpack.c.l.b16 %v5227
      %v5324 = vunpack.c.l.b16 %v5228
      %v5325 = vunpack.c.l.b16 %v5229
      %v5326 = vunpack.c.l.b16 %v5230
      %v5327 = vunpack.c.l.b16 %v5231
      %v5328 = vunpack.c.l.b16 %v5232
      %v5329 = vunpack.c.l.b16 %v5233
      %v5330 = vpack.c.b16 %v5283, %v5282
      %v5331 = vpack.c.b16 %v5285, %v5284
      %v5332 = vpack.c.b16 %v5287, %v5286
      %v5333 = vpack.c.b16 %v5289, %v5288
      %v5334 = vpack.c.b16 %v5291, %v5290
      %v5335 = vpack.c.b16 %v5293, %v5292
      %v5336 = vpack.c.b16 %v5295, %v5294
      %v5337 = vpack.c.b16 %v5297, %v5296
      %v5338 = vpack.c.b16 %v5299, %v5298
      %v5339 = vpack.c.b16 %v5301, %v5300
      %v5340 = vpack.c.b16 %v5303, %v5302
      %v5341 = vpack.c.b16 %v5305, %v5304
      %v5342 = vpack.c.b16 %v5307, %v5306
      %v5343 = vpack.c.b16 %v5309, %v5308
      %v5344 = vpack.c.b16 %v5311, %v5310
      %v5345 = vpack.c.b16 %v5313, %v5312
      %v5346 = vpack.c.b16 %v5315, %v5314
      %v5347 = vpack.c.b16 %v5317, %v5316
      %v5348 = vpack.c.b16 %v5319, %v5318
      %v5349 = vpack.c.b16 %v5321, %v5320
      %v5350 = vpack.c.b16 %v5323, %v5322
      %v5351 = vpack.c.b16 %v5325, %v5324
      %v5352 = vpack.c.b16 %v5327, %v5326
      %v5353 = vpack.c.b16 %v5329, %v5328
      %5378 = vmatpush.bf16.msra.mxu0 %v5337
      %5379 = vmatpush.bf16.msra.mxu0 %v5336
      %5380 = vmatpush.bf16.msra.mxu0 %v5335
      %5381 = vmatpush.bf16.msra.mxu0 %v5334
      %5382 = vmatpush.bf16.msra.mxu0 %v5333
      %5383 = vmatpush.bf16.msra.mxu0 %v5332
      %5384 = vmatpush.bf16.msra.mxu0 %v5331
      %5385 = vmatpush.bf16.msra.mxu0 %v5330
      %5386 = vmatmul.bf16.gmra.mxu0 %v4465
      %v5387 = vpop.f32.mrf.mxu0
      %v5388 = vadd.f32 0.0, %v5387
      %v5389 = vpop.f32.mrf.mxu0
      %v5390 = vadd.f32 0.0, %v5389
      %5391 = vmatmul.bf16.gmra.mxu0 %v4508
      %v5392 = vpop.f32.mrf.mxu0
      %v5393 = vadd.f32 0.0, %v5392
      %v5394 = vpop.f32.mrf.mxu0
      %v5395 = vadd.f32 0.0, %v5394
      %5396 = vmatmul.bf16.gmra.mxu0 %v4551
      %v5397 = vpop.f32.mrf.mxu0
      %v5398 = vadd.f32 0.0, %v5397
      %v5399 = vpop.f32.mrf.mxu0
      %v5400 = vadd.f32 0.0, %v5399
      %5401 = vmatmul.bf16.gmra.mxu0 %v4594
      %v5402 = vpop.f32.mrf.mxu0
      %v5403 = vadd.f32 0.0, %v5402
      %v5404 = vpop.f32.mrf.mxu0
      %v5405 = vadd.f32 0.0, %v5404
      %5406 = vmatmul.bf16.gmra.mxu0 %v4637
      %v5407 = vpop.f32.mrf.mxu0
      %v5408 = vadd.f32 0.0, %v5407
      %v5409 = vpop.f32.mrf.mxu0
      %v5410 = vadd.f32 0.0, %v5409
      %5411 = vmatmul.bf16.gmra.mxu0 %v4680
      %v5412 = vpop.f32.mrf.mxu0
      %v5413 = vadd.f32 0.0, %v5412
      %v5414 = vpop.f32.mrf.mxu0
      %v5415 = vadd.f32 0.0, %v5414
      %5416 = vmatmul.bf16.gmra.mxu0 %v4723
      %v5417 = vpop.f32.mrf.mxu0
      %v5418 = vadd.f32 0.0, %v5417
      %v5419 = vpop.f32.mrf.mxu0
      %v5420 = vadd.f32 0.0, %v5419
      %5421 = vmatmul.bf16.gmra.mxu0 %v4766
      %v5422 = vpop.f32.mrf.mxu0
      %v5423 = vadd.f32 0.0, %v5422
      %v5424 = vpop.f32.mrf.mxu0
      %v5425 = vadd.f32 0.0, %v5424
      %5426 = vmatmul.bf16.gmra.mxu0 %v4809
      %v5427 = vpop.f32.mrf.mxu0
      %v5428 = vadd.f32 0.0, %v5427
      %v5429 = vpop.f32.mrf.mxu0
      %v5430 = vadd.f32 0.0, %v5429
      %5431 = vmatmul.bf16.gmra.mxu0 %v4852
      %v5432 = vpop.f32.mrf.mxu0
      %v5433 = vadd.f32 0.0, %v5432
      %v5434 = vpop.f32.mrf.mxu0
      %v5435 = vadd.f32 0.0, %v5434
      %5436 = vmatmul.bf16.gmra.mxu0 %v4895
      %v5437 = vpop.f32.mrf.mxu0
      %v5438 = vadd.f32 0.0, %v5437
      %v5439 = vpop.f32.mrf.mxu0
      %v5440 = vadd.f32 0.0, %v5439
      %5441 = vmatmul.bf16.gmra.mxu0 %v4938
      %v5442 = vpop.f32.mrf.mxu0
      %v5443 = vadd.f32 0.0, %v5442
      %v5444 = vpop.f32.mrf.mxu0
      %v5445 = vadd.f32 0.0, %v5444
      %5446 = vmatmul.bf16.gmra.mxu0 %v4981
      %v5447 = vpop.f32.mrf.mxu0
      %v5448 = vadd.f32 0.0, %v5447
      %v5449 = vpop.f32.mrf.mxu0
      %v5450 = vadd.f32 0.0, %v5449
      %5451 = vmatmul.bf16.gmra.mxu0 %v5024
      %v5452 = vpop.f32.mrf.mxu0
      %v5453 = vadd.f32 0.0, %v5452
      %v5454 = vpop.f32.mrf.mxu0
      %v5455 = vadd.f32 0.0, %v5454
      %5456 = vmatmul.bf16.gmra.mxu0 %v5067
      %v5457 = vpop.f32.mrf.mxu0
      %v5458 = vadd.f32 0.0, %v5457
      %v5459 = vpop.f32.mrf.mxu0
      %v5460 = vadd.f32 0.0, %v5459
      %5461 = vmatmul.bf16.gmra.mxu0 %v5110
      %v5462 = vpop.f32.mrf.mxu0
      %v5463 = vadd.f32 0.0, %v5462
      %v5464 = vpop.f32.mrf.mxu0
      %v5465 = vadd.f32 0.0, %v5464
      %5466 = vdwg.mxu0
      %5467 = vmatpush.bf16.msra.mxu0 %v5345
      %5468 = vmatpush.bf16.msra.mxu0 %v5344
      %5469 = vmatpush.bf16.msra.mxu0 %v5343
      %5470 = vmatpush.bf16.msra.mxu0 %v5342
      %5471 = vmatpush.bf16.msra.mxu0 %v5341
      %5472 = vmatpush.bf16.msra.mxu0 %v5340
      %5473 = vmatpush.bf16.msra.mxu0 %v5339
      %5474 = vmatpush.bf16.msra.mxu0 %v5338
      %5475 = vmatmul.bf16.gmra.mxu0 %v4474
      %v5476 = vpop.f32.mrf.mxu0
      %v5477 = vadd.f32 %v5388, %v5476
      %v5478 = vpop.f32.mrf.mxu0
      %v5479 = vadd.f32 %v5390, %v5478
      %5480 = vmatmul.bf16.gmra.mxu0 %v4517
      %v5481 = vpop.f32.mrf.mxu0
      %v5482 = vadd.f32 %v5393, %v5481
      %v5483 = vpop.f32.mrf.mxu0
      %v5484 = vadd.f32 %v5395, %v5483
      %5485 = vmatmul.bf16.gmra.mxu0 %v4560
      %v5486 = vpop.f32.mrf.mxu0
      %v5487 = vadd.f32 %v5398, %v5486
      %v5488 = vpop.f32.mrf.mxu0
      %v5489 = vadd.f32 %v5400, %v5488
      %5490 = vmatmul.bf16.gmra.mxu0 %v4603
      %v5491 = vpop.f32.mrf.mxu0
      %v5492 = vadd.f32 %v5403, %v5491
      %v5493 = vpop.f32.mrf.mxu0
      %v5494 = vadd.f32 %v5405, %v5493
      %5495 = vmatmul.bf16.gmra.mxu0 %v4646
      %v5496 = vpop.f32.mrf.mxu0
      %v5497 = vadd.f32 %v5408, %v5496
      %v5498 = vpop.f32.mrf.mxu0
      %v5499 = vadd.f32 %v5410, %v5498
      %5500 = vmatmul.bf16.gmra.mxu0 %v4689
      %v5501 = vpop.f32.mrf.mxu0
      %v5502 = vadd.f32 %v5413, %v5501
      %v5503 = vpop.f32.mrf.mxu0
      %v5504 = vadd.f32 %v5415, %v5503
      %5505 = vmatmul.bf16.gmra.mxu0 %v4732
      %v5506 = vpop.f32.mrf.mxu0
      %v5507 = vadd.f32 %v5418, %v5506
      %v5508 = vpop.f32.mrf.mxu0
      %v5509 = vadd.f32 %v5420, %v5508
      %5510 = vmatmul.bf16.gmra.mxu0 %v4775
      %v5511 = vpop.f32.mrf.mxu0
      %v5512 = vadd.f32 %v5423, %v5511
      %v5513 = vpop.f32.mrf.mxu0
      %v5514 = vadd.f32 %v5425, %v5513
      %5515 = vmatmul.bf16.gmra.mxu0 %v4818
      %v5516 = vpop.f32.mrf.mxu0
      %v5517 = vadd.f32 %v5428, %v5516
      %v5518 = vpop.f32.mrf.mxu0
      %v5519 = vadd.f32 %v5430, %v5518
      %5520 = vmatmul.bf16.gmra.mxu0 %v4861
      %v5521 = vpop.f32.mrf.mxu0
      %v5522 = vadd.f32 %v5433, %v5521
      %v5523 = vpop.f32.mrf.mxu0
      %v5524 = vadd.f32 %v5435, %v5523
      %5525 = vmatmul.bf16.gmra.mxu0 %v4904
      %v5526 = vpop.f32.mrf.mxu0
      %v5527 = vadd.f32 %v5438, %v5526
      %v5528 = vpop.f32.mrf.mxu0
      %v5529 = vadd.f32 %v5440, %v5528
      %5530 = vmatmul.bf16.gmra.mxu0 %v4947
      %v5531 = vpop.f32.mrf.mxu0
      %v5532 = vadd.f32 %v5443, %v5531
      %v5533 = vpop.f32.mrf.mxu0
      %v5534 = vadd.f32 %v5445, %v5533
      %5535 = vmatmul.bf16.gmra.mxu0 %v4990
      %v5536 = vpop.f32.mrf.mxu0
      %v5537 = vadd.f32 %v5448, %v5536
      %v5538 = vpop.f32.mrf.mxu0
      %v5539 = vadd.f32 %v5450, %v5538
      %5540 = vmatmul.bf16.gmra.mxu0 %v5033
      %v5541 = vpop.f32.mrf.mxu0
      %v5542 = vadd.f32 %v5453, %v5541
      %v5543 = vpop.f32.mrf.mxu0
      %v5544 = vadd.f32 %v5455, %v5543
      %5545 = vmatmul.bf16.gmra.mxu0 %v5076
      %v5546 = vpop.f32.mrf.mxu0
      %v5547 = vadd.f32 %v5458, %v5546
      %v5548 = vpop.f32.mrf.mxu0
      %v5549 = vadd.f32 %v5460, %v5548
      %5550 = vmatmul.bf16.gmra.mxu0 %v5119
      %v5551 = vpop.f32.mrf.mxu0
      %v5552 = vadd.f32 %v5463, %v5551
      %v5553 = vpop.f32.mrf.mxu0
      %v5554 = vadd.f32 %v5465, %v5553
      %5555 = vdwg.mxu0
      %5556 = vmatpush.bf16.msra.mxu0 %v5353
      %5557 = vmatpush.bf16.msra.mxu0 %v5352
      %5558 = vmatpush.bf16.msra.mxu0 %v5351
      %5559 = vmatpush.bf16.msra.mxu0 %v5350
      %5560 = vmatpush.bf16.msra.mxu0 %v5349
      %5561 = vmatpush.bf16.msra.mxu0 %v5348
      %5562 = vmatpush.bf16.msra.mxu0 %v5347
      %5563 = vmatpush.bf16.msra.mxu0 %v5346
      %5564 = vmatmul.bf16.gmra.mxu0 %v4491
      %v5565 = vpop.f32.mrf.mxu0
      %v5566 = vadd.f32 %v5477, %v5565
      %v5567 = vpop.f32.mrf.mxu0
      %v5568 = vadd.f32 %v5479, %v5567
      %5569 = vmatmul.bf16.gmra.mxu0 %v4534
      %v5570 = vpop.f32.mrf.mxu0
      %v5571 = vadd.f32 %v5482, %v5570
      %v5572 = vpop.f32.mrf.mxu0
      %v5573 = vadd.f32 %v5484, %v5572
      %5574 = vmatmul.bf16.gmra.mxu0 %v4577
      %v5575 = vpop.f32.mrf.mxu0
      %v5576 = vadd.f32 %v5487, %v5575
      %v5577 = vpop.f32.mrf.mxu0
      %v5578 = vadd.f32 %v5489, %v5577
      %5579 = vmatmul.bf16.gmra.mxu0 %v4620
      %v5580 = vpop.f32.mrf.mxu0
      %v5581 = vadd.f32 %v5492, %v5580
      %v5582 = vpop.f32.mrf.mxu0
      %v5583 = vadd.f32 %v5494, %v5582
      %5584 = vmatmul.bf16.gmra.mxu0 %v4663
      %v5585 = vpop.f32.mrf.mxu0
      %v5586 = vadd.f32 %v5497, %v5585
      %v5587 = vpop.f32.mrf.mxu0
      %v5588 = vadd.f32 %v5499, %v5587
      %5589 = vmatmul.bf16.gmra.mxu0 %v4706
      %v5590 = vpop.f32.mrf.mxu0
      %v5591 = vadd.f32 %v5502, %v5590
      %v5592 = vpop.f32.mrf.mxu0
      %v5593 = vadd.f32 %v5504, %v5592
      %5594 = vmatmul.bf16.gmra.mxu0 %v4749
      %v5595 = vpop.f32.mrf.mxu0
      %v5596 = vadd.f32 %v5507, %v5595
      %v5597 = vpop.f32.mrf.mxu0
      %v5598 = vadd.f32 %v5509, %v5597
      %5599 = vmatmul.bf16.gmra.mxu0 %v4792
      %v5600 = vpop.f32.mrf.mxu0
      %v5601 = vadd.f32 %v5512, %v5600
      %v5602 = vpop.f32.mrf.mxu0
      %v5603 = vadd.f32 %v5514, %v5602
      %5604 = vmatmul.bf16.gmra.mxu0 %v4835
      %v5605 = vpop.f32.mrf.mxu0
      %v5606 = vadd.f32 %v5517, %v5605
      %v5607 = vpop.f32.mrf.mxu0
      %v5608 = vadd.f32 %v5519, %v5607
      %5609 = vmatmul.bf16.gmra.mxu0 %v4878
      %v5610 = vpop.f32.mrf.mxu0
      %v5611 = vadd.f32 %v5522, %v5610
      %v5612 = vpop.f32.mrf.mxu0
      %v5613 = vadd.f32 %v5524, %v5612
      %5614 = vmatmul.bf16.gmra.mxu0 %v4921
      %v5615 = vpop.f32.mrf.mxu0
      %v5616 = vadd.f32 %v5527, %v5615
      %v5617 = vpop.f32.mrf.mxu0
      %v5618 = vadd.f32 %v5529, %v5617
      %5619 = vmatmul.bf16.gmra.mxu0 %v4964
      %v5620 = vpop.f32.mrf.mxu0
      %v5621 = vadd.f32 %v5532, %v5620
      %v5622 = vpop.f32.mrf.mxu0
      %v5623 = vadd.f32 %v5534, %v5622
      %5624 = vmatmul.bf16.gmra.mxu0 %v5007
      %v5625 = vpop.f32.mrf.mxu0
      %v5626 = vadd.f32 %v5537, %v5625
      %v5627 = vpop.f32.mrf.mxu0
      %v5628 = vadd.f32 %v5539, %v5627
      %5629 = vmatmul.bf16.gmra.mxu0 %v5050
      %v5630 = vpop.f32.mrf.mxu0
      %v5631 = vadd.f32 %v5542, %v5630
      %v5632 = vpop.f32.mrf.mxu0
      %v5633 = vadd.f32 %v5544, %v5632
      %5634 = vmatmul.bf16.gmra.mxu0 %v5093
      %v5635 = vpop.f32.mrf.mxu0
      %v5636 = vadd.f32 %v5547, %v5635
      %v5637 = vpop.f32.mrf.mxu0
      %v5638 = vadd.f32 %v5549, %v5637
      %5639 = vmatmul.bf16.gmra.mxu0 %v5136
      %v5640 = vpop.f32.mrf.mxu0
      %v5641 = vadd.f32 %v5552, %v5640
      %v5642 = vpop.f32.mrf.mxu0
      %v5643 = vadd.f32 %v5554, %v5642
      %5644 = vdwg.mxu0
      %v5645 = vld [vmem:[#allocation3] sm:$0xff]
      %v5646 = vld [vmem:[#allocation3 + $0x8] sm:$0xff]
      %v5647 = vld [vmem:[#allocation3 + $0x10] sm:$0xff]
      %v5648 = vld [vmem:[#allocation3 + $0x18] sm:$0xff]
      %v5649 = vld [vmem:[#allocation3 + $0x20] sm:$0xff]
      %v5650 = vld [vmem:[#allocation3 + $0x28] sm:$0xff]
      %v5651 = vld [vmem:[#allocation3 + $0x30] sm:$0xff]
      %v5652 = vld [vmem:[#allocation3 + $0x38] sm:$0xff]
      %v5653 = vld [vmem:[#allocation3 + $0x40] sm:$0xff]
      %v5654 = vld [vmem:[#allocation3 + $0x48] sm:$0xff]
      %v5655 = vld [vmem:[#allocation3 + $0x50] sm:$0xff]
      %v5656 = vld [vmem:[#allocation3 + $0x58] sm:$0xff]
      %v5657 = vld [vmem:[#allocation3 + $0x60] sm:$0xff]
      %v5658 = vld [vmem:[#allocation3 + $0x68] sm:$0xff]
      %v5659 = vld [vmem:[#allocation3 + $0x70] sm:$0xff]
      %v5660 = vld [vmem:[#allocation3 + $0x78] sm:$0xff]
      %v5661 = vld [vmem:[#allocation3 + $0x80] sm:$0xff]
      %v5662 = vld [vmem:[#allocation3 + $0x88] sm:$0xff]
      %v5663 = vld [vmem:[#allocation3 + $0x90] sm:$0xff]
      %v5664 = vld [vmem:[#allocation3 + $0x98] sm:$0xff]
      %v5665 = vld [vmem:[#allocation3 + $0xa0] sm:$0xff]
      %v5666 = vld [vmem:[#allocation3 + $0xa8] sm:$0xff]
      %v5667 = vld [vmem:[#allocation3 + $0xb0] sm:$0xff]
      %v5668 = vld [vmem:[#allocation3 + $0xb8] sm:$0xff]
      %v5669 = vld [vmem:[#allocation3 + $0xc0] sm:$0xff]
      %v5670 = vld [vmem:[#allocation3 + $0xc8] sm:$0xff]
      %v5671 = vld [vmem:[#allocation3 + $0xd0] sm:$0xff]
      %v5672 = vld [vmem:[#allocation3 + $0xd8] sm:$0xff]
      %v5673 = vld [vmem:[#allocation3 + $0xe0] sm:$0xff]
      %v5674 = vld [vmem:[#allocation3 + $0xe8] sm:$0xff]
      %v5675 = vld [vmem:[#allocation3 + $0xf0] sm:$0xff]
      %v5676 = vld [vmem:[#allocation3 + $0xf8] sm:$0xff]
      %v5677 = vadd.f32 %v5645, %v5566
      %v5678 = vadd.f32 %v5646, %v5568
      %v5679 = vadd.f32 %v5647, %v5571
      %v5680 = vadd.f32 %v5648, %v5573
      %v5681 = vadd.f32 %v5649, %v5576
      %v5682 = vadd.f32 %v5650, %v5578
      %v5683 = vadd.f32 %v5651, %v5581
      %v5684 = vadd.f32 %v5652, %v5583
      %v5685 = vadd.f32 %v5653, %v5586
      %v5686 = vadd.f32 %v5654, %v5588
      %v5687 = vadd.f32 %v5655, %v5591
      %v5688 = vadd.f32 %v5656, %v5593
      %v5689 = vadd.f32 %v5657, %v5596
      %v5690 = vadd.f32 %v5658, %v5598
      %v5691 = vadd.f32 %v5659, %v5601
      %v5692 = vadd.f32 %v5660, %v5603
      %v5693 = vadd.f32 %v5661, %v5606
      %v5694 = vadd.f32 %v5662, %v5608
      %v5695 = vadd.f32 %v5663, %v5611
      %v5696 = vadd.f32 %v5664, %v5613
      %v5697 = vadd.f32 %v5665, %v5616
      %v5698 = vadd.f32 %v5666, %v5618
      %v5699 = vadd.f32 %v5667, %v5621
      %v5700 = vadd.f32 %v5668, %v5623
      %v5701 = vadd.f32 %v5669, %v5626
      %v5702 = vadd.f32 %v5670, %v5628
      %v5703 = vadd.f32 %v5671, %v5631
      %v5704 = vadd.f32 %v5672, %v5633
      %v5705 = vadd.f32 %v5673, %v5636
      %v5706 = vadd.f32 %v5674, %v5638
      %v5707 = vadd.f32 %v5675, %v5641
      %v5708 = vadd.f32 %v5676, %v5643
      %5709 = vst [vmem:[#allocation3] sm:$0xff] %v5677
      %5710 = vst [vmem:[#allocation3 + $0x8] sm:$0xff] %v5678
      %5711 = vst [vmem:[#allocation3 + $0x10] sm:$0xff] %v5679
      %5712 = vst [vmem:[#allocation3 + $0x18] sm:$0xff] %v5680
      %5713 = vst [vmem:[#allocation3 + $0x20] sm:$0xff] %v5681
      %5714 = vst [vmem:[#allocation3 + $0x28] sm:$0xff] %v5682
      %5715 = vst [vmem:[#allocation3 + $0x30] sm:$0xff] %v5683
      %5716 = vst [vmem:[#allocation3 + $0x38] sm:$0xff] %v5684
      %5717 = vst [vmem:[#allocation3 + $0x40] sm:$0xff] %v5685
      %5718 = vst [vmem:[#allocation3 + $0x48] sm:$0xff] %v5686
      %5719 = vst [vmem:[#allocation3 + $0x50] sm:$0xff] %v5687
      %5720 = vst [vmem:[#allocation3 + $0x58] sm:$0xff] %v5688
      %5721 = vst [vmem:[#allocation3 + $0x60] sm:$0xff] %v5689
      %5722 = vst [vmem:[#allocation3 + $0x68] sm:$0xff] %v5690
      %5723 = vst [vmem:[#allocation3 + $0x70] sm:$0xff] %v5691
      %5724 = vst [vmem:[#allocation3 + $0x78] sm:$0xff] %v5692
      %5725 = vst [vmem:[#allocation3 + $0x80] sm:$0xff] %v5693
      %5726 = vst [vmem:[#allocation3 + $0x88] sm:$0xff] %v5694
      %5727 = vst [vmem:[#allocation3 + $0x90] sm:$0xff] %v5695
      %5728 = vst [vmem:[#allocation3 + $0x98] sm:$0xff] %v5696
      %5729 = vst [vmem:[#allocation3 + $0xa0] sm:$0xff] %v5697
      %5730 = vst [vmem:[#allocation3 + $0xa8] sm:$0xff] %v5698
      %5731 = vst [vmem:[#allocation3 + $0xb0] sm:$0xff] %v5699
      %5732 = vst [vmem:[#allocation3 + $0xb8] sm:$0xff] %v5700
      %5733 = vst [vmem:[#allocation3 + $0xc0] sm:$0xff] %v5701
      %5734 = vst [vmem:[#allocation3 + $0xc8] sm:$0xff] %v5702
      %5735 = vst [vmem:[#allocation3 + $0xd0] sm:$0xff] %v5703
      %5736 = vst [vmem:[#allocation3 + $0xd8] sm:$0xff] %v5704
      %5737 = vst [vmem:[#allocation3 + $0xe0] sm:$0xff] %v5705
      %5738 = vst [vmem:[#allocation3 + $0xe8] sm:$0xff] %v5706
      %5739 = vst [vmem:[#allocation3 + $0xf0] sm:$0xff] %v5707
      %5740 = vst [vmem:[#allocation3 + $0xf8] sm:$0xff] %v5708
      %v5741 = vld [vmem:[#allocation3] sm:$0xff]
      %v5742 = vld [vmem:[#allocation3 + $0x8] sm:$0xff]
      %v5743 = vld [vmem:[#allocation3 + $0x10] sm:$0xff]
      %v5744 = vld [vmem:[#allocation3 + $0x18] sm:$0xff]
      %v5745 = vld [vmem:[#allocation3 + $0x20] sm:$0xff]
      %v5746 = vld [vmem:[#allocation3 + $0x28] sm:$0xff]
      %v5747 = vld [vmem:[#allocation3 + $0x30] sm:$0xff]
      %v5748 = vld [vmem:[#allocation3 + $0x38] sm:$0xff]
      %v5749 = vld [vmem:[#allocation3 + $0x40] sm:$0xff]
      %v5750 = vld [vmem:[#allocation3 + $0x48] sm:$0xff]
      %v5751 = vld [vmem:[#allocation3 + $0x50] sm:$0xff]
      %v5752 = vld [vmem:[#allocation3 + $0x58] sm:$0xff]
      %v5753 = vld [vmem:[#allocation3 + $0x60] sm:$0xff]
      %v5754 = vld [vmem:[#allocation3 + $0x68] sm:$0xff]
      %v5755 = vld [vmem:[#allocation3 + $0x70] sm:$0xff]
      %v5756 = vld [vmem:[#allocation3 + $0x78] sm:$0xff]
      %v5757 = vld [vmem:[#allocation3 + $0x80] sm:$0xff]
      %v5758 = vld [vmem:[#allocation3 + $0x88] sm:$0xff]
      %v5759 = vld [vmem:[#allocation3 + $0x90] sm:$0xff]
      %v5760 = vld [vmem:[#allocation3 + $0x98] sm:$0xff]
      %v5761 = vld [vmem:[#allocation3 + $0xa0] sm:$0xff]
      %v5762 = vld [vmem:[#allocation3 + $0xa8] sm:$0xff]
      %v5763 = vld [vmem:[#allocation3 + $0xb0] sm:$0xff]
      %v5764 = vld [vmem:[#allocation3 + $0xb8] sm:$0xff]
      %v5765 = vld [vmem:[#allocation3 + $0xc0] sm:$0xff]
      %v5766 = vld [vmem:[#allocation3 + $0xc8] sm:$0xff]
      %v5767 = vld [vmem:[#allocation3 + $0xd0] sm:$0xff]
      %v5768 = vld [vmem:[#allocation3 + $0xd8] sm:$0xff]
      %v5769 = vld [vmem:[#allocation3 + $0xe0] sm:$0xff]
      %v5770 = vld [vmem:[#allocation3 + $0xe8] sm:$0xff]
      %v5771 = vld [vmem:[#allocation3 + $0xf0] sm:$0xff]
      %v5772 = vld [vmem:[#allocation3 + $0xf8] sm:$0xff]
      %v5773 = vpack.c.bf16 %v5741, %v5741
      %v5774 = vpack.c.bf16 %v5742, %v5742
      %v5775 = vpack.c.bf16 %v5743, %v5743
      %v5776 = vpack.c.bf16 %v5744, %v5744
      %v5777 = vpack.c.bf16 %v5745, %v5745
      %v5778 = vpack.c.bf16 %v5746, %v5746
      %v5779 = vpack.c.bf16 %v5747, %v5747
      %v5780 = vpack.c.bf16 %v5748, %v5748
      %v5781 = vpack.c.bf16 %v5749, %v5749
      %v5782 = vpack.c.bf16 %v5750, %v5750
      %v5783 = vpack.c.bf16 %v5751, %v5751
      %v5784 = vpack.c.bf16 %v5752, %v5752
      %v5785 = vpack.c.bf16 %v5753, %v5753
      %v5786 = vpack.c.bf16 %v5754, %v5754
      %v5787 = vpack.c.bf16 %v5755, %v5755
      %v5788 = vpack.c.bf16 %v5756, %v5756
      %v5789 = vpack.c.bf16 %v5757, %v5757
      %v5790 = vpack.c.bf16 %v5758, %v5758
      %v5791 = vpack.c.bf16 %v5759, %v5759
      %v5792 = vpack.c.bf16 %v5760, %v5760
      %v5793 = vpack.c.bf16 %v5761, %v5761
      %v5794 = vpack.c.bf16 %v5762, %v5762
      %v5795 = vpack.c.bf16 %v5763, %v5763
      %v5796 = vpack.c.bf16 %v5764, %v5764
      %v5797 = vpack.c.bf16 %v5765, %v5765
      %v5798 = vpack.c.bf16 %v5766, %v5766
      %v5799 = vpack.c.bf16 %v5767, %v5767
      %v5800 = vpack.c.bf16 %v5768, %v5768
      %v5801 = vpack.c.bf16 %v5769, %v5769
      %v5802 = vpack.c.bf16 %v5770, %v5770
      %v5803 = vpack.c.bf16 %v5771, %v5771
      %v5804 = vpack.c.bf16 %v5772, %v5772
      %5805 = vst [vmem:[%s296] sm:$0xf] %v5773
      %5806 = vst [vmem:[%s296 + $0x4] sm:$0xf] %v5774
      %5807 = vst [vmem:[%s296 + $0x8] sm:$0xf] %v5775
      %5808 = vst [vmem:[%s296 + $0xc] sm:$0xf] %v5776
      %5809 = vst [vmem:[%s296 + $0x10] sm:$0xf] %v5777
      %5810 = vst [vmem:[%s296 + $0x14] sm:$0xf] %v5778
      %5811 = vst [vmem:[%s296 + $0x18] sm:$0xf] %v5779
      %5812 = vst [vmem:[%s296 + $0x1c] sm:$0xf] %v5780
      %5813 = vst [vmem:[%s296 + $0x20] sm:$0xf] %v5781
      %5814 = vst [vmem:[%s296 + $0x24] sm:$0xf] %v5782
      %5815 = vst [vmem:[%s296 + $0x28] sm:$0xf] %v5783
      %5816 = vst [vmem:[%s296 + $0x2c] sm:$0xf] %v5784
      %5817 = vst [vmem:[%s296 + $0x30] sm:$0xf] %v5785
      %5818 = vst [vmem:[%s296 + $0x34] sm:$0xf] %v5786
      %5819 = vst [vmem:[%s296 + $0x38] sm:$0xf] %v5787
      %5820 = vst [vmem:[%s296 + $0x3c] sm:$0xf] %v5788
      %5821 = vst [vmem:[%s296 + $0x40] sm:$0xf] %v5789
      %5822 = vst [vmem:[%s296 + $0x44] sm:$0xf] %v5790
      %5823 = vst [vmem:[%s296 + $0x48] sm:$0xf] %v5791
      %5824 = vst [vmem:[%s296 + $0x4c] sm:$0xf] %v5792
      %5825 = vst [vmem:[%s296 + $0x50] sm:$0xf] %v5793
      %5826 = vst [vmem:[%s296 + $0x54] sm:$0xf] %v5794
      %5827 = vst [vmem:[%s296 + $0x58] sm:$0xf] %v5795
      %5828 = vst [vmem:[%s296 + $0x5c] sm:$0xf] %v5796
      %5829 = vst [vmem:[%s296 + $0x60] sm:$0xf] %v5797
      %5830 = vst [vmem:[%s296 + $0x64] sm:$0xf] %v5798
      %5831 = vst [vmem:[%s296 + $0x68] sm:$0xf] %v5799
      %5832 = vst [vmem:[%s296 + $0x6c] sm:$0xf] %v5800
      %5833 = vst [vmem:[%s296 + $0x70] sm:$0xf] %v5801
      %5834 = vst [vmem:[%s296 + $0x74] sm:$0xf] %v5802
      %5835 = vst [vmem:[%s296 + $0x78] sm:$0xf] %v5803
      %5836 = vst [vmem:[%s296 + $0x7c] sm:$0xf] %v5804
      %v5837 = vadd.f32 %v5741, %v5742
      %v5838 = vadd.f32 %v5837, %v5743
      %v5839 = vadd.f32 %v5838, %v5744
      %v5840 = vadd.f32 %v5839, %v5745
      %v5841 = vadd.f32 %v5840, %v5746
      %v5842 = vadd.f32 %v5841, %v5747
      %v5843 = vadd.f32 %v5842, %v5748
      %v5844 = vadd.f32 %v5843, %v5749
      %v5845 = vadd.f32 %v5844, %v5750
      %v5846 = vadd.f32 %v5845, %v5751
      %v5847 = vadd.f32 %v5846, %v5752
      %v5848 = vadd.f32 %v5847, %v5753
      %v5849 = vadd.f32 %v5848, %v5754
      %v5850 = vadd.f32 %v5849, %v5755
      %v5851 = vadd.f32 %v5850, %v5756
      %v5852 = vadd.f32 %v5851, %v5757
      %v5853 = vadd.f32 %v5852, %v5758
      %v5854 = vadd.f32 %v5853, %v5759
      %v5855 = vadd.f32 %v5854, %v5760
      %v5856 = vadd.f32 %v5855, %v5761
      %v5857 = vadd.f32 %v5856, %v5762
      %v5858 = vadd.f32 %v5857, %v5763
      %v5859 = vadd.f32 %v5858, %v5764
      %v5860 = vadd.f32 %v5859, %v5765
      %v5861 = vadd.f32 %v5860, %v5766
      %v5862 = vadd.f32 %v5861, %v5767
      %v5863 = vadd.f32 %v5862, %v5768
      %v5864 = vadd.f32 %v5863, %v5769
      %v5865 = vadd.f32 %v5864, %v5770
      %v5866 = vadd.f32 %v5865, %v5771
      %v5867 = vadd.f32 %v5866, %v5772
      %v5868 = vrot.slane %v5867, 4
      %v5869 = vadd.f32 %v5867, %v5868
      %v5870 = vrot.slane %v5869, 2
      %v5871 = vadd.f32 %v5869, %v5870
      %v5872 = vrot.slane %v5871, 1
      %v5873 = vadd.f32 %v5871, %v5872
      %5874 = vst [vmem:[%s303] sm:$0x1] %v5873
      %v5875 = vmul.f32 %v5741, %v5741
      %v5876 = vmul.f32 %v5742, %v5742
      %v5877 = vmul.f32 %v5743, %v5743
      %v5878 = vmul.f32 %v5744, %v5744
      %v5879 = vmul.f32 %v5745, %v5745
      %v5880 = vmul.f32 %v5746, %v5746
      %v5881 = vmul.f32 %v5747, %v5747
      %v5882 = vmul.f32 %v5748, %v5748
      %v5883 = vmul.f32 %v5749, %v5749
      %v5884 = vmul.f32 %v5750, %v5750
      %v5885 = vmul.f32 %v5751, %v5751
      %v5886 = vmul.f32 %v5752, %v5752
      %v5887 = vmul.f32 %v5753, %v5753
      %v5888 = vmul.f32 %v5754, %v5754
      %v5889 = vmul.f32 %v5755, %v5755
      %v5890 = vmul.f32 %v5756, %v5756
      %v5891 = vmul.f32 %v5757, %v5757
      %v5892 = vmul.f32 %v5758, %v5758
      %v5893 = vmul.f32 %v5759, %v5759
      %v5894 = vmul.f32 %v5760, %v5760
      %v5895 = vmul.f32 %v5761, %v5761
      %v5896 = vmul.f32 %v5762, %v5762
      %v5897 = vmul.f32 %v5763, %v5763
      %v5898 = vmul.f32 %v5764, %v5764
      %v5899 = vmul.f32 %v5765, %v5765
      %v5900 = vmul.f32 %v5766, %v5766
      %v5901 = vmul.f32 %v5767, %v5767
      %v5902 = vmul.f32 %v5768, %v5768
      %v5903 = vmul.f32 %v5769, %v5769
      %v5904 = vmul.f32 %v5770, %v5770
      %v5905 = vmul.f32 %v5771, %v5771
      %v5906 = vmul.f32 %v5772, %v5772
      %v5907 = vadd.f32 %v5875, %v5876
      %v5908 = vadd.f32 %v5907, %v5877
      %v5909 = vadd.f32 %v5908, %v5878
      %v5910 = vadd.f32 %v5909, %v5879
      %v5911 = vadd.f32 %v5910, %v5880
      %v5912 = vadd.f32 %v5911, %v5881
      %v5913 = vadd.f32 %v5912, %v5882
      %v5914 = vadd.f32 %v5913, %v5883
      %v5915 = vadd.f32 %v5914, %v5884
      %v5916 = vadd.f32 %v5915, %v5885
      %v5917 = vadd.f32 %v5916, %v5886
      %v5918 = vadd.f32 %v5917, %v5887
      %v5919 = vadd.f32 %v5918, %v5888
      %v5920 = vadd.f32 %v5919, %v5889
      %v5921 = vadd.f32 %v5920, %v5890
      %v5922 = vadd.f32 %v5921, %v5891
      %v5923 = vadd.f32 %v5922, %v5892
      %v5924 = vadd.f32 %v5923, %v5893
      %v5925 = vadd.f32 %v5924, %v5894
      %v5926 = vadd.f32 %v5925, %v5895
      %v5927 = vadd.f32 %v5926, %v5896
      %v5928 = vadd.f32 %v5927, %v5897
      %v5929 = vadd.f32 %v5928, %v5898
      %v5930 = vadd.f32 %v5929, %v5899
      %v5931 = vadd.f32 %v5930, %v5900
      %v5932 = vadd.f32 %v5931, %v5901
      %v5933 = vadd.f32 %v5932, %v5902
      %v5934 = vadd.f32 %v5933, %v5903
      %v5935 = vadd.f32 %v5934, %v5904
      %v5936 = vadd.f32 %v5935, %v5905
      %v5937 = vadd.f32 %v5936, %v5906
      %v5938 = vrot.slane %v5937, 4
      %v5939 = vadd.f32 %v5937, %v5938
      %v5940 = vrot.slane %v5939, 2
      %v5941 = vadd.f32 %v5939, %v5940
      %v5942 = vrot.slane %v5941, 1
      %v5943 = vadd.f32 %v5941, %v5942
      %5944 = vst [vmem:[%s309] sm:$0x1] %v5943
      %s5945 = smul.u32 16, %s23
      %p5946 = scmp.lt.s32.totalorder %s22, 1
      %s5947 = scalar_select %p5946, %s22, 1
      %p5948 = scmp.lt.s32.totalorder %s5945, 15
      %s5949 = scalar_select %p5948, %s5945, 15
      %s5950 = smul.addr %s5949, 2
      %s5951 = smul.addr %s5947, 32
      %s5952 = sadd.s32 %s5950, %s5951
      %s5953 = smul.addr %s5952, 4
      %s5954 = scalar_lea.vmem %s4, %s5953
      %p5955 = scmp.lt.s32.totalorder %s22, 1
      %s5956 = scalar_select %p5955, %s22, 1
      %p5957 = scmp.lt.s32.totalorder %s23, 0
      %s5958 = scalar_select %p5957, %s23, 0
      %s5959 = sadd.s32 %s5958, %s5956
      %s5960 = scalar_lea.vmem %s5, %s5959
      %p5961 = scmp.lt.s32.totalorder %s22, 1
      %s5962 = scalar_select %p5961, %s22, 1
      %p5963 = scmp.lt.s32.totalorder %s23, 0
      %s5964 = scalar_select %p5963, %s23, 0
      %s5965 = sadd.s32 %s5964, %s5962
      %s5966 = scalar_lea.vmem %s6, %s5965
      // Predicated region
      $region41: #{double_convolution_forward.4} parent=35 // pred_check
        %p5967 = pneg %p139
      $region42: #{double_convolution_forward.4} parent=35 // pred_check_branch
        %5969 = sbr.rel (%p5967) target = $region44
      $region43: #{double_convolution_forward.4} parent=35 // pred_region
        %s5970 = smul.u32 16, %s23
      $region44: #{double_convolution_forward.4} parent=35 // pred_fallthru
        _
      // Predicated region
      $region45: #{double_convolution_forward.4} parent=35 // pred_check
        %p5971 = pneg %p167
      $region46: #{double_convolution_forward.4} parent=35 // pred_check_branch
        %5973 = sbr.rel (%p5971) target = $region48
      $region47: #{double_convolution_forward.4} parent=35 // pred_region
        _
      $region48: #{double_convolution_forward.4} parent=35 // pred_fallthru
        _
      // Predicated region
      $region49: #{double_convolution_forward.4} parent=35 // pred_check
        %p5974 = pneg %p195
      $region50: #{double_convolution_forward.4} parent=35 // pred_check_branch
        %5976 = sbr.rel (%p5974) target = $region52
      $region51: #{double_convolution_forward.4} parent=35 // pred_region
        _
      $region52: #{double_convolution_forward.4} parent=35 // pred_fallthru
        _
    $region36: #{double_convolution_forward.4} parent=5 // pred_fallthru
      _
    %p5977 = scmp.le.s32.totalorder 2, %s13
    // Predicated region
    $region53: #{double_convolution_forward.4} parent=5 // pred_check
      %p5978 = pneg %p5977
    $region54: #{double_convolution_forward.4} parent=5 // pred_check_branch
      %5980 = sbr.rel (%p5978) target = $region56
    $region55: #{double_convolution_forward.4} parent=5 // pred_region
      %s5981 = ssub.s32 %s13, 2
      // Predicated region
      $region57: #{double_convolution_forward.4} parent=55 // pred_check
        %p5982 = pneg %p145
      $region58: #{double_convolution_forward.4} parent=55 // pred_check_branch
        %5984 = sbr.rel (%p5982) target = $region60
      $region59: #{double_convolution_forward.4} parent=55 // pred_region
        %s5985 = smul.u32 16, %s25
        %p5986 = scmp.lt.s32.totalorder %s24, 1
        %s5987 = scalar_select %p5986, %s24, 1
        %p5988 = scmp.lt.s32.totalorder %s5985, 15
        %s5989 = scalar_select %p5988, %s5985, 15
        %s5990 = smul.addr %s5989, 2
        %s5991 = smul.addr %s5987, 32
        %s5992 = sadd.s32 %s5990, %s5991
        %s5993 = smul.addr %s5992, 4
        %s5994 = scalar_lea.vmem %s4, %s5993
      $region60: #{double_convolution_forward.4} parent=55 // pred_fallthru
        _
      // Predicated region
      $region61: #{double_convolution_forward.4} parent=55 // pred_check
        %p5995 = pneg %p173
      $region62: #{double_convolution_forward.4} parent=55 // pred_check_branch
        %5997 = sbr.rel (%p5995) target = $region64
      $region63: #{double_convolution_forward.4} parent=55 // pred_region
        %p5998 = scmp.lt.s32.totalorder %s24, 1
        %s5999 = scalar_select %p5998, %s24, 1
        %p6000 = scmp.lt.s32.totalorder %s25, 0
        %s6001 = scalar_select %p6000, %s25, 0
        %s6002 = sadd.s32 %s6001, %s5999
        %s6003 = scalar_lea.vmem %s5, %s6002
      $region64: #{double_convolution_forward.4} parent=55 // pred_fallthru
        _
      // Predicated region
      $region65: #{double_convolution_forward.4} parent=55 // pred_check
        %p6004 = pneg %p201
      $region66: #{double_convolution_forward.4} parent=55 // pred_check_branch
        %6006 = sbr.rel (%p6004) target = $region68
      $region67: #{double_convolution_forward.4} parent=55 // pred_region
        %p6007 = scmp.lt.s32.totalorder %s24, 1
        %s6008 = scalar_select %p6007, %s24, 1
        %p6009 = scmp.lt.s32.totalorder %s25, 0
        %s6010 = scalar_select %p6009, %s25, 0
        %s6011 = sadd.s32 %s6010, %s6008
        %s6012 = scalar_lea.vmem %s6, %s6011
      $region68: #{double_convolution_forward.4} parent=55 // pred_fallthru
        _
    $region56: #{double_convolution_forward.4} parent=5 // pred_fallthru
      _
  $region6: #{double_convolution_forward.4} parent=0 // loop_footer
    %s17 = sadd.s32 1, %s13
  $region7: #{double_convolution_forward.4} parent=0 // loop_footer_branch
    %12 = sbr.rel target = $region3
  $region8: #{double_convolution_forward.4} parent=0 // loop_exit
    _

// kernel: double_convolution_forward.3
$region0: #{double_convolution_forward.3}
  #allocation0 [shape = 'u32[]', space=smem, size = 0x4, offset = 0x4, fixed_abs, tag = 'smem constant byte address 0x4 - core index']
  #allocation1 [shape = 'u32[72,128]{1,0:T(1,128)}', space=vmem, size = 0x9000, scoped, tag = 'internal scratch']
  #allocation2 [shape = 'bf16[18,32,128]{2,1,0:T(8,128)(2,1)}', space=vmem, size = 0x24000, scoped, tag = 'scratch operand']
  #allocation3 [shape = 'f32[256,128]{1,0:T(8,128)}', space=vmem, size = 0x20000, scoped, tag = 'scratch operand']
  %s0 = inlined_call_operand.vmem [shape: bf16[2,16,16,128], index: 0, kind: input, shape index: {}]
  %s1 = inlined_call_operand.vmem [shape: bf16[3,384,128], index: 1, kind: input, shape index: {}]
  %s2 = inlined_call_operand.vmem [shape: bf16[2,16,16,128], index: 2, kind: output, shape index: {0}]
  %s3 = inlined_call_operand.vmem [shape: f32[2,1,1,128], index: 3, kind: output, shape index: {1}]
  %s4 = inlined_call_operand.vmem [shape: f32[2,1,1,128], index: 4, kind: output, shape index: {2}]
  %5 = xla_tuple %s2, %s3, %s4
  %s6 = sld [smem:[#allocation0]]
  $region61: #{double_convolution_forward.3} parent=0
    _
  %s8 = ssub.s32 1, %s6
  %s9 = scalar_select 0, %s8, %s6
  loop: start=0, step=1, limit=4
  $region2: #{double_convolution_forward.3} parent=0 // loop_pre_header
    _
  $region3: #{double_convolution_forward.3} parent=0 // loop_header
    %s11 = sphi 0, %s15
    %p12 = scmp.ge.s32.totalorder %s11, 4
    %s18 = sphi 0, %s30
    %s19 = sphi 0, %s26
    %s20 = sphi 0, %s18
    %s21 = sphi 0, %s19
    %s22 = sphi 0, %s20
    %s23 = sphi 0, %s21
    %s33 = sphi 0, %s35
    %s36 = sphi 0, %s33
    %s37 = sphi 0, %s36
    %s53 = sphi 0, %s37
    %s57 = sphi 0, %s57
    %s59 = sphi 0, %s57
    %s60 = sphi 0, %s59
    %s74 = sphi 0, %s60
    %s82 = sphi 0, %s84
    %s85 = sphi 0, %s82
    %s86 = sphi 0, %s85
    %s102 = sphi 0, %s86
    %s110 = sphi 0, %s112
    %s113 = sphi 0, %s110
    %s114 = sphi 0, %s113
    %s130 = sphi 0, %s114
    %s138 = sphi 0, %s140
    %s141 = sphi 0, %s138
    %s142 = sphi 0, %s141
    %s158 = sphi 0, %s142
  $region4: #{double_convolution_forward.3} parent=0 // loop_header_branch
    %14 = sbr.rel (%p12) target = $region8
  $region5: #{double_convolution_forward.3} parent=0 // loop_body
    %s16 = ssub.s32 %s11, 1
    %s17 = ssub.s32 %s11, 2
    %s24 = sadd.s32 1, %s19
    %p25 = scmp.ge.s32.totalorder %s24, 1
    %s26 = scalar_select %p25, 0, %s24
    %s27 = sadd.s32 1, %s18
    %s28 = scalar_select %p25, %s27, %s18
    %p29 = scmp.ge.s32.totalorder %s28, 2
    %s30 = scalar_select %p29, 0, %s28
    %s31 = ssub.s32 %s18, %s30
    %p32 = scmp.eq.s32.totalorder %s31, 0
    %s34 = sadd.s32 %s33, 1
    %s35 = scalar_select %p32, %s33, %s34
    %p38 = pneg %p32
    %p39 = scmp.eq.s32.totalorder %s11, 1
    %p40 = por %p38, %p39
    %p41 = scmp.ne.s32.totalorder %s33, %s36
    %p42 = scmp.eq.s32.totalorder %s11, 0
    %p43 = por %p41, %p42
    %p44 = scmp.ne.s32.totalorder %s33, %s36
    %p45 = scmp.eq.s32.totalorder %s16, 1
    %p46 = por %p44, %p45
    %p47 = scmp.ne.s32.totalorder %s36, %s37
    %p48 = scmp.eq.s32.totalorder %s16, 0
    %p49 = por %p47, %p48
    %p50 = scmp.ne.s32.totalorder %s36, %s37
    %p51 = scmp.eq.s32.totalorder %s17, 1
    %p52 = por %p50, %p51
    %p54 = scmp.ne.s32.totalorder %s37, %s53
    %p55 = scmp.eq.s32.totalorder %s17, 0
    %p56 = por %p54, %p55
    %s58 = sadd.s32 %s57, 1
    %p61 = scmp.eq.s32.totalorder %s11, 1
    %p62 = scmp.ne.s32.totalorder %s57, %s59
    %p63 = scmp.eq.s32.totalorder %s11, 0
    %p64 = por %p62, %p63
    %p65 = scmp.ne.s32.totalorder %s57, %s59
    %p66 = scmp.eq.s32.totalorder %s16, 1
    %p67 = por %p65, %p66
    %p68 = scmp.ne.s32.totalorder %s59, %s60
    %p69 = scmp.eq.s32.totalorder %s16, 0
    %p70 = por %p68, %p69
    %p71 = scmp.ne.s32.totalorder %s59, %s60
    %p72 = scmp.eq.s32.totalorder %s17, 1
    %p73 = por %p71, %p72
    %p75 = scmp.ne.s32.totalorder %s60, %s74
    %p76 = scmp.eq.s32.totalorder %s17, 0
    %p77 = por %p75, %p76
    %s78 = ssub.s32 %s18, %s30
    %s79 = ssub.s32 %s19, %s26
    %s80 = sor.u32 %s78, %s79
    %p81 = scmp.eq.s32.totalorder %s80, 0
    %s83 = sadd.s32 %s82, 1
    %s84 = scalar_select %p81, %s82, %s83
    %p87 = pneg %p81
    %p88 = scmp.eq.s32.totalorder %s11, 1
    %p89 = por %p87, %p88
    %p90 = scmp.ne.s32.totalorder %s82, %s85
    %p91 = scmp.eq.s32.totalorder %s11, 0
    %p92 = por %p90, %p91
    %p93 = scmp.ne.s32.totalorder %s82, %s85
    %p94 = scmp.eq.s32.totalorder %s16, 1
    %p95 = por %p93, %p94
    %p96 = scmp.ne.s32.totalorder %s85, %s86
    %p97 = scmp.eq.s32.totalorder %s16, 0
    %p98 = por %p96, %p97
    %p99 = scmp.ne.s32.totalorder %s85, %s86
    %p100 = scmp.eq.s32.totalorder %s17, 1
    %p101 = por %p99, %p100
    %p103 = scmp.ne.s32.totalorder %s86, %s102
    %p104 = scmp.eq.s32.totalorder %s17, 0
    %p105 = por %p103, %p104
    %s106 = ssub.s32 %s18, %s30
    %s107 = ssub.s32 %s19, %s26
    %s108 = sor.u32 %s106, %s107
    %p109 = scmp.eq.s32.totalorder %s108, 0
    %s111 = sadd.s32 %s110, 1
    %s112 = scalar_select %p109, %s110, %s111
    %p115 = pneg %p109
    %p116 = scmp.eq.s32.totalorder %s11, 1
    %p117 = por %p115, %p116
    %p118 = scmp.ne.s32.totalorder %s110, %s113
    %p119 = scmp.eq.s32.totalorder %s11, 0
    %p120 = por %p118, %p119
    %p121 = scmp.ne.s32.totalorder %s110, %s113
    %p122 = scmp.eq.s32.totalorder %s16, 1
    %p123 = por %p121, %p122
    %p124 = scmp.ne.s32.totalorder %s113, %s114
    %p125 = scmp.eq.s32.totalorder %s16, 0
    %p126 = por %p124, %p125
    %p127 = scmp.ne.s32.totalorder %s113, %s114
    %p128 = scmp.eq.s32.totalorder %s17, 1
    %p129 = por %p127, %p128
    %p131 = scmp.ne.s32.totalorder %s114, %s130
    %p132 = scmp.eq.s32.totalorder %s17, 0
    %p133 = por %p131, %p132
    %s134 = ssub.s32 %s18, %s30
    %s135 = ssub.s32 %s19, %s26
    %s136 = sor.u32 %s134, %s135
    %p137 = scmp.eq.s32.totalorder %s136, 0
    %s139 = sadd.s32 %s138, 1
    %s140 = scalar_select %p137, %s138, %s139
    %p143 = pneg %p137
    %p144 = scmp.eq.s32.totalorder %s11, 1
    %p145 = por %p143, %p144
    %p146 = scmp.ne.s32.totalorder %s138, %s141
    %p147 = scmp.eq.s32.totalorder %s11, 0
    %p148 = por %p146, %p147
    %p149 = scmp.ne.s32.totalorder %s138, %s141
    %p150 = scmp.eq.s32.totalorder %s16, 1
    %p151 = por %p149, %p150
    %p152 = scmp.ne.s32.totalorder %s141, %s142
    %p153 = scmp.eq.s32.totalorder %s16, 0
    %p154 = por %p152, %p153
    %p155 = scmp.ne.s32.totalorder %s141, %s142
    %p156 = scmp.eq.s32.totalorder %s17, 1
    %p157 = por %p155, %p156
    %p159 = scmp.ne.s32.totalorder %s142, %s158
    %p160 = scmp.eq.s32.totalorder %s17, 0
    %p161 = por %p159, %p160
    %p162 = scmp.le.s32.totalorder 1, %s11
    %p163 = scmp.lt.s32.totalorder %s11, 3
    %p164 = pnand %p162, %p163
    %p165 = pneg %p164
    // Predicated region
    $region9: #{double_convolution_forward.3} parent=5 // pred_check
      _
    $region10: #{double_convolution_forward.3} parent=5 // pred_check_branch
      %167 = sbr.rel (%p164) target = $region12
    $region11: #{double_convolution_forward.3} parent=5 // pred_region
      %s168 = ssub.s32 %s11, 1
      // Predicated region
      $region13: #{double_convolution_forward.3} parent=11 // pred_check
        %p169 = pneg %p70
      $region14: #{double_convolution_forward.3} parent=11 // pred_check_branch
        %171 = sbr.rel (%p169) target = $region16
      $region15: #{double_convolution_forward.3} parent=11 // pred_region
        _
      $region16: #{double_convolution_forward.3} parent=11 // pred_fallthru
        _
    $region12: #{double_convolution_forward.3} parent=5 // pred_fallthru
      _
    %p172 = scmp.lt.s32.totalorder %s11, 2
    // Predicated region
    $region17: #{double_convolution_forward.3} parent=5 // pred_check
      %p173 = pneg %p172
    $region18: #{double_convolution_forward.3} parent=5 // pred_check_branch
      %175 = sbr.rel (%p173) target = $region20
    $region19: #{double_convolution_forward.3} parent=5 // pred_region
      // Predicated region
      $region21: #{double_convolution_forward.3} parent=19 // pred_check
        %p176 = pneg %p43
      $region22: #{double_convolution_forward.3} parent=19 // pred_check_branch
        %178 = sbr.rel (%p176) target = $region24
      $region23: #{double_convolution_forward.3} parent=19 // pred_region
        %p179 = scmp.lt.s32.totalorder %s18, 1
        %s180 = scalar_select %p179, %s18, 1
        %s181 = smul.addr %s180, 32
        %s182 = smul.addr %s181, 4
        %s183 = scalar_lea.vmem %s0, %s182
      $region24: #{double_convolution_forward.3} parent=19 // pred_fallthru
        _
    $region20: #{double_convolution_forward.3} parent=5 // pred_fallthru
      _
    %p184 = scmp.le.s32.totalorder 1, %s11
    %p185 = scmp.lt.s32.totalorder %s11, 3
    %p186 = pnand %p184, %p185
    %p187 = pneg %p186
    // Predicated region
    $region25: #{double_convolution_forward.3} parent=5 // pred_check
      _
    $region26: #{double_convolution_forward.3} parent=5 // pred_check_branch
      %189 = sbr.rel (%p186) target = $region28
    $region27: #{double_convolution_forward.3} parent=5 // pred_region
      %s190 = ssub.s32 %s11, 1
      %p191 = scmp.lt.s32.totalorder %s20, 1
      %s192 = scalar_select %p191, %s20, 1
      %s193 = smul.addr %s192, 32
      %s194 = smul.addr %s193, 4
      %s195 = scalar_lea.vmem %s0, %s194
      %p196 = pneg %p49
      %p197 = pneg %p46
      %p198 = pneg %p70
      %p199 = pneg %p67
      %p200 = pneg %p98
      %p201 = pneg %p95
      %s202 = smul.u32 16, %s21
      %p203 = scmp.lt.s32.totalorder %s20, 1
      %s204 = scalar_select %p203, %s20, 1
      %p205 = scmp.lt.s32.totalorder %s202, 15
      %s206 = scalar_select %p205, %s202, 15
      %s207 = smul.addr %s206, 2
      %s208 = smul.addr %s204, 32
      %s209 = sadd.s32 %s207, %s208
      %s210 = smul.addr %s209, 4
      %s211 = scalar_lea.vmem %s2, %s210
      %p212 = pneg %p126
      %p213 = pneg %p123
      %p214 = scmp.lt.s32.totalorder %s20, 1
      %s215 = scalar_select %p214, %s20, 1
      %p216 = scmp.lt.s32.totalorder %s21, 0
      %s217 = scalar_select %p216, %s21, 0
      %s218 = sadd.s32 %s217, %s215
      %s219 = scalar_lea.vmem %s3, %s218
      %p220 = pneg %p154
      %p221 = pneg %p151
      %p222 = scmp.lt.s32.totalorder %s20, 1
      %s223 = scalar_select %p222, %s20, 1
      %p224 = scmp.lt.s32.totalorder %s21, 0
      %s225 = scalar_select %p224, %s21, 0
      %s226 = sadd.s32 %s225, %s223
      %s227 = scalar_lea.vmem %s4, %s226
      %p228 = scmp.lt.s32.totalorder %s20, 1
      %s229 = scalar_select %p228, %s20, 1
      %s230 = smul.addr %s229, 32
      %s231 = smul.addr %s230, 4
      %s232 = scalar_lea.vmem %s0, %s231
      %s233 = smul.u32 16, %s21
      %p234 = scmp.lt.s32.totalorder %s20, 1
      %s235 = scalar_select %p234, %s20, 1
      %p236 = scmp.lt.s32.totalorder %s233, 15
      %s237 = scalar_select %p236, %s233, 15
      %s238 = smul.addr %s237, 2
      %s239 = smul.addr %s235, 32
      %s240 = sadd.s32 %s238, %s239
      %s241 = smul.addr %s240, 4
      %s242 = scalar_lea.vmem %s2, %s241
      %s243 = smul.u32 16, %s21
      %p244 = scmp.lt.s32.totalorder %s20, 1
      %s245 = scalar_select %p244, %s20, 1
      %p246 = scmp.lt.s32.totalorder %s21, 0
      %s247 = scalar_select %p246, %s21, 0
      %s248 = sadd.s32 %s247, %s245
      %s249 = scalar_lea.vmem %s3, %s248
      %p250 = scmp.lt.s32.totalorder %s20, 1
      %s251 = scalar_select %p250, %s20, 1
      %p252 = scmp.lt.s32.totalorder %s21, 0
      %s253 = scalar_select %p252, %s21, 0
      %s254 = sadd.s32 %s253, %s251
      %s255 = scalar_lea.vmem %s4, %s254
      %p257 = scmp.eq.s32.totalorder %s21, 0
      // Predicated region
      $region29: #{double_convolution_forward.3} parent=27 // pred_check
        %p258 = pneg %p257
      $region30: #{double_convolution_forward.3} parent=27 // pred_check_branch
        %260 = sbr.rel (%p258) target = $region32
      $region31: #{double_convolution_forward.3} parent=27 // pred_region
        %261 = vst [vmem:[#allocation2] sm:$0xf] 0
        %262 = vst [vmem:[#allocation2 + $0x4] sm:$0xf] 0
        %263 = vst [vmem:[#allocation2 + $0x8] sm:$0xf] 0
        %264 = vst [vmem:[#allocation2 + $0xc] sm:$0xf] 0
        %265 = vst [vmem:[#allocation2 + $0x10] sm:$0xf] 0
        %266 = vst [vmem:[#allocation2 + $0x14] sm:$0xf] 0
        %267 = vst [vmem:[#allocation2 + $0x18] sm:$0xf] 0
        %268 = vst [vmem:[#allocation2 + $0x1c] sm:$0xf] 0
        %269 = vst [vmem:[#allocation2 + $0x20] sm:$0xf] 0
        %270 = vst [vmem:[#allocation2 + $0x24] sm:$0xf] 0
        %271 = vst [vmem:[#allocation2 + $0x28] sm:$0xf] 0
        %272 = vst [vmem:[#allocation2 + $0x2c] sm:$0xf] 0
        %273 = vst [vmem:[#allocation2 + $0x30] sm:$0xf] 0
        %274 = vst [vmem:[#allocation2 + $0x34] sm:$0xf] 0
        %275 = vst [vmem:[#allocation2 + $0x38] sm:$0xf] 0
        %276 = vst [vmem:[#allocation2 + $0x3c] sm:$0xf] 0
        %277 = vst [vmem:[#allocation2 + $0x40] sm:$0xf] 0
        %278 = vst [vmem:[#allocation2 + $0x44] sm:$0xf] 0
        %279 = vst [vmem:[#allocation2 + $0x48] sm:$0xf] 0
        %280 = vst [vmem:[#allocation2 + $0x4c] sm:$0xf] 0
        %281 = vst [vmem:[#allocation2 + $0x50] sm:$0xf] 0
        %282 = vst [vmem:[#allocation2 + $0x54] sm:$0xf] 0
        %283 = vst [vmem:[#allocation2 + $0x58] sm:$0xf] 0
        %284 = vst [vmem:[#allocation2 + $0x5c] sm:$0xf] 0
        %285 = vst [vmem:[#allocation2 + $0x60] sm:$0xf] 0
        %286 = vst [vmem:[#allocation2 + $0x64] sm:$0xf] 0
        %287 = vst [vmem:[#allocation2 + $0x68] sm:$0xf] 0
        %288 = vst [vmem:[#allocation2 + $0x6c] sm:$0xf] 0
        %289 = vst [vmem:[#allocation2 + $0x70] sm:$0xf] 0
        %290 = vst [vmem:[#allocation2 + $0x74] sm:$0xf] 0
        %291 = vst [vmem:[#allocation2 + $0x78] sm:$0xf] 0
        %292 = vst [vmem:[#allocation2 + $0x7c] sm:$0xf] 0
        %293 = vst [vmem:[#allocation2 + $0x80] sm:$0xf] 0
        %294 = vst [vmem:[#allocation2 + $0x84] sm:$0xf] 0
        %295 = vst [vmem:[#allocation2 + $0x88] sm:$0xf] 0
        %296 = vst [vmem:[#allocation2 + $0x8c] sm:$0xf] 0
        %297 = vst [vmem:[#allocation2 + $0x90] sm:$0xf] 0
        %298 = vst [vmem:[#allocation2 + $0x94] sm:$0xf] 0
        %299 = vst [vmem:[#allocation2 + $0x98] sm:$0xf] 0
        %300 = vst [vmem:[#allocation2 + $0x9c] sm:$0xf] 0
        %301 = vst [vmem:[#allocation2 + $0xa0] sm:$0xf] 0
        %302 = vst [vmem:[#allocation2 + $0xa4] sm:$0xf] 0
        %303 = vst [vmem:[#allocation2 + $0xa8] sm:$0xf] 0
        %304 = vst [vmem:[#allocation2 + $0xac] sm:$0xf] 0
        %305 = vst [vmem:[#allocation2 + $0xb0] sm:$0xf] 0
        %306 = vst [vmem:[#allocation2 + $0xb4] sm:$0xf] 0
        %307 = vst [vmem:[#allocation2 + $0xb8] sm:$0xf] 0
        %308 = vst [vmem:[#allocation2 + $0xbc] sm:$0xf] 0
        %309 = vst [vmem:[#allocation2 + $0xc0] sm:$0xf] 0
        %310 = vst [vmem:[#allocation2 + $0xc4] sm:$0xf] 0
        %311 = vst [vmem:[#allocation2 + $0xc8] sm:$0xf] 0
        %312 = vst [vmem:[#allocation2 + $0xcc] sm:$0xf] 0
        %313 = vst [vmem:[#allocation2 + $0xd0] sm:$0xf] 0
        %314 = vst [vmem:[#allocation2 + $0xd4] sm:$0xf] 0
        %315 = vst [vmem:[#allocation2 + $0xd8] sm:$0xf] 0
        %316 = vst [vmem:[#allocation2 + $0xdc] sm:$0xf] 0
        %317 = vst [vmem:[#allocation2 + $0xe0] sm:$0xf] 0
        %318 = vst [vmem:[#allocation2 + $0xe4] sm:$0xf] 0
        %319 = vst [vmem:[#allocation2 + $0xe8] sm:$0xf] 0
        %320 = vst [vmem:[#allocation2 + $0xec] sm:$0xf] 0
        %321 = vst [vmem:[#allocation2 + $0xf0] sm:$0xf] 0
        %322 = vst [vmem:[#allocation2 + $0xf4] sm:$0xf] 0
        %323 = vst [vmem:[#allocation2 + $0xf8] sm:$0xf] 0
        %324 = vst [vmem:[#allocation2 + $0xfc] sm:$0xf] 0
        %325 = vst [vmem:[#allocation2 + $0x100] sm:$0xf] 0
        %326 = vst [vmem:[#allocation2 + $0x104] sm:$0xf] 0
        %327 = vst [vmem:[#allocation2 + $0x108] sm:$0xf] 0
        %328 = vst [vmem:[#allocation2 + $0x10c] sm:$0xf] 0
        %329 = vst [vmem:[#allocation2 + $0x110] sm:$0xf] 0
        %330 = vst [vmem:[#allocation2 + $0x114] sm:$0xf] 0
        %331 = vst [vmem:[#allocation2 + $0x118] sm:$0xf] 0
        %332 = vst [vmem:[#allocation2 + $0x11c] sm:$0xf] 0
        %v333 = vld [vmem:[%s232] sm:$0xf]
        %v334 = vld [vmem:[%s232 + $0x4] sm:$0xf]
        %v335 = vld [vmem:[%s232 + $0x8] sm:$0xf]
        %v336 = vld [vmem:[%s232 + $0xc] sm:$0xf]
        %v337 = vld [vmem:[%s232 + $0x10] sm:$0xf]
        %v338 = vld [vmem:[%s232 + $0x14] sm:$0xf]
        %v339 = vld [vmem:[%s232 + $0x18] sm:$0xf]
        %v340 = vld [vmem:[%s232 + $0x1c] sm:$0xf]
        %v341 = vld [vmem:[%s232 + $0x20] sm:$0xf]
        %v342 = vld [vmem:[%s232 + $0x24] sm:$0xf]
        %v343 = vld [vmem:[%s232 + $0x28] sm:$0xf]
        %v344 = vld [vmem:[%s232 + $0x2c] sm:$0xf]
        %v345 = vld [vmem:[%s232 + $0x30] sm:$0xf]
        %v346 = vld [vmem:[%s232 + $0x34] sm:$0xf]
        %v347 = vld [vmem:[%s232 + $0x38] sm:$0xf]
        %v348 = vld [vmem:[%s232 + $0x3c] sm:$0xf]
        %v349 = vld [vmem:[%s232 + $0x40] sm:$0xf]
        %v350 = vld [vmem:[%s232 + $0x44] sm:$0xf]
        %v351 = vld [vmem:[%s232 + $0x48] sm:$0xf]
        %v352 = vld [vmem:[%s232 + $0x4c] sm:$0xf]
        %v353 = vld [vmem:[%s232 + $0x50] sm:$0xf]
        %v354 = vld [vmem:[%s232 + $0x54] sm:$0xf]
        %v355 = vld [vmem:[%s232 + $0x58] sm:$0xf]
        %v356 = vld [vmem:[%s232 + $0x5c] sm:$0xf]
        %v357 = vld [vmem:[%s232 + $0x60] sm:$0xf]
        %v358 = vld [vmem:[%s232 + $0x64] sm:$0xf]
        %v359 = vld [vmem:[%s232 + $0x68] sm:$0xf]
        %v360 = vld [vmem:[%s232 + $0x6c] sm:$0xf]
        %v361 = vld [vmem:[%s232 + $0x70] sm:$0xf]
        %v362 = vld [vmem:[%s232 + $0x74] sm:$0xf]
        %v363 = vld [vmem:[%s232 + $0x78] sm:$0xf]
        %v364 = vld [vmem:[%s232 + $0x7c] sm:$0xf]
        %s365 = scalar_lea.vmem [#allocation2], 16
        %366 = vst [vmem:[%s365 + $0x4] sm:$0xf] %v333
        %367 = vst [vmem:[%s365 + $0x8] sm:$0xf] %v334
        %368 = vst [vmem:[%s365 + $0x14] sm:$0xf] %v335
        %369 = vst [vmem:[%s365 + $0x18] sm:$0xf] %v336
        %370 = vst [vmem:[%s365 + $0x24] sm:$0xf] %v337
        %371 = vst [vmem:[%s365 + $0x28] sm:$0xf] %v338
        %372 = vst [vmem:[%s365 + $0x34] sm:$0xf] %v339
        %373 = vst [vmem:[%s365 + $0x38] sm:$0xf] %v340
        %374 = vst [vmem:[%s365 + $0x44] sm:$0xf] %v341
        %375 = vst [vmem:[%s365 + $0x48] sm:$0xf] %v342
        %376 = vst [vmem:[%s365 + $0x54] sm:$0xf] %v343
        %377 = vst [vmem:[%s365 + $0x58] sm:$0xf] %v344
        %378 = vst [vmem:[%s365 + $0x64] sm:$0xf] %v345
        %379 = vst [vmem:[%s365 + $0x68] sm:$0xf] %v346
        %380 = vst [vmem:[%s365 + $0x74] sm:$0xf] %v347
        %381 = vst [vmem:[%s365 + $0x78] sm:$0xf] %v348
        %382 = vst [vmem:[%s365 + $0x84] sm:$0xf] %v349
        %383 = vst [vmem:[%s365 + $0x88] sm:$0xf] %v350
        %384 = vst [vmem:[%s365 + $0x94] sm:$0xf] %v351
        %385 = vst [vmem:[%s365 + $0x98] sm:$0xf] %v352
        %386 = vst [vmem:[%s365 + $0xa4] sm:$0xf] %v353
        %387 = vst [vmem:[%s365 + $0xa8] sm:$0xf] %v354
        %388 = vst [vmem:[%s365 + $0xb4] sm:$0xf] %v355
        %389 = vst [vmem:[%s365 + $0xb8] sm:$0xf] %v356
        %390 = vst [vmem:[%s365 + $0xc4] sm:$0xf] %v357
        %391 = vst [vmem:[%s365 + $0xc8] sm:$0xf] %v358
        %392 = vst [vmem:[%s365 + $0xd4] sm:$0xf] %v359
        %393 = vst [vmem:[%s365 + $0xd8] sm:$0xf] %v360
        %394 = vst [vmem:[%s365 + $0xe4] sm:$0xf] %v361
        %395 = vst [vmem:[%s365 + $0xe8] sm:$0xf] %v362
        %396 = vst [vmem:[%s365 + $0xf4] sm:$0xf] %v363
        %397 = vst [vmem:[%s365 + $0xf8] sm:$0xf] %v364
      $region32: #{double_convolution_forward.3} parent=27 // pred_fallthru
        _
      %s398 = smul.u32 %s21, 16
      %s399 = smul.u32 %s398, 4
      %s400 = smul.addr %s399, 4
      %s401 = scalar_lea.vmem [#allocation2], %s400
      %v402 = vld [vmem:[%s401] sm:$0x8]
      %v403 = vld [vmem:[%s401 + $0x4] sm:$0xf]
      %v404 = vld [vmem:[%s401 + $0x8] sm:$0xf]
      %v405 = vld [vmem:[%s401 + $0x10] sm:$0x8]
      %v406 = vld [vmem:[%s401 + $0x14] sm:$0xf]
      %v407 = vld [vmem:[%s401 + $0x18] sm:$0xf]
      %v408 = vld [vmem:[%s401 + $0x20] sm:$0x8]
      %v409 = vld [vmem:[%s401 + $0x24] sm:$0xf]
      %v410 = vld [vmem:[%s401 + $0x28] sm:$0xf]
      %v411 = vld [vmem:[%s401 + $0x30] sm:$0x8]
      %v412 = vld [vmem:[%s401 + $0x34] sm:$0xf]
      %v413 = vld [vmem:[%s401 + $0x38] sm:$0xf]
      %v414 = vld [vmem:[%s401 + $0x40] sm:$0x8]
      %v415 = vld [vmem:[%s401 + $0x44] sm:$0xf]
      %v416 = vld [vmem:[%s401 + $0x48] sm:$0xf]
      %v417 = vld [vmem:[%s401 + $0x50] sm:$0x8]
      %v418 = vld [vmem:[%s401 + $0x54] sm:$0xf]
      %v419 = vld [vmem:[%s401 + $0x58] sm:$0xf]
      %v420 = vld [vmem:[%s401 + $0x60] sm:$0x8]
      %v421 = vld [vmem:[%s401 + $0x64] sm:$0xf]
      %v422 = vld [vmem:[%s401 + $0x68] sm:$0xf]
      %v423 = vld [vmem:[%s401 + $0x70] sm:$0x8]
      %v424 = vld [vmem:[%s401 + $0x74] sm:$0xf]
      %v425 = vld [vmem:[%s401 + $0x78] sm:$0xf]
      %v426 = vld [vmem:[%s401 + $0x80] sm:$0x8]
      %v427 = vld [vmem:[%s401 + $0x84] sm:$0xf]
      %v428 = vld [vmem:[%s401 + $0x88] sm:$0xf]
      %v429 = vld [vmem:[%s401 + $0x90] sm:$0x8]
      %v430 = vld [vmem:[%s401 + $0x94] sm:$0xf]
      %v431 = vld [vmem:[%s401 + $0x98] sm:$0xf]
      %v432 = vld [vmem:[%s401 + $0xa0] sm:$0x8]
      %v433 = vld [vmem:[%s401 + $0xa4] sm:$0xf]
      %v434 = vld [vmem:[%s401 + $0xa8] sm:$0xf]
      %v435 = vld [vmem:[%s401 + $0xb0] sm:$0x8]
      %v436 = vld [vmem:[%s401 + $0xb4] sm:$0xf]
      %v437 = vld [vmem:[%s401 + $0xb8] sm:$0xf]
      %v438 = vld [vmem:[%s401 + $0xc0] sm:$0x8]
      %v439 = vld [vmem:[%s401 + $0xc4] sm:$0xf]
      %v440 = vld [vmem:[%s401 + $0xc8] sm:$0xf]
      %v441 = vld [vmem:[%s401 + $0xd0] sm:$0x8]
      %v442 = vld [vmem:[%s401 + $0xd4] sm:$0xf]
      %v443 = vld [vmem:[%s401 + $0xd8] sm:$0xf]
      %v444 = vld [vmem:[%s401 + $0xe0] sm:$0x8]
      %v445 = vld [vmem:[%s401 + $0xe4] sm:$0xf]
      %v446 = vld [vmem:[%s401 + $0xe8] sm:$0xf]
      %v447 = vld [vmem:[%s401 + $0xf0] sm:$0x8]
      %v448 = vld [vmem:[%s401 + $0xf4] sm:$0xf]
      %v449 = vld [vmem:[%s401 + $0xf8] sm:$0xf]
      %v450 = vld [vmem:[%s401 + $0xc] sm:$0x1]
      %v451 = vld [vmem:[%s401 + $0x1c] sm:$0x1]
      %v452 = vld [vmem:[%s401 + $0x2c] sm:$0x1]
      %v453 = vld [vmem:[%s401 + $0x3c] sm:$0x1]
      %v454 = vld [vmem:[%s401 + $0x4c] sm:$0x1]
      %v455 = vld [vmem:[%s401 + $0x5c] sm:$0x1]
      %v456 = vld [vmem:[%s401 + $0x6c] sm:$0x1]
      %v457 = vld [vmem:[%s401 + $0x7c] sm:$0x1]
      %v458 = vld [vmem:[%s401 + $0x8c] sm:$0x1]
      %v459 = vld [vmem:[%s401 + $0x9c] sm:$0x1]
      %v460 = vld [vmem:[%s401 + $0xac] sm:$0x1]
      %v461 = vld [vmem:[%s401 + $0xbc] sm:$0x1]
      %v462 = vld [vmem:[%s401 + $0xcc] sm:$0x1]
      %v463 = vld [vmem:[%s401 + $0xdc] sm:$0x1]
      %v464 = vld [vmem:[%s401 + $0xec] sm:$0x1]
      %v465 = vld [vmem:[%s401 + $0xfc] sm:$0x1]
      %v514 = vunpack.c.l.b16 %v402
      %v515 = vunpack.c.l.b16 %v403
      %v516 = vunpack.c.l.b16 %v404
      %v517 = vunpack.c.l.b16 %v405
      %v518 = vunpack.c.l.b16 %v406
      %v519 = vunpack.c.l.b16 %v407
      %v520 = vunpack.c.l.b16 %v408
      %v521 = vunpack.c.l.b16 %v409
      %v522 = vunpack.c.l.b16 %v410
      %v523 = vunpack.c.l.b16 %v411
      %v524 = vunpack.c.l.b16 %v412
      %v525 = vunpack.c.l.b16 %v413
      %v526 = vunpack.c.l.b16 %v414
      %v527 = vunpack.c.l.b16 %v415
      %v528 = vunpack.c.l.b16 %v416
      %v529 = vunpack.c.l.b16 %v417
      %v530 = vunpack.c.l.b16 %v418
      %v531 = vunpack.c.l.b16 %v419
      %v532 = vunpack.c.l.b16 %v420
      %v533 = vunpack.c.l.b16 %v421
      %v534 = vunpack.c.l.b16 %v422
      %v535 = vunpack.c.l.b16 %v423
      %v536 = vunpack.c.l.b16 %v424
      %v537 = vunpack.c.l.b16 %v425
      %v538 = vunpack.c.l.b16 %v426
      %v539 = vunpack.c.l.b16 %v427
      %v540 = vunpack.c.l.b16 %v428
      %v541 = vunpack.c.l.b16 %v429
      %v542 = vunpack.c.l.b16 %v430
      %v543 = vunpack.c.l.b16 %v431
      %v544 = vunpack.c.l.b16 %v432
      %v545 = vunpack.c.l.b16 %v433
      %v546 = vunpack.c.l.b16 %v434
      %v547 = vunpack.c.l.b16 %v435
      %v548 = vunpack.c.l.b16 %v436
      %v549 = vunpack.c.l.b16 %v437
      %v550 = vunpack.c.l.b16 %v438
      %v551 = vunpack.c.l.b16 %v439
      %v552 = vunpack.c.l.b16 %v440
      %v553 = vunpack.c.l.b16 %v441
      %v554 = vunpack.c.l.b16 %v442
      %v555 = vunpack.c.l.b16 %v443
      %v556 = vunpack.c.l.b16 %v444
      %v557 = vunpack.c.l.b16 %v445
      %v558 = vunpack.c.l.b16 %v446
      %v559 = vunpack.c.l.b16 %v447
      %v560 = vunpack.c.l.b16 %v448
      %v561 = vunpack.c.l.b16 %v449
      %v562 = vpack.c.b16 %v515, %v514
      %v563 = vpack.c.b16 %v516, %v516
      %v564 = vpack.c.b16 %v518, %v517
      %v565 = vpack.c.b16 %v519, %v519
      %v566 = vpack.c.b16 %v521, %v520
      %v567 = vpack.c.b16 %v522, %v522
      %v568 = vpack.c.b16 %v524, %v523
      %v569 = vpack.c.b16 %v525, %v525
      %v570 = vpack.c.b16 %v527, %v526
      %v571 = vpack.c.b16 %v528, %v528
      %v572 = vpack.c.b16 %v530, %v529
      %v573 = vpack.c.b16 %v531, %v531
      %v574 = vpack.c.b16 %v533, %v532
      %v575 = vpack.c.b16 %v534, %v534
      %v576 = vpack.c.b16 %v536, %v535
      %v577 = vpack.c.b16 %v537, %v537
      %v578 = vpack.c.b16 %v539, %v538
      %v579 = vpack.c.b16 %v540, %v540
      %v580 = vpack.c.b16 %v542, %v541
      %v581 = vpack.c.b16 %v543, %v543
      %v582 = vpack.c.b16 %v545, %v544
      %v583 = vpack.c.b16 %v546, %v546
      %v584 = vpack.c.b16 %v548, %v547
      %v585 = vpack.c.b16 %v549, %v549
      %v586 = vpack.c.b16 %v551, %v550
      %v587 = vpack.c.b16 %v552, %v552
      %v588 = vpack.c.b16 %v554, %v553
      %v589 = vpack.c.b16 %v555, %v555
      %v590 = vpack.c.b16 %v557, %v556
      %v591 = vpack.c.b16 %v558, %v558
      %v592 = vpack.c.b16 %v560, %v559
      %v593 = vpack.c.b16 %v561, %v561
      %v594 = vpack.c.b16 %v516, %v515
      %v595 = vpack.c.b16 %v519, %v518
      %v596 = vpack.c.b16 %v522, %v521
      %v597 = vpack.c.b16 %v525, %v524
      %v598 = vpack.c.b16 %v528, %v527
      %v599 = vpack.c.b16 %v531, %v530
      %v600 = vpack.c.b16 %v534, %v533
      %v601 = vpack.c.b16 %v537, %v536
      %v602 = vpack.c.b16 %v540, %v539
      %v603 = vpack.c.b16 %v543, %v542
      %v604 = vpack.c.b16 %v546, %v545
      %v605 = vpack.c.b16 %v549, %v548
      %v606 = vpack.c.b16 %v552, %v551
      %v607 = vpack.c.b16 %v555, %v554
      %v608 = vpack.c.b16 %v558, %v557
      %v609 = vpack.c.b16 %v561, %v560
      %v611 = vshrl.u32 %v594, 16
      %v613 = vrot.slane %v611, 4
      %v614 = vshll.u32 %v594, 16
      %v616 = vrot.slane %v614, 5
      %v617 = vor.u32 %v613, %v616
      %v619 = vshrl.u32 %v595, 16
      %v621 = vrot.slane %v619, 4
      %v622 = vshll.u32 %v595, 16
      %v624 = vrot.slane %v622, 5
      %v625 = vor.u32 %v621, %v624
      %v627 = vshrl.u32 %v596, 16
      %v629 = vrot.slane %v627, 4
      %v630 = vshll.u32 %v596, 16
      %v632 = vrot.slane %v630, 5
      %v633 = vor.u32 %v629, %v632
      %v635 = vshrl.u32 %v597, 16
      %v637 = vrot.slane %v635, 4
      %v638 = vshll.u32 %v597, 16
      %v640 = vrot.slane %v638, 5
      %v641 = vor.u32 %v637, %v640
      %v643 = vshrl.u32 %v598, 16
      %v645 = vrot.slane %v643, 4
      %v646 = vshll.u32 %v598, 16
      %v648 = vrot.slane %v646, 5
      %v649 = vor.u32 %v645, %v648
      %v651 = vshrl.u32 %v599, 16
      %v653 = vrot.slane %v651, 4
      %v654 = vshll.u32 %v599, 16
      %v656 = vrot.slane %v654, 5
      %v657 = vor.u32 %v653, %v656
      %v659 = vshrl.u32 %v600, 16
      %v661 = vrot.slane %v659, 4
      %v662 = vshll.u32 %v600, 16
      %v664 = vrot.slane %v662, 5
      %v665 = vor.u32 %v661, %v664
      %v667 = vshrl.u32 %v601, 16
      %v669 = vrot.slane %v667, 4
      %v670 = vshll.u32 %v601, 16
      %v672 = vrot.slane %v670, 5
      %v673 = vor.u32 %v669, %v672
      %v675 = vshrl.u32 %v602, 16
      %v677 = vrot.slane %v675, 4
      %v678 = vshll.u32 %v602, 16
      %v680 = vrot.slane %v678, 5
      %v681 = vor.u32 %v677, %v680
      %v683 = vshrl.u32 %v603, 16
      %v685 = vrot.slane %v683, 4
      %v686 = vshll.u32 %v603, 16
      %v688 = vrot.slane %v686, 5
      %v689 = vor.u32 %v685, %v688
      %v691 = vshrl.u32 %v604, 16
      %v693 = vrot.slane %v691, 4
      %v694 = vshll.u32 %v604, 16
      %v696 = vrot.slane %v694, 5
      %v697 = vor.u32 %v693, %v696
      %v699 = vshrl.u32 %v605, 16
      %v701 = vrot.slane %v699, 4
      %v702 = vshll.u32 %v605, 16
      %v704 = vrot.slane %v702, 5
      %v705 = vor.u32 %v701, %v704
      %v707 = vshrl.u32 %v606, 16
      %v709 = vrot.slane %v707, 4
      %v710 = vshll.u32 %v606, 16
      %v712 = vrot.slane %v710, 5
      %v713 = vor.u32 %v709, %v712
      %v715 = vshrl.u32 %v607, 16
      %v717 = vrot.slane %v715, 4
      %v718 = vshll.u32 %v607, 16
      %v720 = vrot.slane %v718, 5
      %v721 = vor.u32 %v717, %v720
      %v723 = vshrl.u32 %v608, 16
      %v725 = vrot.slane %v723, 4
      %v726 = vshll.u32 %v608, 16
      %v728 = vrot.slane %v726, 5
      %v729 = vor.u32 %v725, %v728
      %v731 = vshrl.u32 %v609, 16
      %v733 = vrot.slane %v731, 4
      %v734 = vshll.u32 %v609, 16
      %v736 = vrot.slane %v734, 5
      %v737 = vor.u32 %v733, %v736
      %v754 = vunpack.c.l.b16 %v450
      %v755 = vunpack.c.l.b16 %v451
      %v756 = vunpack.c.l.b16 %v452
      %v757 = vunpack.c.l.b16 %v453
      %v758 = vunpack.c.l.b16 %v454
      %v759 = vunpack.c.l.b16 %v455
      %v760 = vunpack.c.l.b16 %v456
      %v761 = vunpack.c.l.b16 %v457
      %v762 = vunpack.c.l.b16 %v458
      %v763 = vunpack.c.l.b16 %v459
      %v764 = vunpack.c.l.b16 %v460
      %v765 = vunpack.c.l.b16 %v461
      %v766 = vunpack.c.l.b16 %v462
      %v767 = vunpack.c.l.b16 %v463
      %v768 = vunpack.c.l.b16 %v464
      %v769 = vunpack.c.l.b16 %v465
      %v770 = vpack.c.b16 %v754, %v754
      %v771 = vpack.c.b16 %v755, %v755
      %v772 = vpack.c.b16 %v756, %v756
      %v773 = vpack.c.b16 %v757, %v757
      %v774 = vpack.c.b16 %v758, %v758
      %v775 = vpack.c.b16 %v759, %v759
      %v776 = vpack.c.b16 %v760, %v760
      %v777 = vpack.c.b16 %v761, %v761
      %v778 = vpack.c.b16 %v762, %v762
      %v779 = vpack.c.b16 %v763, %v763
      %v780 = vpack.c.b16 %v764, %v764
      %v781 = vpack.c.b16 %v765, %v765
      %v782 = vpack.c.b16 %v766, %v766
      %v783 = vpack.c.b16 %v767, %v767
      %v784 = vpack.c.b16 %v768, %v768
      %v785 = vpack.c.b16 %v769, %v769
      %vm786 = vcmask 1042432
      %v787 = vrot.slane %v594, 5
      %v788 = vrot.slane %v770, 5
      %v789 = vsel %vm786, %v787, %v788
      %v790 = vrot.slane %v595, 5
      %v791 = vrot.slane %v771, 5
      %v792 = vsel %vm786, %v790, %v791
      %v793 = vrot.slane %v596, 5
      %v794 = vrot.slane %v772, 5
      %v795 = vsel %vm786, %v793, %v794
      %v796 = vrot.slane %v597, 5
      %v797 = vrot.slane %v773, 5
      %v798 = vsel %vm786, %v796, %v797
      %v799 = vrot.slane %v598, 5
      %v800 = vrot.slane %v774, 5
      %v801 = vsel %vm786, %v799, %v800
      %v802 = vrot.slane %v599, 5
      %v803 = vrot.slane %v775, 5
      %v804 = vsel %vm786, %v802, %v803
      %v805 = vrot.slane %v600, 5
      %v806 = vrot.slane %v776, 5
      %v807 = vsel %vm786, %v805, %v806
      %v808 = vrot.slane %v601, 5
      %v809 = vrot.slane %v777, 5
      %v810 = vsel %vm786, %v808, %v809
      %v811 = vrot.slane %v602, 5
      %v812 = vrot.slane %v778, 5
      %v813 = vsel %vm786, %v811, %v812
      %v814 = vrot.slane %v603, 5
      %v815 = vrot.slane %v779, 5
      %v816 = vsel %vm786, %v814, %v815
      %v817 = vrot.slane %v604, 5
      %v818 = vrot.slane %v780, 5
      %v819 = vsel %vm786, %v817, %v818
      %v820 = vrot.slane %v605, 5
      %v821 = vrot.slane %v781, 5
      %v822 = vsel %vm786, %v820, %v821
      %v823 = vrot.slane %v606, 5
      %v824 = vrot.slane %v782, 5
      %v825 = vsel %vm786, %v823, %v824
      %v826 = vrot.slane %v607, 5
      %v827 = vrot.slane %v783, 5
      %v828 = vsel %vm786, %v826, %v827
      %v829 = vrot.slane %v608, 5
      %v830 = vrot.slane %v784, 5
      %v831 = vsel %vm786, %v829, %v830
      %v832 = vrot.slane %v609, 5
      %v833 = vrot.slane %v785, 5
      %v834 = vsel %vm786, %v832, %v833
      %vm835 = vsmask.f32 4352
      %v837 = vshrl.u32 %v562, 16
      %v839 = vrot.slane %v837, 3
      %v840 = vshll.u32 %v562, 16
      %v842 = vrot.slane %v840, 4
      %v843 = vor.u32 %v839, %v842
      %v845 = vshrl.u32 %v563, 16
      %v847 = vrot.slane %v845, 3
      %v848 = vshll.u32 %v563, 16
      %v850 = vrot.slane %v848, 4
      %v851 = vor.u32 %v847, %v850
      %v852 = vsel %vm835, %v843, %v851
      %v854 = vshrl.u32 %v617, 16
      %v856 = vrot.slane %v854, 3
      %v857 = vshll.u32 %v617, 16
      %v859 = vrot.slane %v857, 4
      %v860 = vor.u32 %v856, %v859
      %v861 = vsel %vm835, %v860, %v860
      %v863 = vshrl.u32 %v787, 16
      %v865 = vrot.slane %v863, 3
      %v866 = vshll.u32 %v787, 16
      %v868 = vrot.slane %v866, 4
      %v869 = vor.u32 %v865, %v868
      %v871 = vshrl.u32 %v789, 16
      %v873 = vrot.slane %v871, 3
      %v874 = vshll.u32 %v789, 16
      %v876 = vrot.slane %v874, 4
      %v877 = vor.u32 %v873, %v876
      %v878 = vsel %vm835, %v869, %v877
      %v880 = vshrl.u32 %v564, 16
      %v882 = vrot.slane %v880, 3
      %v883 = vshll.u32 %v564, 16
      %v885 = vrot.slane %v883, 4
      %v886 = vor.u32 %v882, %v885
      %v888 = vshrl.u32 %v565, 16
      %v890 = vrot.slane %v888, 3
      %v891 = vshll.u32 %v565, 16
      %v893 = vrot.slane %v891, 4
      %v894 = vor.u32 %v890, %v893
      %v895 = vsel %vm835, %v886, %v894
      %v897 = vshrl.u32 %v625, 16
      %v899 = vrot.slane %v897, 3
      %v900 = vshll.u32 %v625, 16
      %v902 = vrot.slane %v900, 4
      %v903 = vor.u32 %v899, %v902
      %v904 = vsel %vm835, %v903, %v903
      %v906 = vshrl.u32 %v790, 16
      %v908 = vrot.slane %v906, 3
      %v909 = vshll.u32 %v790, 16
      %v911 = vrot.slane %v909, 4
      %v912 = vor.u32 %v908, %v911
      %v914 = vshrl.u32 %v792, 16
      %v916 = vrot.slane %v914, 3
      %v917 = vshll.u32 %v792, 16
      %v919 = vrot.slane %v917, 4
      %v920 = vor.u32 %v916, %v919
      %v921 = vsel %vm835, %v912, %v920
      %v923 = vshrl.u32 %v566, 16
      %v925 = vrot.slane %v923, 3
      %v926 = vshll.u32 %v566, 16
      %v928 = vrot.slane %v926, 4
      %v929 = vor.u32 %v925, %v928
      %v931 = vshrl.u32 %v567, 16
      %v933 = vrot.slane %v931, 3
      %v934 = vshll.u32 %v567, 16
      %v936 = vrot.slane %v934, 4
      %v937 = vor.u32 %v933, %v936
      %v938 = vsel %vm835, %v929, %v937
      %v940 = vshrl.u32 %v633, 16
      %v942 = vrot.slane %v940, 3
      %v943 = vshll.u32 %v633, 16
      %v945 = vrot.slane %v943, 4
      %v946 = vor.u32 %v942, %v945
      %v947 = vsel %vm835, %v946, %v946
      %v949 = vshrl.u32 %v793, 16
      %v951 = vrot.slane %v949, 3
      %v952 = vshll.u32 %v793, 16
      %v954 = vrot.slane %v952, 4
      %v955 = vor.u32 %v951, %v954
      %v957 = vshrl.u32 %v795, 16
      %v959 = vrot.slane %v957, 3
      %v960 = vshll.u32 %v795, 16
      %v962 = vrot.slane %v960, 4
      %v963 = vor.u32 %v959, %v962
      %v964 = vsel %vm835, %v955, %v963
      %v966 = vshrl.u32 %v568, 16
      %v968 = vrot.slane %v966, 3
      %v969 = vshll.u32 %v568, 16
      %v971 = vrot.slane %v969, 4
      %v972 = vor.u32 %v968, %v971
      %v974 = vshrl.u32 %v569, 16
      %v976 = vrot.slane %v974, 3
      %v977 = vshll.u32 %v569, 16
      %v979 = vrot.slane %v977, 4
      %v980 = vor.u32 %v976, %v979
      %v981 = vsel %vm835, %v972, %v980
      %v983 = vshrl.u32 %v641, 16
      %v985 = vrot.slane %v983, 3
      %v986 = vshll.u32 %v641, 16
      %v988 = vrot.slane %v986, 4
      %v989 = vor.u32 %v985, %v988
      %v990 = vsel %vm835, %v989, %v989
      %v992 = vshrl.u32 %v796, 16
      %v994 = vrot.slane %v992, 3
      %v995 = vshll.u32 %v796, 16
      %v997 = vrot.slane %v995, 4
      %v998 = vor.u32 %v994, %v997
      %v1000 = vshrl.u32 %v798, 16
      %v1002 = vrot.slane %v1000, 3
      %v1003 = vshll.u32 %v798, 16
      %v1005 = vrot.slane %v1003, 4
      %v1006 = vor.u32 %v1002, %v1005
      %v1007 = vsel %vm835, %v998, %v1006
      %v1009 = vshrl.u32 %v570, 16
      %v1011 = vrot.slane %v1009, 3
      %v1012 = vshll.u32 %v570, 16
      %v1014 = vrot.slane %v1012, 4
      %v1015 = vor.u32 %v1011, %v1014
      %v1017 = vshrl.u32 %v571, 16
      %v1019 = vrot.slane %v1017, 3
      %v1020 = vshll.u32 %v571, 16
      %v1022 = vrot.slane %v1020, 4
      %v1023 = vor.u32 %v1019, %v1022
      %v1024 = vsel %vm835, %v1015, %v1023
      %v1026 = vshrl.u32 %v649, 16
      %v1028 = vrot.slane %v1026, 3
      %v1029 = vshll.u32 %v649, 16
      %v1031 = vrot.slane %v1029, 4
      %v1032 = vor.u32 %v1028, %v1031
      %v1033 = vsel %vm835, %v1032, %v1032
      %v1035 = vshrl.u32 %v799, 16
      %v1037 = vrot.slane %v1035, 3
      %v1038 = vshll.u32 %v799, 16
      %v1040 = vrot.slane %v1038, 4
      %v1041 = vor.u32 %v1037, %v1040
      %v1043 = vshrl.u32 %v801, 16
      %v1045 = vrot.slane %v1043, 3
      %v1046 = vshll.u32 %v801, 16
      %v1048 = vrot.slane %v1046, 4
      %v1049 = vor.u32 %v1045, %v1048
      %v1050 = vsel %vm835, %v1041, %v1049
      %v1052 = vshrl.u32 %v572, 16
      %v1054 = vrot.slane %v1052, 3
      %v1055 = vshll.u32 %v572, 16
      %v1057 = vrot.slane %v1055, 4
      %v1058 = vor.u32 %v1054, %v1057
      %v1060 = vshrl.u32 %v573, 16
      %v1062 = vrot.slane %v1060, 3
      %v1063 = vshll.u32 %v573, 16
      %v1065 = vrot.slane %v1063, 4
      %v1066 = vor.u32 %v1062, %v1065
      %v1067 = vsel %vm835, %v1058, %v1066
      %v1069 = vshrl.u32 %v657, 16
      %v1071 = vrot.slane %v1069, 3
      %v1072 = vshll.u32 %v657, 16
      %v1074 = vrot.slane %v1072, 4
      %v1075 = vor.u32 %v1071, %v1074
      %v1076 = vsel %vm835, %v1075, %v1075
      %v1078 = vshrl.u32 %v802, 16
      %v1080 = vrot.slane %v1078, 3
      %v1081 = vshll.u32 %v802, 16
      %v1083 = vrot.slane %v1081, 4
      %v1084 = vor.u32 %v1080, %v1083
      %v1086 = vshrl.u32 %v804, 16
      %v1088 = vrot.slane %v1086, 3
      %v1089 = vshll.u32 %v804, 16
      %v1091 = vrot.slane %v1089, 4
      %v1092 = vor.u32 %v1088, %v1091
      %v1093 = vsel %vm835, %v1084, %v1092
      %v1095 = vshrl.u32 %v574, 16
      %v1097 = vrot.slane %v1095, 3
      %v1098 = vshll.u32 %v574, 16
      %v1100 = vrot.slane %v1098, 4
      %v1101 = vor.u32 %v1097, %v1100
      %v1103 = vshrl.u32 %v575, 16
      %v1105 = vrot.slane %v1103, 3
      %v1106 = vshll.u32 %v575, 16
      %v1108 = vrot.slane %v1106, 4
      %v1109 = vor.u32 %v1105, %v1108
      %v1110 = vsel %vm835, %v1101, %v1109
      %v1112 = vshrl.u32 %v665, 16
      %v1114 = vrot.slane %v1112, 3
      %v1115 = vshll.u32 %v665, 16
      %v1117 = vrot.slane %v1115, 4
      %v1118 = vor.u32 %v1114, %v1117
      %v1119 = vsel %vm835, %v1118, %v1118
      %v1121 = vshrl.u32 %v805, 16
      %v1123 = vrot.slane %v1121, 3
      %v1124 = vshll.u32 %v805, 16
      %v1126 = vrot.slane %v1124, 4
      %v1127 = vor.u32 %v1123, %v1126
      %v1129 = vshrl.u32 %v807, 16
      %v1131 = vrot.slane %v1129, 3
      %v1132 = vshll.u32 %v807, 16
      %v1134 = vrot.slane %v1132, 4
      %v1135 = vor.u32 %v1131, %v1134
      %v1136 = vsel %vm835, %v1127, %v1135
      %v1138 = vshrl.u32 %v576, 16
      %v1140 = vrot.slane %v1138, 3
      %v1141 = vshll.u32 %v576, 16
      %v1143 = vrot.slane %v1141, 4
      %v1144 = vor.u32 %v1140, %v1143
      %v1146 = vshrl.u32 %v577, 16
      %v1148 = vrot.slane %v1146, 3
      %v1149 = vshll.u32 %v577, 16
      %v1151 = vrot.slane %v1149, 4
      %v1152 = vor.u32 %v1148, %v1151
      %v1153 = vsel %vm835, %v1144, %v1152
      %v1155 = vshrl.u32 %v673, 16
      %v1157 = vrot.slane %v1155, 3
      %v1158 = vshll.u32 %v673, 16
      %v1160 = vrot.slane %v1158, 4
      %v1161 = vor.u32 %v1157, %v1160
      %v1162 = vsel %vm835, %v1161, %v1161
      %v1164 = vshrl.u32 %v808, 16
      %v1166 = vrot.slane %v1164, 3
      %v1167 = vshll.u32 %v808, 16
      %v1169 = vrot.slane %v1167, 4
      %v1170 = vor.u32 %v1166, %v1169
      %v1172 = vshrl.u32 %v810, 16
      %v1174 = vrot.slane %v1172, 3
      %v1175 = vshll.u32 %v810, 16
      %v1177 = vrot.slane %v1175, 4
      %v1178 = vor.u32 %v1174, %v1177
      %v1179 = vsel %vm835, %v1170, %v1178
      %v1181 = vshrl.u32 %v578, 16
      %v1183 = vrot.slane %v1181, 3
      %v1184 = vshll.u32 %v578, 16
      %v1186 = vrot.slane %v1184, 4
      %v1187 = vor.u32 %v1183, %v1186
      %v1189 = vshrl.u32 %v579, 16
      %v1191 = vrot.slane %v1189, 3
      %v1192 = vshll.u32 %v579, 16
      %v1194 = vrot.slane %v1192, 4
      %v1195 = vor.u32 %v1191, %v1194
      %v1196 = vsel %vm835, %v1187, %v1195
      %v1198 = vshrl.u32 %v681, 16
      %v1200 = vrot.slane %v1198, 3
      %v1201 = vshll.u32 %v681, 16
      %v1203 = vrot.slane %v1201, 4
      %v1204 = vor.u32 %v1200, %v1203
      %v1205 = vsel %vm835, %v1204, %v1204
      %v1207 = vshrl.u32 %v811, 16
      %v1209 = vrot.slane %v1207, 3
      %v1210 = vshll.u32 %v811, 16
      %v1212 = vrot.slane %v1210, 4
      %v1213 = vor.u32 %v1209, %v1212
      %v1215 = vshrl.u32 %v813, 16
      %v1217 = vrot.slane %v1215, 3
      %v1218 = vshll.u32 %v813, 16
      %v1220 = vrot.slane %v1218, 4
      %v1221 = vor.u32 %v1217, %v1220
      %v1222 = vsel %vm835, %v1213, %v1221
      %v1224 = vshrl.u32 %v580, 16
      %v1226 = vrot.slane %v1224, 3
      %v1227 = vshll.u32 %v580, 16
      %v1229 = vrot.slane %v1227, 4
      %v1230 = vor.u32 %v1226, %v1229
      %v1232 = vshrl.u32 %v581, 16
      %v1234 = vrot.slane %v1232, 3
      %v1235 = vshll.u32 %v581, 16
      %v1237 = vrot.slane %v1235, 4
      %v1238 = vor.u32 %v1234, %v1237
      %v1239 = vsel %vm835, %v1230, %v1238
      %v1241 = vshrl.u32 %v689, 16
      %v1243 = vrot.slane %v1241, 3
      %v1244 = vshll.u32 %v689, 16
      %v1246 = vrot.slane %v1244, 4
      %v1247 = vor.u32 %v1243, %v1246
      %v1248 = vsel %vm835, %v1247, %v1247
      %v1250 = vshrl.u32 %v814, 16
      %v1252 = vrot.slane %v1250, 3
      %v1253 = vshll.u32 %v814, 16
      %v1255 = vrot.slane %v1253, 4
      %v1256 = vor.u32 %v1252, %v1255
      %v1258 = vshrl.u32 %v816, 16
      %v1260 = vrot.slane %v1258, 3
      %v1261 = vshll.u32 %v816, 16
      %v1263 = vrot.slane %v1261, 4
      %v1264 = vor.u32 %v1260, %v1263
      %v1265 = vsel %vm835, %v1256, %v1264
      %v1267 = vshrl.u32 %v582, 16
      %v1269 = vrot.slane %v1267, 3
      %v1270 = vshll.u32 %v582, 16
      %v1272 = vrot.slane %v1270, 4
      %v1273 = vor.u32 %v1269, %v1272
      %v1275 = vshrl.u32 %v583, 16
      %v1277 = vrot.slane %v1275, 3
      %v1278 = vshll.u32 %v583, 16
      %v1280 = vrot.slane %v1278, 4
      %v1281 = vor.u32 %v1277, %v1280
      %v1282 = vsel %vm835, %v1273, %v1281
      %v1284 = vshrl.u32 %v697, 16
      %v1286 = vrot.slane %v1284, 3
      %v1287 = vshll.u32 %v697, 16
      %v1289 = vrot.slane %v1287, 4
      %v1290 = vor.u32 %v1286, %v1289
      %v1291 = vsel %vm835, %v1290, %v1290
      %v1293 = vshrl.u32 %v817, 16
      %v1295 = vrot.slane %v1293, 3
      %v1296 = vshll.u32 %v817, 16
      %v1298 = vrot.slane %v1296, 4
      %v1299 = vor.u32 %v1295, %v1298
      %v1301 = vshrl.u32 %v819, 16
      %v1303 = vrot.slane %v1301, 3
      %v1304 = vshll.u32 %v819, 16
      %v1306 = vrot.slane %v1304, 4
      %v1307 = vor.u32 %v1303, %v1306
      %v1308 = vsel %vm835, %v1299, %v1307
      %v1310 = vshrl.u32 %v584, 16
      %v1312 = vrot.slane %v1310, 3
      %v1313 = vshll.u32 %v584, 16
      %v1315 = vrot.slane %v1313, 4
      %v1316 = vor.u32 %v1312, %v1315
      %v1318 = vshrl.u32 %v585, 16
      %v1320 = vrot.slane %v1318, 3
      %v1321 = vshll.u32 %v585, 16
      %v1323 = vrot.slane %v1321, 4
      %v1324 = vor.u32 %v1320, %v1323
      %v1325 = vsel %vm835, %v1316, %v1324
      %v1327 = vshrl.u32 %v705, 16
      %v1329 = vrot.slane %v1327, 3
      %v1330 = vshll.u32 %v705, 16
      %v1332 = vrot.slane %v1330, 4
      %v1333 = vor.u32 %v1329, %v1332
      %v1334 = vsel %vm835, %v1333, %v1333
      %v1336 = vshrl.u32 %v820, 16
      %v1338 = vrot.slane %v1336, 3
      %v1339 = vshll.u32 %v820, 16
      %v1341 = vrot.slane %v1339, 4
      %v1342 = vor.u32 %v1338, %v1341
      %v1344 = vshrl.u32 %v822, 16
      %v1346 = vrot.slane %v1344, 3
      %v1347 = vshll.u32 %v822, 16
      %v1349 = vrot.slane %v1347, 4
      %v1350 = vor.u32 %v1346, %v1349
      %v1351 = vsel %vm835, %v1342, %v1350
      %v1353 = vshrl.u32 %v586, 16
      %v1355 = vrot.slane %v1353, 3
      %v1356 = vshll.u32 %v586, 16
      %v1358 = vrot.slane %v1356, 4
      %v1359 = vor.u32 %v1355, %v1358
      %v1361 = vshrl.u32 %v587, 16
      %v1363 = vrot.slane %v1361, 3
      %v1364 = vshll.u32 %v587, 16
      %v1366 = vrot.slane %v1364, 4
      %v1367 = vor.u32 %v1363, %v1366
      %v1368 = vsel %vm835, %v1359, %v1367
      %v1370 = vshrl.u32 %v713, 16
      %v1372 = vrot.slane %v1370, 3
      %v1373 = vshll.u32 %v713, 16
      %v1375 = vrot.slane %v1373, 4
      %v1376 = vor.u32 %v1372, %v1375
      %v1377 = vsel %vm835, %v1376, %v1376
      %v1379 = vshrl.u32 %v823, 16
      %v1381 = vrot.slane %v1379, 3
      %v1382 = vshll.u32 %v823, 16
      %v1384 = vrot.slane %v1382, 4
      %v1385 = vor.u32 %v1381, %v1384
      %v1387 = vshrl.u32 %v825, 16
      %v1389 = vrot.slane %v1387, 3
      %v1390 = vshll.u32 %v825, 16
      %v1392 = vrot.slane %v1390, 4
      %v1393 = vor.u32 %v1389, %v1392
      %v1394 = vsel %vm835, %v1385, %v1393
      %v1396 = vshrl.u32 %v588, 16
      %v1398 = vrot.slane %v1396, 3
      %v1399 = vshll.u32 %v588, 16
      %v1401 = vrot.slane %v1399, 4
      %v1402 = vor.u32 %v1398, %v1401
      %v1404 = vshrl.u32 %v589, 16
      %v1406 = vrot.slane %v1404, 3
      %v1407 = vshll.u32 %v589, 16
      %v1409 = vrot.slane %v1407, 4
      %v1410 = vor.u32 %v1406, %v1409
      %v1411 = vsel %vm835, %v1402, %v1410
      %v1413 = vshrl.u32 %v721, 16
      %v1415 = vrot.slane %v1413, 3
      %v1416 = vshll.u32 %v721, 16
      %v1418 = vrot.slane %v1416, 4
      %v1419 = vor.u32 %v1415, %v1418
      %v1420 = vsel %vm835, %v1419, %v1419
      %v1422 = vshrl.u32 %v826, 16
      %v1424 = vrot.slane %v1422, 3
      %v1425 = vshll.u32 %v826, 16
      %v1427 = vrot.slane %v1425, 4
      %v1428 = vor.u32 %v1424, %v1427
      %v1430 = vshrl.u32 %v828, 16
      %v1432 = vrot.slane %v1430, 3
      %v1433 = vshll.u32 %v828, 16
      %v1435 = vrot.slane %v1433, 4
      %v1436 = vor.u32 %v1432, %v1435
      %v1437 = vsel %vm835, %v1428, %v1436
      %v1439 = vshrl.u32 %v590, 16
      %v1441 = vrot.slane %v1439, 3
      %v1442 = vshll.u32 %v590, 16
      %v1444 = vrot.slane %v1442, 4
      %v1445 = vor.u32 %v1441, %v1444
      %v1447 = vshrl.u32 %v591, 16
      %v1449 = vrot.slane %v1447, 3
      %v1450 = vshll.u32 %v591, 16
      %v1452 = vrot.slane %v1450, 4
      %v1453 = vor.u32 %v1449, %v1452
      %v1454 = vsel %vm835, %v1445, %v1453
      %v1456 = vshrl.u32 %v729, 16
      %v1458 = vrot.slane %v1456, 3
      %v1459 = vshll.u32 %v729, 16
      %v1461 = vrot.slane %v1459, 4
      %v1462 = vor.u32 %v1458, %v1461
      %v1463 = vsel %vm835, %v1462, %v1462
      %v1465 = vshrl.u32 %v829, 16
      %v1467 = vrot.slane %v1465, 3
      %v1468 = vshll.u32 %v829, 16
      %v1470 = vrot.slane %v1468, 4
      %v1471 = vor.u32 %v1467, %v1470
      %v1473 = vshrl.u32 %v831, 16
      %v1475 = vrot.slane %v1473, 3
      %v1476 = vshll.u32 %v831, 16
      %v1478 = vrot.slane %v1476, 4
      %v1479 = vor.u32 %v1475, %v1478
      %v1480 = vsel %vm835, %v1471, %v1479
      %v1482 = vshrl.u32 %v592, 16
      %v1484 = vrot.slane %v1482, 3
      %v1485 = vshll.u32 %v592, 16
      %v1487 = vrot.slane %v1485, 4
      %v1488 = vor.u32 %v1484, %v1487
      %v1490 = vshrl.u32 %v593, 16
      %v1492 = vrot.slane %v1490, 3
      %v1493 = vshll.u32 %v593, 16
      %v1495 = vrot.slane %v1493, 4
      %v1496 = vor.u32 %v1492, %v1495
      %v1497 = vsel %vm835, %v1488, %v1496
      %v1499 = vshrl.u32 %v737, 16
      %v1501 = vrot.slane %v1499, 3
      %v1502 = vshll.u32 %v737, 16
      %v1504 = vrot.slane %v1502, 4
      %v1505 = vor.u32 %v1501, %v1504
      %v1506 = vsel %vm835, %v1505, %v1505
      %v1508 = vshrl.u32 %v832, 16
      %v1510 = vrot.slane %v1508, 3
      %v1511 = vshll.u32 %v832, 16
      %v1513 = vrot.slane %v1511, 4
      %v1514 = vor.u32 %v1510, %v1513
      %v1516 = vshrl.u32 %v834, 16
      %v1518 = vrot.slane %v1516, 3
      %v1519 = vshll.u32 %v834, 16
      %v1521 = vrot.slane %v1519, 4
      %v1522 = vor.u32 %v1518, %v1521
      %v1523 = vsel %vm835, %v1514, %v1522
      %v1572 = vld [vmem:[%s1] sm:$0xf]
      %v1573 = vld [vmem:[%s1 + $0x4] sm:$0xf]
      %v1574 = vld [vmem:[%s1 + $0x8] sm:$0xf]
      %v1575 = vld [vmem:[%s1 + $0xc] sm:$0xf]
      %v1576 = vld [vmem:[%s1 + $0x10] sm:$0xf]
      %v1577 = vld [vmem:[%s1 + $0x14] sm:$0xf]
      %v1578 = vld [vmem:[%s1 + $0x18] sm:$0xf]
      %v1579 = vld [vmem:[%s1 + $0x1c] sm:$0xf]
      %v1580 = vld [vmem:[%s1 + $0x20] sm:$0xf]
      %v1581 = vld [vmem:[%s1 + $0x24] sm:$0xf]
      %v1582 = vld [vmem:[%s1 + $0x28] sm:$0xf]
      %v1583 = vld [vmem:[%s1 + $0x2c] sm:$0xf]
      %v1584 = vld [vmem:[%s1 + $0x30] sm:$0xf]
      %v1585 = vld [vmem:[%s1 + $0x34] sm:$0xf]
      %v1586 = vld [vmem:[%s1 + $0x38] sm:$0xf]
      %v1587 = vld [vmem:[%s1 + $0x3c] sm:$0xf]
      %v1588 = vld [vmem:[%s1 + $0x40] sm:$0xf]
      %v1589 = vld [vmem:[%s1 + $0x44] sm:$0xf]
      %v1590 = vld [vmem:[%s1 + $0x48] sm:$0xf]
      %v1591 = vld [vmem:[%s1 + $0x4c] sm:$0xf]
      %v1592 = vld [vmem:[%s1 + $0x50] sm:$0xf]
      %v1593 = vld [vmem:[%s1 + $0x54] sm:$0xf]
      %v1594 = vld [vmem:[%s1 + $0x58] sm:$0xf]
      %v1595 = vld [vmem:[%s1 + $0x5c] sm:$0xf]
      %v1596 = vld [vmem:[%s1 + $0x60] sm:$0xf]
      %v1597 = vld [vmem:[%s1 + $0x64] sm:$0xf]
      %v1598 = vld [vmem:[%s1 + $0x68] sm:$0xf]
      %v1599 = vld [vmem:[%s1 + $0x6c] sm:$0xf]
      %v1600 = vld [vmem:[%s1 + $0x70] sm:$0xf]
      %v1601 = vld [vmem:[%s1 + $0x74] sm:$0xf]
      %v1602 = vld [vmem:[%s1 + $0x78] sm:$0xf]
      %v1603 = vld [vmem:[%s1 + $0x7c] sm:$0xf]
      %v1604 = vld [vmem:[%s1 + $0x80] sm:$0xf]
      %v1605 = vld [vmem:[%s1 + $0x84] sm:$0xf]
      %v1606 = vld [vmem:[%s1 + $0x88] sm:$0xf]
      %v1607 = vld [vmem:[%s1 + $0x8c] sm:$0xf]
      %v1608 = vld [vmem:[%s1 + $0x90] sm:$0xf]
      %v1609 = vld [vmem:[%s1 + $0x94] sm:$0xf]
      %v1610 = vld [vmem:[%s1 + $0x98] sm:$0xf]
      %v1611 = vld [vmem:[%s1 + $0x9c] sm:$0xf]
      %v1612 = vld [vmem:[%s1 + $0xa0] sm:$0xf]
      %v1613 = vld [vmem:[%s1 + $0xa4] sm:$0xf]
      %v1614 = vld [vmem:[%s1 + $0xa8] sm:$0xf]
      %v1615 = vld [vmem:[%s1 + $0xac] sm:$0xf]
      %v1616 = vld [vmem:[%s1 + $0xb0] sm:$0xf]
      %v1617 = vld [vmem:[%s1 + $0xb4] sm:$0xf]
      %v1618 = vld [vmem:[%s1 + $0xb8] sm:$0xf]
      %v1619 = vld [vmem:[%s1 + $0xbc] sm:$0xf]
      %v1668 = vunpack.c.l.b16 %v1572
      %v1669 = vunpack.c.l.b16 %v1573
      %v1670 = vunpack.c.l.b16 %v1574
      %v1671 = vunpack.c.l.b16 %v1575
      %v1672 = vunpack.c.l.b16 %v1576
      %v1673 = vunpack.c.l.b16 %v1577
      %v1674 = vunpack.c.l.b16 %v1578
      %v1675 = vunpack.c.l.b16 %v1579
      %v1676 = vunpack.c.l.b16 %v1580
      %v1677 = vunpack.c.l.b16 %v1581
      %v1678 = vunpack.c.l.b16 %v1582
      %v1679 = vunpack.c.l.b16 %v1583
      %v1680 = vunpack.c.l.b16 %v1584
      %v1681 = vunpack.c.l.b16 %v1585
      %v1682 = vunpack.c.l.b16 %v1586
      %v1683 = vunpack.c.l.b16 %v1587
      %v1684 = vunpack.c.l.b16 %v1588
      %v1685 = vunpack.c.l.b16 %v1589
      %v1686 = vunpack.c.l.b16 %v1590
      %v1687 = vunpack.c.l.b16 %v1591
      %v1688 = vunpack.c.l.b16 %v1592
      %v1689 = vunpack.c.l.b16 %v1593
      %v1690 = vunpack.c.l.b16 %v1594
      %v1691 = vunpack.c.l.b16 %v1595
      %v1692 = vunpack.c.l.b16 %v1596
      %v1693 = vunpack.c.l.b16 %v1597
      %v1694 = vunpack.c.l.b16 %v1598
      %v1695 = vunpack.c.l.b16 %v1599
      %v1696 = vunpack.c.l.b16 %v1600
      %v1697 = vunpack.c.l.b16 %v1601
      %v1698 = vunpack.c.l.b16 %v1602
      %v1699 = vunpack.c.l.b16 %v1603
      %v1700 = vunpack.c.l.b16 %v1604
      %v1701 = vunpack.c.l.b16 %v1605
      %v1702 = vunpack.c.l.b16 %v1606
      %v1703 = vunpack.c.l.b16 %v1607
      %v1704 = vunpack.c.l.b16 %v1608
      %v1705 = vunpack.c.l.b16 %v1609
      %v1706 = vunpack.c.l.b16 %v1610
      %v1707 = vunpack.c.l.b16 %v1611
      %v1708 = vunpack.c.l.b16 %v1612
      %v1709 = vunpack.c.l.b16 %v1613
      %v1710 = vunpack.c.l.b16 %v1614
      %v1711 = vunpack.c.l.b16 %v1615
      %v1712 = vunpack.c.l.b16 %v1616
      %v1713 = vunpack.c.l.b16 %v1617
      %v1714 = vunpack.c.l.b16 %v1618
      %v1715 = vunpack.c.l.b16 %v1619
      %v1716 = vpack.c.b16 %v1669, %v1668
      %v1717 = vpack.c.b16 %v1671, %v1670
      %v1718 = vpack.c.b16 %v1673, %v1672
      %v1719 = vpack.c.b16 %v1675, %v1674
      %v1720 = vpack.c.b16 %v1677, %v1676
      %v1721 = vpack.c.b16 %v1679, %v1678
      %v1722 = vpack.c.b16 %v1681, %v1680
      %v1723 = vpack.c.b16 %v1683, %v1682
      %v1724 = vpack.c.b16 %v1685, %v1684
      %v1725 = vpack.c.b16 %v1687, %v1686
      %v1726 = vpack.c.b16 %v1689, %v1688
      %v1727 = vpack.c.b16 %v1691, %v1690
      %v1728 = vpack.c.b16 %v1693, %v1692
      %v1729 = vpack.c.b16 %v1695, %v1694
      %v1730 = vpack.c.b16 %v1697, %v1696
      %v1731 = vpack.c.b16 %v1699, %v1698
      %v1732 = vpack.c.b16 %v1701, %v1700
      %v1733 = vpack.c.b16 %v1703, %v1702
      %v1734 = vpack.c.b16 %v1705, %v1704
      %v1735 = vpack.c.b16 %v1707, %v1706
      %v1736 = vpack.c.b16 %v1709, %v1708
      %v1737 = vpack.c.b16 %v1711, %v1710
      %v1738 = vpack.c.b16 %v1713, %v1712
      %v1739 = vpack.c.b16 %v1715, %v1714
      %1764 = vmatpush.bf16.msra.mxu0 %v1723
      %1765 = vmatpush.bf16.msra.mxu0 %v1722
      %1766 = vmatpush.bf16.msra.mxu0 %v1721
      %1767 = vmatpush.bf16.msra.mxu0 %v1720
      %1768 = vmatpush.bf16.msra.mxu0 %v1719
      %1769 = vmatpush.bf16.msra.mxu0 %v1718
      %1770 = vmatpush.bf16.msra.mxu0 %v1717
      %1771 = vmatpush.bf16.msra.mxu0 %v1716
      %1772 = vmatmul.bf16.gmra.mxu0 %v852
      %v1773 = vpop.f32.mrf.mxu0
      %v1774 = vadd.f32 0.0, %v1773
      %v1775 = vpop.f32.mrf.mxu0
      %v1776 = vadd.f32 0.0, %v1775
      %1777 = vmatmul.bf16.gmra.mxu0 %v895
      %v1778 = vpop.f32.mrf.mxu0
      %v1779 = vadd.f32 0.0, %v1778
      %v1780 = vpop.f32.mrf.mxu0
      %v1781 = vadd.f32 0.0, %v1780
      %1782 = vmatmul.bf16.gmra.mxu0 %v938
      %v1783 = vpop.f32.mrf.mxu0
      %v1784 = vadd.f32 0.0, %v1783
      %v1785 = vpop.f32.mrf.mxu0
      %v1786 = vadd.f32 0.0, %v1785
      %1787 = vmatmul.bf16.gmra.mxu0 %v981
      %v1788 = vpop.f32.mrf.mxu0
      %v1789 = vadd.f32 0.0, %v1788
      %v1790 = vpop.f32.mrf.mxu0
      %v1791 = vadd.f32 0.0, %v1790
      %1792 = vmatmul.bf16.gmra.mxu0 %v1024
      %v1793 = vpop.f32.mrf.mxu0
      %v1794 = vadd.f32 0.0, %v1793
      %v1795 = vpop.f32.mrf.mxu0
      %v1796 = vadd.f32 0.0, %v1795
      %1797 = vmatmul.bf16.gmra.mxu0 %v1067
      %v1798 = vpop.f32.mrf.mxu0
      %v1799 = vadd.f32 0.0, %v1798
      %v1800 = vpop.f32.mrf.mxu0
      %v1801 = vadd.f32 0.0, %v1800
      %1802 = vmatmul.bf16.gmra.mxu0 %v1110
      %v1803 = vpop.f32.mrf.mxu0
      %v1804 = vadd.f32 0.0, %v1803
      %v1805 = vpop.f32.mrf.mxu0
      %v1806 = vadd.f32 0.0, %v1805
      %1807 = vmatmul.bf16.gmra.mxu0 %v1153
      %v1808 = vpop.f32.mrf.mxu0
      %v1809 = vadd.f32 0.0, %v1808
      %v1810 = vpop.f32.mrf.mxu0
      %v1811 = vadd.f32 0.0, %v1810
      %1812 = vmatmul.bf16.gmra.mxu0 %v1196
      %v1813 = vpop.f32.mrf.mxu0
      %v1814 = vadd.f32 0.0, %v1813
      %v1815 = vpop.f32.mrf.mxu0
      %v1816 = vadd.f32 0.0, %v1815
      %1817 = vmatmul.bf16.gmra.mxu0 %v1239
      %v1818 = vpop.f32.mrf.mxu0
      %v1819 = vadd.f32 0.0, %v1818
      %v1820 = vpop.f32.mrf.mxu0
      %v1821 = vadd.f32 0.0, %v1820
      %1822 = vmatmul.bf16.gmra.mxu0 %v1282
      %v1823 = vpop.f32.mrf.mxu0
      %v1824 = vadd.f32 0.0, %v1823
      %v1825 = vpop.f32.mrf.mxu0
      %v1826 = vadd.f32 0.0, %v1825
      %1827 = vmatmul.bf16.gmra.mxu0 %v1325
      %v1828 = vpop.f32.mrf.mxu0
      %v1829 = vadd.f32 0.0, %v1828
      %v1830 = vpop.f32.mrf.mxu0
      %v1831 = vadd.f32 0.0, %v1830
      %1832 = vmatmul.bf16.gmra.mxu0 %v1368
      %v1833 = vpop.f32.mrf.mxu0
      %v1834 = vadd.f32 0.0, %v1833
      %v1835 = vpop.f32.mrf.mxu0
      %v1836 = vadd.f32 0.0, %v1835
      %1837 = vmatmul.bf16.gmra.mxu0 %v1411
      %v1838 = vpop.f32.mrf.mxu0
      %v1839 = vadd.f32 0.0, %v1838
      %v1840 = vpop.f32.mrf.mxu0
      %v1841 = vadd.f32 0.0, %v1840
      %1842 = vmatmul.bf16.gmra.mxu0 %v1454
      %v1843 = vpop.f32.mrf.mxu0
      %v1844 = vadd.f32 0.0, %v1843
      %v1845 = vpop.f32.mrf.mxu0
      %v1846 = vadd.f32 0.0, %v1845
      %1847 = vmatmul.bf16.gmra.mxu0 %v1497
      %v1848 = vpop.f32.mrf.mxu0
      %v1849 = vadd.f32 0.0, %v1848
      %v1850 = vpop.f32.mrf.mxu0
      %v1851 = vadd.f32 0.0, %v1850
      %1852 = vdwg.mxu0
      %1853 = vmatpush.bf16.msra.mxu0 %v1731
      %1854 = vmatpush.bf16.msra.mxu0 %v1730
      %1855 = vmatpush.bf16.msra.mxu0 %v1729
      %1856 = vmatpush.bf16.msra.mxu0 %v1728
      %1857 = vmatpush.bf16.msra.mxu0 %v1727
      %1858 = vmatpush.bf16.msra.mxu0 %v1726
      %1859 = vmatpush.bf16.msra.mxu0 %v1725
      %1860 = vmatpush.bf16.msra.mxu0 %v1724
      %1861 = vmatmul.bf16.gmra.mxu0 %v861
      %v1862 = vpop.f32.mrf.mxu0
      %v1863 = vadd.f32 %v1774, %v1862
      %v1864 = vpop.f32.mrf.mxu0
      %v1865 = vadd.f32 %v1776, %v1864
      %1866 = vmatmul.bf16.gmra.mxu0 %v904
      %v1867 = vpop.f32.mrf.mxu0
      %v1868 = vadd.f32 %v1779, %v1867
      %v1869 = vpop.f32.mrf.mxu0
      %v1870 = vadd.f32 %v1781, %v1869
      %1871 = vmatmul.bf16.gmra.mxu0 %v947
      %v1872 = vpop.f32.mrf.mxu0
      %v1873 = vadd.f32 %v1784, %v1872
      %v1874 = vpop.f32.mrf.mxu0
      %v1875 = vadd.f32 %v1786, %v1874
      %1876 = vmatmul.bf16.gmra.mxu0 %v990
      %v1877 = vpop.f32.mrf.mxu0
      %v1878 = vadd.f32 %v1789, %v1877
      %v1879 = vpop.f32.mrf.mxu0
      %v1880 = vadd.f32 %v1791, %v1879
      %1881 = vmatmul.bf16.gmra.mxu0 %v1033
      %v1882 = vpop.f32.mrf.mxu0
      %v1883 = vadd.f32 %v1794, %v1882
      %v1884 = vpop.f32.mrf.mxu0
      %v1885 = vadd.f32 %v1796, %v1884
      %1886 = vmatmul.bf16.gmra.mxu0 %v1076
      %v1887 = vpop.f32.mrf.mxu0
      %v1888 = vadd.f32 %v1799, %v1887
      %v1889 = vpop.f32.mrf.mxu0
      %v1890 = vadd.f32 %v1801, %v1889
      %1891 = vmatmul.bf16.gmra.mxu0 %v1119
      %v1892 = vpop.f32.mrf.mxu0
      %v1893 = vadd.f32 %v1804, %v1892
      %v1894 = vpop.f32.mrf.mxu0
      %v1895 = vadd.f32 %v1806, %v1894
      %1896 = vmatmul.bf16.gmra.mxu0 %v1162
      %v1897 = vpop.f32.mrf.mxu0
      %v1898 = vadd.f32 %v1809, %v1897
      %v1899 = vpop.f32.mrf.mxu0
      %v1900 = vadd.f32 %v1811, %v1899
      %1901 = vmatmul.bf16.gmra.mxu0 %v1205
      %v1902 = vpop.f32.mrf.mxu0
      %v1903 = vadd.f32 %v1814, %v1902
      %v1904 = vpop.f32.mrf.mxu0
      %v1905 = vadd.f32 %v1816, %v1904
      %1906 = vmatmul.bf16.gmra.mxu0 %v1248
      %v1907 = vpop.f32.mrf.mxu0
      %v1908 = vadd.f32 %v1819, %v1907
      %v1909 = vpop.f32.mrf.mxu0
      %v1910 = vadd.f32 %v1821, %v1909
      %1911 = vmatmul.bf16.gmra.mxu0 %v1291
      %v1912 = vpop.f32.mrf.mxu0
      %v1913 = vadd.f32 %v1824, %v1912
      %v1914 = vpop.f32.mrf.mxu0
      %v1915 = vadd.f32 %v1826, %v1914
      %1916 = vmatmul.bf16.gmra.mxu0 %v1334
      %v1917 = vpop.f32.mrf.mxu0
      %v1918 = vadd.f32 %v1829, %v1917
      %v1919 = vpop.f32.mrf.mxu0
      %v1920 = vadd.f32 %v1831, %v1919
      %1921 = vmatmul.bf16.gmra.mxu0 %v1377
      %v1922 = vpop.f32.mrf.mxu0
      %v1923 = vadd.f32 %v1834, %v1922
      %v1924 = vpop.f32.mrf.mxu0
      %v1925 = vadd.f32 %v1836, %v1924
      %1926 = vmatmul.bf16.gmra.mxu0 %v1420
      %v1927 = vpop.f32.mrf.mxu0
      %v1928 = vadd.f32 %v1839, %v1927
      %v1929 = vpop.f32.mrf.mxu0
      %v1930 = vadd.f32 %v1841, %v1929
      %1931 = vmatmul.bf16.gmra.mxu0 %v1463
      %v1932 = vpop.f32.mrf.mxu0
      %v1933 = vadd.f32 %v1844, %v1932
      %v1934 = vpop.f32.mrf.mxu0
      %v1935 = vadd.f32 %v1846, %v1934
      %1936 = vmatmul.bf16.gmra.mxu0 %v1506
      %v1937 = vpop.f32.mrf.mxu0
      %v1938 = vadd.f32 %v1849, %v1937
      %v1939 = vpop.f32.mrf.mxu0
      %v1940 = vadd.f32 %v1851, %v1939
      %1941 = vdwg.mxu0
      %1942 = vmatpush.bf16.msra.mxu0 %v1739
      %1943 = vmatpush.bf16.msra.mxu0 %v1738
      %1944 = vmatpush.bf16.msra.mxu0 %v1737
      %1945 = vmatpush.bf16.msra.mxu0 %v1736
      %1946 = vmatpush.bf16.msra.mxu0 %v1735
      %1947 = vmatpush.bf16.msra.mxu0 %v1734
      %1948 = vmatpush.bf16.msra.mxu0 %v1733
      %1949 = vmatpush.bf16.msra.mxu0 %v1732
      %1950 = vmatmul.bf16.gmra.mxu0 %v878
      %v1951 = vpop.f32.mrf.mxu0
      %v1952 = vadd.f32 %v1863, %v1951
      %v1953 = vpop.f32.mrf.mxu0
      %v1954 = vadd.f32 %v1865, %v1953
      %1955 = vmatmul.bf16.gmra.mxu0 %v921
      %v1956 = vpop.f32.mrf.mxu0
      %v1957 = vadd.f32 %v1868, %v1956
      %v1958 = vpop.f32.mrf.mxu0
      %v1959 = vadd.f32 %v1870, %v1958
      %1960 = vmatmul.bf16.gmra.mxu0 %v964
      %v1961 = vpop.f32.mrf.mxu0
      %v1962 = vadd.f32 %v1873, %v1961
      %v1963 = vpop.f32.mrf.mxu0
      %v1964 = vadd.f32 %v1875, %v1963
      %1965 = vmatmul.bf16.gmra.mxu0 %v1007
      %v1966 = vpop.f32.mrf.mxu0
      %v1967 = vadd.f32 %v1878, %v1966
      %v1968 = vpop.f32.mrf.mxu0
      %v1969 = vadd.f32 %v1880, %v1968
      %1970 = vmatmul.bf16.gmra.mxu0 %v1050
      %v1971 = vpop.f32.mrf.mxu0
      %v1972 = vadd.f32 %v1883, %v1971
      %v1973 = vpop.f32.mrf.mxu0
      %v1974 = vadd.f32 %v1885, %v1973
      %1975 = vmatmul.bf16.gmra.mxu0 %v1093
      %v1976 = vpop.f32.mrf.mxu0
      %v1977 = vadd.f32 %v1888, %v1976
      %v1978 = vpop.f32.mrf.mxu0
      %v1979 = vadd.f32 %v1890, %v1978
      %1980 = vmatmul.bf16.gmra.mxu0 %v1136
      %v1981 = vpop.f32.mrf.mxu0
      %v1982 = vadd.f32 %v1893, %v1981
      %v1983 = vpop.f32.mrf.mxu0
      %v1984 = vadd.f32 %v1895, %v1983
      %1985 = vmatmul.bf16.gmra.mxu0 %v1179
      %v1986 = vpop.f32.mrf.mxu0
      %v1987 = vadd.f32 %v1898, %v1986
      %v1988 = vpop.f32.mrf.mxu0
      %v1989 = vadd.f32 %v1900, %v1988
      %1990 = vmatmul.bf16.gmra.mxu0 %v1222
      %v1991 = vpop.f32.mrf.mxu0
      %v1992 = vadd.f32 %v1903, %v1991
      %v1993 = vpop.f32.mrf.mxu0
      %v1994 = vadd.f32 %v1905, %v1993
      %1995 = vmatmul.bf16.gmra.mxu0 %v1265
      %v1996 = vpop.f32.mrf.mxu0
      %v1997 = vadd.f32 %v1908, %v1996
      %v1998 = vpop.f32.mrf.mxu0
      %v1999 = vadd.f32 %v1910, %v1998
      %2000 = vmatmul.bf16.gmra.mxu0 %v1308
      %v2001 = vpop.f32.mrf.mxu0
      %v2002 = vadd.f32 %v1913, %v2001
      %v2003 = vpop.f32.mrf.mxu0
      %v2004 = vadd.f32 %v1915, %v2003
      %2005 = vmatmul.bf16.gmra.mxu0 %v1351
      %v2006 = vpop.f32.mrf.mxu0
      %v2007 = vadd.f32 %v1918, %v2006
      %v2008 = vpop.f32.mrf.mxu0
      %v2009 = vadd.f32 %v1920, %v2008
      %2010 = vmatmul.bf16.gmra.mxu0 %v1394
      %v2011 = vpop.f32.mrf.mxu0
      %v2012 = vadd.f32 %v1923, %v2011
      %v2013 = vpop.f32.mrf.mxu0
      %v2014 = vadd.f32 %v1925, %v2013
      %2015 = vmatmul.bf16.gmra.mxu0 %v1437
      %v2016 = vpop.f32.mrf.mxu0
      %v2017 = vadd.f32 %v1928, %v2016
      %v2018 = vpop.f32.mrf.mxu0
      %v2019 = vadd.f32 %v1930, %v2018
      %2020 = vmatmul.bf16.gmra.mxu0 %v1480
      %v2021 = vpop.f32.mrf.mxu0
      %v2022 = vadd.f32 %v1933, %v2021
      %v2023 = vpop.f32.mrf.mxu0
      %v2024 = vadd.f32 %v1935, %v2023
      %2025 = vmatmul.bf16.gmra.mxu0 %v1523
      %v2026 = vpop.f32.mrf.mxu0
      %v2027 = vadd.f32 %v1938, %v2026
      %v2028 = vpop.f32.mrf.mxu0
      %v2029 = vadd.f32 %v1940, %v2028
      %2030 = vdwg.mxu0
      %2031 = vst [vmem:[#allocation3] sm:$0xff] %v1952
      %2032 = vst [vmem:[#allocation3 + $0x8] sm:$0xff] %v1954
      %2033 = vst [vmem:[#allocation3 + $0x10] sm:$0xff] %v1957
      %2034 = vst [vmem:[#allocation3 + $0x18] sm:$0xff] %v1959
      %2035 = vst [vmem:[#allocation3 + $0x20] sm:$0xff] %v1962
      %2036 = vst [vmem:[#allocation3 + $0x28] sm:$0xff] %v1964
      %2037 = vst [vmem:[#allocation3 + $0x30] sm:$0xff] %v1967
      %2038 = vst [vmem:[#allocation3 + $0x38] sm:$0xff] %v1969
      %2039 = vst [vmem:[#allocation3 + $0x40] sm:$0xff] %v1972
      %2040 = vst [vmem:[#allocation3 + $0x48] sm:$0xff] %v1974
      %2041 = vst [vmem:[#allocation3 + $0x50] sm:$0xff] %v1977
      %2042 = vst [vmem:[#allocation3 + $0x58] sm:$0xff] %v1979
      %2043 = vst [vmem:[#allocation3 + $0x60] sm:$0xff] %v1982
      %2044 = vst [vmem:[#allocation3 + $0x68] sm:$0xff] %v1984
      %2045 = vst [vmem:[#allocation3 + $0x70] sm:$0xff] %v1987
      %2046 = vst [vmem:[#allocation3 + $0x78] sm:$0xff] %v1989
      %2047 = vst [vmem:[#allocation3 + $0x80] sm:$0xff] %v1992
      %2048 = vst [vmem:[#allocation3 + $0x88] sm:$0xff] %v1994
      %2049 = vst [vmem:[#allocation3 + $0x90] sm:$0xff] %v1997
      %2050 = vst [vmem:[#allocation3 + $0x98] sm:$0xff] %v1999
      %2051 = vst [vmem:[#allocation3 + $0xa0] sm:$0xff] %v2002
      %2052 = vst [vmem:[#allocation3 + $0xa8] sm:$0xff] %v2004
      %2053 = vst [vmem:[#allocation3 + $0xb0] sm:$0xff] %v2007
      %2054 = vst [vmem:[#allocation3 + $0xb8] sm:$0xff] %v2009
      %2055 = vst [vmem:[#allocation3 + $0xc0] sm:$0xff] %v2012
      %2056 = vst [vmem:[#allocation3 + $0xc8] sm:$0xff] %v2014
      %2057 = vst [vmem:[#allocation3 + $0xd0] sm:$0xff] %v2017
      %2058 = vst [vmem:[#allocation3 + $0xd8] sm:$0xff] %v2019
      %2059 = vst [vmem:[#allocation3 + $0xe0] sm:$0xff] %v2022
      %2060 = vst [vmem:[#allocation3 + $0xe8] sm:$0xff] %v2024
      %2061 = vst [vmem:[#allocation3 + $0xf0] sm:$0xff] %v2027
      %2062 = vst [vmem:[#allocation3 + $0xf8] sm:$0xff] %v2029
      %s2063 = sadd.s32 %s398, 1
      %s2064 = smul.u32 %s2063, 4
      %s2065 = smul.addr %s2064, 4
      %s2066 = scalar_lea.vmem [#allocation2], %s2065
      %v2067 = vld [vmem:[%s2066] sm:$0x8]
      %v2068 = vld [vmem:[%s2066 + $0x4] sm:$0xf]
      %v2069 = vld [vmem:[%s2066 + $0x8] sm:$0xf]
      %v2070 = vld [vmem:[%s2066 + $0x10] sm:$0x8]
      %v2071 = vld [vmem:[%s2066 + $0x14] sm:$0xf]
      %v2072 = vld [vmem:[%s2066 + $0x18] sm:$0xf]
      %v2073 = vld [vmem:[%s2066 + $0x20] sm:$0x8]
      %v2074 = vld [vmem:[%s2066 + $0x24] sm:$0xf]
      %v2075 = vld [vmem:[%s2066 + $0x28] sm:$0xf]
      %v2076 = vld [vmem:[%s2066 + $0x30] sm:$0x8]
      %v2077 = vld [vmem:[%s2066 + $0x34] sm:$0xf]
      %v2078 = vld [vmem:[%s2066 + $0x38] sm:$0xf]
      %v2079 = vld [vmem:[%s2066 + $0x40] sm:$0x8]
      %v2080 = vld [vmem:[%s2066 + $0x44] sm:$0xf]
      %v2081 = vld [vmem:[%s2066 + $0x48] sm:$0xf]
      %v2082 = vld [vmem:[%s2066 + $0x50] sm:$0x8]
      %v2083 = vld [vmem:[%s2066 + $0x54] sm:$0xf]
      %v2084 = vld [vmem:[%s2066 + $0x58] sm:$0xf]
      %v2085 = vld [vmem:[%s2066 + $0x60] sm:$0x8]
      %v2086 = vld [vmem:[%s2066 + $0x64] sm:$0xf]
      %v2087 = vld [vmem:[%s2066 + $0x68] sm:$0xf]
      %v2088 = vld [vmem:[%s2066 + $0x70] sm:$0x8]
      %v2089 = vld [vmem:[%s2066 + $0x74] sm:$0xf]
      %v2090 = vld [vmem:[%s2066 + $0x78] sm:$0xf]
      %v2091 = vld [vmem:[%s2066 + $0x80] sm:$0x8]
      %v2092 = vld [vmem:[%s2066 + $0x84] sm:$0xf]
      %v2093 = vld [vmem:[%s2066 + $0x88] sm:$0xf]
      %v2094 = vld [vmem:[%s2066 + $0x90] sm:$0x8]
      %v2095 = vld [vmem:[%s2066 + $0x94] sm:$0xf]
      %v2096 = vld [vmem:[%s2066 + $0x98] sm:$0xf]
      %v2097 = vld [vmem:[%s2066 + $0xa0] sm:$0x8]
      %v2098 = vld [vmem:[%s2066 + $0xa4] sm:$0xf]
      %v2099 = vld [vmem:[%s2066 + $0xa8] sm:$0xf]
      %v2100 = vld [vmem:[%s2066 + $0xb0] sm:$0x8]
      %v2101 = vld [vmem:[%s2066 + $0xb4] sm:$0xf]
      %v2102 = vld [vmem:[%s2066 + $0xb8] sm:$0xf]
      %v2103 = vld [vmem:[%s2066 + $0xc0] sm:$0x8]
      %v2104 = vld [vmem:[%s2066 + $0xc4] sm:$0xf]
      %v2105 = vld [vmem:[%s2066 + $0xc8] sm:$0xf]
      %v2106 = vld [vmem:[%s2066 + $0xd0] sm:$0x8]
      %v2107 = vld [vmem:[%s2066 + $0xd4] sm:$0xf]
      %v2108 = vld [vmem:[%s2066 + $0xd8] sm:$0xf]
      %v2109 = vld [vmem:[%s2066 + $0xe0] sm:$0x8]
      %v2110 = vld [vmem:[%s2066 + $0xe4] sm:$0xf]
      %v2111 = vld [vmem:[%s2066 + $0xe8] sm:$0xf]
      %v2112 = vld [vmem:[%s2066 + $0xf0] sm:$0x8]
      %v2113 = vld [vmem:[%s2066 + $0xf4] sm:$0xf]
      %v2114 = vld [vmem:[%s2066 + $0xf8] sm:$0xf]
      %v2115 = vld [vmem:[%s2066 + $0xc] sm:$0x1]
      %v2116 = vld [vmem:[%s2066 + $0x1c] sm:$0x1]
      %v2117 = vld [vmem:[%s2066 + $0x2c] sm:$0x1]
      %v2118 = vld [vmem:[%s2066 + $0x3c] sm:$0x1]
      %v2119 = vld [vmem:[%s2066 + $0x4c] sm:$0x1]
      %v2120 = vld [vmem:[%s2066 + $0x5c] sm:$0x1]
      %v2121 = vld [vmem:[%s2066 + $0x6c] sm:$0x1]
      %v2122 = vld [vmem:[%s2066 + $0x7c] sm:$0x1]
      %v2123 = vld [vmem:[%s2066 + $0x8c] sm:$0x1]
      %v2124 = vld [vmem:[%s2066 + $0x9c] sm:$0x1]
      %v2125 = vld [vmem:[%s2066 + $0xac] sm:$0x1]
      %v2126 = vld [vmem:[%s2066 + $0xbc] sm:$0x1]
      %v2127 = vld [vmem:[%s2066 + $0xcc] sm:$0x1]
      %v2128 = vld [vmem:[%s2066 + $0xdc] sm:$0x1]
      %v2129 = vld [vmem:[%s2066 + $0xec] sm:$0x1]
      %v2130 = vld [vmem:[%s2066 + $0xfc] sm:$0x1]
      %v2179 = vunpack.c.l.b16 %v2067
      %v2180 = vunpack.c.l.b16 %v2068
      %v2181 = vunpack.c.l.b16 %v2069
      %v2182 = vunpack.c.l.b16 %v2070
      %v2183 = vunpack.c.l.b16 %v2071
      %v2184 = vunpack.c.l.b16 %v2072
      %v2185 = vunpack.c.l.b16 %v2073
      %v2186 = vunpack.c.l.b16 %v2074
      %v2187 = vunpack.c.l.b16 %v2075
      %v2188 = vunpack.c.l.b16 %v2076
      %v2189 = vunpack.c.l.b16 %v2077
      %v2190 = vunpack.c.l.b16 %v2078
      %v2191 = vunpack.c.l.b16 %v2079
      %v2192 = vunpack.c.l.b16 %v2080
      %v2193 = vunpack.c.l.b16 %v2081
      %v2194 = vunpack.c.l.b16 %v2082
      %v2195 = vunpack.c.l.b16 %v2083
      %v2196 = vunpack.c.l.b16 %v2084
      %v2197 = vunpack.c.l.b16 %v2085
      %v2198 = vunpack.c.l.b16 %v2086
      %v2199 = vunpack.c.l.b16 %v2087
      %v2200 = vunpack.c.l.b16 %v2088
      %v2201 = vunpack.c.l.b16 %v2089
      %v2202 = vunpack.c.l.b16 %v2090
      %v2203 = vunpack.c.l.b16 %v2091
      %v2204 = vunpack.c.l.b16 %v2092
      %v2205 = vunpack.c.l.b16 %v2093
      %v2206 = vunpack.c.l.b16 %v2094
      %v2207 = vunpack.c.l.b16 %v2095
      %v2208 = vunpack.c.l.b16 %v2096
      %v2209 = vunpack.c.l.b16 %v2097
      %v2210 = vunpack.c.l.b16 %v2098
      %v2211 = vunpack.c.l.b16 %v2099
      %v2212 = vunpack.c.l.b16 %v2100
      %v2213 = vunpack.c.l.b16 %v2101
      %v2214 = vunpack.c.l.b16 %v2102
      %v2215 = vunpack.c.l.b16 %v2103
      %v2216 = vunpack.c.l.b16 %v2104
      %v2217 = vunpack.c.l.b16 %v2105
      %v2218 = vunpack.c.l.b16 %v2106
      %v2219 = vunpack.c.l.b16 %v2107
      %v2220 = vunpack.c.l.b16 %v2108
      %v2221 = vunpack.c.l.b16 %v2109
      %v2222 = vunpack.c.l.b16 %v2110
      %v2223 = vunpack.c.l.b16 %v2111
      %v2224 = vunpack.c.l.b16 %v2112
      %v2225 = vunpack.c.l.b16 %v2113
      %v2226 = vunpack.c.l.b16 %v2114
      %v2227 = vpack.c.b16 %v2180, %v2179
      %v2228 = vpack.c.b16 %v2181, %v2181
      %v2229 = vpack.c.b16 %v2183, %v2182
      %v2230 = vpack.c.b16 %v2184, %v2184
      %v2231 = vpack.c.b16 %v2186, %v2185
      %v2232 = vpack.c.b16 %v2187, %v2187
      %v2233 = vpack.c.b16 %v2189, %v2188
      %v2234 = vpack.c.b16 %v2190, %v2190
      %v2235 = vpack.c.b16 %v2192, %v2191
      %v2236 = vpack.c.b16 %v2193, %v2193
      %v2237 = vpack.c.b16 %v2195, %v2194
      %v2238 = vpack.c.b16 %v2196, %v2196
      %v2239 = vpack.c.b16 %v2198, %v2197
      %v2240 = vpack.c.b16 %v2199, %v2199
      %v2241 = vpack.c.b16 %v2201, %v2200
      %v2242 = vpack.c.b16 %v2202, %v2202
      %v2243 = vpack.c.b16 %v2204, %v2203
      %v2244 = vpack.c.b16 %v2205, %v2205
      %v2245 = vpack.c.b16 %v2207, %v2206
      %v2246 = vpack.c.b16 %v2208, %v2208
      %v2247 = vpack.c.b16 %v2210, %v2209
      %v2248 = vpack.c.b16 %v2211, %v2211
      %v2249 = vpack.c.b16 %v2213, %v2212
      %v2250 = vpack.c.b16 %v2214, %v2214
      %v2251 = vpack.c.b16 %v2216, %v2215
      %v2252 = vpack.c.b16 %v2217, %v2217
      %v2253 = vpack.c.b16 %v2219, %v2218
      %v2254 = vpack.c.b16 %v2220, %v2220
      %v2255 = vpack.c.b16 %v2222, %v2221
      %v2256 = vpack.c.b16 %v2223, %v2223
      %v2257 = vpack.c.b16 %v2225, %v2224
      %v2258 = vpack.c.b16 %v2226, %v2226
      %v2259 = vpack.c.b16 %v2181, %v2180
      %v2260 = vpack.c.b16 %v2184, %v2183
      %v2261 = vpack.c.b16 %v2187, %v2186
      %v2262 = vpack.c.b16 %v2190, %v2189
      %v2263 = vpack.c.b16 %v2193, %v2192
      %v2264 = vpack.c.b16 %v2196, %v2195
      %v2265 = vpack.c.b16 %v2199, %v2198
      %v2266 = vpack.c.b16 %v2202, %v2201
      %v2267 = vpack.c.b16 %v2205, %v2204
      %v2268 = vpack.c.b16 %v2208, %v2207
      %v2269 = vpack.c.b16 %v2211, %v2210
      %v2270 = vpack.c.b16 %v2214, %v2213
      %v2271 = vpack.c.b16 %v2217, %v2216
      %v2272 = vpack.c.b16 %v2220, %v2219
      %v2273 = vpack.c.b16 %v2223, %v2222
      %v2274 = vpack.c.b16 %v2226, %v2225
      %v2276 = vshrl.u32 %v2259, 16
      %v2278 = vrot.slane %v2276, 4
      %v2279 = vshll.u32 %v2259, 16
      %v2281 = vrot.slane %v2279, 5
      %v2282 = vor.u32 %v2278, %v2281
      %v2284 = vshrl.u32 %v2260, 16
      %v2286 = vrot.slane %v2284, 4
      %v2287 = vshll.u32 %v2260, 16
      %v2289 = vrot.slane %v2287, 5
      %v2290 = vor.u32 %v2286, %v2289
      %v2292 = vshrl.u32 %v2261, 16
      %v2294 = vrot.slane %v2292, 4
      %v2295 = vshll.u32 %v2261, 16
      %v2297 = vrot.slane %v2295, 5
      %v2298 = vor.u32 %v2294, %v2297
      %v2300 = vshrl.u32 %v2262, 16
      %v2302 = vrot.slane %v2300, 4
      %v2303 = vshll.u32 %v2262, 16
      %v2305 = vrot.slane %v2303, 5
      %v2306 = vor.u32 %v2302, %v2305
      %v2308 = vshrl.u32 %v2263, 16
      %v2310 = vrot.slane %v2308, 4
      %v2311 = vshll.u32 %v2263, 16
      %v2313 = vrot.slane %v2311, 5
      %v2314 = vor.u32 %v2310, %v2313
      %v2316 = vshrl.u32 %v2264, 16
      %v2318 = vrot.slane %v2316, 4
      %v2319 = vshll.u32 %v2264, 16
      %v2321 = vrot.slane %v2319, 5
      %v2322 = vor.u32 %v2318, %v2321
      %v2324 = vshrl.u32 %v2265, 16
      %v2326 = vrot.slane %v2324, 4
      %v2327 = vshll.u32 %v2265, 16
      %v2329 = vrot.slane %v2327, 5
      %v2330 = vor.u32 %v2326, %v2329
      %v2332 = vshrl.u32 %v2266, 16
      %v2334 = vrot.slane %v2332, 4
      %v2335 = vshll.u32 %v2266, 16
      %v2337 = vrot.slane %v2335, 5
      %v2338 = vor.u32 %v2334, %v2337
      %v2340 = vshrl.u32 %v2267, 16
      %v2342 = vrot.slane %v2340, 4
      %v2343 = vshll.u32 %v2267, 16
      %v2345 = vrot.slane %v2343, 5
      %v2346 = vor.u32 %v2342, %v2345
      %v2348 = vshrl.u32 %v2268, 16
      %v2350 = vrot.slane %v2348, 4
      %v2351 = vshll.u32 %v2268, 16
      %v2353 = vrot.slane %v2351, 5
      %v2354 = vor.u32 %v2350, %v2353
      %v2356 = vshrl.u32 %v2269, 16
      %v2358 = vrot.slane %v2356, 4
      %v2359 = vshll.u32 %v2269, 16
      %v2361 = vrot.slane %v2359, 5
      %v2362 = vor.u32 %v2358, %v2361
      %v2364 = vshrl.u32 %v2270, 16
      %v2366 = vrot.slane %v2364, 4
      %v2367 = vshll.u32 %v2270, 16
      %v2369 = vrot.slane %v2367, 5
      %v2370 = vor.u32 %v2366, %v2369
      %v2372 = vshrl.u32 %v2271, 16
      %v2374 = vrot.slane %v2372, 4
      %v2375 = vshll.u32 %v2271, 16
      %v2377 = vrot.slane %v2375, 5
      %v2378 = vor.u32 %v2374, %v2377
      %v2380 = vshrl.u32 %v2272, 16
      %v2382 = vrot.slane %v2380, 4
      %v2383 = vshll.u32 %v2272, 16
      %v2385 = vrot.slane %v2383, 5
      %v2386 = vor.u32 %v2382, %v2385
      %v2388 = vshrl.u32 %v2273, 16
      %v2390 = vrot.slane %v2388, 4
      %v2391 = vshll.u32 %v2273, 16
      %v2393 = vrot.slane %v2391, 5
      %v2394 = vor.u32 %v2390, %v2393
      %v2396 = vshrl.u32 %v2274, 16
      %v2398 = vrot.slane %v2396, 4
      %v2399 = vshll.u32 %v2274, 16
      %v2401 = vrot.slane %v2399, 5
      %v2402 = vor.u32 %v2398, %v2401
      %v2419 = vunpack.c.l.b16 %v2115
      %v2420 = vunpack.c.l.b16 %v2116
      %v2421 = vunpack.c.l.b16 %v2117
      %v2422 = vunpack.c.l.b16 %v2118
      %v2423 = vunpack.c.l.b16 %v2119
      %v2424 = vunpack.c.l.b16 %v2120
      %v2425 = vunpack.c.l.b16 %v2121
      %v2426 = vunpack.c.l.b16 %v2122
      %v2427 = vunpack.c.l.b16 %v2123
      %v2428 = vunpack.c.l.b16 %v2124
      %v2429 = vunpack.c.l.b16 %v2125
      %v2430 = vunpack.c.l.b16 %v2126
      %v2431 = vunpack.c.l.b16 %v2127
      %v2432 = vunpack.c.l.b16 %v2128
      %v2433 = vunpack.c.l.b16 %v2129
      %v2434 = vunpack.c.l.b16 %v2130
      %v2435 = vpack.c.b16 %v2419, %v2419
      %v2436 = vpack.c.b16 %v2420, %v2420
      %v2437 = vpack.c.b16 %v2421, %v2421
      %v2438 = vpack.c.b16 %v2422, %v2422
      %v2439 = vpack.c.b16 %v2423, %v2423
      %v2440 = vpack.c.b16 %v2424, %v2424
      %v2441 = vpack.c.b16 %v2425, %v2425
      %v2442 = vpack.c.b16 %v2426, %v2426
      %v2443 = vpack.c.b16 %v2427, %v2427
      %v2444 = vpack.c.b16 %v2428, %v2428
      %v2445 = vpack.c.b16 %v2429, %v2429
      %v2446 = vpack.c.b16 %v2430, %v2430
      %v2447 = vpack.c.b16 %v2431, %v2431
      %v2448 = vpack.c.b16 %v2432, %v2432
      %v2449 = vpack.c.b16 %v2433, %v2433
      %v2450 = vpack.c.b16 %v2434, %v2434
      %v2451 = vrot.slane %v2259, 5
      %v2452 = vrot.slane %v2435, 5
      %v2453 = vsel %vm786, %v2451, %v2452
      %v2454 = vrot.slane %v2260, 5
      %v2455 = vrot.slane %v2436, 5
      %v2456 = vsel %vm786, %v2454, %v2455
      %v2457 = vrot.slane %v2261, 5
      %v2458 = vrot.slane %v2437, 5
      %v2459 = vsel %vm786, %v2457, %v2458
      %v2460 = vrot.slane %v2262, 5
      %v2461 = vrot.slane %v2438, 5
      %v2462 = vsel %vm786, %v2460, %v2461
      %v2463 = vrot.slane %v2263, 5
      %v2464 = vrot.slane %v2439, 5
      %v2465 = vsel %vm786, %v2463, %v2464
      %v2466 = vrot.slane %v2264, 5
      %v2467 = vrot.slane %v2440, 5
      %v2468 = vsel %vm786, %v2466, %v2467
      %v2469 = vrot.slane %v2265, 5
      %v2470 = vrot.slane %v2441, 5
      %v2471 = vsel %vm786, %v2469, %v2470
      %v2472 = vrot.slane %v2266, 5
      %v2473 = vrot.slane %v2442, 5
      %v2474 = vsel %vm786, %v2472, %v2473
      %v2475 = vrot.slane %v2267, 5
      %v2476 = vrot.slane %v2443, 5
      %v2477 = vsel %vm786, %v2475, %v2476
      %v2478 = vrot.slane %v2268, 5
      %v2479 = vrot.slane %v2444, 5
      %v2480 = vsel %vm786, %v2478, %v2479
      %v2481 = vrot.slane %v2269, 5
      %v2482 = vrot.slane %v2445, 5
      %v2483 = vsel %vm786, %v2481, %v2482
      %v2484 = vrot.slane %v2270, 5
      %v2485 = vrot.slane %v2446, 5
      %v2486 = vsel %vm786, %v2484, %v2485
      %v2487 = vrot.slane %v2271, 5
      %v2488 = vrot.slane %v2447, 5
      %v2489 = vsel %vm786, %v2487, %v2488
      %v2490 = vrot.slane %v2272, 5
      %v2491 = vrot.slane %v2448, 5
      %v2492 = vsel %vm786, %v2490, %v2491
      %v2493 = vrot.slane %v2273, 5
      %v2494 = vrot.slane %v2449, 5
      %v2495 = vsel %vm786, %v2493, %v2494
      %v2496 = vrot.slane %v2274, 5
      %v2497 = vrot.slane %v2450, 5
      %v2498 = vsel %vm786, %v2496, %v2497
      %v2500 = vshrl.u32 %v2227, 16
      %v2502 = vrot.slane %v2500, 3
      %v2503 = vshll.u32 %v2227, 16
      %v2505 = vrot.slane %v2503, 4
      %v2506 = vor.u32 %v2502, %v2505
      %v2508 = vshrl.u32 %v2228, 16
      %v2510 = vrot.slane %v2508, 3
      %v2511 = vshll.u32 %v2228, 16
      %v2513 = vrot.slane %v2511, 4
      %v2514 = vor.u32 %v2510, %v2513
      %v2515 = vsel %vm835, %v2506, %v2514
      %v2517 = vshrl.u32 %v2282, 16
      %v2519 = vrot.slane %v2517, 3
      %v2520 = vshll.u32 %v2282, 16
      %v2522 = vrot.slane %v2520, 4
      %v2523 = vor.u32 %v2519, %v2522
      %v2524 = vsel %vm835, %v2523, %v2523
      %v2526 = vshrl.u32 %v2451, 16
      %v2528 = vrot.slane %v2526, 3
      %v2529 = vshll.u32 %v2451, 16
      %v2531 = vrot.slane %v2529, 4
      %v2532 = vor.u32 %v2528, %v2531
      %v2534 = vshrl.u32 %v2453, 16
      %v2536 = vrot.slane %v2534, 3
      %v2537 = vshll.u32 %v2453, 16
      %v2539 = vrot.slane %v2537, 4
      %v2540 = vor.u32 %v2536, %v2539
      %v2541 = vsel %vm835, %v2532, %v2540
      %v2543 = vshrl.u32 %v2229, 16
      %v2545 = vrot.slane %v2543, 3
      %v2546 = vshll.u32 %v2229, 16
      %v2548 = vrot.slane %v2546, 4
      %v2549 = vor.u32 %v2545, %v2548
      %v2551 = vshrl.u32 %v2230, 16
      %v2553 = vrot.slane %v2551, 3
      %v2554 = vshll.u32 %v2230, 16
      %v2556 = vrot.slane %v2554, 4
      %v2557 = vor.u32 %v2553, %v2556
      %v2558 = vsel %vm835, %v2549, %v2557
      %v2560 = vshrl.u32 %v2290, 16
      %v2562 = vrot.slane %v2560, 3
      %v2563 = vshll.u32 %v2290, 16
      %v2565 = vrot.slane %v2563, 4
      %v2566 = vor.u32 %v2562, %v2565
      %v2567 = vsel %vm835, %v2566, %v2566
      %v2569 = vshrl.u32 %v2454, 16
      %v2571 = vrot.slane %v2569, 3
      %v2572 = vshll.u32 %v2454, 16
      %v2574 = vrot.slane %v2572, 4
      %v2575 = vor.u32 %v2571, %v2574
      %v2577 = vshrl.u32 %v2456, 16
      %v2579 = vrot.slane %v2577, 3
      %v2580 = vshll.u32 %v2456, 16
      %v2582 = vrot.slane %v2580, 4
      %v2583 = vor.u32 %v2579, %v2582
      %v2584 = vsel %vm835, %v2575, %v2583
      %v2586 = vshrl.u32 %v2231, 16
      %v2588 = vrot.slane %v2586, 3
      %v2589 = vshll.u32 %v2231, 16
      %v2591 = vrot.slane %v2589, 4
      %v2592 = vor.u32 %v2588, %v2591
      %v2594 = vshrl.u32 %v2232, 16
      %v2596 = vrot.slane %v2594, 3
      %v2597 = vshll.u32 %v2232, 16
      %v2599 = vrot.slane %v2597, 4
      %v2600 = vor.u32 %v2596, %v2599
      %v2601 = vsel %vm835, %v2592, %v2600
      %v2603 = vshrl.u32 %v2298, 16
      %v2605 = vrot.slane %v2603, 3
      %v2606 = vshll.u32 %v2298, 16
      %v2608 = vrot.slane %v2606, 4
      %v2609 = vor.u32 %v2605, %v2608
      %v2610 = vsel %vm835, %v2609, %v2609
      %v2612 = vshrl.u32 %v2457, 16
      %v2614 = vrot.slane %v2612, 3
      %v2615 = vshll.u32 %v2457, 16
      %v2617 = vrot.slane %v2615, 4
      %v2618 = vor.u32 %v2614, %v2617
      %v2620 = vshrl.u32 %v2459, 16
      %v2622 = vrot.slane %v2620, 3
      %v2623 = vshll.u32 %v2459, 16
      %v2625 = vrot.slane %v2623, 4
      %v2626 = vor.u32 %v2622, %v2625
      %v2627 = vsel %vm835, %v2618, %v2626
      %v2629 = vshrl.u32 %v2233, 16
      %v2631 = vrot.slane %v2629, 3
      %v2632 = vshll.u32 %v2233, 16
      %v2634 = vrot.slane %v2632, 4
      %v2635 = vor.u32 %v2631, %v2634
      %v2637 = vshrl.u32 %v2234, 16
      %v2639 = vrot.slane %v2637, 3
      %v2640 = vshll.u32 %v2234, 16
      %v2642 = vrot.slane %v2640, 4
      %v2643 = vor.u32 %v2639, %v2642
      %v2644 = vsel %vm835, %v2635, %v2643
      %v2646 = vshrl.u32 %v2306, 16
      %v2648 = vrot.slane %v2646, 3
      %v2649 = vshll.u32 %v2306, 16
      %v2651 = vrot.slane %v2649, 4
      %v2652 = vor.u32 %v2648, %v2651
      %v2653 = vsel %vm835, %v2652, %v2652
      %v2655 = vshrl.u32 %v2460, 16
      %v2657 = vrot.slane %v2655, 3
      %v2658 = vshll.u32 %v2460, 16
      %v2660 = vrot.slane %v2658, 4
      %v2661 = vor.u32 %v2657, %v2660
      %v2663 = vshrl.u32 %v2462, 16
      %v2665 = vrot.slane %v2663, 3
      %v2666 = vshll.u32 %v2462, 16
      %v2668 = vrot.slane %v2666, 4
      %v2669 = vor.u32 %v2665, %v2668
      %v2670 = vsel %vm835, %v2661, %v2669
      %v2672 = vshrl.u32 %v2235, 16
      %v2674 = vrot.slane %v2672, 3
      %v2675 = vshll.u32 %v2235, 16
      %v2677 = vrot.slane %v2675, 4
      %v2678 = vor.u32 %v2674, %v2677
      %v2680 = vshrl.u32 %v2236, 16
      %v2682 = vrot.slane %v2680, 3
      %v2683 = vshll.u32 %v2236, 16
      %v2685 = vrot.slane %v2683, 4
      %v2686 = vor.u32 %v2682, %v2685
      %v2687 = vsel %vm835, %v2678, %v2686
      %v2689 = vshrl.u32 %v2314, 16
      %v2691 = vrot.slane %v2689, 3
      %v2692 = vshll.u32 %v2314, 16
      %v2694 = vrot.slane %v2692, 4
      %v2695 = vor.u32 %v2691, %v2694
      %v2696 = vsel %vm835, %v2695, %v2695
      %v2698 = vshrl.u32 %v2463, 16
      %v2700 = vrot.slane %v2698, 3
      %v2701 = vshll.u32 %v2463, 16
      %v2703 = vrot.slane %v2701, 4
      %v2704 = vor.u32 %v2700, %v2703
      %v2706 = vshrl.u32 %v2465, 16
      %v2708 = vrot.slane %v2706, 3
      %v2709 = vshll.u32 %v2465, 16
      %v2711 = vrot.slane %v2709, 4
      %v2712 = vor.u32 %v2708, %v2711
      %v2713 = vsel %vm835, %v2704, %v2712
      %v2715 = vshrl.u32 %v2237, 16
      %v2717 = vrot.slane %v2715, 3
      %v2718 = vshll.u32 %v2237, 16
      %v2720 = vrot.slane %v2718, 4
      %v2721 = vor.u32 %v2717, %v2720
      %v2723 = vshrl.u32 %v2238, 16
      %v2725 = vrot.slane %v2723, 3
      %v2726 = vshll.u32 %v2238, 16
      %v2728 = vrot.slane %v2726, 4
      %v2729 = vor.u32 %v2725, %v2728
      %v2730 = vsel %vm835, %v2721, %v2729
      %v2732 = vshrl.u32 %v2322, 16
      %v2734 = vrot.slane %v2732, 3
      %v2735 = vshll.u32 %v2322, 16
      %v2737 = vrot.slane %v2735, 4
      %v2738 = vor.u32 %v2734, %v2737
      %v2739 = vsel %vm835, %v2738, %v2738
      %v2741 = vshrl.u32 %v2466, 16
      %v2743 = vrot.slane %v2741, 3
      %v2744 = vshll.u32 %v2466, 16
      %v2746 = vrot.slane %v2744, 4
      %v2747 = vor.u32 %v2743, %v2746
      %v2749 = vshrl.u32 %v2468, 16
      %v2751 = vrot.slane %v2749, 3
      %v2752 = vshll.u32 %v2468, 16
      %v2754 = vrot.slane %v2752, 4
      %v2755 = vor.u32 %v2751, %v2754
      %v2756 = vsel %vm835, %v2747, %v2755
      %v2758 = vshrl.u32 %v2239, 16
      %v2760 = vrot.slane %v2758, 3
      %v2761 = vshll.u32 %v2239, 16
      %v2763 = vrot.slane %v2761, 4
      %v2764 = vor.u32 %v2760, %v2763
      %v2766 = vshrl.u32 %v2240, 16
      %v2768 = vrot.slane %v2766, 3
      %v2769 = vshll.u32 %v2240, 16
      %v2771 = vrot.slane %v2769, 4
      %v2772 = vor.u32 %v2768, %v2771
      %v2773 = vsel %vm835, %v2764, %v2772
      %v2775 = vshrl.u32 %v2330, 16
      %v2777 = vrot.slane %v2775, 3
      %v2778 = vshll.u32 %v2330, 16
      %v2780 = vrot.slane %v2778, 4
      %v2781 = vor.u32 %v2777, %v2780
      %v2782 = vsel %vm835, %v2781, %v2781
      %v2784 = vshrl.u32 %v2469, 16
      %v2786 = vrot.slane %v2784, 3
      %v2787 = vshll.u32 %v2469, 16
      %v2789 = vrot.slane %v2787, 4
      %v2790 = vor.u32 %v2786, %v2789
      %v2792 = vshrl.u32 %v2471, 16
      %v2794 = vrot.slane %v2792, 3
      %v2795 = vshll.u32 %v2471, 16
      %v2797 = vrot.slane %v2795, 4
      %v2798 = vor.u32 %v2794, %v2797
      %v2799 = vsel %vm835, %v2790, %v2798
      %v2801 = vshrl.u32 %v2241, 16
      %v2803 = vrot.slane %v2801, 3
      %v2804 = vshll.u32 %v2241, 16
      %v2806 = vrot.slane %v2804, 4
      %v2807 = vor.u32 %v2803, %v2806
      %v2809 = vshrl.u32 %v2242, 16
      %v2811 = vrot.slane %v2809, 3
      %v2812 = vshll.u32 %v2242, 16
      %v2814 = vrot.slane %v2812, 4
      %v2815 = vor.u32 %v2811, %v2814
      %v2816 = vsel %vm835, %v2807, %v2815
      %v2818 = vshrl.u32 %v2338, 16
      %v2820 = vrot.slane %v2818, 3
      %v2821 = vshll.u32 %v2338, 16
      %v2823 = vrot.slane %v2821, 4
      %v2824 = vor.u32 %v2820, %v2823
      %v2825 = vsel %vm835, %v2824, %v2824
      %v2827 = vshrl.u32 %v2472, 16
      %v2829 = vrot.slane %v2827, 3
      %v2830 = vshll.u32 %v2472, 16
      %v2832 = vrot.slane %v2830, 4
      %v2833 = vor.u32 %v2829, %v2832
      %v2835 = vshrl.u32 %v2474, 16
      %v2837 = vrot.slane %v2835, 3
      %v2838 = vshll.u32 %v2474, 16
      %v2840 = vrot.slane %v2838, 4
      %v2841 = vor.u32 %v2837, %v2840
      %v2842 = vsel %vm835, %v2833, %v2841
      %v2844 = vshrl.u32 %v2243, 16
      %v2846 = vrot.slane %v2844, 3
      %v2847 = vshll.u32 %v2243, 16
      %v2849 = vrot.slane %v2847, 4
      %v2850 = vor.u32 %v2846, %v2849
      %v2852 = vshrl.u32 %v2244, 16
      %v2854 = vrot.slane %v2852, 3
      %v2855 = vshll.u32 %v2244, 16
      %v2857 = vrot.slane %v2855, 4
      %v2858 = vor.u32 %v2854, %v2857
      %v2859 = vsel %vm835, %v2850, %v2858
      %v2861 = vshrl.u32 %v2346, 16
      %v2863 = vrot.slane %v2861, 3
      %v2864 = vshll.u32 %v2346, 16
      %v2866 = vrot.slane %v2864, 4
      %v2867 = vor.u32 %v2863, %v2866
      %v2868 = vsel %vm835, %v2867, %v2867
      %v2870 = vshrl.u32 %v2475, 16
      %v2872 = vrot.slane %v2870, 3
      %v2873 = vshll.u32 %v2475, 16
      %v2875 = vrot.slane %v2873, 4
      %v2876 = vor.u32 %v2872, %v2875
      %v2878 = vshrl.u32 %v2477, 16
      %v2880 = vrot.slane %v2878, 3
      %v2881 = vshll.u32 %v2477, 16
      %v2883 = vrot.slane %v2881, 4
      %v2884 = vor.u32 %v2880, %v2883
      %v2885 = vsel %vm835, %v2876, %v2884
      %v2887 = vshrl.u32 %v2245, 16
      %v2889 = vrot.slane %v2887, 3
      %v2890 = vshll.u32 %v2245, 16
      %v2892 = vrot.slane %v2890, 4
      %v2893 = vor.u32 %v2889, %v2892
      %v2895 = vshrl.u32 %v2246, 16
      %v2897 = vrot.slane %v2895, 3
      %v2898 = vshll.u32 %v2246, 16
      %v2900 = vrot.slane %v2898, 4
      %v2901 = vor.u32 %v2897, %v2900
      %v2902 = vsel %vm835, %v2893, %v2901
      %v2904 = vshrl.u32 %v2354, 16
      %v2906 = vrot.slane %v2904, 3
      %v2907 = vshll.u32 %v2354, 16
      %v2909 = vrot.slane %v2907, 4
      %v2910 = vor.u32 %v2906, %v2909
      %v2911 = vsel %vm835, %v2910, %v2910
      %v2913 = vshrl.u32 %v2478, 16
      %v2915 = vrot.slane %v2913, 3
      %v2916 = vshll.u32 %v2478, 16
      %v2918 = vrot.slane %v2916, 4
      %v2919 = vor.u32 %v2915, %v2918
      %v2921 = vshrl.u32 %v2480, 16
      %v2923 = vrot.slane %v2921, 3
      %v2924 = vshll.u32 %v2480, 16
      %v2926 = vrot.slane %v2924, 4
      %v2927 = vor.u32 %v2923, %v2926
      %v2928 = vsel %vm835, %v2919, %v2927
      %v2930 = vshrl.u32 %v2247, 16
      %v2932 = vrot.slane %v2930, 3
      %v2933 = vshll.u32 %v2247, 16
      %v2935 = vrot.slane %v2933, 4
      %v2936 = vor.u32 %v2932, %v2935
      %v2938 = vshrl.u32 %v2248, 16
      %v2940 = vrot.slane %v2938, 3
      %v2941 = vshll.u32 %v2248, 16
      %v2943 = vrot.slane %v2941, 4
      %v2944 = vor.u32 %v2940, %v2943
      %v2945 = vsel %vm835, %v2936, %v2944
      %v2947 = vshrl.u32 %v2362, 16
      %v2949 = vrot.slane %v2947, 3
      %v2950 = vshll.u32 %v2362, 16
      %v2952 = vrot.slane %v2950, 4
      %v2953 = vor.u32 %v2949, %v2952
      %v2954 = vsel %vm835, %v2953, %v2953
      %v2956 = vshrl.u32 %v2481, 16
      %v2958 = vrot.slane %v2956, 3
      %v2959 = vshll.u32 %v2481, 16
      %v2961 = vrot.slane %v2959, 4
      %v2962 = vor.u32 %v2958, %v2961
      %v2964 = vshrl.u32 %v2483, 16
      %v2966 = vrot.slane %v2964, 3
      %v2967 = vshll.u32 %v2483, 16
      %v2969 = vrot.slane %v2967, 4
      %v2970 = vor.u32 %v2966, %v2969
      %v2971 = vsel %vm835, %v2962, %v2970
      %v2973 = vshrl.u32 %v2249, 16
      %v2975 = vrot.slane %v2973, 3
      %v2976 = vshll.u32 %v2249, 16
      %v2978 = vrot.slane %v2976, 4
      %v2979 = vor.u32 %v2975, %v2978
      %v2981 = vshrl.u32 %v2250, 16
      %v2983 = vrot.slane %v2981, 3
      %v2984 = vshll.u32 %v2250, 16
      %v2986 = vrot.slane %v2984, 4
      %v2987 = vor.u32 %v2983, %v2986
      %v2988 = vsel %vm835, %v2979, %v2987
      %v2990 = vshrl.u32 %v2370, 16
      %v2992 = vrot.slane %v2990, 3
      %v2993 = vshll.u32 %v2370, 16
      %v2995 = vrot.slane %v2993, 4
      %v2996 = vor.u32 %v2992, %v2995
      %v2997 = vsel %vm835, %v2996, %v2996
      %v2999 = vshrl.u32 %v2484, 16
      %v3001 = vrot.slane %v2999, 3
      %v3002 = vshll.u32 %v2484, 16
      %v3004 = vrot.slane %v3002, 4
      %v3005 = vor.u32 %v3001, %v3004
      %v3007 = vshrl.u32 %v2486, 16
      %v3009 = vrot.slane %v3007, 3
      %v3010 = vshll.u32 %v2486, 16
      %v3012 = vrot.slane %v3010, 4
      %v3013 = vor.u32 %v3009, %v3012
      %v3014 = vsel %vm835, %v3005, %v3013
      %v3016 = vshrl.u32 %v2251, 16
      %v3018 = vrot.slane %v3016, 3
      %v3019 = vshll.u32 %v2251, 16
      %v3021 = vrot.slane %v3019, 4
      %v3022 = vor.u32 %v3018, %v3021
      %v3024 = vshrl.u32 %v2252, 16
      %v3026 = vrot.slane %v3024, 3
      %v3027 = vshll.u32 %v2252, 16
      %v3029 = vrot.slane %v3027, 4
      %v3030 = vor.u32 %v3026, %v3029
      %v3031 = vsel %vm835, %v3022, %v3030
      %v3033 = vshrl.u32 %v2378, 16
      %v3035 = vrot.slane %v3033, 3
      %v3036 = vshll.u32 %v2378, 16
      %v3038 = vrot.slane %v3036, 4
      %v3039 = vor.u32 %v3035, %v3038
      %v3040 = vsel %vm835, %v3039, %v3039
      %v3042 = vshrl.u32 %v2487, 16
      %v3044 = vrot.slane %v3042, 3
      %v3045 = vshll.u32 %v2487, 16
      %v3047 = vrot.slane %v3045, 4
      %v3048 = vor.u32 %v3044, %v3047
      %v3050 = vshrl.u32 %v2489, 16
      %v3052 = vrot.slane %v3050, 3
      %v3053 = vshll.u32 %v2489, 16
      %v3055 = vrot.slane %v3053, 4
      %v3056 = vor.u32 %v3052, %v3055
      %v3057 = vsel %vm835, %v3048, %v3056
      %v3059 = vshrl.u32 %v2253, 16
      %v3061 = vrot.slane %v3059, 3
      %v3062 = vshll.u32 %v2253, 16
      %v3064 = vrot.slane %v3062, 4
      %v3065 = vor.u32 %v3061, %v3064
      %v3067 = vshrl.u32 %v2254, 16
      %v3069 = vrot.slane %v3067, 3
      %v3070 = vshll.u32 %v2254, 16
      %v3072 = vrot.slane %v3070, 4
      %v3073 = vor.u32 %v3069, %v3072
      %v3074 = vsel %vm835, %v3065, %v3073
      %v3076 = vshrl.u32 %v2386, 16
      %v3078 = vrot.slane %v3076, 3
      %v3079 = vshll.u32 %v2386, 16
      %v3081 = vrot.slane %v3079, 4
      %v3082 = vor.u32 %v3078, %v3081
      %v3083 = vsel %vm835, %v3082, %v3082
      %v3085 = vshrl.u32 %v2490, 16
      %v3087 = vrot.slane %v3085, 3
      %v3088 = vshll.u32 %v2490, 16
      %v3090 = vrot.slane %v3088, 4
      %v3091 = vor.u32 %v3087, %v3090
      %v3093 = vshrl.u32 %v2492, 16
      %v3095 = vrot.slane %v3093, 3
      %v3096 = vshll.u32 %v2492, 16
      %v3098 = vrot.slane %v3096, 4
      %v3099 = vor.u32 %v3095, %v3098
      %v3100 = vsel %vm835, %v3091, %v3099
      %v3102 = vshrl.u32 %v2255, 16
      %v3104 = vrot.slane %v3102, 3
      %v3105 = vshll.u32 %v2255, 16
      %v3107 = vrot.slane %v3105, 4
      %v3108 = vor.u32 %v3104, %v3107
      %v3110 = vshrl.u32 %v2256, 16
      %v3112 = vrot.slane %v3110, 3
      %v3113 = vshll.u32 %v2256, 16
      %v3115 = vrot.slane %v3113, 4
      %v3116 = vor.u32 %v3112, %v3115
      %v3117 = vsel %vm835, %v3108, %v3116
      %v3119 = vshrl.u32 %v2394, 16
      %v3121 = vrot.slane %v3119, 3
      %v3122 = vshll.u32 %v2394, 16
      %v3124 = vrot.slane %v3122, 4
      %v3125 = vor.u32 %v3121, %v3124
      %v3126 = vsel %vm835, %v3125, %v3125
      %v3128 = vshrl.u32 %v2493, 16
      %v3130 = vrot.slane %v3128, 3
      %v3131 = vshll.u32 %v2493, 16
      %v3133 = vrot.slane %v3131, 4
      %v3134 = vor.u32 %v3130, %v3133
      %v3136 = vshrl.u32 %v2495, 16
      %v3138 = vrot.slane %v3136, 3
      %v3139 = vshll.u32 %v2495, 16
      %v3141 = vrot.slane %v3139, 4
      %v3142 = vor.u32 %v3138, %v3141
      %v3143 = vsel %vm835, %v3134, %v3142
      %v3145 = vshrl.u32 %v2257, 16
      %v3147 = vrot.slane %v3145, 3
      %v3148 = vshll.u32 %v2257, 16
      %v3150 = vrot.slane %v3148, 4
      %v3151 = vor.u32 %v3147, %v3150
      %v3153 = vshrl.u32 %v2258, 16
      %v3155 = vrot.slane %v3153, 3
      %v3156 = vshll.u32 %v2258, 16
      %v3158 = vrot.slane %v3156, 4
      %v3159 = vor.u32 %v3155, %v3158
      %v3160 = vsel %vm835, %v3151, %v3159
      %v3162 = vshrl.u32 %v2402, 16
      %v3164 = vrot.slane %v3162, 3
      %v3165 = vshll.u32 %v2402, 16
      %v3167 = vrot.slane %v3165, 4
      %v3168 = vor.u32 %v3164, %v3167
      %v3169 = vsel %vm835, %v3168, %v3168
      %v3171 = vshrl.u32 %v2496, 16
      %v3173 = vrot.slane %v3171, 3
      %v3174 = vshll.u32 %v2496, 16
      %v3176 = vrot.slane %v3174, 4
      %v3177 = vor.u32 %v3173, %v3176
      %v3179 = vshrl.u32 %v2498, 16
      %v3181 = vrot.slane %v3179, 3
      %v3182 = vshll.u32 %v2498, 16
      %v3184 = vrot.slane %v3182, 4
      %v3185 = vor.u32 %v3181, %v3184
      %v3186 = vsel %vm835, %v3177, %v3185
      %s3235 = scalar_lea.vmem %s1, 192
      %v3236 = vld [vmem:[%s3235] sm:$0xf]
      %v3237 = vld [vmem:[%s3235 + $0x4] sm:$0xf]
      %v3238 = vld [vmem:[%s3235 + $0x8] sm:$0xf]
      %v3239 = vld [vmem:[%s3235 + $0xc] sm:$0xf]
      %v3240 = vld [vmem:[%s3235 + $0x10] sm:$0xf]
      %v3241 = vld [vmem:[%s3235 + $0x14] sm:$0xf]
      %v3242 = vld [vmem:[%s3235 + $0x18] sm:$0xf]
      %v3243 = vld [vmem:[%s3235 + $0x1c] sm:$0xf]
      %v3244 = vld [vmem:[%s3235 + $0x20] sm:$0xf]
      %v3245 = vld [vmem:[%s3235 + $0x24] sm:$0xf]
      %v3246 = vld [vmem:[%s3235 + $0x28] sm:$0xf]
      %v3247 = vld [vmem:[%s3235 + $0x2c] sm:$0xf]
      %v3248 = vld [vmem:[%s3235 + $0x30] sm:$0xf]
      %v3249 = vld [vmem:[%s3235 + $0x34] sm:$0xf]
      %v3250 = vld [vmem:[%s3235 + $0x38] sm:$0xf]
      %v3251 = vld [vmem:[%s3235 + $0x3c] sm:$0xf]
      %v3252 = vld [vmem:[%s3235 + $0x40] sm:$0xf]
      %v3253 = vld [vmem:[%s3235 + $0x44] sm:$0xf]
      %v3254 = vld [vmem:[%s3235 + $0x48] sm:$0xf]
      %v3255 = vld [vmem:[%s3235 + $0x4c] sm:$0xf]
      %v3256 = vld [vmem:[%s3235 + $0x50] sm:$0xf]
      %v3257 = vld [vmem:[%s3235 + $0x54] sm:$0xf]
      %v3258 = vld [vmem:[%s3235 + $0x58] sm:$0xf]
      %v3259 = vld [vmem:[%s3235 + $0x5c] sm:$0xf]
      %v3260 = vld [vmem:[%s3235 + $0x60] sm:$0xf]
      %v3261 = vld [vmem:[%s3235 + $0x64] sm:$0xf]
      %v3262 = vld [vmem:[%s3235 + $0x68] sm:$0xf]
      %v3263 = vld [vmem:[%s3235 + $0x6c] sm:$0xf]
      %v3264 = vld [vmem:[%s3235 + $0x70] sm:$0xf]
      %v3265 = vld [vmem:[%s3235 + $0x74] sm:$0xf]
      %v3266 = vld [vmem:[%s3235 + $0x78] sm:$0xf]
      %v3267 = vld [vmem:[%s3235 + $0x7c] sm:$0xf]
      %v3268 = vld [vmem:[%s3235 + $0x80] sm:$0xf]
      %v3269 = vld [vmem:[%s3235 + $0x84] sm:$0xf]
      %v3270 = vld [vmem:[%s3235 + $0x88] sm:$0xf]
      %v3271 = vld [vmem:[%s3235 + $0x8c] sm:$0xf]
      %v3272 = vld [vmem:[%s3235 + $0x90] sm:$0xf]
      %v3273 = vld [vmem:[%s3235 + $0x94] sm:$0xf]
      %v3274 = vld [vmem:[%s3235 + $0x98] sm:$0xf]
      %v3275 = vld [vmem:[%s3235 + $0x9c] sm:$0xf]
      %v3276 = vld [vmem:[%s3235 + $0xa0] sm:$0xf]
      %v3277 = vld [vmem:[%s3235 + $0xa4] sm:$0xf]
      %v3278 = vld [vmem:[%s3235 + $0xa8] sm:$0xf]
      %v3279 = vld [vmem:[%s3235 + $0xac] sm:$0xf]
      %v3280 = vld [vmem:[%s3235 + $0xb0] sm:$0xf]
      %v3281 = vld [vmem:[%s3235 + $0xb4] sm:$0xf]
      %v3282 = vld [vmem:[%s3235 + $0xb8] sm:$0xf]
      %v3283 = vld [vmem:[%s3235 + $0xbc] sm:$0xf]
      %v3332 = vunpack.c.l.b16 %v3236
      %v3333 = vunpack.c.l.b16 %v3237
      %v3334 = vunpack.c.l.b16 %v3238
      %v3335 = vunpack.c.l.b16 %v3239
      %v3336 = vunpack.c.l.b16 %v3240
      %v3337 = vunpack.c.l.b16 %v3241
      %v3338 = vunpack.c.l.b16 %v3242
      %v3339 = vunpack.c.l.b16 %v3243
      %v3340 = vunpack.c.l.b16 %v3244
      %v3341 = vunpack.c.l.b16 %v3245
      %v3342 = vunpack.c.l.b16 %v3246
      %v3343 = vunpack.c.l.b16 %v3247
      %v3344 = vunpack.c.l.b16 %v3248
      %v3345 = vunpack.c.l.b16 %v3249
      %v3346 = vunpack.c.l.b16 %v3250
      %v3347 = vunpack.c.l.b16 %v3251
      %v3348 = vunpack.c.l.b16 %v3252
      %v3349 = vunpack.c.l.b16 %v3253
      %v3350 = vunpack.c.l.b16 %v3254
      %v3351 = vunpack.c.l.b16 %v3255
      %v3352 = vunpack.c.l.b16 %v3256
      %v3353 = vunpack.c.l.b16 %v3257
      %v3354 = vunpack.c.l.b16 %v3258
      %v3355 = vunpack.c.l.b16 %v3259
      %v3356 = vunpack.c.l.b16 %v3260
      %v3357 = vunpack.c.l.b16 %v3261
      %v3358 = vunpack.c.l.b16 %v3262
      %v3359 = vunpack.c.l.b16 %v3263
      %v3360 = vunpack.c.l.b16 %v3264
      %v3361 = vunpack.c.l.b16 %v3265
      %v3362 = vunpack.c.l.b16 %v3266
      %v3363 = vunpack.c.l.b16 %v3267
      %v3364 = vunpack.c.l.b16 %v3268
      %v3365 = vunpack.c.l.b16 %v3269
      %v3366 = vunpack.c.l.b16 %v3270
      %v3367 = vunpack.c.l.b16 %v3271
      %v3368 = vunpack.c.l.b16 %v3272
      %v3369 = vunpack.c.l.b16 %v3273
      %v3370 = vunpack.c.l.b16 %v3274
      %v3371 = vunpack.c.l.b16 %v3275
      %v3372 = vunpack.c.l.b16 %v3276
      %v3373 = vunpack.c.l.b16 %v3277
      %v3374 = vunpack.c.l.b16 %v3278
      %v3375 = vunpack.c.l.b16 %v3279
      %v3376 = vunpack.c.l.b16 %v3280
      %v3377 = vunpack.c.l.b16 %v3281
      %v3378 = vunpack.c.l.b16 %v3282
      %v3379 = vunpack.c.l.b16 %v3283
      %v3380 = vpack.c.b16 %v3333, %v3332
      %v3381 = vpack.c.b16 %v3335, %v3334
      %v3382 = vpack.c.b16 %v3337, %v3336
      %v3383 = vpack.c.b16 %v3339, %v3338
      %v3384 = vpack.c.b16 %v3341, %v3340
      %v3385 = vpack.c.b16 %v3343, %v3342
      %v3386 = vpack.c.b16 %v3345, %v3344
      %v3387 = vpack.c.b16 %v3347, %v3346
      %v3388 = vpack.c.b16 %v3349, %v3348
      %v3389 = vpack.c.b16 %v3351, %v3350
      %v3390 = vpack.c.b16 %v3353, %v3352
      %v3391 = vpack.c.b16 %v3355, %v3354
      %v3392 = vpack.c.b16 %v3357, %v3356
      %v3393 = vpack.c.b16 %v3359, %v3358
      %v3394 = vpack.c.b16 %v3361, %v3360
      %v3395 = vpack.c.b16 %v3363, %v3362
      %v3396 = vpack.c.b16 %v3365, %v3364
      %v3397 = vpack.c.b16 %v3367, %v3366
      %v3398 = vpack.c.b16 %v3369, %v3368
      %v3399 = vpack.c.b16 %v3371, %v3370
      %v3400 = vpack.c.b16 %v3373, %v3372
      %v3401 = vpack.c.b16 %v3375, %v3374
      %v3402 = vpack.c.b16 %v3377, %v3376
      %v3403 = vpack.c.b16 %v3379, %v3378
      %3428 = vmatpush.bf16.msra.mxu0 %v3387
      %3429 = vmatpush.bf16.msra.mxu0 %v3386
      %3430 = vmatpush.bf16.msra.mxu0 %v3385
      %3431 = vmatpush.bf16.msra.mxu0 %v3384
      %3432 = vmatpush.bf16.msra.mxu0 %v3383
      %3433 = vmatpush.bf16.msra.mxu0 %v3382
      %3434 = vmatpush.bf16.msra.mxu0 %v3381
      %3435 = vmatpush.bf16.msra.mxu0 %v3380
      %3436 = vmatmul.bf16.gmra.mxu0 %v2515
      %v3437 = vpop.f32.mrf.mxu0
      %v3438 = vadd.f32 0.0, %v3437
      %v3439 = vpop.f32.mrf.mxu0
      %v3440 = vadd.f32 0.0, %v3439
      %3441 = vmatmul.bf16.gmra.mxu0 %v2558
      %v3442 = vpop.f32.mrf.mxu0
      %v3443 = vadd.f32 0.0, %v3442
      %v3444 = vpop.f32.mrf.mxu0
      %v3445 = vadd.f32 0.0, %v3444
      %3446 = vmatmul.bf16.gmra.mxu0 %v2601
      %v3447 = vpop.f32.mrf.mxu0
      %v3448 = vadd.f32 0.0, %v3447
      %v3449 = vpop.f32.mrf.mxu0
      %v3450 = vadd.f32 0.0, %v3449
      %3451 = vmatmul.bf16.gmra.mxu0 %v2644
      %v3452 = vpop.f32.mrf.mxu0
      %v3453 = vadd.f32 0.0, %v3452
      %v3454 = vpop.f32.mrf.mxu0
      %v3455 = vadd.f32 0.0, %v3454
      %3456 = vmatmul.bf16.gmra.mxu0 %v2687
      %v3457 = vpop.f32.mrf.mxu0
      %v3458 = vadd.f32 0.0, %v3457
      %v3459 = vpop.f32.mrf.mxu0
      %v3460 = vadd.f32 0.0, %v3459
      %3461 = vmatmul.bf16.gmra.mxu0 %v2730
      %v3462 = vpop.f32.mrf.mxu0
      %v3463 = vadd.f32 0.0, %v3462
      %v3464 = vpop.f32.mrf.mxu0
      %v3465 = vadd.f32 0.0, %v3464
      %3466 = vmatmul.bf16.gmra.mxu0 %v2773
      %v3467 = vpop.f32.mrf.mxu0
      %v3468 = vadd.f32 0.0, %v3467
      %v3469 = vpop.f32.mrf.mxu0
      %v3470 = vadd.f32 0.0, %v3469
      %3471 = vmatmul.bf16.gmra.mxu0 %v2816
      %v3472 = vpop.f32.mrf.mxu0
      %v3473 = vadd.f32 0.0, %v3472
      %v3474 = vpop.f32.mrf.mxu0
      %v3475 = vadd.f32 0.0, %v3474
      %3476 = vmatmul.bf16.gmra.mxu0 %v2859
      %v3477 = vpop.f32.mrf.mxu0
      %v3478 = vadd.f32 0.0, %v3477
      %v3479 = vpop.f32.mrf.mxu0
      %v3480 = vadd.f32 0.0, %v3479
      %3481 = vmatmul.bf16.gmra.mxu0 %v2902
      %v3482 = vpop.f32.mrf.mxu0
      %v3483 = vadd.f32 0.0, %v3482
      %v3484 = vpop.f32.mrf.mxu0
      %v3485 = vadd.f32 0.0, %v3484
      %3486 = vmatmul.bf16.gmra.mxu0 %v2945
      %v3487 = vpop.f32.mrf.mxu0
      %v3488 = vadd.f32 0.0, %v3487
      %v3489 = vpop.f32.mrf.mxu0
      %v3490 = vadd.f32 0.0, %v3489
      %3491 = vmatmul.bf16.gmra.mxu0 %v2988
      %v3492 = vpop.f32.mrf.mxu0
      %v3493 = vadd.f32 0.0, %v3492
      %v3494 = vpop.f32.mrf.mxu0
      %v3495 = vadd.f32 0.0, %v3494
      %3496 = vmatmul.bf16.gmra.mxu0 %v3031
      %v3497 = vpop.f32.mrf.mxu0
      %v3498 = vadd.f32 0.0, %v3497
      %v3499 = vpop.f32.mrf.mxu0
      %v3500 = vadd.f32 0.0, %v3499
      %3501 = vmatmul.bf16.gmra.mxu0 %v3074
      %v3502 = vpop.f32.mrf.mxu0
      %v3503 = vadd.f32 0.0, %v3502
      %v3504 = vpop.f32.mrf.mxu0
      %v3505 = vadd.f32 0.0, %v3504
      %3506 = vmatmul.bf16.gmra.mxu0 %v3117
      %v3507 = vpop.f32.mrf.mxu0
      %v3508 = vadd.f32 0.0, %v3507
      %v3509 = vpop.f32.mrf.mxu0
      %v3510 = vadd.f32 0.0, %v3509
      %3511 = vmatmul.bf16.gmra.mxu0 %v3160
      %v3512 = vpop.f32.mrf.mxu0
      %v3513 = vadd.f32 0.0, %v3512
      %v3514 = vpop.f32.mrf.mxu0
      %v3515 = vadd.f32 0.0, %v3514
      %3516 = vdwg.mxu0
      %3517 = vmatpush.bf16.msra.mxu0 %v3395
      %3518 = vmatpush.bf16.msra.mxu0 %v3394
      %3519 = vmatpush.bf16.msra.mxu0 %v3393
      %3520 = vmatpush.bf16.msra.mxu0 %v3392
      %3521 = vmatpush.bf16.msra.mxu0 %v3391
      %3522 = vmatpush.bf16.msra.mxu0 %v3390
      %3523 = vmatpush.bf16.msra.mxu0 %v3389
      %3524 = vmatpush.bf16.msra.mxu0 %v3388
      %3525 = vmatmul.bf16.gmra.mxu0 %v2524
      %v3526 = vpop.f32.mrf.mxu0
      %v3527 = vadd.f32 %v3438, %v3526
      %v3528 = vpop.f32.mrf.mxu0
      %v3529 = vadd.f32 %v3440, %v3528
      %3530 = vmatmul.bf16.gmra.mxu0 %v2567
      %v3531 = vpop.f32.mrf.mxu0
      %v3532 = vadd.f32 %v3443, %v3531
      %v3533 = vpop.f32.mrf.mxu0
      %v3534 = vadd.f32 %v3445, %v3533
      %3535 = vmatmul.bf16.gmra.mxu0 %v2610
      %v3536 = vpop.f32.mrf.mxu0
      %v3537 = vadd.f32 %v3448, %v3536
      %v3538 = vpop.f32.mrf.mxu0
      %v3539 = vadd.f32 %v3450, %v3538
      %3540 = vmatmul.bf16.gmra.mxu0 %v2653
      %v3541 = vpop.f32.mrf.mxu0
      %v3542 = vadd.f32 %v3453, %v3541
      %v3543 = vpop.f32.mrf.mxu0
      %v3544 = vadd.f32 %v3455, %v3543
      %3545 = vmatmul.bf16.gmra.mxu0 %v2696
      %v3546 = vpop.f32.mrf.mxu0
      %v3547 = vadd.f32 %v3458, %v3546
      %v3548 = vpop.f32.mrf.mxu0
      %v3549 = vadd.f32 %v3460, %v3548
      %3550 = vmatmul.bf16.gmra.mxu0 %v2739
      %v3551 = vpop.f32.mrf.mxu0
      %v3552 = vadd.f32 %v3463, %v3551
      %v3553 = vpop.f32.mrf.mxu0
      %v3554 = vadd.f32 %v3465, %v3553
      %3555 = vmatmul.bf16.gmra.mxu0 %v2782
      %v3556 = vpop.f32.mrf.mxu0
      %v3557 = vadd.f32 %v3468, %v3556
      %v3558 = vpop.f32.mrf.mxu0
      %v3559 = vadd.f32 %v3470, %v3558
      %3560 = vmatmul.bf16.gmra.mxu0 %v2825
      %v3561 = vpop.f32.mrf.mxu0
      %v3562 = vadd.f32 %v3473, %v3561
      %v3563 = vpop.f32.mrf.mxu0
      %v3564 = vadd.f32 %v3475, %v3563
      %3565 = vmatmul.bf16.gmra.mxu0 %v2868
      %v3566 = vpop.f32.mrf.mxu0
      %v3567 = vadd.f32 %v3478, %v3566
      %v3568 = vpop.f32.mrf.mxu0
      %v3569 = vadd.f32 %v3480, %v3568
      %3570 = vmatmul.bf16.gmra.mxu0 %v2911
      %v3571 = vpop.f32.mrf.mxu0
      %v3572 = vadd.f32 %v3483, %v3571
      %v3573 = vpop.f32.mrf.mxu0
      %v3574 = vadd.f32 %v3485, %v3573
      %3575 = vmatmul.bf16.gmra.mxu0 %v2954
      %v3576 = vpop.f32.mrf.mxu0
      %v3577 = vadd.f32 %v3488, %v3576
      %v3578 = vpop.f32.mrf.mxu0
      %v3579 = vadd.f32 %v3490, %v3578
      %3580 = vmatmul.bf16.gmra.mxu0 %v2997
      %v3581 = vpop.f32.mrf.mxu0
      %v3582 = vadd.f32 %v3493, %v3581
      %v3583 = vpop.f32.mrf.mxu0
      %v3584 = vadd.f32 %v3495, %v3583
      %3585 = vmatmul.bf16.gmra.mxu0 %v3040
      %v3586 = vpop.f32.mrf.mxu0
      %v3587 = vadd.f32 %v3498, %v3586
      %v3588 = vpop.f32.mrf.mxu0
      %v3589 = vadd.f32 %v3500, %v3588
      %3590 = vmatmul.bf16.gmra.mxu0 %v3083
      %v3591 = vpop.f32.mrf.mxu0
      %v3592 = vadd.f32 %v3503, %v3591
      %v3593 = vpop.f32.mrf.mxu0
      %v3594 = vadd.f32 %v3505, %v3593
      %3595 = vmatmul.bf16.gmra.mxu0 %v3126
      %v3596 = vpop.f32.mrf.mxu0
      %v3597 = vadd.f32 %v3508, %v3596
      %v3598 = vpop.f32.mrf.mxu0
      %v3599 = vadd.f32 %v3510, %v3598
      %3600 = vmatmul.bf16.gmra.mxu0 %v3169
      %v3601 = vpop.f32.mrf.mxu0
      %v3602 = vadd.f32 %v3513, %v3601
      %v3603 = vpop.f32.mrf.mxu0
      %v3604 = vadd.f32 %v3515, %v3603
      %3605 = vdwg.mxu0
      %3606 = vmatpush.bf16.msra.mxu0 %v3403
      %3607 = vmatpush.bf16.msra.mxu0 %v3402
      %3608 = vmatpush.bf16.msra.mxu0 %v3401
      %3609 = vmatpush.bf16.msra.mxu0 %v3400
      %3610 = vmatpush.bf16.msra.mxu0 %v3399
      %3611 = vmatpush.bf16.msra.mxu0 %v3398
      %3612 = vmatpush.bf16.msra.mxu0 %v3397
      %3613 = vmatpush.bf16.msra.mxu0 %v3396
      %3614 = vmatmul.bf16.gmra.mxu0 %v2541
      %v3615 = vpop.f32.mrf.mxu0
      %v3616 = vadd.f32 %v3527, %v3615
      %v3617 = vpop.f32.mrf.mxu0
      %v3618 = vadd.f32 %v3529, %v3617
      %3619 = vmatmul.bf16.gmra.mxu0 %v2584
      %v3620 = vpop.f32.mrf.mxu0
      %v3621 = vadd.f32 %v3532, %v3620
      %v3622 = vpop.f32.mrf.mxu0
      %v3623 = vadd.f32 %v3534, %v3622
      %3624 = vmatmul.bf16.gmra.mxu0 %v2627
      %v3625 = vpop.f32.mrf.mxu0
      %v3626 = vadd.f32 %v3537, %v3625
      %v3627 = vpop.f32.mrf.mxu0
      %v3628 = vadd.f32 %v3539, %v3627
      %3629 = vmatmul.bf16.gmra.mxu0 %v2670
      %v3630 = vpop.f32.mrf.mxu0
      %v3631 = vadd.f32 %v3542, %v3630
      %v3632 = vpop.f32.mrf.mxu0
      %v3633 = vadd.f32 %v3544, %v3632
      %3634 = vmatmul.bf16.gmra.mxu0 %v2713
      %v3635 = vpop.f32.mrf.mxu0
      %v3636 = vadd.f32 %v3547, %v3635
      %v3637 = vpop.f32.mrf.mxu0
      %v3638 = vadd.f32 %v3549, %v3637
      %3639 = vmatmul.bf16.gmra.mxu0 %v2756
      %v3640 = vpop.f32.mrf.mxu0
      %v3641 = vadd.f32 %v3552, %v3640
      %v3642 = vpop.f32.mrf.mxu0
      %v3643 = vadd.f32 %v3554, %v3642
      %3644 = vmatmul.bf16.gmra.mxu0 %v2799
      %v3645 = vpop.f32.mrf.mxu0
      %v3646 = vadd.f32 %v3557, %v3645
      %v3647 = vpop.f32.mrf.mxu0
      %v3648 = vadd.f32 %v3559, %v3647
      %3649 = vmatmul.bf16.gmra.mxu0 %v2842
      %v3650 = vpop.f32.mrf.mxu0
      %v3651 = vadd.f32 %v3562, %v3650
      %v3652 = vpop.f32.mrf.mxu0
      %v3653 = vadd.f32 %v3564, %v3652
      %3654 = vmatmul.bf16.gmra.mxu0 %v2885
      %v3655 = vpop.f32.mrf.mxu0
      %v3656 = vadd.f32 %v3567, %v3655
      %v3657 = vpop.f32.mrf.mxu0
      %v3658 = vadd.f32 %v3569, %v3657
      %3659 = vmatmul.bf16.gmra.mxu0 %v2928
      %v3660 = vpop.f32.mrf.mxu0
      %v3661 = vadd.f32 %v3572, %v3660
      %v3662 = vpop.f32.mrf.mxu0
      %v3663 = vadd.f32 %v3574, %v3662
      %3664 = vmatmul.bf16.gmra.mxu0 %v2971
      %v3665 = vpop.f32.mrf.mxu0
      %v3666 = vadd.f32 %v3577, %v3665
      %v3667 = vpop.f32.mrf.mxu0
      %v3668 = vadd.f32 %v3579, %v3667
      %3669 = vmatmul.bf16.gmra.mxu0 %v3014
      %v3670 = vpop.f32.mrf.mxu0
      %v3671 = vadd.f32 %v3582, %v3670
      %v3672 = vpop.f32.mrf.mxu0
      %v3673 = vadd.f32 %v3584, %v3672
      %3674 = vmatmul.bf16.gmra.mxu0 %v3057
      %v3675 = vpop.f32.mrf.mxu0
      %v3676 = vadd.f32 %v3587, %v3675
      %v3677 = vpop.f32.mrf.mxu0
      %v3678 = vadd.f32 %v3589, %v3677
      %3679 = vmatmul.bf16.gmra.mxu0 %v3100
      %v3680 = vpop.f32.mrf.mxu0
      %v3681 = vadd.f32 %v3592, %v3680
      %v3682 = vpop.f32.mrf.mxu0
      %v3683 = vadd.f32 %v3594, %v3682
      %3684 = vmatmul.bf16.gmra.mxu0 %v3143
      %v3685 = vpop.f32.mrf.mxu0
      %v3686 = vadd.f32 %v3597, %v3685
      %v3687 = vpop.f32.mrf.mxu0
      %v3688 = vadd.f32 %v3599, %v3687
      %3689 = vmatmul.bf16.gmra.mxu0 %v3186
      %v3690 = vpop.f32.mrf.mxu0
      %v3691 = vadd.f32 %v3602, %v3690
      %v3692 = vpop.f32.mrf.mxu0
      %v3693 = vadd.f32 %v3604, %v3692
      %3694 = vdwg.mxu0
      %v3695 = vld [vmem:[#allocation3] sm:$0xff]
      %v3696 = vld [vmem:[#allocation3 + $0x8] sm:$0xff]
      %v3697 = vld [vmem:[#allocation3 + $0x10] sm:$0xff]
      %v3698 = vld [vmem:[#allocation3 + $0x18] sm:$0xff]
      %v3699 = vld [vmem:[#allocation3 + $0x20] sm:$0xff]
      %v3700 = vld [vmem:[#allocation3 + $0x28] sm:$0xff]
      %v3701 = vld [vmem:[#allocation3 + $0x30] sm:$0xff]
      %v3702 = vld [vmem:[#allocation3 + $0x38] sm:$0xff]
      %v3703 = vld [vmem:[#allocation3 + $0x40] sm:$0xff]
      %v3704 = vld [vmem:[#allocation3 + $0x48] sm:$0xff]
      %v3705 = vld [vmem:[#allocation3 + $0x50] sm:$0xff]
      %v3706 = vld [vmem:[#allocation3 + $0x58] sm:$0xff]
      %v3707 = vld [vmem:[#allocation3 + $0x60] sm:$0xff]
      %v3708 = vld [vmem:[#allocation3 + $0x68] sm:$0xff]
      %v3709 = vld [vmem:[#allocation3 + $0x70] sm:$0xff]
      %v3710 = vld [vmem:[#allocation3 + $0x78] sm:$0xff]
      %v3711 = vld [vmem:[#allocation3 + $0x80] sm:$0xff]
      %v3712 = vld [vmem:[#allocation3 + $0x88] sm:$0xff]
      %v3713 = vld [vmem:[#allocation3 + $0x90] sm:$0xff]
      %v3714 = vld [vmem:[#allocation3 + $0x98] sm:$0xff]
      %v3715 = vld [vmem:[#allocation3 + $0xa0] sm:$0xff]
      %v3716 = vld [vmem:[#allocation3 + $0xa8] sm:$0xff]
      %v3717 = vld [vmem:[#allocation3 + $0xb0] sm:$0xff]
      %v3718 = vld [vmem:[#allocation3 + $0xb8] sm:$0xff]
      %v3719 = vld [vmem:[#allocation3 + $0xc0] sm:$0xff]
      %v3720 = vld [vmem:[#allocation3 + $0xc8] sm:$0xff]
      %v3721 = vld [vmem:[#allocation3 + $0xd0] sm:$0xff]
      %v3722 = vld [vmem:[#allocation3 + $0xd8] sm:$0xff]
      %v3723 = vld [vmem:[#allocation3 + $0xe0] sm:$0xff]
      %v3724 = vld [vmem:[#allocation3 + $0xe8] sm:$0xff]
      %v3725 = vld [vmem:[#allocation3 + $0xf0] sm:$0xff]
      %v3726 = vld [vmem:[#allocation3 + $0xf8] sm:$0xff]
      %v3727 = vadd.f32 %v3695, %v3616
      %v3728 = vadd.f32 %v3696, %v3618
      %v3729 = vadd.f32 %v3697, %v3621
      %v3730 = vadd.f32 %v3698, %v3623
      %v3731 = vadd.f32 %v3699, %v3626
      %v3732 = vadd.f32 %v3700, %v3628
      %v3733 = vadd.f32 %v3701, %v3631
      %v3734 = vadd.f32 %v3702, %v3633
      %v3735 = vadd.f32 %v3703, %v3636
      %v3736 = vadd.f32 %v3704, %v3638
      %v3737 = vadd.f32 %v3705, %v3641
      %v3738 = vadd.f32 %v3706, %v3643
      %v3739 = vadd.f32 %v3707, %v3646
      %v3740 = vadd.f32 %v3708, %v3648
      %v3741 = vadd.f32 %v3709, %v3651
      %v3742 = vadd.f32 %v3710, %v3653
      %v3743 = vadd.f32 %v3711, %v3656
      %v3744 = vadd.f32 %v3712, %v3658
      %v3745 = vadd.f32 %v3713, %v3661
      %v3746 = vadd.f32 %v3714, %v3663
      %v3747 = vadd.f32 %v3715, %v3666
      %v3748 = vadd.f32 %v3716, %v3668
      %v3749 = vadd.f32 %v3717, %v3671
      %v3750 = vadd.f32 %v3718, %v3673
      %v3751 = vadd.f32 %v3719, %v3676
      %v3752 = vadd.f32 %v3720, %v3678
      %v3753 = vadd.f32 %v3721, %v3681
      %v3754 = vadd.f32 %v3722, %v3683
      %v3755 = vadd.f32 %v3723, %v3686
      %v3756 = vadd.f32 %v3724, %v3688
      %v3757 = vadd.f32 %v3725, %v3691
      %v3758 = vadd.f32 %v3726, %v3693
      %3759 = vst [vmem:[#allocation3] sm:$0xff] %v3727
      %3760 = vst [vmem:[#allocation3 + $0x8] sm:$0xff] %v3728
      %3761 = vst [vmem:[#allocation3 + $0x10] sm:$0xff] %v3729
      %3762 = vst [vmem:[#allocation3 + $0x18] sm:$0xff] %v3730
      %3763 = vst [vmem:[#allocation3 + $0x20] sm:$0xff] %v3731
      %3764 = vst [vmem:[#allocation3 + $0x28] sm:$0xff] %v3732
      %3765 = vst [vmem:[#allocation3 + $0x30] sm:$0xff] %v3733
      %3766 = vst [vmem:[#allocation3 + $0x38] sm:$0xff] %v3734
      %3767 = vst [vmem:[#allocation3 + $0x40] sm:$0xff] %v3735
      %3768 = vst [vmem:[#allocation3 + $0x48] sm:$0xff] %v3736
      %3769 = vst [vmem:[#allocation3 + $0x50] sm:$0xff] %v3737
      %3770 = vst [vmem:[#allocation3 + $0x58] sm:$0xff] %v3738
      %3771 = vst [vmem:[#allocation3 + $0x60] sm:$0xff] %v3739
      %3772 = vst [vmem:[#allocation3 + $0x68] sm:$0xff] %v3740
      %3773 = vst [vmem:[#allocation3 + $0x70] sm:$0xff] %v3741
      %3774 = vst [vmem:[#allocation3 + $0x78] sm:$0xff] %v3742
      %3775 = vst [vmem:[#allocation3 + $0x80] sm:$0xff] %v3743
      %3776 = vst [vmem:[#allocation3 + $0x88] sm:$0xff] %v3744
      %3777 = vst [vmem:[#allocation3 + $0x90] sm:$0xff] %v3745
      %3778 = vst [vmem:[#allocation3 + $0x98] sm:$0xff] %v3746
      %3779 = vst [vmem:[#allocation3 + $0xa0] sm:$0xff] %v3747
      %3780 = vst [vmem:[#allocation3 + $0xa8] sm:$0xff] %v3748
      %3781 = vst [vmem:[#allocation3 + $0xb0] sm:$0xff] %v3749
      %3782 = vst [vmem:[#allocation3 + $0xb8] sm:$0xff] %v3750
      %3783 = vst [vmem:[#allocation3 + $0xc0] sm:$0xff] %v3751
      %3784 = vst [vmem:[#allocation3 + $0xc8] sm:$0xff] %v3752
      %3785 = vst [vmem:[#allocation3 + $0xd0] sm:$0xff] %v3753
      %3786 = vst [vmem:[#allocation3 + $0xd8] sm:$0xff] %v3754
      %3787 = vst [vmem:[#allocation3 + $0xe0] sm:$0xff] %v3755
      %3788 = vst [vmem:[#allocation3 + $0xe8] sm:$0xff] %v3756
      %3789 = vst [vmem:[#allocation3 + $0xf0] sm:$0xff] %v3757
      %3790 = vst [vmem:[#allocation3 + $0xf8] sm:$0xff] %v3758
      %s3791 = sadd.s32 %s398, 2
      %s3792 = smul.u32 %s3791, 4
      %s3793 = smul.addr %s3792, 4
      %s3794 = scalar_lea.vmem [#allocation2], %s3793
      %v3795 = vld [vmem:[%s3794] sm:$0x8]
      %v3796 = vld [vmem:[%s3794 + $0x4] sm:$0xf]
      %v3797 = vld [vmem:[%s3794 + $0x8] sm:$0xf]
      %v3798 = vld [vmem:[%s3794 + $0x10] sm:$0x8]
      %v3799 = vld [vmem:[%s3794 + $0x14] sm:$0xf]
      %v3800 = vld [vmem:[%s3794 + $0x18] sm:$0xf]
      %v3801 = vld [vmem:[%s3794 + $0x20] sm:$0x8]
      %v3802 = vld [vmem:[%s3794 + $0x24] sm:$0xf]
      %v3803 = vld [vmem:[%s3794 + $0x28] sm:$0xf]
      %v3804 = vld [vmem:[%s3794 + $0x30] sm:$0x8]
      %v3805 = vld [vmem:[%s3794 + $0x34] sm:$0xf]
      %v3806 = vld [vmem:[%s3794 + $0x38] sm:$0xf]
      %v3807 = vld [vmem:[%s3794 + $0x40] sm:$0x8]
      %v3808 = vld [vmem:[%s3794 + $0x44] sm:$0xf]
      %v3809 = vld [vmem:[%s3794 + $0x48] sm:$0xf]
      %v3810 = vld [vmem:[%s3794 + $0x50] sm:$0x8]
      %v3811 = vld [vmem:[%s3794 + $0x54] sm:$0xf]
      %v3812 = vld [vmem:[%s3794 + $0x58] sm:$0xf]
      %v3813 = vld [vmem:[%s3794 + $0x60] sm:$0x8]
      %v3814 = vld [vmem:[%s3794 + $0x64] sm:$0xf]
      %v3815 = vld [vmem:[%s3794 + $0x68] sm:$0xf]
      %v3816 = vld [vmem:[%s3794 + $0x70] sm:$0x8]
      %v3817 = vld [vmem:[%s3794 + $0x74] sm:$0xf]
      %v3818 = vld [vmem:[%s3794 + $0x78] sm:$0xf]
      %v3819 = vld [vmem:[%s3794 + $0x80] sm:$0x8]
      %v3820 = vld [vmem:[%s3794 + $0x84] sm:$0xf]
      %v3821 = vld [vmem:[%s3794 + $0x88] sm:$0xf]
      %v3822 = vld [vmem:[%s3794 + $0x90] sm:$0x8]
      %v3823 = vld [vmem:[%s3794 + $0x94] sm:$0xf]
      %v3824 = vld [vmem:[%s3794 + $0x98] sm:$0xf]
      %v3825 = vld [vmem:[%s3794 + $0xa0] sm:$0x8]
      %v3826 = vld [vmem:[%s3794 + $0xa4] sm:$0xf]
      %v3827 = vld [vmem:[%s3794 + $0xa8] sm:$0xf]
      %v3828 = vld [vmem:[%s3794 + $0xb0] sm:$0x8]
      %v3829 = vld [vmem:[%s3794 + $0xb4] sm:$0xf]
      %v3830 = vld [vmem:[%s3794 + $0xb8] sm:$0xf]
      %v3831 = vld [vmem:[%s3794 + $0xc0] sm:$0x8]
      %v3832 = vld [vmem:[%s3794 + $0xc4] sm:$0xf]
      %v3833 = vld [vmem:[%s3794 + $0xc8] sm:$0xf]
      %v3834 = vld [vmem:[%s3794 + $0xd0] sm:$0x8]
      %v3835 = vld [vmem:[%s3794 + $0xd4] sm:$0xf]
      %v3836 = vld [vmem:[%s3794 + $0xd8] sm:$0xf]
      %v3837 = vld [vmem:[%s3794 + $0xe0] sm:$0x8]
      %v3838 = vld [vmem:[%s3794 + $0xe4] sm:$0xf]
      %v3839 = vld [vmem:[%s3794 + $0xe8] sm:$0xf]
      %v3840 = vld [vmem:[%s3794 + $0xf0] sm:$0x8]
      %v3841 = vld [vmem:[%s3794 + $0xf4] sm:$0xf]
      %v3842 = vld [vmem:[%s3794 + $0xf8] sm:$0xf]
      %v3843 = vld [vmem:[%s3794 + $0xc] sm:$0x1]
      %v3844 = vld [vmem:[%s3794 + $0x1c] sm:$0x1]
      %v3845 = vld [vmem:[%s3794 + $0x2c] sm:$0x1]
      %v3846 = vld [vmem:[%s3794 + $0x3c] sm:$0x1]
      %v3847 = vld [vmem:[%s3794 + $0x4c] sm:$0x1]
      %v3848 = vld [vmem:[%s3794 + $0x5c] sm:$0x1]
      %v3849 = vld [vmem:[%s3794 + $0x6c] sm:$0x1]
      %v3850 = vld [vmem:[%s3794 + $0x7c] sm:$0x1]
      %v3851 = vld [vmem:[%s3794 + $0x8c] sm:$0x1]
      %v3852 = vld [vmem:[%s3794 + $0x9c] sm:$0x1]
      %v3853 = vld [vmem:[%s3794 + $0xac] sm:$0x1]
      %v3854 = vld [vmem:[%s3794 + $0xbc] sm:$0x1]
      %v3855 = vld [vmem:[%s3794 + $0xcc] sm:$0x1]
      %v3856 = vld [vmem:[%s3794 + $0xdc] sm:$0x1]
      %v3857 = vld [vmem:[%s3794 + $0xec] sm:$0x1]
      %v3858 = vld [vmem:[%s3794 + $0xfc] sm:$0x1]
      %v3907 = vunpack.c.l.b16 %v3795
      %v3908 = vunpack.c.l.b16 %v3796
      %v3909 = vunpack.c.l.b16 %v3797
      %v3910 = vunpack.c.l.b16 %v3798
      %v3911 = vunpack.c.l.b16 %v3799
      %v3912 = vunpack.c.l.b16 %v3800
      %v3913 = vunpack.c.l.b16 %v3801
      %v3914 = vunpack.c.l.b16 %v3802
      %v3915 = vunpack.c.l.b16 %v3803
      %v3916 = vunpack.c.l.b16 %v3804
      %v3917 = vunpack.c.l.b16 %v3805
      %v3918 = vunpack.c.l.b16 %v3806
      %v3919 = vunpack.c.l.b16 %v3807
      %v3920 = vunpack.c.l.b16 %v3808
      %v3921 = vunpack.c.l.b16 %v3809
      %v3922 = vunpack.c.l.b16 %v3810
      %v3923 = vunpack.c.l.b16 %v3811
      %v3924 = vunpack.c.l.b16 %v3812
      %v3925 = vunpack.c.l.b16 %v3813
      %v3926 = vunpack.c.l.b16 %v3814
      %v3927 = vunpack.c.l.b16 %v3815
      %v3928 = vunpack.c.l.b16 %v3816
      %v3929 = vunpack.c.l.b16 %v3817
      %v3930 = vunpack.c.l.b16 %v3818
      %v3931 = vunpack.c.l.b16 %v3819
      %v3932 = vunpack.c.l.b16 %v3820
      %v3933 = vunpack.c.l.b16 %v3821
      %v3934 = vunpack.c.l.b16 %v3822
      %v3935 = vunpack.c.l.b16 %v3823
      %v3936 = vunpack.c.l.b16 %v3824
      %v3937 = vunpack.c.l.b16 %v3825
      %v3938 = vunpack.c.l.b16 %v3826
      %v3939 = vunpack.c.l.b16 %v3827
      %v3940 = vunpack.c.l.b16 %v3828
      %v3941 = vunpack.c.l.b16 %v3829
      %v3942 = vunpack.c.l.b16 %v3830
      %v3943 = vunpack.c.l.b16 %v3831
      %v3944 = vunpack.c.l.b16 %v3832
      %v3945 = vunpack.c.l.b16 %v3833
      %v3946 = vunpack.c.l.b16 %v3834
      %v3947 = vunpack.c.l.b16 %v3835
      %v3948 = vunpack.c.l.b16 %v3836
      %v3949 = vunpack.c.l.b16 %v3837
      %v3950 = vunpack.c.l.b16 %v3838
      %v3951 = vunpack.c.l.b16 %v3839
      %v3952 = vunpack.c.l.b16 %v3840
      %v3953 = vunpack.c.l.b16 %v3841
      %v3954 = vunpack.c.l.b16 %v3842
      %v3955 = vpack.c.b16 %v3908, %v3907
      %v3956 = vpack.c.b16 %v3909, %v3909
      %v3957 = vpack.c.b16 %v3911, %v3910
      %v3958 = vpack.c.b16 %v3912, %v3912
      %v3959 = vpack.c.b16 %v3914, %v3913
      %v3960 = vpack.c.b16 %v3915, %v3915
      %v3961 = vpack.c.b16 %v3917, %v3916
      %v3962 = vpack.c.b16 %v3918, %v3918
      %v3963 = vpack.c.b16 %v3920, %v3919
      %v3964 = vpack.c.b16 %v3921, %v3921
      %v3965 = vpack.c.b16 %v3923, %v3922
      %v3966 = vpack.c.b16 %v3924, %v3924
      %v3967 = vpack.c.b16 %v3926, %v3925
      %v3968 = vpack.c.b16 %v3927, %v3927
      %v3969 = vpack.c.b16 %v3929, %v3928
      %v3970 = vpack.c.b16 %v3930, %v3930
      %v3971 = vpack.c.b16 %v3932, %v3931
      %v3972 = vpack.c.b16 %v3933, %v3933
      %v3973 = vpack.c.b16 %v3935, %v3934
      %v3974 = vpack.c.b16 %v3936, %v3936
      %v3975 = vpack.c.b16 %v3938, %v3937
      %v3976 = vpack.c.b16 %v3939, %v3939
      %v3977 = vpack.c.b16 %v3941, %v3940
      %v3978 = vpack.c.b16 %v3942, %v3942
      %v3979 = vpack.c.b16 %v3944, %v3943
      %v3980 = vpack.c.b16 %v3945, %v3945
      %v3981 = vpack.c.b16 %v3947, %v3946
      %v3982 = vpack.c.b16 %v3948, %v3948
      %v3983 = vpack.c.b16 %v3950, %v3949
      %v3984 = vpack.c.b16 %v3951, %v3951
      %v3985 = vpack.c.b16 %v3953, %v3952
      %v3986 = vpack.c.b16 %v3954, %v3954
      %v3987 = vpack.c.b16 %v3909, %v3908
      %v3988 = vpack.c.b16 %v3912, %v3911
      %v3989 = vpack.c.b16 %v3915, %v3914
      %v3990 = vpack.c.b16 %v3918, %v3917
      %v3991 = vpack.c.b16 %v3921, %v3920
      %v3992 = vpack.c.b16 %v3924, %v3923
      %v3993 = vpack.c.b16 %v3927, %v3926
      %v3994 = vpack.c.b16 %v3930, %v3929
      %v3995 = vpack.c.b16 %v3933, %v3932
      %v3996 = vpack.c.b16 %v3936, %v3935
      %v3997 = vpack.c.b16 %v3939, %v3938
      %v3998 = vpack.c.b16 %v3942, %v3941
      %v3999 = vpack.c.b16 %v3945, %v3944
      %v4000 = vpack.c.b16 %v3948, %v3947
      %v4001 = vpack.c.b16 %v3951, %v3950
      %v4002 = vpack.c.b16 %v3954, %v3953
      %v4004 = vshrl.u32 %v3987, 16
      %v4006 = vrot.slane %v4004, 4
      %v4007 = vshll.u32 %v3987, 16
      %v4009 = vrot.slane %v4007, 5
      %v4010 = vor.u32 %v4006, %v4009
      %v4012 = vshrl.u32 %v3988, 16
      %v4014 = vrot.slane %v4012, 4
      %v4015 = vshll.u32 %v3988, 16
      %v4017 = vrot.slane %v4015, 5
      %v4018 = vor.u32 %v4014, %v4017
      %v4020 = vshrl.u32 %v3989, 16
      %v4022 = vrot.slane %v4020, 4
      %v4023 = vshll.u32 %v3989, 16
      %v4025 = vrot.slane %v4023, 5
      %v4026 = vor.u32 %v4022, %v4025
      %v4028 = vshrl.u32 %v3990, 16
      %v4030 = vrot.slane %v4028, 4
      %v4031 = vshll.u32 %v3990, 16
      %v4033 = vrot.slane %v4031, 5
      %v4034 = vor.u32 %v4030, %v4033
      %v4036 = vshrl.u32 %v3991, 16
      %v4038 = vrot.slane %v4036, 4
      %v4039 = vshll.u32 %v3991, 16
      %v4041 = vrot.slane %v4039, 5
      %v4042 = vor.u32 %v4038, %v4041
      %v4044 = vshrl.u32 %v3992, 16
      %v4046 = vrot.slane %v4044, 4
      %v4047 = vshll.u32 %v3992, 16
      %v4049 = vrot.slane %v4047, 5
      %v4050 = vor.u32 %v4046, %v4049
      %v4052 = vshrl.u32 %v3993, 16
      %v4054 = vrot.slane %v4052, 4
      %v4055 = vshll.u32 %v3993, 16
      %v4057 = vrot.slane %v4055, 5
      %v4058 = vor.u32 %v4054, %v4057
      %v4060 = vshrl.u32 %v3994, 16
      %v4062 = vrot.slane %v4060, 4
      %v4063 = vshll.u32 %v3994, 16
      %v4065 = vrot.slane %v4063, 5
      %v4066 = vor.u32 %v4062, %v4065
      %v4068 = vshrl.u32 %v3995, 16
      %v4070 = vrot.slane %v4068, 4
      %v4071 = vshll.u32 %v3995, 16
      %v4073 = vrot.slane %v4071, 5
      %v4074 = vor.u32 %v4070, %v4073
      %v4076 = vshrl.u32 %v3996, 16
      %v4078 = vrot.slane %v4076, 4
      %v4079 = vshll.u32 %v3996, 16
      %v4081 = vrot.slane %v4079, 5
      %v4082 = vor.u32 %v4078, %v4081
      %v4084 = vshrl.u32 %v3997, 16
      %v4086 = vrot.slane %v4084, 4
      %v4087 = vshll.u32 %v3997, 16
      %v4089 = vrot.slane %v4087, 5
      %v4090 = vor.u32 %v4086, %v4089
      %v4092 = vshrl.u32 %v3998, 16
      %v4094 = vrot.slane %v4092, 4
      %v4095 = vshll.u32 %v3998, 16
      %v4097 = vrot.slane %v4095, 5
      %v4098 = vor.u32 %v4094, %v4097
      %v4100 = vshrl.u32 %v3999, 16
      %v4102 = vrot.slane %v4100, 4
      %v4103 = vshll.u32 %v3999, 16
      %v4105 = vrot.slane %v4103, 5
      %v4106 = vor.u32 %v4102, %v4105
      %v4108 = vshrl.u32 %v4000, 16
      %v4110 = vrot.slane %v4108, 4
      %v4111 = vshll.u32 %v4000, 16
      %v4113 = vrot.slane %v4111, 5
      %v4114 = vor.u32 %v4110, %v4113
      %v4116 = vshrl.u32 %v4001, 16
      %v4118 = vrot.slane %v4116, 4
      %v4119 = vshll.u32 %v4001, 16
      %v4121 = vrot.slane %v4119, 5
      %v4122 = vor.u32 %v4118, %v4121
      %v4124 = vshrl.u32 %v4002, 16
      %v4126 = vrot.slane %v4124, 4
      %v4127 = vshll.u32 %v4002, 16
      %v4129 = vrot.slane %v4127, 5
      %v4130 = vor.u32 %v4126, %v4129
      %v4147 = vunpack.c.l.b16 %v3843
      %v4148 = vunpack.c.l.b16 %v3844
      %v4149 = vunpack.c.l.b16 %v3845
      %v4150 = vunpack.c.l.b16 %v3846
      %v4151 = vunpack.c.l.b16 %v3847
      %v4152 = vunpack.c.l.b16 %v3848
      %v4153 = vunpack.c.l.b16 %v3849
      %v4154 = vunpack.c.l.b16 %v3850
      %v4155 = vunpack.c.l.b16 %v3851
      %v4156 = vunpack.c.l.b16 %v3852
      %v4157 = vunpack.c.l.b16 %v3853
      %v4158 = vunpack.c.l.b16 %v3854
      %v4159 = vunpack.c.l.b16 %v3855
      %v4160 = vunpack.c.l.b16 %v3856
      %v4161 = vunpack.c.l.b16 %v3857
      %v4162 = vunpack.c.l.b16 %v3858
      %v4163 = vpack.c.b16 %v4147, %v4147
      %v4164 = vpack.c.b16 %v4148, %v4148
      %v4165 = vpack.c.b16 %v4149, %v4149
      %v4166 = vpack.c.b16 %v4150, %v4150
      %v4167 = vpack.c.b16 %v4151, %v4151
      %v4168 = vpack.c.b16 %v4152, %v4152
      %v4169 = vpack.c.b16 %v4153, %v4153
      %v4170 = vpack.c.b16 %v4154, %v4154
      %v4171 = vpack.c.b16 %v4155, %v4155
      %v4172 = vpack.c.b16 %v4156, %v4156
      %v4173 = vpack.c.b16 %v4157, %v4157
      %v4174 = vpack.c.b16 %v4158, %v4158
      %v4175 = vpack.c.b16 %v4159, %v4159
      %v4176 = vpack.c.b16 %v4160, %v4160
      %v4177 = vpack.c.b16 %v4161, %v4161
      %v4178 = vpack.c.b16 %v4162, %v4162
      %v4179 = vrot.slane %v3987, 5
      %v4180 = vrot.slane %v4163, 5
      %v4181 = vsel %vm786, %v4179, %v4180
      %v4182 = vrot.slane %v3988, 5
      %v4183 = vrot.slane %v4164, 5
      %v4184 = vsel %vm786, %v4182, %v4183
      %v4185 = vrot.slane %v3989, 5
      %v4186 = vrot.slane %v4165, 5
      %v4187 = vsel %vm786, %v4185, %v4186
      %v4188 = vrot.slane %v3990, 5
      %v4189 = vrot.slane %v4166, 5
      %v4190 = vsel %vm786, %v4188, %v4189
      %v4191 = vrot.slane %v3991, 5
      %v4192 = vrot.slane %v4167, 5
      %v4193 = vsel %vm786, %v4191, %v4192
      %v4194 = vrot.slane %v3992, 5
      %v4195 = vrot.slane %v4168, 5
      %v4196 = vsel %vm786, %v4194, %v4195
      %v4197 = vrot.slane %v3993, 5
      %v4198 = vrot.slane %v4169, 5
      %v4199 = vsel %vm786, %v4197, %v4198
      %v4200 = vrot.slane %v3994, 5
      %v4201 = vrot.slane %v4170, 5
      %v4202 = vsel %vm786, %v4200, %v4201
      %v4203 = vrot.slane %v3995, 5
      %v4204 = vrot.slane %v4171, 5
      %v4205 = vsel %vm786, %v4203, %v4204
      %v4206 = vrot.slane %v3996, 5
      %v4207 = vrot.slane %v4172, 5
      %v4208 = vsel %vm786, %v4206, %v4207
      %v4209 = vrot.slane %v3997, 5
      %v4210 = vrot.slane %v4173, 5
      %v4211 = vsel %vm786, %v4209, %v4210
      %v4212 = vrot.slane %v3998, 5
      %v4213 = vrot.slane %v4174, 5
      %v4214 = vsel %vm786, %v4212, %v4213
      %v4215 = vrot.slane %v3999, 5
      %v4216 = vrot.slane %v4175, 5
      %v4217 = vsel %vm786, %v4215, %v4216
      %v4218 = vrot.slane %v4000, 5
      %v4219 = vrot.slane %v4176, 5
      %v4220 = vsel %vm786, %v4218, %v4219
      %v4221 = vrot.slane %v4001, 5
      %v4222 = vrot.slane %v4177, 5
      %v4223 = vsel %vm786, %v4221, %v4222
      %v4224 = vrot.slane %v4002, 5
      %v4225 = vrot.slane %v4178, 5
      %v4226 = vsel %vm786, %v4224, %v4225
      %v4228 = vshrl.u32 %v3955, 16
      %v4230 = vrot.slane %v4228, 3
      %v4231 = vshll.u32 %v3955, 16
      %v4233 = vrot.slane %v4231, 4
      %v4234 = vor.u32 %v4230, %v4233
      %v4236 = vshrl.u32 %v3956, 16
      %v4238 = vrot.slane %v4236, 3
      %v4239 = vshll.u32 %v3956, 16
      %v4241 = vrot.slane %v4239, 4
      %v4242 = vor.u32 %v4238, %v4241
      %v4243 = vsel %vm835, %v4234, %v4242
      %v4245 = vshrl.u32 %v4010, 16
      %v4247 = vrot.slane %v4245, 3
      %v4248 = vshll.u32 %v4010, 16
      %v4250 = vrot.slane %v4248, 4
      %v4251 = vor.u32 %v4247, %v4250
      %v4252 = vsel %vm835, %v4251, %v4251
      %v4254 = vshrl.u32 %v4179, 16
      %v4256 = vrot.slane %v4254, 3
      %v4257 = vshll.u32 %v4179, 16
      %v4259 = vrot.slane %v4257, 4
      %v4260 = vor.u32 %v4256, %v4259
      %v4262 = vshrl.u32 %v4181, 16
      %v4264 = vrot.slane %v4262, 3
      %v4265 = vshll.u32 %v4181, 16
      %v4267 = vrot.slane %v4265, 4
      %v4268 = vor.u32 %v4264, %v4267
      %v4269 = vsel %vm835, %v4260, %v4268
      %v4271 = vshrl.u32 %v3957, 16
      %v4273 = vrot.slane %v4271, 3
      %v4274 = vshll.u32 %v3957, 16
      %v4276 = vrot.slane %v4274, 4
      %v4277 = vor.u32 %v4273, %v4276
      %v4279 = vshrl.u32 %v3958, 16
      %v4281 = vrot.slane %v4279, 3
      %v4282 = vshll.u32 %v3958, 16
      %v4284 = vrot.slane %v4282, 4
      %v4285 = vor.u32 %v4281, %v4284
      %v4286 = vsel %vm835, %v4277, %v4285
      %v4288 = vshrl.u32 %v4018, 16
      %v4290 = vrot.slane %v4288, 3
      %v4291 = vshll.u32 %v4018, 16
      %v4293 = vrot.slane %v4291, 4
      %v4294 = vor.u32 %v4290, %v4293
      %v4295 = vsel %vm835, %v4294, %v4294
      %v4297 = vshrl.u32 %v4182, 16
      %v4299 = vrot.slane %v4297, 3
      %v4300 = vshll.u32 %v4182, 16
      %v4302 = vrot.slane %v4300, 4
      %v4303 = vor.u32 %v4299, %v4302
      %v4305 = vshrl.u32 %v4184, 16
      %v4307 = vrot.slane %v4305, 3
      %v4308 = vshll.u32 %v4184, 16
      %v4310 = vrot.slane %v4308, 4
      %v4311 = vor.u32 %v4307, %v4310
      %v4312 = vsel %vm835, %v4303, %v4311
      %v4314 = vshrl.u32 %v3959, 16
      %v4316 = vrot.slane %v4314, 3
      %v4317 = vshll.u32 %v3959, 16
      %v4319 = vrot.slane %v4317, 4
      %v4320 = vor.u32 %v4316, %v4319
      %v4322 = vshrl.u32 %v3960, 16
      %v4324 = vrot.slane %v4322, 3
      %v4325 = vshll.u32 %v3960, 16
      %v4327 = vrot.slane %v4325, 4
      %v4328 = vor.u32 %v4324, %v4327
      %v4329 = vsel %vm835, %v4320, %v4328
      %v4331 = vshrl.u32 %v4026, 16
      %v4333 = vrot.slane %v4331, 3
      %v4334 = vshll.u32 %v4026, 16
      %v4336 = vrot.slane %v4334, 4
      %v4337 = vor.u32 %v4333, %v4336
      %v4338 = vsel %vm835, %v4337, %v4337
      %v4340 = vshrl.u32 %v4185, 16
      %v4342 = vrot.slane %v4340, 3
      %v4343 = vshll.u32 %v4185, 16
      %v4345 = vrot.slane %v4343, 4
      %v4346 = vor.u32 %v4342, %v4345
      %v4348 = vshrl.u32 %v4187, 16
      %v4350 = vrot.slane %v4348, 3
      %v4351 = vshll.u32 %v4187, 16
      %v4353 = vrot.slane %v4351, 4
      %v4354 = vor.u32 %v4350, %v4353
      %v4355 = vsel %vm835, %v4346, %v4354
      %v4357 = vshrl.u32 %v3961, 16
      %v4359 = vrot.slane %v4357, 3
      %v4360 = vshll.u32 %v3961, 16
      %v4362 = vrot.slane %v4360, 4
      %v4363 = vor.u32 %v4359, %v4362
      %v4365 = vshrl.u32 %v3962, 16
      %v4367 = vrot.slane %v4365, 3
      %v4368 = vshll.u32 %v3962, 16
      %v4370 = vrot.slane %v4368, 4
      %v4371 = vor.u32 %v4367, %v4370
      %v4372 = vsel %vm835, %v4363, %v4371
      %v4374 = vshrl.u32 %v4034, 16
      %v4376 = vrot.slane %v4374, 3
      %v4377 = vshll.u32 %v4034, 16
      %v4379 = vrot.slane %v4377, 4
      %v4380 = vor.u32 %v4376, %v4379
      %v4381 = vsel %vm835, %v4380, %v4380
      %v4383 = vshrl.u32 %v4188, 16
      %v4385 = vrot.slane %v4383, 3
      %v4386 = vshll.u32 %v4188, 16
      %v4388 = vrot.slane %v4386, 4
      %v4389 = vor.u32 %v4385, %v4388
      %v4391 = vshrl.u32 %v4190, 16
      %v4393 = vrot.slane %v4391, 3
      %v4394 = vshll.u32 %v4190, 16
      %v4396 = vrot.slane %v4394, 4
      %v4397 = vor.u32 %v4393, %v4396
      %v4398 = vsel %vm835, %v4389, %v4397
      %v4400 = vshrl.u32 %v3963, 16
      %v4402 = vrot.slane %v4400, 3
      %v4403 = vshll.u32 %v3963, 16
      %v4405 = vrot.slane %v4403, 4
      %v4406 = vor.u32 %v4402, %v4405
      %v4408 = vshrl.u32 %v3964, 16
      %v4410 = vrot.slane %v4408, 3
      %v4411 = vshll.u32 %v3964, 16
      %v4413 = vrot.slane %v4411, 4
      %v4414 = vor.u32 %v4410, %v4413
      %v4415 = vsel %vm835, %v4406, %v4414
      %v4417 = vshrl.u32 %v4042, 16
      %v4419 = vrot.slane %v4417, 3
      %v4420 = vshll.u32 %v4042, 16
      %v4422 = vrot.slane %v4420, 4
      %v4423 = vor.u32 %v4419, %v4422
      %v4424 = vsel %vm835, %v4423, %v4423
      %v4426 = vshrl.u32 %v4191, 16
      %v4428 = vrot.slane %v4426, 3
      %v4429 = vshll.u32 %v4191, 16
      %v4431 = vrot.slane %v4429, 4
      %v4432 = vor.u32 %v4428, %v4431
      %v4434 = vshrl.u32 %v4193, 16
      %v4436 = vrot.slane %v4434, 3
      %v4437 = vshll.u32 %v4193, 16
      %v4439 = vrot.slane %v4437, 4
      %v4440 = vor.u32 %v4436, %v4439
      %v4441 = vsel %vm835, %v4432, %v4440
      %v4443 = vshrl.u32 %v3965, 16
      %v4445 = vrot.slane %v4443, 3
      %v4446 = vshll.u32 %v3965, 16
      %v4448 = vrot.slane %v4446, 4
      %v4449 = vor.u32 %v4445, %v4448
      %v4451 = vshrl.u32 %v3966, 16
      %v4453 = vrot.slane %v4451, 3
      %v4454 = vshll.u32 %v3966, 16
      %v4456 = vrot.slane %v4454, 4
      %v4457 = vor.u32 %v4453, %v4456
      %v4458 = vsel %vm835, %v4449, %v4457
      %v4460 = vshrl.u32 %v4050, 16
      %v4462 = vrot.slane %v4460, 3
      %v4463 = vshll.u32 %v4050, 16
      %v4465 = vrot.slane %v4463, 4
      %v4466 = vor.u32 %v4462, %v4465
      %v4467 = vsel %vm835, %v4466, %v4466
      %v4469 = vshrl.u32 %v4194, 16
      %v4471 = vrot.slane %v4469, 3
      %v4472 = vshll.u32 %v4194, 16
      %v4474 = vrot.slane %v4472, 4
      %v4475 = vor.u32 %v4471, %v4474
      %v4477 = vshrl.u32 %v4196, 16
      %v4479 = vrot.slane %v4477, 3
      %v4480 = vshll.u32 %v4196, 16
      %v4482 = vrot.slane %v4480, 4
      %v4483 = vor.u32 %v4479, %v4482
      %v4484 = vsel %vm835, %v4475, %v4483
      %v4486 = vshrl.u32 %v3967, 16
      %v4488 = vrot.slane %v4486, 3
      %v4489 = vshll.u32 %v3967, 16
      %v4491 = vrot.slane %v4489, 4
      %v4492 = vor.u32 %v4488, %v4491
      %v4494 = vshrl.u32 %v3968, 16
      %v4496 = vrot.slane %v4494, 3
      %v4497 = vshll.u32 %v3968, 16
      %v4499 = vrot.slane %v4497, 4
      %v4500 = vor.u32 %v4496, %v4499
      %v4501 = vsel %vm835, %v4492, %v4500
      %v4503 = vshrl.u32 %v4058, 16
      %v4505 = vrot.slane %v4503, 3
      %v4506 = vshll.u32 %v4058, 16
      %v4508 = vrot.slane %v4506, 4
      %v4509 = vor.u32 %v4505, %v4508
      %v4510 = vsel %vm835, %v4509, %v4509
      %v4512 = vshrl.u32 %v4197, 16
      %v4514 = vrot.slane %v4512, 3
      %v4515 = vshll.u32 %v4197, 16
      %v4517 = vrot.slane %v4515, 4
      %v4518 = vor.u32 %v4514, %v4517
      %v4520 = vshrl.u32 %v4199, 16
      %v4522 = vrot.slane %v4520, 3
      %v4523 = vshll.u32 %v4199, 16
      %v4525 = vrot.slane %v4523, 4
      %v4526 = vor.u32 %v4522, %v4525
      %v4527 = vsel %vm835, %v4518, %v4526
      %v4529 = vshrl.u32 %v3969, 16
      %v4531 = vrot.slane %v4529, 3
      %v4532 = vshll.u32 %v3969, 16
      %v4534 = vrot.slane %v4532, 4
      %v4535 = vor.u32 %v4531, %v4534
      %v4537 = vshrl.u32 %v3970, 16
      %v4539 = vrot.slane %v4537, 3
      %v4540 = vshll.u32 %v3970, 16
      %v4542 = vrot.slane %v4540, 4
      %v4543 = vor.u32 %v4539, %v4542
      %v4544 = vsel %vm835, %v4535, %v4543
      %v4546 = vshrl.u32 %v4066, 16
      %v4548 = vrot.slane %v4546, 3
      %v4549 = vshll.u32 %v4066, 16
      %v4551 = vrot.slane %v4549, 4
      %v4552 = vor.u32 %v4548, %v4551
      %v4553 = vsel %vm835, %v4552, %v4552
      %v4555 = vshrl.u32 %v4200, 16
      %v4557 = vrot.slane %v4555, 3
      %v4558 = vshll.u32 %v4200, 16
      %v4560 = vrot.slane %v4558, 4
      %v4561 = vor.u32 %v4557, %v4560
      %v4563 = vshrl.u32 %v4202, 16
      %v4565 = vrot.slane %v4563, 3
      %v4566 = vshll.u32 %v4202, 16
      %v4568 = vrot.slane %v4566, 4
      %v4569 = vor.u32 %v4565, %v4568
      %v4570 = vsel %vm835, %v4561, %v4569
      %v4572 = vshrl.u32 %v3971, 16
      %v4574 = vrot.slane %v4572, 3
      %v4575 = vshll.u32 %v3971, 16
      %v4577 = vrot.slane %v4575, 4
      %v4578 = vor.u32 %v4574, %v4577
      %v4580 = vshrl.u32 %v3972, 16
      %v4582 = vrot.slane %v4580, 3
      %v4583 = vshll.u32 %v3972, 16
      %v4585 = vrot.slane %v4583, 4
      %v4586 = vor.u32 %v4582, %v4585
      %v4587 = vsel %vm835, %v4578, %v4586
      %v4589 = vshrl.u32 %v4074, 16
      %v4591 = vrot.slane %v4589, 3
      %v4592 = vshll.u32 %v4074, 16
      %v4594 = vrot.slane %v4592, 4
      %v4595 = vor.u32 %v4591, %v4594
      %v4596 = vsel %vm835, %v4595, %v4595
      %v4598 = vshrl.u32 %v4203, 16
      %v4600 = vrot.slane %v4598, 3
      %v4601 = vshll.u32 %v4203, 16
      %v4603 = vrot.slane %v4601, 4
      %v4604 = vor.u32 %v4600, %v4603
      %v4606 = vshrl.u32 %v4205, 16
      %v4608 = vrot.slane %v4606, 3
      %v4609 = vshll.u32 %v4205, 16
      %v4611 = vrot.slane %v4609, 4
      %v4612 = vor.u32 %v4608, %v4611
      %v4613 = vsel %vm835, %v4604, %v4612
      %v4615 = vshrl.u32 %v3973, 16
      %v4617 = vrot.slane %v4615, 3
      %v4618 = vshll.u32 %v3973, 16
      %v4620 = vrot.slane %v4618, 4
      %v4621 = vor.u32 %v4617, %v4620
      %v4623 = vshrl.u32 %v3974, 16
      %v4625 = vrot.slane %v4623, 3
      %v4626 = vshll.u32 %v3974, 16
      %v4628 = vrot.slane %v4626, 4
      %v4629 = vor.u32 %v4625, %v4628
      %v4630 = vsel %vm835, %v4621, %v4629
      %v4632 = vshrl.u32 %v4082, 16
      %v4634 = vrot.slane %v4632, 3
      %v4635 = vshll.u32 %v4082, 16
      %v4637 = vrot.slane %v4635, 4
      %v4638 = vor.u32 %v4634, %v4637
      %v4639 = vsel %vm835, %v4638, %v4638
      %v4641 = vshrl.u32 %v4206, 16
      %v4643 = vrot.slane %v4641, 3
      %v4644 = vshll.u32 %v4206, 16
      %v4646 = vrot.slane %v4644, 4
      %v4647 = vor.u32 %v4643, %v4646
      %v4649 = vshrl.u32 %v4208, 16
      %v4651 = vrot.slane %v4649, 3
      %v4652 = vshll.u32 %v4208, 16
      %v4654 = vrot.slane %v4652, 4
      %v4655 = vor.u32 %v4651, %v4654
      %v4656 = vsel %vm835, %v4647, %v4655
      %v4658 = vshrl.u32 %v3975, 16
      %v4660 = vrot.slane %v4658, 3
      %v4661 = vshll.u32 %v3975, 16
      %v4663 = vrot.slane %v4661, 4
      %v4664 = vor.u32 %v4660, %v4663
      %v4666 = vshrl.u32 %v3976, 16
      %v4668 = vrot.slane %v4666, 3
      %v4669 = vshll.u32 %v3976, 16
      %v4671 = vrot.slane %v4669, 4
      %v4672 = vor.u32 %v4668, %v4671
      %v4673 = vsel %vm835, %v4664, %v4672
      %v4675 = vshrl.u32 %v4090, 16
      %v4677 = vrot.slane %v4675, 3
      %v4678 = vshll.u32 %v4090, 16
      %v4680 = vrot.slane %v4678, 4
      %v4681 = vor.u32 %v4677, %v4680
      %v4682 = vsel %vm835, %v4681, %v4681
      %v4684 = vshrl.u32 %v4209, 16
      %v4686 = vrot.slane %v4684, 3
      %v4687 = vshll.u32 %v4209, 16
      %v4689 = vrot.slane %v4687, 4
      %v4690 = vor.u32 %v4686, %v4689
      %v4692 = vshrl.u32 %v4211, 16
      %v4694 = vrot.slane %v4692, 3
      %v4695 = vshll.u32 %v4211, 16
      %v4697 = vrot.slane %v4695, 4
      %v4698 = vor.u32 %v4694, %v4697
      %v4699 = vsel %vm835, %v4690, %v4698
      %v4701 = vshrl.u32 %v3977, 16
      %v4703 = vrot.slane %v4701, 3
      %v4704 = vshll.u32 %v3977, 16
      %v4706 = vrot.slane %v4704, 4
      %v4707 = vor.u32 %v4703, %v4706
      %v4709 = vshrl.u32 %v3978, 16
      %v4711 = vrot.slane %v4709, 3
      %v4712 = vshll.u32 %v3978, 16
      %v4714 = vrot.slane %v4712, 4
      %v4715 = vor.u32 %v4711, %v4714
      %v4716 = vsel %vm835, %v4707, %v4715
      %v4718 = vshrl.u32 %v4098, 16
      %v4720 = vrot.slane %v4718, 3
      %v4721 = vshll.u32 %v4098, 16
      %v4723 = vrot.slane %v4721, 4
      %v4724 = vor.u32 %v4720, %v4723
      %v4725 = vsel %vm835, %v4724, %v4724
      %v4727 = vshrl.u32 %v4212, 16
      %v4729 = vrot.slane %v4727, 3
      %v4730 = vshll.u32 %v4212, 16
      %v4732 = vrot.slane %v4730, 4
      %v4733 = vor.u32 %v4729, %v4732
      %v4735 = vshrl.u32 %v4214, 16
      %v4737 = vrot.slane %v4735, 3
      %v4738 = vshll.u32 %v4214, 16
      %v4740 = vrot.slane %v4738, 4
      %v4741 = vor.u32 %v4737, %v4740
      %v4742 = vsel %vm835, %v4733, %v4741
      %v4744 = vshrl.u32 %v3979, 16
      %v4746 = vrot.slane %v4744, 3
      %v4747 = vshll.u32 %v3979, 16
      %v4749 = vrot.slane %v4747, 4
      %v4750 = vor.u32 %v4746, %v4749
      %v4752 = vshrl.u32 %v3980, 16
      %v4754 = vrot.slane %v4752, 3
      %v4755 = vshll.u32 %v3980, 16
      %v4757 = vrot.slane %v4755, 4
      %v4758 = vor.u32 %v4754, %v4757
      %v4759 = vsel %vm835, %v4750, %v4758
      %v4761 = vshrl.u32 %v4106, 16
      %v4763 = vrot.slane %v4761, 3
      %v4764 = vshll.u32 %v4106, 16
      %v4766 = vrot.slane %v4764, 4
      %v4767 = vor.u32 %v4763, %v4766
      %v4768 = vsel %vm835, %v4767, %v4767
      %v4770 = vshrl.u32 %v4215, 16
      %v4772 = vrot.slane %v4770, 3
      %v4773 = vshll.u32 %v4215, 16
      %v4775 = vrot.slane %v4773, 4
      %v4776 = vor.u32 %v4772, %v4775
      %v4778 = vshrl.u32 %v4217, 16
      %v4780 = vrot.slane %v4778, 3
      %v4781 = vshll.u32 %v4217, 16
      %v4783 = vrot.slane %v4781, 4
      %v4784 = vor.u32 %v4780, %v4783
      %v4785 = vsel %vm835, %v4776, %v4784
      %v4787 = vshrl.u32 %v3981, 16
      %v4789 = vrot.slane %v4787, 3
      %v4790 = vshll.u32 %v3981, 16
      %v4792 = vrot.slane %v4790, 4
      %v4793 = vor.u32 %v4789, %v4792
      %v4795 = vshrl.u32 %v3982, 16
      %v4797 = vrot.slane %v4795, 3
      %v4798 = vshll.u32 %v3982, 16
      %v4800 = vrot.slane %v4798, 4
      %v4801 = vor.u32 %v4797, %v4800
      %v4802 = vsel %vm835, %v4793, %v4801
      %v4804 = vshrl.u32 %v4114, 16
      %v4806 = vrot.slane %v4804, 3
      %v4807 = vshll.u32 %v4114, 16
      %v4809 = vrot.slane %v4807, 4
      %v4810 = vor.u32 %v4806, %v4809
      %v4811 = vsel %vm835, %v4810, %v4810
      %v4813 = vshrl.u32 %v4218, 16
      %v4815 = vrot.slane %v4813, 3
      %v4816 = vshll.u32 %v4218, 16
      %v4818 = vrot.slane %v4816, 4
      %v4819 = vor.u32 %v4815, %v4818
      %v4821 = vshrl.u32 %v4220, 16
      %v4823 = vrot.slane %v4821, 3
      %v4824 = vshll.u32 %v4220, 16
      %v4826 = vrot.slane %v4824, 4
      %v4827 = vor.u32 %v4823, %v4826
      %v4828 = vsel %vm835, %v4819, %v4827
      %v4830 = vshrl.u32 %v3983, 16
      %v4832 = vrot.slane %v4830, 3
      %v4833 = vshll.u32 %v3983, 16
      %v4835 = vrot.slane %v4833, 4
      %v4836 = vor.u32 %v4832, %v4835
      %v4838 = vshrl.u32 %v3984, 16
      %v4840 = vrot.slane %v4838, 3
      %v4841 = vshll.u32 %v3984, 16
      %v4843 = vrot.slane %v4841, 4
      %v4844 = vor.u32 %v4840, %v4843
      %v4845 = vsel %vm835, %v4836, %v4844
      %v4847 = vshrl.u32 %v4122, 16
      %v4849 = vrot.slane %v4847, 3
      %v4850 = vshll.u32 %v4122, 16
      %v4852 = vrot.slane %v4850, 4
      %v4853 = vor.u32 %v4849, %v4852
      %v4854 = vsel %vm835, %v4853, %v4853
      %v4856 = vshrl.u32 %v4221, 16
      %v4858 = vrot.slane %v4856, 3
      %v4859 = vshll.u32 %v4221, 16
      %v4861 = vrot.slane %v4859, 4
      %v4862 = vor.u32 %v4858, %v4861
      %v4864 = vshrl.u32 %v4223, 16
      %v4866 = vrot.slane %v4864, 3
      %v4867 = vshll.u32 %v4223, 16
      %v4869 = vrot.slane %v4867, 4
      %v4870 = vor.u32 %v4866, %v4869
      %v4871 = vsel %vm835, %v4862, %v4870
      %v4873 = vshrl.u32 %v3985, 16
      %v4875 = vrot.slane %v4873, 3
      %v4876 = vshll.u32 %v3985, 16
      %v4878 = vrot.slane %v4876, 4
      %v4879 = vor.u32 %v4875, %v4878
      %v4881 = vshrl.u32 %v3986, 16
      %v4883 = vrot.slane %v4881, 3
      %v4884 = vshll.u32 %v3986, 16
      %v4886 = vrot.slane %v4884, 4
      %v4887 = vor.u32 %v4883, %v4886
      %v4888 = vsel %vm835, %v4879, %v4887
      %v4890 = vshrl.u32 %v4130, 16
      %v4892 = vrot.slane %v4890, 3
      %v4893 = vshll.u32 %v4130, 16
      %v4895 = vrot.slane %v4893, 4
      %v4896 = vor.u32 %v4892, %v4895
      %v4897 = vsel %vm835, %v4896, %v4896
      %v4899 = vshrl.u32 %v4224, 16
      %v4901 = vrot.slane %v4899, 3
      %v4902 = vshll.u32 %v4224, 16
      %v4904 = vrot.slane %v4902, 4
      %v4905 = vor.u32 %v4901, %v4904
      %v4907 = vshrl.u32 %v4226, 16
      %v4909 = vrot.slane %v4907, 3
      %v4910 = vshll.u32 %v4226, 16
      %v4912 = vrot.slane %v4910, 4
      %v4913 = vor.u32 %v4909, %v4912
      %v4914 = vsel %vm835, %v4905, %v4913
      %s4963 = scalar_lea.vmem %s1, 384
      %v4964 = vld [vmem:[%s4963] sm:$0xf]
      %v4965 = vld [vmem:[%s4963 + $0x4] sm:$0xf]
      %v4966 = vld [vmem:[%s4963 + $0x8] sm:$0xf]
      %v4967 = vld [vmem:[%s4963 + $0xc] sm:$0xf]
      %v4968 = vld [vmem:[%s4963 + $0x10] sm:$0xf]
      %v4969 = vld [vmem:[%s4963 + $0x14] sm:$0xf]
      %v4970 = vld [vmem:[%s4963 + $0x18] sm:$0xf]
      %v4971 = vld [vmem:[%s4963 + $0x1c] sm:$0xf]
      %v4972 = vld [vmem:[%s4963 + $0x20] sm:$0xf]
      %v4973 = vld [vmem:[%s4963 + $0x24] sm:$0xf]
      %v4974 = vld [vmem:[%s4963 + $0x28] sm:$0xf]
      %v4975 = vld [vmem:[%s4963 + $0x2c] sm:$0xf]
      %v4976 = vld [vmem:[%s4963 + $0x30] sm:$0xf]
      %v4977 = vld [vmem:[%s4963 + $0x34] sm:$0xf]
      %v4978 = vld [vmem:[%s4963 + $0x38] sm:$0xf]
      %v4979 = vld [vmem:[%s4963 + $0x3c] sm:$0xf]
      %v4980 = vld [vmem:[%s4963 + $0x40] sm:$0xf]
      %v4981 = vld [vmem:[%s4963 + $0x44] sm:$0xf]
      %v4982 = vld [vmem:[%s4963 + $0x48] sm:$0xf]
      %v4983 = vld [vmem:[%s4963 + $0x4c] sm:$0xf]
      %v4984 = vld [vmem:[%s4963 + $0x50] sm:$0xf]
      %v4985 = vld [vmem:[%s4963 + $0x54] sm:$0xf]
      %v4986 = vld [vmem:[%s4963 + $0x58] sm:$0xf]
      %v4987 = vld [vmem:[%s4963 + $0x5c] sm:$0xf]
      %v4988 = vld [vmem:[%s4963 + $0x60] sm:$0xf]
      %v4989 = vld [vmem:[%s4963 + $0x64] sm:$0xf]
      %v4990 = vld [vmem:[%s4963 + $0x68] sm:$0xf]
      %v4991 = vld [vmem:[%s4963 + $0x6c] sm:$0xf]
      %v4992 = vld [vmem:[%s4963 + $0x70] sm:$0xf]
      %v4993 = vld [vmem:[%s4963 + $0x74] sm:$0xf]
      %v4994 = vld [vmem:[%s4963 + $0x78] sm:$0xf]
      %v4995 = vld [vmem:[%s4963 + $0x7c] sm:$0xf]
      %v4996 = vld [vmem:[%s4963 + $0x80] sm:$0xf]
      %v4997 = vld [vmem:[%s4963 + $0x84] sm:$0xf]
      %v4998 = vld [vmem:[%s4963 + $0x88] sm:$0xf]
      %v4999 = vld [vmem:[%s4963 + $0x8c] sm:$0xf]
      %v5000 = vld [vmem:[%s4963 + $0x90] sm:$0xf]
      %v5001 = vld [vmem:[%s4963 + $0x94] sm:$0xf]
      %v5002 = vld [vmem:[%s4963 + $0x98] sm:$0xf]
      %v5003 = vld [vmem:[%s4963 + $0x9c] sm:$0xf]
      %v5004 = vld [vmem:[%s4963 + $0xa0] sm:$0xf]
      %v5005 = vld [vmem:[%s4963 + $0xa4] sm:$0xf]
      %v5006 = vld [vmem:[%s4963 + $0xa8] sm:$0xf]
      %v5007 = vld [vmem:[%s4963 + $0xac] sm:$0xf]
      %v5008 = vld [vmem:[%s4963 + $0xb0] sm:$0xf]
      %v5009 = vld [vmem:[%s4963 + $0xb4] sm:$0xf]
      %v5010 = vld [vmem:[%s4963 + $0xb8] sm:$0xf]
      %v5011 = vld [vmem:[%s4963 + $0xbc] sm:$0xf]
      %v5060 = vunpack.c.l.b16 %v4964
      %v5061 = vunpack.c.l.b16 %v4965
      %v5062 = vunpack.c.l.b16 %v4966
      %v5063 = vunpack.c.l.b16 %v4967
      %v5064 = vunpack.c.l.b16 %v4968
      %v5065 = vunpack.c.l.b16 %v4969
      %v5066 = vunpack.c.l.b16 %v4970
      %v5067 = vunpack.c.l.b16 %v4971
      %v5068 = vunpack.c.l.b16 %v4972
      %v5069 = vunpack.c.l.b16 %v4973
      %v5070 = vunpack.c.l.b16 %v4974
      %v5071 = vunpack.c.l.b16 %v4975
      %v5072 = vunpack.c.l.b16 %v4976
      %v5073 = vunpack.c.l.b16 %v4977
      %v5074 = vunpack.c.l.b16 %v4978
      %v5075 = vunpack.c.l.b16 %v4979
      %v5076 = vunpack.c.l.b16 %v4980
      %v5077 = vunpack.c.l.b16 %v4981
      %v5078 = vunpack.c.l.b16 %v4982
      %v5079 = vunpack.c.l.b16 %v4983
      %v5080 = vunpack.c.l.b16 %v4984
      %v5081 = vunpack.c.l.b16 %v4985
      %v5082 = vunpack.c.l.b16 %v4986
      %v5083 = vunpack.c.l.b16 %v4987
      %v5084 = vunpack.c.l.b16 %v4988
      %v5085 = vunpack.c.l.b16 %v4989
      %v5086 = vunpack.c.l.b16 %v4990
      %v5087 = vunpack.c.l.b16 %v4991
      %v5088 = vunpack.c.l.b16 %v4992
      %v5089 = vunpack.c.l.b16 %v4993
      %v5090 = vunpack.c.l.b16 %v4994
      %v5091 = vunpack.c.l.b16 %v4995
      %v5092 = vunpack.c.l.b16 %v4996
      %v5093 = vunpack.c.l.b16 %v4997
      %v5094 = vunpack.c.l.b16 %v4998
      %v5095 = vunpack.c.l.b16 %v4999
      %v5096 = vunpack.c.l.b16 %v5000
      %v5097 = vunpack.c.l.b16 %v5001
      %v5098 = vunpack.c.l.b16 %v5002
      %v5099 = vunpack.c.l.b16 %v5003
      %v5100 = vunpack.c.l.b16 %v5004
      %v5101 = vunpack.c.l.b16 %v5005
      %v5102 = vunpack.c.l.b16 %v5006
      %v5103 = vunpack.c.l.b16 %v5007
      %v5104 = vunpack.c.l.b16 %v5008
      %v5105 = vunpack.c.l.b16 %v5009
      %v5106 = vunpack.c.l.b16 %v5010
      %v5107 = vunpack.c.l.b16 %v5011
      %v5108 = vpack.c.b16 %v5061, %v5060
      %v5109 = vpack.c.b16 %v5063, %v5062
      %v5110 = vpack.c.b16 %v5065, %v5064
      %v5111 = vpack.c.b16 %v5067, %v5066
      %v5112 = vpack.c.b16 %v5069, %v5068
      %v5113 = vpack.c.b16 %v5071, %v5070
      %v5114 = vpack.c.b16 %v5073, %v5072
      %v5115 = vpack.c.b16 %v5075, %v5074
      %v5116 = vpack.c.b16 %v5077, %v5076
      %v5117 = vpack.c.b16 %v5079, %v5078
      %v5118 = vpack.c.b16 %v5081, %v5080
      %v5119 = vpack.c.b16 %v5083, %v5082
      %v5120 = vpack.c.b16 %v5085, %v5084
      %v5121 = vpack.c.b16 %v5087, %v5086
      %v5122 = vpack.c.b16 %v5089, %v5088
      %v5123 = vpack.c.b16 %v5091, %v5090
      %v5124 = vpack.c.b16 %v5093, %v5092
      %v5125 = vpack.c.b16 %v5095, %v5094
      %v5126 = vpack.c.b16 %v5097, %v5096
      %v5127 = vpack.c.b16 %v5099, %v5098
      %v5128 = vpack.c.b16 %v5101, %v5100
      %v5129 = vpack.c.b16 %v5103, %v5102
      %v5130 = vpack.c.b16 %v5105, %v5104
      %v5131 = vpack.c.b16 %v5107, %v5106
      %5156 = vmatpush.bf16.msra.mxu0 %v5115
      %5157 = vmatpush.bf16.msra.mxu0 %v5114
      %5158 = vmatpush.bf16.msra.mxu0 %v5113
      %5159 = vmatpush.bf16.msra.mxu0 %v5112
      %5160 = vmatpush.bf16.msra.mxu0 %v5111
      %5161 = vmatpush.bf16.msra.mxu0 %v5110
      %5162 = vmatpush.bf16.msra.mxu0 %v5109
      %5163 = vmatpush.bf16.msra.mxu0 %v5108
      %5164 = vmatmul.bf16.gmra.mxu0 %v4243
      %v5165 = vpop.f32.mrf.mxu0
      %v5166 = vadd.f32 0.0, %v5165
      %v5167 = vpop.f32.mrf.mxu0
      %v5168 = vadd.f32 0.0, %v5167
      %5169 = vmatmul.bf16.gmra.mxu0 %v4286
      %v5170 = vpop.f32.mrf.mxu0
      %v5171 = vadd.f32 0.0, %v5170
      %v5172 = vpop.f32.mrf.mxu0
      %v5173 = vadd.f32 0.0, %v5172
      %5174 = vmatmul.bf16.gmra.mxu0 %v4329
      %v5175 = vpop.f32.mrf.mxu0
      %v5176 = vadd.f32 0.0, %v5175
      %v5177 = vpop.f32.mrf.mxu0
      %v5178 = vadd.f32 0.0, %v5177
      %5179 = vmatmul.bf16.gmra.mxu0 %v4372
      %v5180 = vpop.f32.mrf.mxu0
      %v5181 = vadd.f32 0.0, %v5180
      %v5182 = vpop.f32.mrf.mxu0
      %v5183 = vadd.f32 0.0, %v5182
      %5184 = vmatmul.bf16.gmra.mxu0 %v4415
      %v5185 = vpop.f32.mrf.mxu0
      %v5186 = vadd.f32 0.0, %v5185
      %v5187 = vpop.f32.mrf.mxu0
      %v5188 = vadd.f32 0.0, %v5187
      %5189 = vmatmul.bf16.gmra.mxu0 %v4458
      %v5190 = vpop.f32.mrf.mxu0
      %v5191 = vadd.f32 0.0, %v5190
      %v5192 = vpop.f32.mrf.mxu0
      %v5193 = vadd.f32 0.0, %v5192
      %5194 = vmatmul.bf16.gmra.mxu0 %v4501
      %v5195 = vpop.f32.mrf.mxu0
      %v5196 = vadd.f32 0.0, %v5195
      %v5197 = vpop.f32.mrf.mxu0
      %v5198 = vadd.f32 0.0, %v5197
      %5199 = vmatmul.bf16.gmra.mxu0 %v4544
      %v5200 = vpop.f32.mrf.mxu0
      %v5201 = vadd.f32 0.0, %v5200
      %v5202 = vpop.f32.mrf.mxu0
      %v5203 = vadd.f32 0.0, %v5202
      %5204 = vmatmul.bf16.gmra.mxu0 %v4587
      %v5205 = vpop.f32.mrf.mxu0
      %v5206 = vadd.f32 0.0, %v5205
      %v5207 = vpop.f32.mrf.mxu0
      %v5208 = vadd.f32 0.0, %v5207
      %5209 = vmatmul.bf16.gmra.mxu0 %v4630
      %v5210 = vpop.f32.mrf.mxu0
      %v5211 = vadd.f32 0.0, %v5210
      %v5212 = vpop.f32.mrf.mxu0
      %v5213 = vadd.f32 0.0, %v5212
      %5214 = vmatmul.bf16.gmra.mxu0 %v4673
      %v5215 = vpop.f32.mrf.mxu0
      %v5216 = vadd.f32 0.0, %v5215
      %v5217 = vpop.f32.mrf.mxu0
      %v5218 = vadd.f32 0.0, %v5217
      %5219 = vmatmul.bf16.gmra.mxu0 %v4716
      %v5220 = vpop.f32.mrf.mxu0
      %v5221 = vadd.f32 0.0, %v5220
      %v5222 = vpop.f32.mrf.mxu0
      %v5223 = vadd.f32 0.0, %v5222
      %5224 = vmatmul.bf16.gmra.mxu0 %v4759
      %v5225 = vpop.f32.mrf.mxu0
      %v5226 = vadd.f32 0.0, %v5225
      %v5227 = vpop.f32.mrf.mxu0
      %v5228 = vadd.f32 0.0, %v5227
      %5229 = vmatmul.bf16.gmra.mxu0 %v4802
      %v5230 = vpop.f32.mrf.mxu0
      %v5231 = vadd.f32 0.0, %v5230
      %v5232 = vpop.f32.mrf.mxu0
      %v5233 = vadd.f32 0.0, %v5232
      %5234 = vmatmul.bf16.gmra.mxu0 %v4845
      %v5235 = vpop.f32.mrf.mxu0
      %v5236 = vadd.f32 0.0, %v5235
      %v5237 = vpop.f32.mrf.mxu0
      %v5238 = vadd.f32 0.0, %v5237
      %5239 = vmatmul.bf16.gmra.mxu0 %v4888
      %v5240 = vpop.f32.mrf.mxu0
      %v5241 = vadd.f32 0.0, %v5240
      %v5242 = vpop.f32.mrf.mxu0
      %v5243 = vadd.f32 0.0, %v5242
      %5244 = vdwg.mxu0
      %5245 = vmatpush.bf16.msra.mxu0 %v5123
      %5246 = vmatpush.bf16.msra.mxu0 %v5122
      %5247 = vmatpush.bf16.msra.mxu0 %v5121
      %5248 = vmatpush.bf16.msra.mxu0 %v5120
      %5249 = vmatpush.bf16.msra.mxu0 %v5119
      %5250 = vmatpush.bf16.msra.mxu0 %v5118
      %5251 = vmatpush.bf16.msra.mxu0 %v5117
      %5252 = vmatpush.bf16.msra.mxu0 %v5116
      %5253 = vmatmul.bf16.gmra.mxu0 %v4252
      %v5254 = vpop.f32.mrf.mxu0
      %v5255 = vadd.f32 %v5166, %v5254
      %v5256 = vpop.f32.mrf.mxu0
      %v5257 = vadd.f32 %v5168, %v5256
      %5258 = vmatmul.bf16.gmra.mxu0 %v4295
      %v5259 = vpop.f32.mrf.mxu0
      %v5260 = vadd.f32 %v5171, %v5259
      %v5261 = vpop.f32.mrf.mxu0
      %v5262 = vadd.f32 %v5173, %v5261
      %5263 = vmatmul.bf16.gmra.mxu0 %v4338
      %v5264 = vpop.f32.mrf.mxu0
      %v5265 = vadd.f32 %v5176, %v5264
      %v5266 = vpop.f32.mrf.mxu0
      %v5267 = vadd.f32 %v5178, %v5266
      %5268 = vmatmul.bf16.gmra.mxu0 %v4381
      %v5269 = vpop.f32.mrf.mxu0
      %v5270 = vadd.f32 %v5181, %v5269
      %v5271 = vpop.f32.mrf.mxu0
      %v5272 = vadd.f32 %v5183, %v5271
      %5273 = vmatmul.bf16.gmra.mxu0 %v4424
      %v5274 = vpop.f32.mrf.mxu0
      %v5275 = vadd.f32 %v5186, %v5274
      %v5276 = vpop.f32.mrf.mxu0
      %v5277 = vadd.f32 %v5188, %v5276
      %5278 = vmatmul.bf16.gmra.mxu0 %v4467
      %v5279 = vpop.f32.mrf.mxu0
      %v5280 = vadd.f32 %v5191, %v5279
      %v5281 = vpop.f32.mrf.mxu0
      %v5282 = vadd.f32 %v5193, %v5281
      %5283 = vmatmul.bf16.gmra.mxu0 %v4510
      %v5284 = vpop.f32.mrf.mxu0
      %v5285 = vadd.f32 %v5196, %v5284
      %v5286 = vpop.f32.mrf.mxu0
      %v5287 = vadd.f32 %v5198, %v5286
      %5288 = vmatmul.bf16.gmra.mxu0 %v4553
      %v5289 = vpop.f32.mrf.mxu0
      %v5290 = vadd.f32 %v5201, %v5289
      %v5291 = vpop.f32.mrf.mxu0
      %v5292 = vadd.f32 %v5203, %v5291
      %5293 = vmatmul.bf16.gmra.mxu0 %v4596
      %v5294 = vpop.f32.mrf.mxu0
      %v5295 = vadd.f32 %v5206, %v5294
      %v5296 = vpop.f32.mrf.mxu0
      %v5297 = vadd.f32 %v5208, %v5296
      %5298 = vmatmul.bf16.gmra.mxu0 %v4639
      %v5299 = vpop.f32.mrf.mxu0
      %v5300 = vadd.f32 %v5211, %v5299
      %v5301 = vpop.f32.mrf.mxu0
      %v5302 = vadd.f32 %v5213, %v5301
      %5303 = vmatmul.bf16.gmra.mxu0 %v4682
      %v5304 = vpop.f32.mrf.mxu0
      %v5305 = vadd.f32 %v5216, %v5304
      %v5306 = vpop.f32.mrf.mxu0
      %v5307 = vadd.f32 %v5218, %v5306
      %5308 = vmatmul.bf16.gmra.mxu0 %v4725
      %v5309 = vpop.f32.mrf.mxu0
      %v5310 = vadd.f32 %v5221, %v5309
      %v5311 = vpop.f32.mrf.mxu0
      %v5312 = vadd.f32 %v5223, %v5311
      %5313 = vmatmul.bf16.gmra.mxu0 %v4768
      %v5314 = vpop.f32.mrf.mxu0
      %v5315 = vadd.f32 %v5226, %v5314
      %v5316 = vpop.f32.mrf.mxu0
      %v5317 = vadd.f32 %v5228, %v5316
      %5318 = vmatmul.bf16.gmra.mxu0 %v4811
      %v5319 = vpop.f32.mrf.mxu0
      %v5320 = vadd.f32 %v5231, %v5319
      %v5321 = vpop.f32.mrf.mxu0
      %v5322 = vadd.f32 %v5233, %v5321
      %5323 = vmatmul.bf16.gmra.mxu0 %v4854
      %v5324 = vpop.f32.mrf.mxu0
      %v5325 = vadd.f32 %v5236, %v5324
      %v5326 = vpop.f32.mrf.mxu0
      %v5327 = vadd.f32 %v5238, %v5326
      %5328 = vmatmul.bf16.gmra.mxu0 %v4897
      %v5329 = vpop.f32.mrf.mxu0
      %v5330 = vadd.f32 %v5241, %v5329
      %v5331 = vpop.f32.mrf.mxu0
      %v5332 = vadd.f32 %v5243, %v5331
      %5333 = vdwg.mxu0
      %5334 = vmatpush.bf16.msra.mxu0 %v5131
      %5335 = vmatpush.bf16.msra.mxu0 %v5130
      %5336 = vmatpush.bf16.msra.mxu0 %v5129
      %5337 = vmatpush.bf16.msra.mxu0 %v5128
      %5338 = vmatpush.bf16.msra.mxu0 %v5127
      %5339 = vmatpush.bf16.msra.mxu0 %v5126
      %5340 = vmatpush.bf16.msra.mxu0 %v5125
      %5341 = vmatpush.bf16.msra.mxu0 %v5124
      %5342 = vmatmul.bf16.gmra.mxu0 %v4269
      %v5343 = vpop.f32.mrf.mxu0
      %v5344 = vadd.f32 %v5255, %v5343
      %v5345 = vpop.f32.mrf.mxu0
      %v5346 = vadd.f32 %v5257, %v5345
      %5347 = vmatmul.bf16.gmra.mxu0 %v4312
      %v5348 = vpop.f32.mrf.mxu0
      %v5349 = vadd.f32 %v5260, %v5348
      %v5350 = vpop.f32.mrf.mxu0
      %v5351 = vadd.f32 %v5262, %v5350
      %5352 = vmatmul.bf16.gmra.mxu0 %v4355
      %v5353 = vpop.f32.mrf.mxu0
      %v5354 = vadd.f32 %v5265, %v5353
      %v5355 = vpop.f32.mrf.mxu0
      %v5356 = vadd.f32 %v5267, %v5355
      %5357 = vmatmul.bf16.gmra.mxu0 %v4398
      %v5358 = vpop.f32.mrf.mxu0
      %v5359 = vadd.f32 %v5270, %v5358
      %v5360 = vpop.f32.mrf.mxu0
      %v5361 = vadd.f32 %v5272, %v5360
      %5362 = vmatmul.bf16.gmra.mxu0 %v4441
      %v5363 = vpop.f32.mrf.mxu0
      %v5364 = vadd.f32 %v5275, %v5363
      %v5365 = vpop.f32.mrf.mxu0
      %v5366 = vadd.f32 %v5277, %v5365
      %5367 = vmatmul.bf16.gmra.mxu0 %v4484
      %v5368 = vpop.f32.mrf.mxu0
      %v5369 = vadd.f32 %v5280, %v5368
      %v5370 = vpop.f32.mrf.mxu0
      %v5371 = vadd.f32 %v5282, %v5370
      %5372 = vmatmul.bf16.gmra.mxu0 %v4527
      %v5373 = vpop.f32.mrf.mxu0
      %v5374 = vadd.f32 %v5285, %v5373
      %v5375 = vpop.f32.mrf.mxu0
      %v5376 = vadd.f32 %v5287, %v5375
      %5377 = vmatmul.bf16.gmra.mxu0 %v4570
      %v5378 = vpop.f32.mrf.mxu0
      %v5379 = vadd.f32 %v5290, %v5378
      %v5380 = vpop.f32.mrf.mxu0
      %v5381 = vadd.f32 %v5292, %v5380
      %5382 = vmatmul.bf16.gmra.mxu0 %v4613
      %v5383 = vpop.f32.mrf.mxu0
      %v5384 = vadd.f32 %v5295, %v5383
      %v5385 = vpop.f32.mrf.mxu0
      %v5386 = vadd.f32 %v5297, %v5385
      %5387 = vmatmul.bf16.gmra.mxu0 %v4656
      %v5388 = vpop.f32.mrf.mxu0
      %v5389 = vadd.f32 %v5300, %v5388
      %v5390 = vpop.f32.mrf.mxu0
      %v5391 = vadd.f32 %v5302, %v5390
      %5392 = vmatmul.bf16.gmra.mxu0 %v4699
      %v5393 = vpop.f32.mrf.mxu0
      %v5394 = vadd.f32 %v5305, %v5393
      %v5395 = vpop.f32.mrf.mxu0
      %v5396 = vadd.f32 %v5307, %v5395
      %5397 = vmatmul.bf16.gmra.mxu0 %v4742
      %v5398 = vpop.f32.mrf.mxu0
      %v5399 = vadd.f32 %v5310, %v5398
      %v5400 = vpop.f32.mrf.mxu0
      %v5401 = vadd.f32 %v5312, %v5400
      %5402 = vmatmul.bf16.gmra.mxu0 %v4785
      %v5403 = vpop.f32.mrf.mxu0
      %v5404 = vadd.f32 %v5315, %v5403
      %v5405 = vpop.f32.mrf.mxu0
      %v5406 = vadd.f32 %v5317, %v5405
      %5407 = vmatmul.bf16.gmra.mxu0 %v4828
      %v5408 = vpop.f32.mrf.mxu0
      %v5409 = vadd.f32 %v5320, %v5408
      %v5410 = vpop.f32.mrf.mxu0
      %v5411 = vadd.f32 %v5322, %v5410
      %5412 = vmatmul.bf16.gmra.mxu0 %v4871
      %v5413 = vpop.f32.mrf.mxu0
      %v5414 = vadd.f32 %v5325, %v5413
      %v5415 = vpop.f32.mrf.mxu0
      %v5416 = vadd.f32 %v5327, %v5415
      %5417 = vmatmul.bf16.gmra.mxu0 %v4914
      %v5418 = vpop.f32.mrf.mxu0
      %v5419 = vadd.f32 %v5330, %v5418
      %v5420 = vpop.f32.mrf.mxu0
      %v5421 = vadd.f32 %v5332, %v5420
      %5422 = vdwg.mxu0
      %v5423 = vld [vmem:[#allocation3] sm:$0xff]
      %v5424 = vld [vmem:[#allocation3 + $0x8] sm:$0xff]
      %v5425 = vld [vmem:[#allocation3 + $0x10] sm:$0xff]
      %v5426 = vld [vmem:[#allocation3 + $0x18] sm:$0xff]
      %v5427 = vld [vmem:[#allocation3 + $0x20] sm:$0xff]
      %v5428 = vld [vmem:[#allocation3 + $0x28] sm:$0xff]
      %v5429 = vld [vmem:[#allocation3 + $0x30] sm:$0xff]
      %v5430 = vld [vmem:[#allocation3 + $0x38] sm:$0xff]
      %v5431 = vld [vmem:[#allocation3 + $0x40] sm:$0xff]
      %v5432 = vld [vmem:[#allocation3 + $0x48] sm:$0xff]
      %v5433 = vld [vmem:[#allocation3 + $0x50] sm:$0xff]
      %v5434 = vld [vmem:[#allocation3 + $0x58] sm:$0xff]
      %v5435 = vld [vmem:[#allocation3 + $0x60] sm:$0xff]
      %v5436 = vld [vmem:[#allocation3 + $0x68] sm:$0xff]
      %v5437 = vld [vmem:[#allocation3 + $0x70] sm:$0xff]
      %v5438 = vld [vmem:[#allocation3 + $0x78] sm:$0xff]
      %v5439 = vld [vmem:[#allocation3 + $0x80] sm:$0xff]
      %v5440 = vld [vmem:[#allocation3 + $0x88] sm:$0xff]
      %v5441 = vld [vmem:[#allocation3 + $0x90] sm:$0xff]
      %v5442 = vld [vmem:[#allocation3 + $0x98] sm:$0xff]
      %v5443 = vld [vmem:[#allocation3 + $0xa0] sm:$0xff]
      %v5444 = vld [vmem:[#allocation3 + $0xa8] sm:$0xff]
      %v5445 = vld [vmem:[#allocation3 + $0xb0] sm:$0xff]
      %v5446 = vld [vmem:[#allocation3 + $0xb8] sm:$0xff]
      %v5447 = vld [vmem:[#allocation3 + $0xc0] sm:$0xff]
      %v5448 = vld [vmem:[#allocation3 + $0xc8] sm:$0xff]
      %v5449 = vld [vmem:[#allocation3 + $0xd0] sm:$0xff]
      %v5450 = vld [vmem:[#allocation3 + $0xd8] sm:$0xff]
      %v5451 = vld [vmem:[#allocation3 + $0xe0] sm:$0xff]
      %v5452 = vld [vmem:[#allocation3 + $0xe8] sm:$0xff]
      %v5453 = vld [vmem:[#allocation3 + $0xf0] sm:$0xff]
      %v5454 = vld [vmem:[#allocation3 + $0xf8] sm:$0xff]
      %v5455 = vadd.f32 %v5423, %v5344
      %v5456 = vadd.f32 %v5424, %v5346
      %v5457 = vadd.f32 %v5425, %v5349
      %v5458 = vadd.f32 %v5426, %v5351
      %v5459 = vadd.f32 %v5427, %v5354
      %v5460 = vadd.f32 %v5428, %v5356
      %v5461 = vadd.f32 %v5429, %v5359
      %v5462 = vadd.f32 %v5430, %v5361
      %v5463 = vadd.f32 %v5431, %v5364
      %v5464 = vadd.f32 %v5432, %v5366
      %v5465 = vadd.f32 %v5433, %v5369
      %v5466 = vadd.f32 %v5434, %v5371
      %v5467 = vadd.f32 %v5435, %v5374
      %v5468 = vadd.f32 %v5436, %v5376
      %v5469 = vadd.f32 %v5437, %v5379
      %v5470 = vadd.f32 %v5438, %v5381
      %v5471 = vadd.f32 %v5439, %v5384
      %v5472 = vadd.f32 %v5440, %v5386
      %v5473 = vadd.f32 %v5441, %v5389
      %v5474 = vadd.f32 %v5442, %v5391
      %v5475 = vadd.f32 %v5443, %v5394
      %v5476 = vadd.f32 %v5444, %v5396
      %v5477 = vadd.f32 %v5445, %v5399
      %v5478 = vadd.f32 %v5446, %v5401
      %v5479 = vadd.f32 %v5447, %v5404
      %v5480 = vadd.f32 %v5448, %v5406
      %v5481 = vadd.f32 %v5449, %v5409
      %v5482 = vadd.f32 %v5450, %v5411
      %v5483 = vadd.f32 %v5451, %v5414
      %v5484 = vadd.f32 %v5452, %v5416
      %v5485 = vadd.f32 %v5453, %v5419
      %v5486 = vadd.f32 %v5454, %v5421
      %5487 = vst [vmem:[#allocation3] sm:$0xff] %v5455
      %5488 = vst [vmem:[#allocation3 + $0x8] sm:$0xff] %v5456
      %5489 = vst [vmem:[#allocation3 + $0x10] sm:$0xff] %v5457
      %5490 = vst [vmem:[#allocation3 + $0x18] sm:$0xff] %v5458
      %5491 = vst [vmem:[#allocation3 + $0x20] sm:$0xff] %v5459
      %5492 = vst [vmem:[#allocation3 + $0x28] sm:$0xff] %v5460
      %5493 = vst [vmem:[#allocation3 + $0x30] sm:$0xff] %v5461
      %5494 = vst [vmem:[#allocation3 + $0x38] sm:$0xff] %v5462
      %5495 = vst [vmem:[#allocation3 + $0x40] sm:$0xff] %v5463
      %5496 = vst [vmem:[#allocation3 + $0x48] sm:$0xff] %v5464
      %5497 = vst [vmem:[#allocation3 + $0x50] sm:$0xff] %v5465
      %5498 = vst [vmem:[#allocation3 + $0x58] sm:$0xff] %v5466
      %5499 = vst [vmem:[#allocation3 + $0x60] sm:$0xff] %v5467
      %5500 = vst [vmem:[#allocation3 + $0x68] sm:$0xff] %v5468
      %5501 = vst [vmem:[#allocation3 + $0x70] sm:$0xff] %v5469
      %5502 = vst [vmem:[#allocation3 + $0x78] sm:$0xff] %v5470
      %5503 = vst [vmem:[#allocation3 + $0x80] sm:$0xff] %v5471
      %5504 = vst [vmem:[#allocation3 + $0x88] sm:$0xff] %v5472
      %5505 = vst [vmem:[#allocation3 + $0x90] sm:$0xff] %v5473
      %5506 = vst [vmem:[#allocation3 + $0x98] sm:$0xff] %v5474
      %5507 = vst [vmem:[#allocation3 + $0xa0] sm:$0xff] %v5475
      %5508 = vst [vmem:[#allocation3 + $0xa8] sm:$0xff] %v5476
      %5509 = vst [vmem:[#allocation3 + $0xb0] sm:$0xff] %v5477
      %5510 = vst [vmem:[#allocation3 + $0xb8] sm:$0xff] %v5478
      %5511 = vst [vmem:[#allocation3 + $0xc0] sm:$0xff] %v5479
      %5512 = vst [vmem:[#allocation3 + $0xc8] sm:$0xff] %v5480
      %5513 = vst [vmem:[#allocation3 + $0xd0] sm:$0xff] %v5481
      %5514 = vst [vmem:[#allocation3 + $0xd8] sm:$0xff] %v5482
      %5515 = vst [vmem:[#allocation3 + $0xe0] sm:$0xff] %v5483
      %5516 = vst [vmem:[#allocation3 + $0xe8] sm:$0xff] %v5484
      %5517 = vst [vmem:[#allocation3 + $0xf0] sm:$0xff] %v5485
      %5518 = vst [vmem:[#allocation3 + $0xf8] sm:$0xff] %v5486
      %v5519 = vld [vmem:[#allocation3] sm:$0xff]
      %v5520 = vld [vmem:[#allocation3 + $0x8] sm:$0xff]
      %v5521 = vld [vmem:[#allocation3 + $0x10] sm:$0xff]
      %v5522 = vld [vmem:[#allocation3 + $0x18] sm:$0xff]
      %v5523 = vld [vmem:[#allocation3 + $0x20] sm:$0xff]
      %v5524 = vld [vmem:[#allocation3 + $0x28] sm:$0xff]
      %v5525 = vld [vmem:[#allocation3 + $0x30] sm:$0xff]
      %v5526 = vld [vmem:[#allocation3 + $0x38] sm:$0xff]
      %v5527 = vld [vmem:[#allocation3 + $0x40] sm:$0xff]
      %v5528 = vld [vmem:[#allocation3 + $0x48] sm:$0xff]
      %v5529 = vld [vmem:[#allocation3 + $0x50] sm:$0xff]
      %v5530 = vld [vmem:[#allocation3 + $0x58] sm:$0xff]
      %v5531 = vld [vmem:[#allocation3 + $0x60] sm:$0xff]
      %v5532 = vld [vmem:[#allocation3 + $0x68] sm:$0xff]
      %v5533 = vld [vmem:[#allocation3 + $0x70] sm:$0xff]
      %v5534 = vld [vmem:[#allocation3 + $0x78] sm:$0xff]
      %v5535 = vld [vmem:[#allocation3 + $0x80] sm:$0xff]
      %v5536 = vld [vmem:[#allocation3 + $0x88] sm:$0xff]
      %v5537 = vld [vmem:[#allocation3 + $0x90] sm:$0xff]
      %v5538 = vld [vmem:[#allocation3 + $0x98] sm:$0xff]
      %v5539 = vld [vmem:[#allocation3 + $0xa0] sm:$0xff]
      %v5540 = vld [vmem:[#allocation3 + $0xa8] sm:$0xff]
      %v5541 = vld [vmem:[#allocation3 + $0xb0] sm:$0xff]
      %v5542 = vld [vmem:[#allocation3 + $0xb8] sm:$0xff]
      %v5543 = vld [vmem:[#allocation3 + $0xc0] sm:$0xff]
      %v5544 = vld [vmem:[#allocation3 + $0xc8] sm:$0xff]
      %v5545 = vld [vmem:[#allocation3 + $0xd0] sm:$0xff]
      %v5546 = vld [vmem:[#allocation3 + $0xd8] sm:$0xff]
      %v5547 = vld [vmem:[#allocation3 + $0xe0] sm:$0xff]
      %v5548 = vld [vmem:[#allocation3 + $0xe8] sm:$0xff]
      %v5549 = vld [vmem:[#allocation3 + $0xf0] sm:$0xff]
      %v5550 = vld [vmem:[#allocation3 + $0xf8] sm:$0xff]
      %v5551 = vpack.c.bf16 %v5519, %v5519
      %v5552 = vpack.c.bf16 %v5520, %v5520
      %v5553 = vpack.c.bf16 %v5521, %v5521
      %v5554 = vpack.c.bf16 %v5522, %v5522
      %v5555 = vpack.c.bf16 %v5523, %v5523
      %v5556 = vpack.c.bf16 %v5524, %v5524
      %v5557 = vpack.c.bf16 %v5525, %v5525
      %v5558 = vpack.c.bf16 %v5526, %v5526
      %v5559 = vpack.c.bf16 %v5527, %v5527
      %v5560 = vpack.c.bf16 %v5528, %v5528
      %v5561 = vpack.c.bf16 %v5529, %v5529
      %v5562 = vpack.c.bf16 %v5530, %v5530
      %v5563 = vpack.c.bf16 %v5531, %v5531
      %v5564 = vpack.c.bf16 %v5532, %v5532
      %v5565 = vpack.c.bf16 %v5533, %v5533
      %v5566 = vpack.c.bf16 %v5534, %v5534
      %v5567 = vpack.c.bf16 %v5535, %v5535
      %v5568 = vpack.c.bf16 %v5536, %v5536
      %v5569 = vpack.c.bf16 %v5537, %v5537
      %v5570 = vpack.c.bf16 %v5538, %v5538
      %v5571 = vpack.c.bf16 %v5539, %v5539
      %v5572 = vpack.c.bf16 %v5540, %v5540
      %v5573 = vpack.c.bf16 %v5541, %v5541
      %v5574 = vpack.c.bf16 %v5542, %v5542
      %v5575 = vpack.c.bf16 %v5543, %v5543
      %v5576 = vpack.c.bf16 %v5544, %v5544
      %v5577 = vpack.c.bf16 %v5545, %v5545
      %v5578 = vpack.c.bf16 %v5546, %v5546
      %v5579 = vpack.c.bf16 %v5547, %v5547
      %v5580 = vpack.c.bf16 %v5548, %v5548
      %v5581 = vpack.c.bf16 %v5549, %v5549
      %v5582 = vpack.c.bf16 %v5550, %v5550
      %5583 = vst [vmem:[%s242] sm:$0xf] %v5551
      %5584 = vst [vmem:[%s242 + $0x4] sm:$0xf] %v5552
      %5585 = vst [vmem:[%s242 + $0x8] sm:$0xf] %v5553
      %5586 = vst [vmem:[%s242 + $0xc] sm:$0xf] %v5554
      %5587 = vst [vmem:[%s242 + $0x10] sm:$0xf] %v5555
      %5588 = vst [vmem:[%s242 + $0x14] sm:$0xf] %v5556
      %5589 = vst [vmem:[%s242 + $0x18] sm:$0xf] %v5557
      %5590 = vst [vmem:[%s242 + $0x1c] sm:$0xf] %v5558
      %5591 = vst [vmem:[%s242 + $0x20] sm:$0xf] %v5559
      %5592 = vst [vmem:[%s242 + $0x24] sm:$0xf] %v5560
      %5593 = vst [vmem:[%s242 + $0x28] sm:$0xf] %v5561
      %5594 = vst [vmem:[%s242 + $0x2c] sm:$0xf] %v5562
      %5595 = vst [vmem:[%s242 + $0x30] sm:$0xf] %v5563
      %5596 = vst [vmem:[%s242 + $0x34] sm:$0xf] %v5564
      %5597 = vst [vmem:[%s242 + $0x38] sm:$0xf] %v5565
      %5598 = vst [vmem:[%s242 + $0x3c] sm:$0xf] %v5566
      %5599 = vst [vmem:[%s242 + $0x40] sm:$0xf] %v5567
      %5600 = vst [vmem:[%s242 + $0x44] sm:$0xf] %v5568
      %5601 = vst [vmem:[%s242 + $0x48] sm:$0xf] %v5569
      %5602 = vst [vmem:[%s242 + $0x4c] sm:$0xf] %v5570
      %5603 = vst [vmem:[%s242 + $0x50] sm:$0xf] %v5571
      %5604 = vst [vmem:[%s242 + $0x54] sm:$0xf] %v5572
      %5605 = vst [vmem:[%s242 + $0x58] sm:$0xf] %v5573
      %5606 = vst [vmem:[%s242 + $0x5c] sm:$0xf] %v5574
      %5607 = vst [vmem:[%s242 + $0x60] sm:$0xf] %v5575
      %5608 = vst [vmem:[%s242 + $0x64] sm:$0xf] %v5576
      %5609 = vst [vmem:[%s242 + $0x68] sm:$0xf] %v5577
      %5610 = vst [vmem:[%s242 + $0x6c] sm:$0xf] %v5578
      %5611 = vst [vmem:[%s242 + $0x70] sm:$0xf] %v5579
      %5612 = vst [vmem:[%s242 + $0x74] sm:$0xf] %v5580
      %5613 = vst [vmem:[%s242 + $0x78] sm:$0xf] %v5581
      %5614 = vst [vmem:[%s242 + $0x7c] sm:$0xf] %v5582
      %v5615 = vadd.f32 %v5519, %v5520
      %v5616 = vadd.f32 %v5615, %v5521
      %v5617 = vadd.f32 %v5616, %v5522
      %v5618 = vadd.f32 %v5617, %v5523
      %v5619 = vadd.f32 %v5618, %v5524
      %v5620 = vadd.f32 %v5619, %v5525
      %v5621 = vadd.f32 %v5620, %v5526
      %v5622 = vadd.f32 %v5621, %v5527
      %v5623 = vadd.f32 %v5622, %v5528
      %v5624 = vadd.f32 %v5623, %v5529
      %v5625 = vadd.f32 %v5624, %v5530
      %v5626 = vadd.f32 %v5625, %v5531
      %v5627 = vadd.f32 %v5626, %v5532
      %v5628 = vadd.f32 %v5627, %v5533
      %v5629 = vadd.f32 %v5628, %v5534
      %v5630 = vadd.f32 %v5629, %v5535
      %v5631 = vadd.f32 %v5630, %v5536
      %v5632 = vadd.f32 %v5631, %v5537
      %v5633 = vadd.f32 %v5632, %v5538
      %v5634 = vadd.f32 %v5633, %v5539
      %v5635 = vadd.f32 %v5634, %v5540
      %v5636 = vadd.f32 %v5635, %v5541
      %v5637 = vadd.f32 %v5636, %v5542
      %v5638 = vadd.f32 %v5637, %v5543
      %v5639 = vadd.f32 %v5638, %v5544
      %v5640 = vadd.f32 %v5639, %v5545
      %v5641 = vadd.f32 %v5640, %v5546
      %v5642 = vadd.f32 %v5641, %v5547
      %v5643 = vadd.f32 %v5642, %v5548
      %v5644 = vadd.f32 %v5643, %v5549
      %v5645 = vadd.f32 %v5644, %v5550
      %v5646 = vrot.slane %v5645, 4
      %v5647 = vadd.f32 %v5645, %v5646
      %v5648 = vrot.slane %v5647, 2
      %v5649 = vadd.f32 %v5647, %v5648
      %v5650 = vrot.slane %v5649, 1
      %v5651 = vadd.f32 %v5649, %v5650
      %5652 = vst [vmem:[%s249] sm:$0x1] %v5651
      %v5653 = vmul.f32 %v5519, %v5519
      %v5654 = vmul.f32 %v5520, %v5520
      %v5655 = vmul.f32 %v5521, %v5521
      %v5656 = vmul.f32 %v5522, %v5522
      %v5657 = vmul.f32 %v5523, %v5523
      %v5658 = vmul.f32 %v5524, %v5524
      %v5659 = vmul.f32 %v5525, %v5525
      %v5660 = vmul.f32 %v5526, %v5526
      %v5661 = vmul.f32 %v5527, %v5527
      %v5662 = vmul.f32 %v5528, %v5528
      %v5663 = vmul.f32 %v5529, %v5529
      %v5664 = vmul.f32 %v5530, %v5530
      %v5665 = vmul.f32 %v5531, %v5531
      %v5666 = vmul.f32 %v5532, %v5532
      %v5667 = vmul.f32 %v5533, %v5533
      %v5668 = vmul.f32 %v5534, %v5534
      %v5669 = vmul.f32 %v5535, %v5535
      %v5670 = vmul.f32 %v5536, %v5536
      %v5671 = vmul.f32 %v5537, %v5537
      %v5672 = vmul.f32 %v5538, %v5538
      %v5673 = vmul.f32 %v5539, %v5539
      %v5674 = vmul.f32 %v5540, %v5540
      %v5675 = vmul.f32 %v5541, %v5541
      %v5676 = vmul.f32 %v5542, %v5542
      %v5677 = vmul.f32 %v5543, %v5543
      %v5678 = vmul.f32 %v5544, %v5544
      %v5679 = vmul.f32 %v5545, %v5545
      %v5680 = vmul.f32 %v5546, %v5546
      %v5681 = vmul.f32 %v5547, %v5547
      %v5682 = vmul.f32 %v5548, %v5548
      %v5683 = vmul.f32 %v5549, %v5549
      %v5684 = vmul.f32 %v5550, %v5550
      %v5685 = vadd.f32 %v5653, %v5654
      %v5686 = vadd.f32 %v5685, %v5655
      %v5687 = vadd.f32 %v5686, %v5656
      %v5688 = vadd.f32 %v5687, %v5657
      %v5689 = vadd.f32 %v5688, %v5658
      %v5690 = vadd.f32 %v5689, %v5659
      %v5691 = vadd.f32 %v5690, %v5660
      %v5692 = vadd.f32 %v5691, %v5661
      %v5693 = vadd.f32 %v5692, %v5662
      %v5694 = vadd.f32 %v5693, %v5663
      %v5695 = vadd.f32 %v5694, %v5664
      %v5696 = vadd.f32 %v5695, %v5665
      %v5697 = vadd.f32 %v5696, %v5666
      %v5698 = vadd.f32 %v5697, %v5667
      %v5699 = vadd.f32 %v5698, %v5668
      %v5700 = vadd.f32 %v5699, %v5669
      %v5701 = vadd.f32 %v5700, %v5670
      %v5702 = vadd.f32 %v5701, %v5671
      %v5703 = vadd.f32 %v5702, %v5672
      %v5704 = vadd.f32 %v5703, %v5673
      %v5705 = vadd.f32 %v5704, %v5674
      %v5706 = vadd.f32 %v5705, %v5675
      %v5707 = vadd.f32 %v5706, %v5676
      %v5708 = vadd.f32 %v5707, %v5677
      %v5709 = vadd.f32 %v5708, %v5678
      %v5710 = vadd.f32 %v5709, %v5679
      %v5711 = vadd.f32 %v5710, %v5680
      %v5712 = vadd.f32 %v5711, %v5681
      %v5713 = vadd.f32 %v5712, %v5682
      %v5714 = vadd.f32 %v5713, %v5683
      %v5715 = vadd.f32 %v5714, %v5684
      %v5716 = vrot.slane %v5715, 4
      %v5717 = vadd.f32 %v5715, %v5716
      %v5718 = vrot.slane %v5717, 2
      %v5719 = vadd.f32 %v5717, %v5718
      %v5720 = vrot.slane %v5719, 1
      %v5721 = vadd.f32 %v5719, %v5720
      %5722 = vst [vmem:[%s255] sm:$0x1] %v5721
      %s5723 = smul.u32 16, %s21
      %p5724 = scmp.lt.s32.totalorder %s20, 1
      %s5725 = scalar_select %p5724, %s20, 1
      %p5726 = scmp.lt.s32.totalorder %s5723, 15
      %s5727 = scalar_select %p5726, %s5723, 15
      %s5728 = smul.addr %s5727, 2
      %s5729 = smul.addr %s5725, 32
      %s5730 = sadd.s32 %s5728, %s5729
      %s5731 = smul.addr %s5730, 4
      %s5732 = scalar_lea.vmem %s2, %s5731
      %p5733 = scmp.lt.s32.totalorder %s20, 1
      %s5734 = scalar_select %p5733, %s20, 1
      %p5735 = scmp.lt.s32.totalorder %s21, 0
      %s5736 = scalar_select %p5735, %s21, 0
      %s5737 = sadd.s32 %s5736, %s5734
      %s5738 = scalar_lea.vmem %s3, %s5737
      %p5739 = scmp.lt.s32.totalorder %s20, 1
      %s5740 = scalar_select %p5739, %s20, 1
      %p5741 = scmp.lt.s32.totalorder %s21, 0
      %s5742 = scalar_select %p5741, %s21, 0
      %s5743 = sadd.s32 %s5742, %s5740
      %s5744 = scalar_lea.vmem %s4, %s5743
      // Predicated region
      $region33: #{double_convolution_forward.3} parent=27 // pred_check
        %p5745 = pneg %p95
      $region34: #{double_convolution_forward.3} parent=27 // pred_check_branch
        %5747 = sbr.rel (%p5745) target = $region36
      $region35: #{double_convolution_forward.3} parent=27 // pred_region
        %s5748 = smul.u32 16, %s21
      $region36: #{double_convolution_forward.3} parent=27 // pred_fallthru
        _
      // Predicated region
      $region37: #{double_convolution_forward.3} parent=27 // pred_check
        %p5749 = pneg %p123
      $region38: #{double_convolution_forward.3} parent=27 // pred_check_branch
        %5751 = sbr.rel (%p5749) target = $region40
      $region39: #{double_convolution_forward.3} parent=27 // pred_region
        _
      $region40: #{double_convolution_forward.3} parent=27 // pred_fallthru
        _
      // Predicated region
      $region41: #{double_convolution_forward.3} parent=27 // pred_check
        %p5752 = pneg %p151
      $region42: #{double_convolution_forward.3} parent=27 // pred_check_branch
        %5754 = sbr.rel (%p5752) target = $region44
      $region43: #{double_convolution_forward.3} parent=27 // pred_region
        _
      $region44: #{double_convolution_forward.3} parent=27 // pred_fallthru
        _
    $region28: #{double_convolution_forward.3} parent=5 // pred_fallthru
      _
    %p5755 = scmp.le.s32.totalorder 2, %s11
    // Predicated region
    $region45: #{double_convolution_forward.3} parent=5 // pred_check
      %p5756 = pneg %p5755
    $region46: #{double_convolution_forward.3} parent=5 // pred_check_branch
      %5758 = sbr.rel (%p5756) target = $region48
    $region47: #{double_convolution_forward.3} parent=5 // pred_region
      %s5759 = ssub.s32 %s11, 2
      // Predicated region
      $region49: #{double_convolution_forward.3} parent=47 // pred_check
        %p5760 = pneg %p101
      $region50: #{double_convolution_forward.3} parent=47 // pred_check_branch
        %5762 = sbr.rel (%p5760) target = $region52
      $region51: #{double_convolution_forward.3} parent=47 // pred_region
        %s5763 = smul.u32 16, %s23
        %p5764 = scmp.lt.s32.totalorder %s22, 1
        %s5765 = scalar_select %p5764, %s22, 1
        %p5766 = scmp.lt.s32.totalorder %s5763, 15
        %s5767 = scalar_select %p5766, %s5763, 15
        %s5768 = smul.addr %s5767, 2
        %s5769 = smul.addr %s5765, 32
        %s5770 = sadd.s32 %s5768, %s5769
        %s5771 = smul.addr %s5770, 4
        %s5772 = scalar_lea.vmem %s2, %s5771
      $region52: #{double_convolution_forward.3} parent=47 // pred_fallthru
        _
      // Predicated region
      $region53: #{double_convolution_forward.3} parent=47 // pred_check
        %p5773 = pneg %p129
      $region54: #{double_convolution_forward.3} parent=47 // pred_check_branch
        %5775 = sbr.rel (%p5773) target = $region56
      $region55: #{double_convolution_forward.3} parent=47 // pred_region
        %p5776 = scmp.lt.s32.totalorder %s22, 1
        %s5777 = scalar_select %p5776, %s22, 1
        %p5778 = scmp.lt.s32.totalorder %s23, 0
        %s5779 = scalar_select %p5778, %s23, 0
        %s5780 = sadd.s32 %s5779, %s5777
        %s5781 = scalar_lea.vmem %s3, %s5780
      $region56: #{double_convolution_forward.3} parent=47 // pred_fallthru
        _
      // Predicated region
      $region57: #{double_convolution_forward.3} parent=47 // pred_check
        %p5782 = pneg %p157
      $region58: #{double_convolution_forward.3} parent=47 // pred_check_branch
        %5784 = sbr.rel (%p5782) target = $region60
      $region59: #{double_convolution_forward.3} parent=47 // pred_region
        %p5785 = scmp.lt.s32.totalorder %s22, 1
        %s5786 = scalar_select %p5785, %s22, 1
        %p5787 = scmp.lt.s32.totalorder %s23, 0
        %s5788 = scalar_select %p5787, %s23, 0
        %s5789 = sadd.s32 %s5788, %s5786
        %s5790 = scalar_lea.vmem %s4, %s5789
      $region60: #{double_convolution_forward.3} parent=47 // pred_fallthru
        _
    $region48: #{double_convolution_forward.3} parent=5 // pred_fallthru
      _
  $region6: #{double_convolution_forward.3} parent=0 // loop_footer
    %s15 = sadd.s32 1, %s11
  $region7: #{double_convolution_forward.3} parent=0 // loop_footer_branch
    %10 = sbr.rel target = $region3
  $region8: #{double_convolution_forward.3} parent=0 // loop_exit
    _

</llo_original>
